<compile_context>
chip_gen: v7x
topology: tpu7x:2x2x1
jax: 0.10.0
libtpu: 0.0.40
codegen_flags: <defaults>
</compile_context>

<pallas_src>
import numpy as np
import jax
import jax.numpy as jnp
from jax.experimental import pallas as pl
from jax.experimental.pallas import tpu as pltpu

EMBED_SIZE = 300   # embedding_size (hard-coded 300 in the PyTorch forward)
TENSOR_DIM = 8     # tensor_dim
VOCAB = 50
N_CHUNKS = 2                               # T1/T2 split into 2 wide-N slabs
SLICES_PER_CHUNK = TENSOR_DIM // N_CHUNKS  # 4 tensor slices per slab (N=1200)


# ---------------------------------------------------------------------------
# Fused kernel: both 300-d tensor_Linear stages + tanh + the tiny 8-d T3
# stage, all in one body, single grid step.  No scratch, no pl.when.
# ---------------------------------------------------------------------------
def _ntn_fused_kernel(subj_ref, verb_ref, obj_ref,
                      t1_ref, t2_ref,
                      w1a_ref, wvb_ref, w2b_ref, b1_ref, b2_ref,
                      t3_ref, w3a_ref, w3b_ref, b3_ref,
                      out_ref):
    d = EMBED_SIZE
    k = TENSOR_DIM

    subj = subj_ref[...]                       # (B, d) f32
    verb = verb_ref[...]
    obj = obj_ref[...]
    subj_bf = subj.astype(jnp.bfloat16)        # bf16 MXU lhs, cast exactly once
    verb_bf = verb.astype(jnp.bfloat16)

    def bilinear(lhs_bf, rhs_f32, t_ref):
        # t_ref: (N_CHUNKS, d, SLICES_PER_CHUNK*d) bf16, PyTorch [a,(i,j)] order.
        cols = []
        for h in range(N_CHUNKS):                                     # static
            tp = jnp.dot(lhs_bf, t_ref[h],
                         preferred_element_type=jnp.float32)          # (B, 4d)
            for l in range(SLICES_PER_CHUNK):                         # static
                seg = tp[:, l * d:(l + 1) * d]                        # (B, d)
                cols.append(jnp.sum(seg * rhs_f32, axis=-1, keepdims=True))
        return jnp.concatenate(cols, axis=-1)                         # (B, k)

    bil1 = bilinear(subj_bf, verb, t1_ref)     # tensor_Linear(subj, verb, T1)
    bil2 = bilinear(verb_bf, obj, t2_ref)      # tensor_Linear(verb, obj, T2)

    # Linear terms: verb feeds both W1's second half and W2's first half ->
    # one (300, 16) matmul, then split.
    vb = jnp.dot(verb, wvb_ref[...], preferred_element_type=jnp.float32)  # (B, 2k)
    lin1 = (jnp.dot(subj, w1a_ref[...], preferred_element_type=jnp.float32)
            + vb[:, :k] + b1_ref[...])
    lin2 = (vb[:, k:] +
            jnp.dot(obj, w2b_ref[...], preferred_element_type=jnp.float32)
            + b2_ref[...])

    r1 = jnp.tanh(bil1 + lin1)                 # dropout: inference identity
    r2 = jnp.tanh(bil2 + lin2)

    # Stage 3 (tiny): one (B,8)@(8,64) matmul + per-8-lane segment reduce.
    tp3 = jnp.dot(r1, t3_ref[...], preferred_element_type=jnp.float32)    # (B, k*k)
    cols3 = [jnp.sum(tp3[:, i * k:(i + 1) * k] * r2, axis=-1, keepdims=True)
             for i in range(k)]
    bil3 = jnp.concatenate(cols3, axis=-1)                                # (B, k)
    lin3 = (jnp.dot(r1, w3a_ref[...], preferred_element_type=jnp.float32)
            + jnp.dot(r2, w3b_ref[...], preferred_element_type=jnp.float32)
            + b3_ref[...])
    out_ref[...] = jnp.tanh(bil3 + lin3).astype(out_ref.dtype)


def fused_ntn(subj, verb, obj, prep):
    B, d = subj.shape
    k = TENSOR_DIM

    def const2(shape):
        return pl.BlockSpec(shape, lambda s: (0, 0))

    def const3(shape):
        return pl.BlockSpec(shape, lambda s: (0, 0, 0))

    t_shape = (N_CHUNKS, d, SLICES_PER_CHUNK * d)

    return pl.pallas_call(
        _ntn_fused_kernel,
        grid=(1,),
        in_specs=[
            const2((B, d)), const2((B, d)), const2((B, d)),
            const3(t_shape), const3(t_shape),
            const2((d, k)), const2((d, 2 * k)), const2((d, k)),
            const2((1, k)), const2((1, k)),
            const2((k, k * k)),
            const2((k, k)), const2((k, k)),
            const2((1, k)),
        ],
        out_specs=const2((B, k)),
        out_shape=jax.ShapeDtypeStruct((B, k), jnp.float32),
        compiler_params=pltpu.CompilerParams(
            dimension_semantics=("arbitrary",),
            vmem_limit_bytes=32 * 1024 * 1024),
    )(subj, verb, obj,
      prep["T1"], prep["T2"],
      prep["W1a"], prep["Wvb"], prep["W2b"], prep["b1"], prep["b2"],
      prep["T3"], prep["W3a"], prep["W3b"], prep["b3"])


# ---------------------------------------------------------------------------
# One-time parameter prep: DMA-ready layouts, bf16 bilinear tensors.
# ---------------------------------------------------------------------------
def prepare_params(raw):
    d, k = EMBED_SIZE, TENSOR_DIM
    c, s = N_CHUNKS, SLICES_PER_CHUNK

    def big_t(flat):
        # PyTorch tensor_Linear views T as (d, k*d) with columns grouped
        # i-major ([a,(i,j)]).  Split once into N_CHUNKS contiguous
        # (d, s*d) slabs so each slab is a lane-aligned wide-N MXU rhs and a
        # single contiguous DMA.
        return (flat.reshape(d, c, s, d)
                    .transpose(1, 0, 2, 3)
                    .reshape(c, d, s * d)
                    .astype(jnp.bfloat16))

    return {
        "embedding": raw["embedding"].astype(jnp.float32),
        "T1": big_t(raw["T1"]),
        "T2": big_t(raw["T2"]),
        "T3": raw["T3"].reshape(k, k * k).astype(jnp.float32),
        "W1a": raw["W1_w"][:, :d].T.astype(jnp.float32),
        # verb's two linear halves fused into one (300, 16) rhs:
        "Wvb": jnp.concatenate([raw["W1_w"][:, d:].T,
                                raw["W2_w"][:, :d].T], axis=1).astype(jnp.float32),
        "W2b": raw["W2_w"][:, d:].T.astype(jnp.float32),
        "W3a": raw["W3_w"][:, :k].T.astype(jnp.float32),
        "W3b": raw["W3_w"][:, k:].T.astype(jnp.float32),
        "b1": raw["W1_b"].reshape(1, k).astype(jnp.float32),
        "b2": raw["W2_b"].reshape(1, k).astype(jnp.float32),
        "b3": raw["W3_b"].reshape(1, k).astype(jnp.float32),
    }


# ---------------------------------------------------------------------------
# Full forward: gather + pair-mean in XLA (fuses with gather), one Pallas call.
# ---------------------------------------------------------------------------
@jax.jit
def ntn_forward(prep, svo_ids):
    emb = jnp.take(prep["embedding"], svo_ids, axis=0)        # (N, 6, 300)
    emb = emb.reshape(-1, 3, 2, EMBED_SIZE)                   # (B, 3, 2, 300)
    pooled = jnp.mean(emb, axis=2)                            # avg_pool2d over pair axis
    subj = pooled[:, 0, :]
    verb = pooled[:, 1, :]
    obj = pooled[:, 2, :]
    u = fused_ntn(subj, verb, obj, prep)                      # (B, tensor_dim)
    return u.reshape(-1, 70, TENSOR_DIM)


# ---------------------------------------------------------------------------
# NumPy float64 reference (exact PyTorch math / layout on the RAW params).
# T1/T2 and the bilinear lhs are rounded to bf16 to match the kernel's stored
# weight format and MXU operand precision; everything else is full precision.
# ---------------------------------------------------------------------------
def _bf16_round(x):
    return np.asarray(jnp.asarray(x, jnp.float32).astype(jnp.bfloat16)
                      .astype(jnp.float32), np.float64)


def np_forward_reference(raw, svo_ids):
    E, K = EMBED_SIZE, TENSOR_DIM
    f64 = lambda x: np.asarray(x, np.float64)

    emb = f64(raw["embedding"])[np.asarray(svo_ids)]
    emb = emb.reshape(-1, 3, 2, E)
    pooled = emb.mean(axis=2)
    subj, verb, obj = pooled[:, 0, :], pooled[:, 1, :], pooled[:, 2, :]

    def tensor_linear(o1, o2, t_flat, w, b, bf16_bilinear):
        Bl, d = o1.shape
        lin = np.concatenate([o1, o2], axis=1) @ f64(w).T + f64(b)
        lhs = _bf16_round(o1) if bf16_bilinear else o1
        t = _bf16_round(t_flat) if bf16_bilinear else f64(t_flat)
        tp = lhs @ t.reshape(d, -1)              # PyTorch: o1.mm(T.view(d, -1))
        tp = tp.reshape(Bl, -1, d)               # .view(B, -1, d)
        bil = np.einsum("bkd,bd->bk", tp, o2)    # .bmm(o2 ...).squeeze()
        return np.tanh(bil + lin)

    r1 = tensor_linear(subj, verb, raw["T1"], raw["W1_w"], raw["W1_b"], True)
    r2 = tensor_linear(verb, obj, raw["T2"], raw["W2_w"], raw["W2_b"], True)
    u = tensor_linear(r1, r2, raw["T3"], raw["W3_w"], raw["W3_b"], False)
    return u.reshape(-1, 70, K)


if __name__ == "__main__":
    key = jax.random.PRNGKey(0)
    ks = jax.random.split(key, 12)
    E, K = EMBED_SIZE, TENSOR_DIM

    raw = {
        "embedding": jax.random.normal(ks[0], (VOCAB, E), jnp.float32),
        "T1": 0.02 * jax.random.normal(ks[1], (E * E * K,), jnp.float32),
        "T2": 0.02 * jax.random.normal(ks[2], (E * E * K,), jnp.float32),
        "T3": 0.02 * jax.random.normal(ks[3], (K * K * K,), jnp.float32),
        "W1_w": 0.05 * jax.random.normal(ks[4], (K, 2 * E), jnp.float32),
        "W1_b": 0.05 * jax.random.normal(ks[5], (K,), jnp.float32),
        "W2_w": 0.05 * jax.random.normal(ks[6], (K, 2 * E), jnp.float32),
        "W2_b": 0.05 * jax.random.normal(ks[7], (K,), jnp.float32),
        "W3_w": 0.05 * jax.random.normal(ks[8], (K, 2 * K), jnp.float32),
        "W3_b": 0.05 * jax.random.normal(ks[9], (K,), jnp.float32),
    }

    # 70 SVO triples x (3 roles x 2 tokens); forward's final view is (-1, 70, K).
    svo_ids = jax.random.randint(ks[10], (70, 6), 0, VOCAB, dtype=jnp.int32)

    prep = prepare_params(raw)          # one-time prep, hoisted out of the forward
    out = ntn_forward(prep, svo_ids)
    out = jax.block_until_ready(out)
    assert out.shape == (1, 70, TENSOR_DIM), out.shape

    ref = np_forward_reference(raw, svo_ids)
    max_err = float(np.max(np.abs(np.asarray(out, np.float64) - ref)))
    assert max_err < 1e-2, f"max abs error too large: {max_err}"

    print("KERNEL_OK")
</pallas_src>

<mosaic_0001>
module attributes {stable_mosaic.version = 11 : i64} {
  func.func @_ntn_fused_kernel(%arg0: i32, %arg1: memref<70x300xf32, #tpu.memory_space<vmem>>, %arg2: memref<70x300xf32, #tpu.memory_space<vmem>>, %arg3: memref<70x300xf32, #tpu.memory_space<vmem>>, %arg4: memref<2x300x1200xbf16, #tpu.memory_space<vmem>>, %arg5: memref<2x300x1200xbf16, #tpu.memory_space<vmem>>, %arg6: memref<300x8xf32, #tpu.memory_space<vmem>>, %arg7: memref<300x16xf32, #tpu.memory_space<vmem>>, %arg8: memref<300x8xf32, #tpu.memory_space<vmem>>, %arg9: memref<1x8xf32, #tpu.memory_space<vmem>>, %arg10: memref<1x8xf32, #tpu.memory_space<vmem>>, %arg11: memref<8x64xf32, #tpu.memory_space<vmem>>, %arg12: memref<8x8xf32, #tpu.memory_space<vmem>>, %arg13: memref<8x8xf32, #tpu.memory_space<vmem>>, %arg14: memref<1x8xf32, #tpu.memory_space<vmem>>, %arg15: memref<70x8xf32, #tpu.memory_space<vmem>>) attributes {dimension_semantics = [#tpu.dimension_semantics<arbitrary>], iteration_bounds = array<i64: 1>, scalar_prefetch = 0 : i64, scratch_operands = 0 : i64, tpu.core_type = #tpu.core_type<tc>, window_params = [{pipeline_mode = #tpu.pipeline_mode<synchronous>, transform_indices = @transform_0, window_bounds = array<i64: 70, 300>}, {pipeline_mode = #tpu.pipeline_mode<synchronous>, transform_indices = @transform_1, window_bounds = array<i64: 70, 300>}, {pipeline_mode = #tpu.pipeline_mode<synchronous>, transform_indices = @transform_2, window_bounds = array<i64: 70, 300>}, {pipeline_mode = #tpu.pipeline_mode<synchronous>, transform_indices = @transform_3, window_bounds = array<i64: 2, 300, 1200>}, {pipeline_mode = #tpu.pipeline_mode<synchronous>, transform_indices = @transform_4, window_bounds = array<i64: 2, 300, 1200>}, {pipeline_mode = #tpu.pipeline_mode<synchronous>, transform_indices = @transform_5, window_bounds = array<i64: 300, 8>}, {pipeline_mode = #tpu.pipeline_mode<synchronous>, transform_indices = @transform_6, window_bounds = array<i64: 300, 16>}, {pipeline_mode = #tpu.pipeline_mode<synchronous>, transform_indices = @transform_7, window_bounds = array<i64: 300, 8>}, {pipeline_mode = #tpu.pipeline_mode<synchronous>, transform_indices = @transform_8, window_bounds = array<i64: 1, 8>}, {pipeline_mode = #tpu.pipeline_mode<synchronous>, transform_indices = @transform_9, window_bounds = array<i64: 1, 8>}, {pipeline_mode = #tpu.pipeline_mode<synchronous>, transform_indices = @transform_10, window_bounds = array<i64: 8, 64>}, {pipeline_mode = #tpu.pipeline_mode<synchronous>, transform_indices = @transform_11, window_bounds = array<i64: 8, 8>}, {pipeline_mode = #tpu.pipeline_mode<synchronous>, transform_indices = @transform_12, window_bounds = array<i64: 8, 8>}, {pipeline_mode = #tpu.pipeline_mode<synchronous>, transform_indices = @transform_13, window_bounds = array<i64: 1, 8>}, {pipeline_mode = #tpu.pipeline_mode<synchronous>, transform_indices = @transform_14, window_bounds = array<i64: 70, 8>}]} {
    %c0 = arith.constant 0 : index
    %c0_0 = arith.constant 0 : index
    %0 = vector.load %arg1[%c0, %c0_0] : memref<70x300xf32, #tpu.memory_space<vmem>>, vector<70x300xf32>
    %c0_1 = arith.constant 0 : index
    %c0_2 = arith.constant 0 : index
    %1 = vector.load %arg2[%c0_1, %c0_2] : memref<70x300xf32, #tpu.memory_space<vmem>>, vector<70x300xf32>
    %c0_3 = arith.constant 0 : index
    %c0_4 = arith.constant 0 : index
    %2 = vector.load %arg3[%c0_3, %c0_4] : memref<70x300xf32, #tpu.memory_space<vmem>>, vector<70x300xf32>
    %3 = arith.truncf %0 : vector<70x300xf32> to vector<70x300xbf16>
    %4 = arith.truncf %1 : vector<70x300xf32> to vector<70x300xbf16>
    %c0_5 = arith.constant 0 : index
    %c0_6 = arith.constant 0 : index
    %c0_7 = arith.constant 0 : index
    %5 = vector.load %arg4[%c0_5, %c0_6, %c0_7] : memref<2x300x1200xbf16, #tpu.memory_space<vmem>>, vector<1x300x1200xbf16>
    %6 = vector.shape_cast %5 : vector<1x300x1200xbf16> to vector<300x1200xbf16>
    %cst = arith.constant dense<0.000000e+00> : vector<70x1200xf32>
    %7 = tpu.matmul %3, %6, %cst {dimension_numbers = #tpu.dot_dimension_numbers<[1], [0], [0], [1], [0, 0, 1, 1], [], []>} : vector<70x300xbf16>, vector<300x1200xbf16>, vector<70x1200xf32> -> vector<70x1200xf32>
    %8 = vector.extract_strided_slice %7 {offsets = [0, 0], sizes = [70, 300], strides = [1, 1]} : vector<70x1200xf32> to vector<70x300xf32>
    %9 = arith.mulf %8, %1 : vector<70x300xf32>
    %cst_8 = arith.constant dense<0.000000e+00> : vector<70xf32>
    %10 = vector.multi_reduction <add>, %9, %cst_8 [1] : vector<70x300xf32> to vector<70xf32>
    %11 = vector.shape_cast %10 : vector<70xf32> to vector<70x1xf32>
    %12 = vector.extract_strided_slice %7 {offsets = [0, 300], sizes = [70, 300], strides = [1, 1]} : vector<70x1200xf32> to vector<70x300xf32>
    %13 = arith.mulf %12, %1 : vector<70x300xf32>
    %cst_9 = arith.constant dense<0.000000e+00> : vector<70xf32>
    %14 = vector.multi_reduction <add>, %13, %cst_9 [1] : vector<70x300xf32> to vector<70xf32>
    %15 = vector.shape_cast %14 : vector<70xf32> to vector<70x1xf32>
    %16 = vector.extract_strided_slice %7 {offsets = [0, 600], sizes = [70, 300], strides = [1, 1]} : vector<70x1200xf32> to vector<70x300xf32>
    %17 = arith.mulf %16, %1 : vector<70x300xf32>
    %cst_10 = arith.constant dense<0.000000e+00> : vector<70xf32>
    %18 = vector.multi_reduction <add>, %17, %cst_10 [1] : vector<70x300xf32> to vector<70xf32>
    %19 = vector.shape_cast %18 : vector<70xf32> to vector<70x1xf32>
    %20 = vector.extract_strided_slice %7 {offsets = [0, 900], sizes = [70, 300], strides = [1, 1]} : vector<70x1200xf32> to vector<70x300xf32>
    %21 = arith.mulf %20, %1 : vector<70x300xf32>
    %cst_11 = arith.constant dense<0.000000e+00> : vector<70xf32>
    %22 = vector.multi_reduction <add>, %21, %cst_11 [1] : vector<70x300xf32> to vector<70xf32>
    %23 = vector.shape_cast %22 : vector<70xf32> to vector<70x1xf32>
    %c1 = arith.constant 1 : index
    %c0_12 = arith.constant 0 : index
    %c0_13 = arith.constant 0 : index
    %24 = vector.load %arg4[%c1, %c0_12, %c0_13] : memref<2x300x1200xbf16, #tpu.memory_space<vmem>>, vector<1x300x1200xbf16>
    %25 = vector.shape_cast %24 : vector<1x300x1200xbf16> to vector<300x1200xbf16>
    %cst_14 = arith.constant dense<0.000000e+00> : vector<70x1200xf32>
    %26 = tpu.matmul %3, %25, %cst_14 {dimension_numbers = #tpu.dot_dimension_numbers<[1], [0], [0], [1], [0, 0, 1, 1], [], []>} : vector<70x300xbf16>, vector<300x1200xbf16>, vector<70x1200xf32> -> vector<70x1200xf32>
    %27 = vector.extract_strided_slice %26 {offsets = [0, 0], sizes = [70, 300], strides = [1, 1]} : vector<70x1200xf32> to vector<70x300xf32>
    %28 = arith.mulf %27, %1 : vector<70x300xf32>
    %cst_15 = arith.constant dense<0.000000e+00> : vector<70xf32>
    %29 = vector.multi_reduction <add>, %28, %cst_15 [1] : vector<70x300xf32> to vector<70xf32>
    %30 = vector.shape_cast %29 : vector<70xf32> to vector<70x1xf32>
    %31 = vector.extract_strided_slice %26 {offsets = [0, 300], sizes = [70, 300], strides = [1, 1]} : vector<70x1200xf32> to vector<70x300xf32>
    %32 = arith.mulf %31, %1 : vector<70x300xf32>
    %cst_16 = arith.constant dense<0.000000e+00> : vector<70xf32>
    %33 = vector.multi_reduction <add>, %32, %cst_16 [1] : vector<70x300xf32> to vector<70xf32>
    %34 = vector.shape_cast %33 : vector<70xf32> to vector<70x1xf32>
    %35 = vector.extract_strided_slice %26 {offsets = [0, 600], sizes = [70, 300], strides = [1, 1]} : vector<70x1200xf32> to vector<70x300xf32>
    %36 = arith.mulf %35, %1 : vector<70x300xf32>
    %cst_17 = arith.constant dense<0.000000e+00> : vector<70xf32>
    %37 = vector.multi_reduction <add>, %36, %cst_17 [1] : vector<70x300xf32> to vector<70xf32>
    %38 = vector.shape_cast %37 : vector<70xf32> to vector<70x1xf32>
    %39 = vector.extract_strided_slice %26 {offsets = [0, 900], sizes = [70, 300], strides = [1, 1]} : vector<70x1200xf32> to vector<70x300xf32>
    %40 = arith.mulf %39, %1 : vector<70x300xf32>
    %cst_18 = arith.constant dense<0.000000e+00> : vector<70xf32>
    %41 = vector.multi_reduction <add>, %40, %cst_18 [1] : vector<70x300xf32> to vector<70xf32>
    %42 = vector.shape_cast %41 : vector<70xf32> to vector<70x1xf32>
    %43 = tpu.concatenate %11, %15, %19, %23, %30, %34, %38, %42 in 1 : vector<70x1xf32>, vector<70x1xf32>, vector<70x1xf32>, vector<70x1xf32>, vector<70x1xf32>, vector<70x1xf32>, vector<70x1xf32>, vector<70x1xf32> -> vector<70x8xf32>
    %c0_19 = arith.constant 0 : index
    %c0_20 = arith.constant 0 : index
    %c0_21 = arith.constant 0 : index
    %44 = vector.load %arg5[%c0_19, %c0_20, %c0_21] : memref<2x300x1200xbf16, #tpu.memory_space<vmem>>, vector<1x300x1200xbf16>
    %45 = vector.shape_cast %44 : vector<1x300x1200xbf16> to vector<300x1200xbf16>
    %cst_22 = arith.constant dense<0.000000e+00> : vector<70x1200xf32>
    %46 = tpu.matmul %4, %45, %cst_22 {dimension_numbers = #tpu.dot_dimension_numbers<[1], [0], [0], [1], [0, 0, 1, 1], [], []>} : vector<70x300xbf16>, vector<300x1200xbf16>, vector<70x1200xf32> -> vector<70x1200xf32>
    %47 = vector.extract_strided_slice %46 {offsets = [0, 0], sizes = [70, 300], strides = [1, 1]} : vector<70x1200xf32> to vector<70x300xf32>
    %48 = arith.mulf %47, %2 : vector<70x300xf32>
    %cst_23 = arith.constant dense<0.000000e+00> : vector<70xf32>
    %49 = vector.multi_reduction <add>, %48, %cst_23 [1] : vector<70x300xf32> to vector<70xf32>
    %50 = vector.shape_cast %49 : vector<70xf32> to vector<70x1xf32>
    %51 = vector.extract_strided_slice %46 {offsets = [0, 300], sizes = [70, 300], strides = [1, 1]} : vector<70x1200xf32> to vector<70x300xf32>
    %52 = arith.mulf %51, %2 : vector<70x300xf32>
    %cst_24 = arith.constant dense<0.000000e+00> : vector<70xf32>
    %53 = vector.multi_reduction <add>, %52, %cst_24 [1] : vector<70x300xf32> to vector<70xf32>
    %54 = vector.shape_cast %53 : vector<70xf32> to vector<70x1xf32>
    %55 = vector.extract_strided_slice %46 {offsets = [0, 600], sizes = [70, 300], strides = [1, 1]} : vector<70x1200xf32> to vector<70x300xf32>
    %56 = arith.mulf %55, %2 : vector<70x300xf32>
    %cst_25 = arith.constant dense<0.000000e+00> : vector<70xf32>
    %57 = vector.multi_reduction <add>, %56, %cst_25 [1] : vector<70x300xf32> to vector<70xf32>
    %58 = vector.shape_cast %57 : vector<70xf32> to vector<70x1xf32>
    %59 = vector.extract_strided_slice %46 {offsets = [0, 900], sizes = [70, 300], strides = [1, 1]} : vector<70x1200xf32> to vector<70x300xf32>
    %60 = arith.mulf %59, %2 : vector<70x300xf32>
    %cst_26 = arith.constant dense<0.000000e+00> : vector<70xf32>
    %61 = vector.multi_reduction <add>, %60, %cst_26 [1] : vector<70x300xf32> to vector<70xf32>
    %62 = vector.shape_cast %61 : vector<70xf32> to vector<70x1xf32>
    %c1_27 = arith.constant 1 : index
    %c0_28 = arith.constant 0 : index
    %c0_29 = arith.constant 0 : index
    %63 = vector.load %arg5[%c1_27, %c0_28, %c0_29] : memref<2x300x1200xbf16, #tpu.memory_space<vmem>>, vector<1x300x1200xbf16>
    %64 = vector.shape_cast %63 : vector<1x300x1200xbf16> to vector<300x1200xbf16>
    %cst_30 = arith.constant dense<0.000000e+00> : vector<70x1200xf32>
    %65 = tpu.matmul %4, %64, %cst_30 {dimension_numbers = #tpu.dot_dimension_numbers<[1], [0], [0], [1], [0, 0, 1, 1], [], []>} : vector<70x300xbf16>, vector<300x1200xbf16>, vector<70x1200xf32> -> vector<70x1200xf32>
    %66 = vector.extract_strided_slice %65 {offsets = [0, 0], sizes = [70, 300], strides = [1, 1]} : vector<70x1200xf32> to vector<70x300xf32>
    %67 = arith.mulf %66, %2 : vector<70x300xf32>
    %cst_31 = arith.constant dense<0.000000e+00> : vector<70xf32>
    %68 = vector.multi_reduction <add>, %67, %cst_31 [1] : vector<70x300xf32> to vector<70xf32>
    %69 = vector.shape_cast %68 : vector<70xf32> to vector<70x1xf32>
    %70 = vector.extract_strided_slice %65 {offsets = [0, 300], sizes = [70, 300], strides = [1, 1]} : vector<70x1200xf32> to vector<70x300xf32>
    %71 = arith.mulf %70, %2 : vector<70x300xf32>
    %cst_32 = arith.constant dense<0.000000e+00> : vector<70xf32>
    %72 = vector.multi_reduction <add>, %71, %cst_32 [1] : vector<70x300xf32> to vector<70xf32>
    %73 = vector.shape_cast %72 : vector<70xf32> to vector<70x1xf32>
    %74 = vector.extract_strided_slice %65 {offsets = [0, 600], sizes = [70, 300], strides = [1, 1]} : vector<70x1200xf32> to vector<70x300xf32>
    %75 = arith.mulf %74, %2 : vector<70x300xf32>
    %cst_33 = arith.constant dense<0.000000e+00> : vector<70xf32>
    %76 = vector.multi_reduction <add>, %75, %cst_33 [1] : vector<70x300xf32> to vector<70xf32>
    %77 = vector.shape_cast %76 : vector<70xf32> to vector<70x1xf32>
    %78 = vector.extract_strided_slice %65 {offsets = [0, 900], sizes = [70, 300], strides = [1, 1]} : vector<70x1200xf32> to vector<70x300xf32>
    %79 = arith.mulf %78, %2 : vector<70x300xf32>
    %cst_34 = arith.constant dense<0.000000e+00> : vector<70xf32>
    %80 = vector.multi_reduction <add>, %79, %cst_34 [1] : vector<70x300xf32> to vector<70xf32>
    %81 = vector.shape_cast %80 : vector<70xf32> to vector<70x1xf32>
    %82 = tpu.concatenate %50, %54, %58, %62, %69, %73, %77, %81 in 1 : vector<70x1xf32>, vector<70x1xf32>, vector<70x1xf32>, vector<70x1xf32>, vector<70x1xf32>, vector<70x1xf32>, vector<70x1xf32>, vector<70x1xf32> -> vector<70x8xf32>
    %c0_35 = arith.constant 0 : index
    %c0_36 = arith.constant 0 : index
    %83 = vector.load %arg7[%c0_35, %c0_36] : memref<300x16xf32, #tpu.memory_space<vmem>>, vector<300x16xf32>
    %cst_37 = arith.constant dense<0.000000e+00> : vector<70x16xf32>
    %84 = tpu.matmul %1, %83, %cst_37 {dimension_numbers = #tpu.dot_dimension_numbers<[1], [0], [0], [1], [0, 0, 1, 1], [], []>} : vector<70x300xf32>, vector<300x16xf32>, vector<70x16xf32> -> vector<70x16xf32>
    %c0_38 = arith.constant 0 : index
    %c0_39 = arith.constant 0 : index
    %85 = vector.load %arg6[%c0_38, %c0_39] : memref<300x8xf32, #tpu.memory_space<vmem>>, vector<300x8xf32>
    %cst_40 = arith.constant dense<0.000000e+00> : vector<70x8xf32>
    %86 = tpu.matmul %0, %85, %cst_40 {dimension_numbers = #tpu.dot_dimension_numbers<[1], [0], [0], [1], [0, 0, 1, 1], [], []>} : vector<70x300xf32>, vector<300x8xf32>, vector<70x8xf32> -> vector<70x8xf32>
    %87 = vector.extract_strided_slice %84 {offsets = [0, 0], sizes = [70, 8], strides = [1, 1]} : vector<70x16xf32> to vector<70x8xf32>
    %88 = arith.addf %86, %87 : vector<70x8xf32>
    %c0_41 = arith.constant 0 : index
    %c0_42 = arith.constant 0 : index
    %89 = vector.load %arg9[%c0_41, %c0_42] : memref<1x8xf32, #tpu.memory_space<vmem>>, vector<1x8xf32>
    %90 = vector.broadcast %89 : vector<1x8xf32> to vector<70x8xf32>
    %91 = arith.addf %88, %90 : vector<70x8xf32>
    %92 = vector.extract_strided_slice %84 {offsets = [0, 8], sizes = [70, 8], strides = [1, 1]} : vector<70x16xf32> to vector<70x8xf32>
    %c0_43 = arith.constant 0 : index
    %c0_44 = arith.constant 0 : index
    %93 = vector.load %arg8[%c0_43, %c0_44] : memref<300x8xf32, #tpu.memory_space<vmem>>, vector<300x8xf32>
    %cst_45 = arith.constant dense<0.000000e+00> : vector<70x8xf32>
    %94 = tpu.matmul %2, %93, %cst_45 {dimension_numbers = #tpu.dot_dimension_numbers<[1], [0], [0], [1], [0, 0, 1, 1], [], []>} : vector<70x300xf32>, vector<300x8xf32>, vector<70x8xf32> -> vector<70x8xf32>
    %95 = arith.addf %92, %94 : vector<70x8xf32>
    %c0_46 = arith.constant 0 : index
    %c0_47 = arith.constant 0 : index
    %96 = vector.load %arg10[%c0_46, %c0_47] : memref<1x8xf32, #tpu.memory_space<vmem>>, vector<1x8xf32>
    %97 = vector.broadcast %96 : vector<1x8xf32> to vector<70x8xf32>
    %98 = arith.addf %95, %97 : vector<70x8xf32>
    %99 = arith.addf %43, %91 : vector<70x8xf32>
    %100 = math.tanh %99 : vector<70x8xf32>
    %101 = arith.addf %82, %98 : vector<70x8xf32>
    %102 = math.tanh %101 : vector<70x8xf32>
    %c0_48 = arith.constant 0 : index
    %c0_49 = arith.constant 0 : index
    %103 = vector.load %arg11[%c0_48, %c0_49] : memref<8x64xf32, #tpu.memory_space<vmem>>, vector<8x64xf32>
    %cst_50 = arith.constant dense<0.000000e+00> : vector<70x64xf32>
    %104 = tpu.matmul %100, %103, %cst_50 {dimension_numbers = #tpu.dot_dimension_numbers<[1], [0], [0], [1], [0, 0, 1, 1], [], []>} : vector<70x8xf32>, vector<8x64xf32>, vector<70x64xf32> -> vector<70x64xf32>
    %105 = vector.extract_strided_slice %104 {offsets = [0, 0], sizes = [70, 8], strides = [1, 1]} : vector<70x64xf32> to vector<70x8xf32>
    %106 = arith.mulf %105, %102 : vector<70x8xf32>
    %cst_51 = arith.constant dense<0.000000e+00> : vector<70xf32>
    %107 = vector.multi_reduction <add>, %106, %cst_51 [1] : vector<70x8xf32> to vector<70xf32>
    %108 = vector.shape_cast %107 : vector<70xf32> to vector<70x1xf32>
    %109 = vector.extract_strided_slice %104 {offsets = [0, 8], sizes = [70, 8], strides = [1, 1]} : vector<70x64xf32> to vector<70x8xf32>
    %110 = arith.mulf %109, %102 : vector<70x8xf32>
    %cst_52 = arith.constant dense<0.000000e+00> : vector<70xf32>
    %111 = vector.multi_reduction <add>, %110, %cst_52 [1] : vector<70x8xf32> to vector<70xf32>
    %112 = vector.shape_cast %111 : vector<70xf32> to vector<70x1xf32>
    %113 = vector.extract_strided_slice %104 {offsets = [0, 16], sizes = [70, 8], strides = [1, 1]} : vector<70x64xf32> to vector<70x8xf32>
    %114 = arith.mulf %113, %102 : vector<70x8xf32>
    %cst_53 = arith.constant dense<0.000000e+00> : vector<70xf32>
    %115 = vector.multi_reduction <add>, %114, %cst_53 [1] : vector<70x8xf32> to vector<70xf32>
    %116 = vector.shape_cast %115 : vector<70xf32> to vector<70x1xf32>
    %117 = vector.extract_strided_slice %104 {offsets = [0, 24], sizes = [70, 8], strides = [1, 1]} : vector<70x64xf32> to vector<70x8xf32>
    %118 = arith.mulf %117, %102 : vector<70x8xf32>
    %cst_54 = arith.constant dense<0.000000e+00> : vector<70xf32>
    %119 = vector.multi_reduction <add>, %118, %cst_54 [1] : vector<70x8xf32> to vector<70xf32>
    %120 = vector.shape_cast %119 : vector<70xf32> to vector<70x1xf32>
    %121 = vector.extract_strided_slice %104 {offsets = [0, 32], sizes = [70, 8], strides = [1, 1]} : vector<70x64xf32> to vector<70x8xf32>
    %122 = arith.mulf %121, %102 : vector<70x8xf32>
    %cst_55 = arith.constant dense<0.000000e+00> : vector<70xf32>
    %123 = vector.multi_reduction <add>, %122, %cst_55 [1] : vector<70x8xf32> to vector<70xf32>
    %124 = vector.shape_cast %123 : vector<70xf32> to vector<70x1xf32>
    %125 = vector.extract_strided_slice %104 {offsets = [0, 40], sizes = [70, 8], strides = [1, 1]} : vector<70x64xf32> to vector<70x8xf32>
    %126 = arith.mulf %125, %102 : vector<70x8xf32>
    %cst_56 = arith.constant dense<0.000000e+00> : vector<70xf32>
    %127 = vector.multi_reduction <add>, %126, %cst_56 [1] : vector<70x8xf32> to vector<70xf32>
    %128 = vector.shape_cast %127 : vector<70xf32> to vector<70x1xf32>
    %129 = vector.extract_strided_slice %104 {offsets = [0, 48], sizes = [70, 8], strides = [1, 1]} : vector<70x64xf32> to vector<70x8xf32>
    %130 = arith.mulf %129, %102 : vector<70x8xf32>
    %cst_57 = arith.constant dense<0.000000e+00> : vector<70xf32>
    %131 = vector.multi_reduction <add>, %130, %cst_57 [1] : vector<70x8xf32> to vector<70xf32>
    %132 = vector.shape_cast %131 : vector<70xf32> to vector<70x1xf32>
    %133 = vector.extract_strided_slice %104 {offsets = [0, 56], sizes = [70, 8], strides = [1, 1]} : vector<70x64xf32> to vector<70x8xf32>
    %134 = arith.mulf %133, %102 : vector<70x8xf32>
    %cst_58 = arith.constant dense<0.000000e+00> : vector<70xf32>
    %135 = vector.multi_reduction <add>, %134, %cst_58 [1] : vector<70x8xf32> to vector<70xf32>
    %136 = vector.shape_cast %135 : vector<70xf32> to vector<70x1xf32>
    %137 = tpu.concatenate %108, %112, %116, %120, %124, %128, %132, %136 in 1 : vector<70x1xf32>, vector<70x1xf32>, vector<70x1xf32>, vector<70x1xf32>, vector<70x1xf32>, vector<70x1xf32>, vector<70x1xf32>, vector<70x1xf32> -> vector<70x8xf32>
    %c0_59 = arith.constant 0 : index
    %c0_60 = arith.constant 0 : index
    %138 = vector.load %arg12[%c0_59, %c0_60] : memref<8x8xf32, #tpu.memory_space<vmem>>, vector<8x8xf32>
    %cst_61 = arith.constant dense<0.000000e+00> : vector<70x8xf32>
    %139 = tpu.matmul %100, %138, %cst_61 {dimension_numbers = #tpu.dot_dimension_numbers<[1], [0], [0], [1], [0, 0, 1, 1], [], []>} : vector<70x8xf32>, vector<8x8xf32>, vector<70x8xf32> -> vector<70x8xf32>
    %c0_62 = arith.constant 0 : index
    %c0_63 = arith.constant 0 : index
    %140 = vector.load %arg13[%c0_62, %c0_63] : memref<8x8xf32, #tpu.memory_space<vmem>>, vector<8x8xf32>
    %cst_64 = arith.constant dense<0.000000e+00> : vector<70x8xf32>
    %141 = tpu.matmul %102, %140, %cst_64 {dimension_numbers = #tpu.dot_dimension_numbers<[1], [0], [0], [1], [0, 0, 1, 1], [], []>} : vector<70x8xf32>, vector<8x8xf32>, vector<70x8xf32> -> vector<70x8xf32>
    %142 = arith.addf %139, %141 : vector<70x8xf32>
    %c0_65 = arith.constant 0 : index
    %c0_66 = arith.constant 0 : index
    %143 = vector.load %arg14[%c0_65, %c0_66] : memref<1x8xf32, #tpu.memory_space<vmem>>, vector<1x8xf32>
    %144 = vector.broadcast %143 : vector<1x8xf32> to vector<70x8xf32>
    %145 = arith.addf %142, %144 : vector<70x8xf32>
    %146 = arith.addf %137, %145 : vector<70x8xf32>
    %147 = math.tanh %146 : vector<70x8xf32>
    %c0_67 = arith.constant 0 : index
    %c0_68 = arith.constant 0 : index
    %148 = vector.load %arg15[%c0_67, %c0_68] : memref<70x8xf32, #tpu.memory_space<vmem>>, vector<70x8xf32>
    tpu.vector_store %arg15[%c0_67, %c0_68], %147 {strides = array<i32>} : memref<70x8xf32, #tpu.memory_space<vmem>>, vector<70x8xf32>,
    return
  }
  func.func @transform_0(%arg0: i32) -> (i32, i32) {
    %c0_i32 = arith.constant 0 : i32
    %c0_i32_0 = arith.constant 0 : i32
    %c0_i32_1 = arith.constant 0 : i32
    return %c0_i32, %c0_i32_0 : i32, i32
  }
  func.func @transform_1(%arg0: i32) -> (i32, i32) {
    %c0_i32 = arith.constant 0 : i32
    %c0_i32_0 = arith.constant 0 : i32
    %c0_i32_1 = arith.constant 0 : i32
    return %c0_i32, %c0_i32_0 : i32, i32
  }
  func.func @transform_2(%arg0: i32) -> (i32, i32) {
    %c0_i32 = arith.constant 0 : i32
    %c0_i32_0 = arith.constant 0 : i32
    %c0_i32_1 = arith.constant 0 : i32
    return %c0_i32, %c0_i32_0 : i32, i32
  }
  func.func @transform_3(%arg0: i32) -> (i32, i32, i32) {
    %c0_i32 = arith.constant 0 : i32
    %c0_i32_0 = arith.constant 0 : i32
    %c0_i32_1 = arith.constant 0 : i32
    %c0_i32_2 = arith.constant 0 : i32
    return %c0_i32, %c0_i32_0, %c0_i32_1 : i32, i32, i32
  }
  func.func @transform_4(%arg0: i32) -> (i32, i32, i32) {
    %c0_i32 = arith.constant 0 : i32
    %c0_i32_0 = arith.constant 0 : i32
    %c0_i32_1 = arith.constant 0 : i32
    %c0_i32_2 = arith.constant 0 : i32
    return %c0_i32, %c0_i32_0, %c0_i32_1 : i32, i32, i32
  }
  func.func @transform_5(%arg0: i32) -> (i32, i32) {
    %c0_i32 = arith.constant 0 : i32
    %c0_i32_0 = arith.constant 0 : i32
    %c0_i32_1 = arith.constant 0 : i32
    return %c0_i32, %c0_i32_0 : i32, i32
  }
  func.func @transform_6(%arg0: i32) -> (i32, i32) {
    %c0_i32 = arith.constant 0 : i32
    %c0_i32_0 = arith.constant 0 : i32
    %c0_i32_1 = arith.constant 0 : i32
    return %c0_i32, %c0_i32_0 : i32, i32
  }
  func.func @transform_7(%arg0: i32) -> (i32, i32) {
    %c0_i32 = arith.constant 0 : i32
    %c0_i32_0 = arith.constant 0 : i32
    %c0_i32_1 = arith.constant 0 : i32
    return %c0_i32, %c0_i32_0 : i32, i32
  }
  func.func @transform_8(%arg0: i32) -> (i32, i32) {
    %c0_i32 = arith.constant 0 : i32
    %c0_i32_0 = arith.constant 0 : i32
    %c0_i32_1 = arith.constant 0 : i32
    return %c0_i32, %c0_i32_0 : i32, i32
  }
  func.func @transform_9(%arg0: i32) -> (i32, i32) {
    %c0_i32 = arith.constant 0 : i32
    %c0_i32_0 = arith.constant 0 : i32
    %c0_i32_1 = arith.constant 0 : i32
    return %c0_i32, %c0_i32_0 : i32, i32
  }
  func.func @transform_10(%arg0: i32) -> (i32, i32) {
    %c0_i32 = arith.constant 0 : i32
    %c0_i32_0 = arith.constant 0 : i32
    %c0_i32_1 = arith.constant 0 : i32
    return %c0_i32, %c0_i32_0 : i32, i32
  }
  func.func @transform_11(%arg0: i32) -> (i32, i32) {
    %c0_i32 = arith.constant 0 : i32
    %c0_i32_0 = arith.constant 0 : i32
    %c0_i32_1 = arith.constant 0 : i32
    return %c0_i32, %c0_i32_0 : i32, i32
  }
  func.func @transform_12(%arg0: i32) -> (i32, i32) {
    %c0_i32 = arith.constant 0 : i32
    %c0_i32_0 = arith.constant 0 : i32
    %c0_i32_1 = arith.constant 0 : i32
    return %c0_i32, %c0_i32_0 : i32, i32
  }
  func.func @transform_13(%arg0: i32) -> (i32, i32) {
    %c0_i32 = arith.constant 0 : i32
    %c0_i32_0 = arith.constant 0 : i32
    %c0_i32_1 = arith.constant 0 : i32
    return %c0_i32, %c0_i32_0 : i32, i32
  }
  func.func @transform_14(%arg0: i32) -> (i32, i32) {
    %c0_i32 = arith.constant 0 : i32
    %c0_i32_0 = arith.constant 0 : i32
    %c0_i32_1 = arith.constant 0 : i32
    return %c0_i32, %c0_i32_0 : i32, i32
  }
}

</mosaic_0001>

<llo_original>
// kernel: ntn_forward.1
$region0: #{ntn_forward.1}
  #allocation0 [shape = 'u32[]', space=smem, size = 0x4, offset = 0x4, fixed_abs, tag = 'smem constant byte address 0x4 - core index']
  #allocation1 [shape = 'u32[144,128]{1,0:T(1,128)}', space=vmem, size = 0x12000, scoped, tag = 'internal scratch']
  %s0 = inlined_call_operand.vmem [shape: f32[70,300], index: 0, kind: input, shape index: {}]
  %s1 = inlined_call_operand.vmem [shape: f32[70,300], index: 1, kind: input, shape index: {}]
  %s2 = inlined_call_operand.vmem [shape: f32[70,300], index: 2, kind: input, shape index: {}]
  %s3 = inlined_call_operand.vmem [shape: bf16[2,300,1200], index: 3, kind: input, shape index: {}]
  %s4 = inlined_call_operand.vmem [shape: bf16[2,300,1200], index: 4, kind: input, shape index: {}]
  %s5 = inlined_call_operand.vmem [shape: f32[300,8], index: 5, kind: input, shape index: {}]
  %s6 = inlined_call_operand.vmem [shape: f32[300,16], index: 6, kind: input, shape index: {}]
  %s7 = inlined_call_operand.vmem [shape: f32[300,8], index: 7, kind: input, shape index: {}]
  %s8 = inlined_call_operand.vmem [shape: f32[1,8], index: 8, kind: input, shape index: {}]
  %s9 = inlined_call_operand.vmem [shape: f32[1,8], index: 9, kind: input, shape index: {}]
  %s10 = inlined_call_operand.vmem [shape: f32[8,64], index: 10, kind: input, shape index: {}]
  %s11 = inlined_call_operand.vmem [shape: f32[8,8], index: 11, kind: input, shape index: {}]
  %s12 = inlined_call_operand.vmem [shape: f32[8,8], index: 12, kind: input, shape index: {}]
  %s13 = inlined_call_operand.vmem [shape: f32[1,8], index: 13, kind: input, shape index: {}]
  %s14 = inlined_call_operand.vmem [shape: f32[70,8], index: 14, kind: output, shape index: {}]
  %s15 = sld [smem:[#allocation0]]
  $region66: #{ntn_forward.1} parent=0
    _
  %s17 = ssub.s32 1, %s15
  %s18 = scalar_select 0, %s17, %s15
  // Predicated region
  $region2: #{ntn_forward.1} parent=0 // pred_check
    _
  $region3: #{ntn_forward.1} parent=0 // pred_check_branch
    %20 = sbr.rel (0) target = $region5
  $region4: #{ntn_forward.1} parent=0 // pred_region
    _
  $region5: #{ntn_forward.1} parent=0 // pred_fallthru
    _
  // Predicated region
  $region6: #{ntn_forward.1} parent=0 // pred_check
    _
  $region7: #{ntn_forward.1} parent=0 // pred_check_branch
    %22 = sbr.rel (0) target = $region9
  $region8: #{ntn_forward.1} parent=0 // pred_region
    _
  $region9: #{ntn_forward.1} parent=0 // pred_fallthru
    _
  // Predicated region
  $region10: #{ntn_forward.1} parent=0 // pred_check
    _
  $region11: #{ntn_forward.1} parent=0 // pred_check_branch
    %24 = sbr.rel (0) target = $region13
  $region12: #{ntn_forward.1} parent=0 // pred_region
    _
  $region13: #{ntn_forward.1} parent=0 // pred_fallthru
    _
  // Predicated region
  $region14: #{ntn_forward.1} parent=0 // pred_check
    _
  $region15: #{ntn_forward.1} parent=0 // pred_check_branch
    %26 = sbr.rel (0) target = $region17
  $region16: #{ntn_forward.1} parent=0 // pred_region
    _
  $region17: #{ntn_forward.1} parent=0 // pred_fallthru
    _
  // Predicated region
  $region18: #{ntn_forward.1} parent=0 // pred_check
    _
  $region19: #{ntn_forward.1} parent=0 // pred_check_branch
    %28 = sbr.rel (0) target = $region21
  $region20: #{ntn_forward.1} parent=0 // pred_region
    _
  $region21: #{ntn_forward.1} parent=0 // pred_fallthru
    _
  // Predicated region
  $region22: #{ntn_forward.1} parent=0 // pred_check
    _
  $region23: #{ntn_forward.1} parent=0 // pred_check_branch
    %30 = sbr.rel (0) target = $region25
  $region24: #{ntn_forward.1} parent=0 // pred_region
    _
  $region25: #{ntn_forward.1} parent=0 // pred_fallthru
    _
  // Predicated region
  $region26: #{ntn_forward.1} parent=0 // pred_check
    _
  $region27: #{ntn_forward.1} parent=0 // pred_check_branch
    %32 = sbr.rel (0) target = $region29
  $region28: #{ntn_forward.1} parent=0 // pred_region
    _
  $region29: #{ntn_forward.1} parent=0 // pred_fallthru
    _
  // Predicated region
  $region30: #{ntn_forward.1} parent=0 // pred_check
    _
  $region31: #{ntn_forward.1} parent=0 // pred_check_branch
    %34 = sbr.rel (0) target = $region33
  $region32: #{ntn_forward.1} parent=0 // pred_region
    _
  $region33: #{ntn_forward.1} parent=0 // pred_fallthru
    _
  // Predicated region
  $region34: #{ntn_forward.1} parent=0 // pred_check
    _
  $region35: #{ntn_forward.1} parent=0 // pred_check_branch
    %36 = sbr.rel (0) target = $region37
  $region36: #{ntn_forward.1} parent=0 // pred_region
    _
  $region37: #{ntn_forward.1} parent=0 // pred_fallthru
    _
  // Predicated region
  $region38: #{ntn_forward.1} parent=0 // pred_check
    _
  $region39: #{ntn_forward.1} parent=0 // pred_check_branch
    %38 = sbr.rel (0) target = $region41
  $region40: #{ntn_forward.1} parent=0 // pred_region
    _
  $region41: #{ntn_forward.1} parent=0 // pred_fallthru
    _
  // Predicated region
  $region42: #{ntn_forward.1} parent=0 // pred_check
    _
  $region43: #{ntn_forward.1} parent=0 // pred_check_branch
    %40 = sbr.rel (0) target = $region45
  $region44: #{ntn_forward.1} parent=0 // pred_region
    _
  $region45: #{ntn_forward.1} parent=0 // pred_fallthru
    _
  // Predicated region
  $region46: #{ntn_forward.1} parent=0 // pred_check
    _
  $region47: #{ntn_forward.1} parent=0 // pred_check_branch
    %42 = sbr.rel (0) target = $region49
  $region48: #{ntn_forward.1} parent=0 // pred_region
    _
  $region49: #{ntn_forward.1} parent=0 // pred_fallthru
    _
  // Predicated region
  $region50: #{ntn_forward.1} parent=0 // pred_check
    _
  $region51: #{ntn_forward.1} parent=0 // pred_check_branch
    %44 = sbr.rel (0) target = $region53
  $region52: #{ntn_forward.1} parent=0 // pred_region
    _
  $region53: #{ntn_forward.1} parent=0 // pred_fallthru
    _
  // Predicated region
  $region54: #{ntn_forward.1} parent=0 // pred_check
    _
  $region55: #{ntn_forward.1} parent=0 // pred_check_branch
    %46 = sbr.rel (0) target = $region57
  $region56: #{ntn_forward.1} parent=0 // pred_region
    _
  $region57: #{ntn_forward.1} parent=0 // pred_fallthru
    _
  %v48 = vld [vmem:[%s0] sm:$0xff]
  %v49 = vld [vmem:[%s0 + $0x8] sm:$0xff]
  %v50 = vld [vmem:[%s0 + $0x10] sm:$0xff]
  %v51 = vld [vmem:[%s0 + $0x18] sm:$0xff]
  %v52 = vld [vmem:[%s0 + $0x20] sm:$0xff]
  %v53 = vld [vmem:[%s0 + $0x28] sm:$0xff]
  %v54 = vld [vmem:[%s0 + $0x30] sm:$0xff]
  %v55 = vld [vmem:[%s0 + $0x38] sm:$0xff]
  %v56 = vld [vmem:[%s0 + $0x40] sm:$0xff]
  %v57 = vld [vmem:[%s0 + $0x48] sm:$0xff]
  %v58 = vld [vmem:[%s0 + $0x50] sm:$0xff]
  %v59 = vld [vmem:[%s0 + $0x58] sm:$0xff]
  %v60 = vld [vmem:[%s0 + $0x60] sm:$0xff]
  %v61 = vld [vmem:[%s0 + $0x68] sm:$0xff]
  %v62 = vld [vmem:[%s0 + $0x70] sm:$0xff]
  %v63 = vld [vmem:[%s0 + $0x78] sm:$0xff]
  %v64 = vld [vmem:[%s0 + $0x80] sm:$0xff]
  %v65 = vld [vmem:[%s0 + $0x88] sm:$0xff]
  %v66 = vld [vmem:[%s0 + $0x90] sm:$0xff]
  %v67 = vld [vmem:[%s0 + $0x98] sm:$0xff]
  %v68 = vld [vmem:[%s0 + $0xa0] sm:$0xff]
  %v69 = vld [vmem:[%s0 + $0xa8] sm:$0xff]
  %v70 = vld [vmem:[%s0 + $0xb0] sm:$0xff]
  %v71 = vld [vmem:[%s0 + $0xb8] sm:$0xff]
  %v72 = vld [vmem:[%s0 + $0xc0] sm:$0x3f]
  %v73 = vld [vmem:[%s0 + $0xc8] sm:$0x3f]
  %v74 = vld [vmem:[%s0 + $0xd0] sm:$0x3f]
  %v75 = vld [vmem:[%s1] sm:$0xff]
  %v76 = vld [vmem:[%s1 + $0x8] sm:$0xff]
  %v77 = vld [vmem:[%s1 + $0x10] sm:$0xff]
  %v78 = vld [vmem:[%s1 + $0x18] sm:$0xff]
  %v79 = vld [vmem:[%s1 + $0x20] sm:$0xff]
  %v80 = vld [vmem:[%s1 + $0x28] sm:$0xff]
  %v81 = vld [vmem:[%s1 + $0x30] sm:$0xff]
  %v82 = vld [vmem:[%s1 + $0x38] sm:$0xff]
  %v83 = vld [vmem:[%s1 + $0x40] sm:$0xff]
  %v84 = vld [vmem:[%s1 + $0x48] sm:$0xff]
  %v85 = vld [vmem:[%s1 + $0x50] sm:$0xff]
  %v86 = vld [vmem:[%s1 + $0x58] sm:$0xff]
  %v87 = vld [vmem:[%s1 + $0x60] sm:$0xff]
  %v88 = vld [vmem:[%s1 + $0x68] sm:$0xff]
  %v89 = vld [vmem:[%s1 + $0x70] sm:$0xff]
  %v90 = vld [vmem:[%s1 + $0x78] sm:$0xff]
  %v91 = vld [vmem:[%s1 + $0x80] sm:$0xff]
  %v92 = vld [vmem:[%s1 + $0x88] sm:$0xff]
  %v93 = vld [vmem:[%s1 + $0x90] sm:$0xff]
  %v94 = vld [vmem:[%s1 + $0x98] sm:$0xff]
  %v95 = vld [vmem:[%s1 + $0xa0] sm:$0xff]
  %v96 = vld [vmem:[%s1 + $0xa8] sm:$0xff]
  %v97 = vld [vmem:[%s1 + $0xb0] sm:$0xff]
  %v98 = vld [vmem:[%s1 + $0xb8] sm:$0xff]
  %v99 = vld [vmem:[%s1 + $0xc0] sm:$0x3f]
  %v100 = vld [vmem:[%s1 + $0xc8] sm:$0x3f]
  %v101 = vld [vmem:[%s1 + $0xd0] sm:$0x3f]
  %v102 = vld [vmem:[%s2] sm:$0xff]
  %v103 = vld [vmem:[%s2 + $0x8] sm:$0xff]
  %v104 = vld [vmem:[%s2 + $0x10] sm:$0xff]
  %v105 = vld [vmem:[%s2 + $0x18] sm:$0xff]
  %v106 = vld [vmem:[%s2 + $0x20] sm:$0xff]
  %v107 = vld [vmem:[%s2 + $0x28] sm:$0xff]
  %v108 = vld [vmem:[%s2 + $0x30] sm:$0xff]
  %v109 = vld [vmem:[%s2 + $0x38] sm:$0xff]
  %v110 = vld [vmem:[%s2 + $0x40] sm:$0xff]
  %v111 = vld [vmem:[%s2 + $0x48] sm:$0xff]
  %v112 = vld [vmem:[%s2 + $0x50] sm:$0xff]
  %v113 = vld [vmem:[%s2 + $0x58] sm:$0xff]
  %v114 = vld [vmem:[%s2 + $0x60] sm:$0xff]
  %v115 = vld [vmem:[%s2 + $0x68] sm:$0xff]
  %v116 = vld [vmem:[%s2 + $0x70] sm:$0xff]
  %v117 = vld [vmem:[%s2 + $0x78] sm:$0xff]
  %v118 = vld [vmem:[%s2 + $0x80] sm:$0xff]
  %v119 = vld [vmem:[%s2 + $0x88] sm:$0xff]
  %v120 = vld [vmem:[%s2 + $0x90] sm:$0xff]
  %v121 = vld [vmem:[%s2 + $0x98] sm:$0xff]
  %v122 = vld [vmem:[%s2 + $0xa0] sm:$0xff]
  %v123 = vld [vmem:[%s2 + $0xa8] sm:$0xff]
  %v124 = vld [vmem:[%s2 + $0xb0] sm:$0xff]
  %v125 = vld [vmem:[%s2 + $0xb8] sm:$0xff]
  %v126 = vld [vmem:[%s2 + $0xc0] sm:$0x3f]
  %v127 = vld [vmem:[%s2 + $0xc8] sm:$0x3f]
  %v128 = vld [vmem:[%s2 + $0xd0] sm:$0x3f]
  %v129 = vpack.c.bf16 %v51, %v48
  %v130 = vpack.c.bf16 %v52, %v49
  %v131 = vpack.c.bf16 %v53, %v50
  %v132 = vpack.c.bf16 %v57, %v54
  %v133 = vpack.c.bf16 %v58, %v55
  %v134 = vpack.c.bf16 %v59, %v56
  %v135 = vpack.c.bf16 %v63, %v60
  %v136 = vpack.c.bf16 %v64, %v61
  %v137 = vpack.c.bf16 %v65, %v62
  %v138 = vpack.c.bf16 %v69, %v66
  %v139 = vpack.c.bf16 %v70, %v67
  %v140 = vpack.c.bf16 %v71, %v68
  %v141 = vpack.c.bf16 %v72, %v72
  %v142 = vpack.c.bf16 %v73, %v73
  %v143 = vpack.c.bf16 %v74, %v74
  %v144 = vpack.c.bf16 %v78, %v75
  %v145 = vpack.c.bf16 %v79, %v76
  %v146 = vpack.c.bf16 %v80, %v77
  %v147 = vpack.c.bf16 %v84, %v81
  %v148 = vpack.c.bf16 %v85, %v82
  %v149 = vpack.c.bf16 %v86, %v83
  %v150 = vpack.c.bf16 %v90, %v87
  %v151 = vpack.c.bf16 %v91, %v88
  %v152 = vpack.c.bf16 %v92, %v89
  %v153 = vpack.c.bf16 %v96, %v93
  %v154 = vpack.c.bf16 %v97, %v94
  %v155 = vpack.c.bf16 %v98, %v95
  %v156 = vpack.c.bf16 %v99, %v99
  %v157 = vpack.c.bf16 %v100, %v100
  %v158 = vpack.c.bf16 %v101, %v101
  %v159 = vld [vmem:[%s3] sm:$0xff]
  %v160 = vld [vmem:[%s3 + $0x8] sm:$0xff]
  %v161 = vld [vmem:[%s3 + $0x10] sm:$0xff]
  %v162 = vld [vmem:[%s3 + $0x18] sm:$0xff]
  %v163 = vld [vmem:[%s3 + $0x20] sm:$0xff]
  %v164 = vld [vmem:[%s3 + $0x28] sm:$0xff]
  %v165 = vld [vmem:[%s3 + $0x30] sm:$0xff]
  %v166 = vld [vmem:[%s3 + $0x38] sm:$0xff]
  %v167 = vld [vmem:[%s3 + $0x40] sm:$0xff]
  %v168 = vld [vmem:[%s3 + $0x48] sm:$0xff]
  %v169 = vld [vmem:[%s3 + $0x50] sm:$0xff]
  %v170 = vld [vmem:[%s3 + $0x58] sm:$0xff]
  %v171 = vld [vmem:[%s3 + $0x60] sm:$0xff]
  %v172 = vld [vmem:[%s3 + $0x68] sm:$0xff]
  %v173 = vld [vmem:[%s3 + $0x70] sm:$0xff]
  %v174 = vld [vmem:[%s3 + $0x78] sm:$0xff]
  %v175 = vld [vmem:[%s3 + $0x80] sm:$0xff]
  %v176 = vld [vmem:[%s3 + $0x88] sm:$0xff]
  %v177 = vld [vmem:[%s3 + $0x90] sm:$0xff]
  %v178 = vld [vmem:[%s3 + $0x98] sm:$0xff]
  %v179 = vld [vmem:[%s3 + $0xa0] sm:$0xff]
  %v180 = vld [vmem:[%s3 + $0xa8] sm:$0xff]
  %v181 = vld [vmem:[%s3 + $0xb0] sm:$0xff]
  %v182 = vld [vmem:[%s3 + $0xb8] sm:$0xff]
  %v183 = vld [vmem:[%s3 + $0xc0] sm:$0xff]
  %v184 = vld [vmem:[%s3 + $0xc8] sm:$0xff]
  %v185 = vld [vmem:[%s3 + $0xd0] sm:$0xff]
  %v186 = vld [vmem:[%s3 + $0xd8] sm:$0xff]
  %v187 = vld [vmem:[%s3 + $0xe0] sm:$0xff]
  %v188 = vld [vmem:[%s3 + $0xe8] sm:$0xff]
  %v189 = vld [vmem:[%s3 + $0xf0] sm:$0xff]
  %v190 = vld [vmem:[%s3 + $0xf8] sm:$0xff]
  %v191 = vld [vmem:[%s3 + $0x100] sm:$0xff]
  %v192 = vld [vmem:[%s3 + $0x108] sm:$0xff]
  %v193 = vld [vmem:[%s3 + $0x110] sm:$0xff]
  %v194 = vld [vmem:[%s3 + $0x118] sm:$0xff]
  %v195 = vld [vmem:[%s3 + $0x120] sm:$0xff]
  %v196 = vld [vmem:[%s3 + $0x128] sm:$0xff]
  %v197 = vld [vmem:[%s3 + $0x130] sm:$0xff]
  %v198 = vld [vmem:[%s3 + $0x138] sm:$0xff]
  %v199 = vld [vmem:[%s3 + $0x140] sm:$0xff]
  %v200 = vld [vmem:[%s3 + $0x148] sm:$0xff]
  %v201 = vld [vmem:[%s3 + $0x150] sm:$0xff]
  %v202 = vld [vmem:[%s3 + $0x158] sm:$0xff]
  %v203 = vld [vmem:[%s3 + $0x160] sm:$0xff]
  %v204 = vld [vmem:[%s3 + $0x168] sm:$0xff]
  %v205 = vld [vmem:[%s3 + $0x170] sm:$0xff]
  %v206 = vld [vmem:[%s3 + $0x178] sm:$0xff]
  %v207 = vld [vmem:[%s3 + $0x180] sm:$0xff]
  %v208 = vld [vmem:[%s3 + $0x188] sm:$0xff]
  %v209 = vld [vmem:[%s3 + $0x190] sm:$0xff]
  %v210 = vld [vmem:[%s3 + $0x198] sm:$0xff]
  %v211 = vld [vmem:[%s3 + $0x1a0] sm:$0xff]
  %v212 = vld [vmem:[%s3 + $0x1a8] sm:$0xff]
  %v213 = vld [vmem:[%s3 + $0x1b0] sm:$0xff]
  %v214 = vld [vmem:[%s3 + $0x1b8] sm:$0xff]
  %v215 = vld [vmem:[%s3 + $0x1c0] sm:$0xff]
  %v216 = vld [vmem:[%s3 + $0x1c8] sm:$0xff]
  %v217 = vld [vmem:[%s3 + $0x1d0] sm:$0xff]
  %v218 = vld [vmem:[%s3 + $0x1d8] sm:$0xff]
  %v219 = vld [vmem:[%s3 + $0x1e0] sm:$0xff]
  %v220 = vld [vmem:[%s3 + $0x1e8] sm:$0xff]
  %v221 = vld [vmem:[%s3 + $0x1f0] sm:$0xff]
  %v222 = vld [vmem:[%s3 + $0x1f8] sm:$0xff]
  %v223 = vld [vmem:[%s3 + $0x200] sm:$0xff]
  %v224 = vld [vmem:[%s3 + $0x208] sm:$0xff]
  %v225 = vld [vmem:[%s3 + $0x210] sm:$0xff]
  %v226 = vld [vmem:[%s3 + $0x218] sm:$0xff]
  %v227 = vld [vmem:[%s3 + $0x220] sm:$0xff]
  %v228 = vld [vmem:[%s3 + $0x228] sm:$0xff]
  %v229 = vld [vmem:[%s3 + $0x230] sm:$0xff]
  %v230 = vld [vmem:[%s3 + $0x238] sm:$0xff]
  %v231 = vld [vmem:[%s3 + $0x240] sm:$0xff]
  %v232 = vld [vmem:[%s3 + $0x248] sm:$0xff]
  %v233 = vld [vmem:[%s3 + $0x250] sm:$0xff]
  %v234 = vld [vmem:[%s3 + $0x258] sm:$0xff]
  %v235 = vld [vmem:[%s3 + $0x260] sm:$0xff]
  %v236 = vld [vmem:[%s3 + $0x268] sm:$0xff]
  %v237 = vld [vmem:[%s3 + $0x270] sm:$0xff]
  %v238 = vld [vmem:[%s3 + $0x278] sm:$0xff]
  %v239 = vld [vmem:[%s3 + $0x280] sm:$0xff]
  %v240 = vld [vmem:[%s3 + $0x288] sm:$0xff]
  %v241 = vld [vmem:[%s3 + $0x290] sm:$0xff]
  %v242 = vld [vmem:[%s3 + $0x298] sm:$0xff]
  %v243 = vld [vmem:[%s3 + $0x2a0] sm:$0xff]
  %v244 = vld [vmem:[%s3 + $0x2a8] sm:$0xff]
  %v245 = vld [vmem:[%s3 + $0x2b0] sm:$0xff]
  %v246 = vld [vmem:[%s3 + $0x2b8] sm:$0xff]
  %v247 = vld [vmem:[%s3 + $0x2c0] sm:$0xff]
  %v248 = vld [vmem:[%s3 + $0x2c8] sm:$0xff]
  %v249 = vld [vmem:[%s3 + $0x2d0] sm:$0xff]
  %v250 = vld [vmem:[%s3 + $0x2d8] sm:$0xff]
  %v251 = vld [vmem:[%s3 + $0x2e0] sm:$0xff]
  %v252 = vld [vmem:[%s3 + $0x2e8] sm:$0xff]
  %v253 = vld [vmem:[%s3 + $0x2f0] sm:$0xff]
  %v254 = vld [vmem:[%s3 + $0x2f8] sm:$0xff]
  %v255 = vld [vmem:[%s3 + $0x300] sm:$0xff]
  %v256 = vld [vmem:[%s3 + $0x308] sm:$0xff]
  %v257 = vld [vmem:[%s3 + $0x310] sm:$0xff]
  %v258 = vld [vmem:[%s3 + $0x318] sm:$0xff]
  %v259 = vld [vmem:[%s3 + $0x320] sm:$0xff]
  %v260 = vld [vmem:[%s3 + $0x328] sm:$0xff]
  %v261 = vld [vmem:[%s3 + $0x330] sm:$0xff]
  %v262 = vld [vmem:[%s3 + $0x338] sm:$0xff]
  %v263 = vld [vmem:[%s3 + $0x340] sm:$0xff]
  %v264 = vld [vmem:[%s3 + $0x348] sm:$0xff]
  %v265 = vld [vmem:[%s3 + $0x350] sm:$0xff]
  %v266 = vld [vmem:[%s3 + $0x358] sm:$0xff]
  %v267 = vld [vmem:[%s3 + $0x360] sm:$0xff]
  %v268 = vld [vmem:[%s3 + $0x368] sm:$0xff]
  %v269 = vld [vmem:[%s3 + $0x370] sm:$0xff]
  %v270 = vld [vmem:[%s3 + $0x378] sm:$0xff]
  %v271 = vld [vmem:[%s3 + $0x380] sm:$0xff]
  %v272 = vld [vmem:[%s3 + $0x388] sm:$0xff]
  %v273 = vld [vmem:[%s3 + $0x390] sm:$0xff]
  %v274 = vld [vmem:[%s3 + $0x398] sm:$0xff]
  %v275 = vld [vmem:[%s3 + $0x3a0] sm:$0xff]
  %v276 = vld [vmem:[%s3 + $0x3a8] sm:$0xff]
  %v277 = vld [vmem:[%s3 + $0x3b0] sm:$0xff]
  %v278 = vld [vmem:[%s3 + $0x3b8] sm:$0xff]
  %v279 = vld [vmem:[%s3 + $0x3c0] sm:$0xff]
  %v280 = vld [vmem:[%s3 + $0x3c8] sm:$0xff]
  %v281 = vld [vmem:[%s3 + $0x3d0] sm:$0xff]
  %v282 = vld [vmem:[%s3 + $0x3d8] sm:$0xff]
  %v283 = vld [vmem:[%s3 + $0x3e0] sm:$0xff]
  %v284 = vld [vmem:[%s3 + $0x3e8] sm:$0xff]
  %v285 = vld [vmem:[%s3 + $0x3f0] sm:$0xff]
  %v286 = vld [vmem:[%s3 + $0x3f8] sm:$0xff]
  %v287 = vld [vmem:[%s3 + $0x400] sm:$0xff]
  %v288 = vld [vmem:[%s3 + $0x408] sm:$0xff]
  %v289 = vld [vmem:[%s3 + $0x410] sm:$0xff]
  %v290 = vld [vmem:[%s3 + $0x418] sm:$0xff]
  %v291 = vld [vmem:[%s3 + $0x420] sm:$0xff]
  %v292 = vld [vmem:[%s3 + $0x428] sm:$0xff]
  %v293 = vld [vmem:[%s3 + $0x430] sm:$0xff]
  %v294 = vld [vmem:[%s3 + $0x438] sm:$0xff]
  %v295 = vld [vmem:[%s3 + $0x440] sm:$0xff]
  %v296 = vld [vmem:[%s3 + $0x448] sm:$0xff]
  %v297 = vld [vmem:[%s3 + $0x450] sm:$0xff]
  %v298 = vld [vmem:[%s3 + $0x458] sm:$0xff]
  %v299 = vld [vmem:[%s3 + $0x460] sm:$0xff]
  %v300 = vld [vmem:[%s3 + $0x468] sm:$0xff]
  %v301 = vld [vmem:[%s3 + $0x470] sm:$0xff]
  %v302 = vld [vmem:[%s3 + $0x478] sm:$0xff]
  %v303 = vld [vmem:[%s3 + $0x480] sm:$0xff]
  %v304 = vld [vmem:[%s3 + $0x488] sm:$0xff]
  %v305 = vld [vmem:[%s3 + $0x490] sm:$0xff]
  %v306 = vld [vmem:[%s3 + $0x498] sm:$0xff]
  %v307 = vld [vmem:[%s3 + $0x4a0] sm:$0xff]
  %v308 = vld [vmem:[%s3 + $0x4a8] sm:$0xff]
  %v309 = vld [vmem:[%s3 + $0x4b0] sm:$0xff]
  %v310 = vld [vmem:[%s3 + $0x4b8] sm:$0xff]
  %v311 = vld [vmem:[%s3 + $0x4c0] sm:$0xff]
  %v312 = vld [vmem:[%s3 + $0x4c8] sm:$0xff]
  %v313 = vld [vmem:[%s3 + $0x4d0] sm:$0xff]
  %v314 = vld [vmem:[%s3 + $0x4d8] sm:$0xff]
  %v315 = vld [vmem:[%s3 + $0x4e0] sm:$0xff]
  %v316 = vld [vmem:[%s3 + $0x4e8] sm:$0xff]
  %v317 = vld [vmem:[%s3 + $0x4f0] sm:$0xff]
  %v318 = vld [vmem:[%s3 + $0x4f8] sm:$0xff]
  %v319 = vld [vmem:[%s3 + $0x500] sm:$0xff]
  %v320 = vld [vmem:[%s3 + $0x508] sm:$0xff]
  %v321 = vld [vmem:[%s3 + $0x510] sm:$0xff]
  %v322 = vld [vmem:[%s3 + $0x518] sm:$0xff]
  %v323 = vld [vmem:[%s3 + $0x520] sm:$0xff]
  %v324 = vld [vmem:[%s3 + $0x528] sm:$0xff]
  %v325 = vld [vmem:[%s3 + $0x530] sm:$0xff]
  %v326 = vld [vmem:[%s3 + $0x538] sm:$0xff]
  %v327 = vld [vmem:[%s3 + $0x540] sm:$0xff]
  %v328 = vld [vmem:[%s3 + $0x548] sm:$0xff]
  %v329 = vld [vmem:[%s3 + $0x550] sm:$0xff]
  %v330 = vld [vmem:[%s3 + $0x558] sm:$0xff]
  %v331 = vld [vmem:[%s3 + $0x560] sm:$0xff]
  %v332 = vld [vmem:[%s3 + $0x568] sm:$0xff]
  %v333 = vld [vmem:[%s3 + $0x570] sm:$0xff]
  %v334 = vld [vmem:[%s3 + $0x578] sm:$0xff]
  %v335 = vld [vmem:[%s3 + $0x580] sm:$0xff]
  %v336 = vld [vmem:[%s3 + $0x588] sm:$0xff]
  %v337 = vld [vmem:[%s3 + $0x590] sm:$0xff]
  %v338 = vld [vmem:[%s3 + $0x598] sm:$0xff]
  %v339 = vld [vmem:[%s3 + $0x5a0] sm:$0xff]
  %v340 = vld [vmem:[%s3 + $0x5a8] sm:$0xff]
  %v341 = vld [vmem:[%s3 + $0x5b0] sm:$0xff]
  %v342 = vld [vmem:[%s3 + $0x5b8] sm:$0xff]
  %v343 = vld [vmem:[%s3 + $0x5c0] sm:$0xff]
  %v344 = vld [vmem:[%s3 + $0x5c8] sm:$0x33]
  %v345 = vld [vmem:[%s3 + $0x5d0] sm:$0x33]
  %v346 = vld [vmem:[%s3 + $0x5d8] sm:$0x33]
  %v347 = vld [vmem:[%s3 + $0x5e0] sm:$0x33]
  %v348 = vld [vmem:[%s3 + $0x5e8] sm:$0x33]
  %v539 = vunpack.c.l.b16 %v159
  %v540 = vunpack.c.h.b16 %v159
  %v541 = vunpack.c.l.b16 %v160
  %v542 = vunpack.c.h.b16 %v160
  %v543 = vunpack.c.l.b16 %v161
  %v544 = vunpack.c.h.b16 %v161
  %v545 = vunpack.c.l.b16 %v162
  %v546 = vunpack.c.h.b16 %v162
  %v547 = vunpack.c.l.b16 %v163
  %v548 = vunpack.c.h.b16 %v163
  %v549 = vunpack.c.l.b16 %v164
  %v550 = vunpack.c.h.b16 %v164
  %v551 = vunpack.c.l.b16 %v165
  %v552 = vunpack.c.h.b16 %v165
  %v553 = vunpack.c.l.b16 %v166
  %v554 = vunpack.c.h.b16 %v166
  %v555 = vunpack.c.l.b16 %v167
  %v556 = vunpack.c.h.b16 %v167
  %v557 = vunpack.c.l.b16 %v168
  %v558 = vunpack.c.h.b16 %v168
  %v559 = vunpack.c.l.b16 %v169
  %v560 = vunpack.c.h.b16 %v169
  %v561 = vunpack.c.l.b16 %v170
  %v562 = vunpack.c.h.b16 %v170
  %v563 = vunpack.c.l.b16 %v171
  %v564 = vunpack.c.h.b16 %v171
  %v565 = vunpack.c.l.b16 %v172
  %v566 = vunpack.c.h.b16 %v172
  %v567 = vunpack.c.l.b16 %v173
  %v568 = vunpack.c.h.b16 %v173
  %v569 = vunpack.c.l.b16 %v174
  %v570 = vunpack.c.h.b16 %v174
  %v571 = vunpack.c.l.b16 %v175
  %v572 = vunpack.c.h.b16 %v175
  %v573 = vunpack.c.l.b16 %v176
  %v574 = vunpack.c.h.b16 %v176
  %v575 = vunpack.c.l.b16 %v177
  %v576 = vunpack.c.h.b16 %v177
  %v577 = vunpack.c.l.b16 %v178
  %v578 = vunpack.c.h.b16 %v178
  %v579 = vunpack.c.l.b16 %v179
  %v580 = vunpack.c.h.b16 %v179
  %v581 = vunpack.c.l.b16 %v180
  %v582 = vunpack.c.h.b16 %v180
  %v583 = vunpack.c.l.b16 %v181
  %v584 = vunpack.c.h.b16 %v181
  %v585 = vunpack.c.l.b16 %v182
  %v586 = vunpack.c.h.b16 %v182
  %v587 = vunpack.c.l.b16 %v183
  %v588 = vunpack.c.h.b16 %v183
  %v589 = vunpack.c.l.b16 %v184
  %v590 = vunpack.c.h.b16 %v184
  %v591 = vunpack.c.l.b16 %v185
  %v592 = vunpack.c.h.b16 %v185
  %v593 = vunpack.c.l.b16 %v186
  %v594 = vunpack.c.h.b16 %v186
  %v595 = vunpack.c.l.b16 %v187
  %v596 = vunpack.c.h.b16 %v187
  %v597 = vunpack.c.l.b16 %v188
  %v598 = vunpack.c.h.b16 %v188
  %v599 = vunpack.c.l.b16 %v189
  %v600 = vunpack.c.h.b16 %v189
  %v601 = vunpack.c.l.b16 %v190
  %v602 = vunpack.c.h.b16 %v190
  %v603 = vunpack.c.l.b16 %v191
  %v604 = vunpack.c.h.b16 %v191
  %v605 = vunpack.c.l.b16 %v192
  %v606 = vunpack.c.h.b16 %v192
  %v607 = vunpack.c.l.b16 %v193
  %v608 = vunpack.c.h.b16 %v193
  %v609 = vunpack.c.l.b16 %v194
  %v610 = vunpack.c.h.b16 %v194
  %v611 = vunpack.c.l.b16 %v195
  %v612 = vunpack.c.h.b16 %v195
  %v613 = vunpack.c.l.b16 %v196
  %v614 = vunpack.c.h.b16 %v196
  %v615 = vunpack.c.l.b16 %v197
  %v616 = vunpack.c.h.b16 %v197
  %v617 = vunpack.c.l.b16 %v198
  %v618 = vunpack.c.h.b16 %v198
  %v619 = vunpack.c.l.b16 %v199
  %v620 = vunpack.c.h.b16 %v199
  %v621 = vunpack.c.l.b16 %v200
  %v622 = vunpack.c.h.b16 %v200
  %v623 = vunpack.c.l.b16 %v201
  %v624 = vunpack.c.h.b16 %v201
  %v625 = vunpack.c.l.b16 %v202
  %v626 = vunpack.c.h.b16 %v202
  %v627 = vunpack.c.l.b16 %v203
  %v628 = vunpack.c.h.b16 %v203
  %v629 = vunpack.c.l.b16 %v204
  %v630 = vunpack.c.h.b16 %v204
  %v631 = vunpack.c.l.b16 %v205
  %v632 = vunpack.c.h.b16 %v205
  %v633 = vunpack.c.l.b16 %v206
  %v634 = vunpack.c.h.b16 %v206
  %v635 = vunpack.c.l.b16 %v207
  %v636 = vunpack.c.h.b16 %v207
  %v637 = vunpack.c.l.b16 %v208
  %v638 = vunpack.c.h.b16 %v208
  %v639 = vunpack.c.l.b16 %v209
  %v640 = vunpack.c.h.b16 %v209
  %v641 = vunpack.c.l.b16 %v210
  %v642 = vunpack.c.h.b16 %v210
  %v643 = vunpack.c.l.b16 %v211
  %v644 = vunpack.c.h.b16 %v211
  %v645 = vunpack.c.l.b16 %v212
  %v646 = vunpack.c.h.b16 %v212
  %v647 = vunpack.c.l.b16 %v213
  %v648 = vunpack.c.h.b16 %v213
  %v649 = vunpack.c.l.b16 %v214
  %v650 = vunpack.c.h.b16 %v214
  %v651 = vunpack.c.l.b16 %v215
  %v652 = vunpack.c.h.b16 %v215
  %v653 = vunpack.c.l.b16 %v216
  %v654 = vunpack.c.h.b16 %v216
  %v655 = vunpack.c.l.b16 %v217
  %v656 = vunpack.c.h.b16 %v217
  %v657 = vunpack.c.l.b16 %v218
  %v658 = vunpack.c.h.b16 %v218
  %v659 = vunpack.c.l.b16 %v219
  %v660 = vunpack.c.h.b16 %v219
  %v661 = vunpack.c.l.b16 %v220
  %v662 = vunpack.c.h.b16 %v220
  %v663 = vunpack.c.l.b16 %v221
  %v664 = vunpack.c.h.b16 %v221
  %v665 = vunpack.c.l.b16 %v222
  %v666 = vunpack.c.h.b16 %v222
  %v667 = vunpack.c.l.b16 %v223
  %v668 = vunpack.c.h.b16 %v223
  %v669 = vunpack.c.l.b16 %v224
  %v670 = vunpack.c.h.b16 %v224
  %v671 = vunpack.c.l.b16 %v225
  %v672 = vunpack.c.h.b16 %v225
  %v673 = vunpack.c.l.b16 %v226
  %v674 = vunpack.c.h.b16 %v226
  %v675 = vunpack.c.l.b16 %v227
  %v676 = vunpack.c.h.b16 %v227
  %v677 = vunpack.c.l.b16 %v228
  %v678 = vunpack.c.h.b16 %v228
  %v679 = vunpack.c.l.b16 %v229
  %v680 = vunpack.c.h.b16 %v229
  %v681 = vunpack.c.l.b16 %v230
  %v682 = vunpack.c.h.b16 %v230
  %v683 = vunpack.c.l.b16 %v231
  %v684 = vunpack.c.h.b16 %v231
  %v685 = vunpack.c.l.b16 %v232
  %v686 = vunpack.c.h.b16 %v232
  %v687 = vunpack.c.l.b16 %v233
  %v688 = vunpack.c.h.b16 %v233
  %v689 = vunpack.c.l.b16 %v234
  %v690 = vunpack.c.h.b16 %v234
  %v691 = vunpack.c.l.b16 %v235
  %v692 = vunpack.c.h.b16 %v235
  %v693 = vunpack.c.l.b16 %v236
  %v694 = vunpack.c.h.b16 %v236
  %v695 = vunpack.c.l.b16 %v237
  %v696 = vunpack.c.h.b16 %v237
  %v697 = vunpack.c.l.b16 %v238
  %v698 = vunpack.c.h.b16 %v238
  %v699 = vunpack.c.l.b16 %v239
  %v700 = vunpack.c.h.b16 %v239
  %v701 = vunpack.c.l.b16 %v240
  %v702 = vunpack.c.h.b16 %v240
  %v703 = vunpack.c.l.b16 %v241
  %v704 = vunpack.c.h.b16 %v241
  %v705 = vunpack.c.l.b16 %v242
  %v706 = vunpack.c.h.b16 %v242
  %v707 = vunpack.c.l.b16 %v243
  %v708 = vunpack.c.h.b16 %v243
  %v709 = vunpack.c.l.b16 %v244
  %v710 = vunpack.c.h.b16 %v244
  %v711 = vunpack.c.l.b16 %v245
  %v712 = vunpack.c.h.b16 %v245
  %v713 = vunpack.c.l.b16 %v246
  %v714 = vunpack.c.h.b16 %v246
  %v715 = vunpack.c.l.b16 %v247
  %v716 = vunpack.c.h.b16 %v247
  %v717 = vunpack.c.l.b16 %v248
  %v718 = vunpack.c.h.b16 %v248
  %v719 = vunpack.c.l.b16 %v249
  %v720 = vunpack.c.h.b16 %v249
  %v721 = vunpack.c.l.b16 %v250
  %v722 = vunpack.c.h.b16 %v250
  %v723 = vunpack.c.l.b16 %v251
  %v724 = vunpack.c.h.b16 %v251
  %v725 = vunpack.c.l.b16 %v252
  %v726 = vunpack.c.h.b16 %v252
  %v727 = vunpack.c.l.b16 %v253
  %v728 = vunpack.c.h.b16 %v253
  %v729 = vunpack.c.l.b16 %v254
  %v730 = vunpack.c.h.b16 %v254
  %v731 = vunpack.c.l.b16 %v255
  %v732 = vunpack.c.h.b16 %v255
  %v733 = vunpack.c.l.b16 %v256
  %v734 = vunpack.c.h.b16 %v256
  %v735 = vunpack.c.l.b16 %v257
  %v736 = vunpack.c.h.b16 %v257
  %v737 = vunpack.c.l.b16 %v258
  %v738 = vunpack.c.h.b16 %v258
  %v739 = vunpack.c.l.b16 %v259
  %v740 = vunpack.c.h.b16 %v259
  %v741 = vunpack.c.l.b16 %v260
  %v742 = vunpack.c.h.b16 %v260
  %v743 = vunpack.c.l.b16 %v261
  %v744 = vunpack.c.h.b16 %v261
  %v745 = vunpack.c.l.b16 %v262
  %v746 = vunpack.c.h.b16 %v262
  %v747 = vunpack.c.l.b16 %v263
  %v748 = vunpack.c.h.b16 %v263
  %v749 = vunpack.c.l.b16 %v264
  %v750 = vunpack.c.h.b16 %v264
  %v751 = vunpack.c.l.b16 %v265
  %v752 = vunpack.c.h.b16 %v265
  %v753 = vunpack.c.l.b16 %v266
  %v754 = vunpack.c.h.b16 %v266
  %v755 = vunpack.c.l.b16 %v267
  %v756 = vunpack.c.h.b16 %v267
  %v757 = vunpack.c.l.b16 %v268
  %v758 = vunpack.c.h.b16 %v268
  %v759 = vunpack.c.l.b16 %v269
  %v760 = vunpack.c.h.b16 %v269
  %v761 = vunpack.c.l.b16 %v270
  %v762 = vunpack.c.h.b16 %v270
  %v763 = vunpack.c.l.b16 %v271
  %v764 = vunpack.c.h.b16 %v271
  %v765 = vunpack.c.l.b16 %v272
  %v766 = vunpack.c.h.b16 %v272
  %v767 = vunpack.c.l.b16 %v273
  %v768 = vunpack.c.h.b16 %v273
  %v769 = vunpack.c.l.b16 %v274
  %v770 = vunpack.c.h.b16 %v274
  %v771 = vunpack.c.l.b16 %v275
  %v772 = vunpack.c.h.b16 %v275
  %v773 = vunpack.c.l.b16 %v276
  %v774 = vunpack.c.h.b16 %v276
  %v775 = vunpack.c.l.b16 %v277
  %v776 = vunpack.c.h.b16 %v277
  %v777 = vunpack.c.l.b16 %v278
  %v778 = vunpack.c.h.b16 %v278
  %v779 = vunpack.c.l.b16 %v279
  %v780 = vunpack.c.h.b16 %v279
  %v781 = vunpack.c.l.b16 %v280
  %v782 = vunpack.c.h.b16 %v280
  %v783 = vunpack.c.l.b16 %v281
  %v784 = vunpack.c.h.b16 %v281
  %v785 = vunpack.c.l.b16 %v282
  %v786 = vunpack.c.h.b16 %v282
  %v787 = vunpack.c.l.b16 %v283
  %v788 = vunpack.c.h.b16 %v283
  %v789 = vunpack.c.l.b16 %v284
  %v790 = vunpack.c.h.b16 %v284
  %v791 = vunpack.c.l.b16 %v285
  %v792 = vunpack.c.h.b16 %v285
  %v793 = vunpack.c.l.b16 %v286
  %v794 = vunpack.c.h.b16 %v286
  %v795 = vunpack.c.l.b16 %v287
  %v796 = vunpack.c.h.b16 %v287
  %v797 = vunpack.c.l.b16 %v288
  %v798 = vunpack.c.h.b16 %v288
  %v799 = vunpack.c.l.b16 %v289
  %v800 = vunpack.c.h.b16 %v289
  %v801 = vunpack.c.l.b16 %v290
  %v802 = vunpack.c.h.b16 %v290
  %v803 = vunpack.c.l.b16 %v291
  %v804 = vunpack.c.h.b16 %v291
  %v805 = vunpack.c.l.b16 %v292
  %v806 = vunpack.c.h.b16 %v292
  %v807 = vunpack.c.l.b16 %v293
  %v808 = vunpack.c.h.b16 %v293
  %v809 = vunpack.c.l.b16 %v294
  %v810 = vunpack.c.h.b16 %v294
  %v811 = vunpack.c.l.b16 %v295
  %v812 = vunpack.c.h.b16 %v295
  %v813 = vunpack.c.l.b16 %v296
  %v814 = vunpack.c.h.b16 %v296
  %v815 = vunpack.c.l.b16 %v297
  %v816 = vunpack.c.h.b16 %v297
  %v817 = vunpack.c.l.b16 %v298
  %v818 = vunpack.c.h.b16 %v298
  %v819 = vunpack.c.l.b16 %v299
  %v820 = vunpack.c.h.b16 %v299
  %v821 = vunpack.c.l.b16 %v300
  %v822 = vunpack.c.h.b16 %v300
  %v823 = vunpack.c.l.b16 %v301
  %v824 = vunpack.c.h.b16 %v301
  %v825 = vunpack.c.l.b16 %v302
  %v826 = vunpack.c.h.b16 %v302
  %v827 = vunpack.c.l.b16 %v303
  %v828 = vunpack.c.h.b16 %v303
  %v829 = vunpack.c.l.b16 %v304
  %v830 = vunpack.c.h.b16 %v304
  %v831 = vunpack.c.l.b16 %v305
  %v832 = vunpack.c.h.b16 %v305
  %v833 = vunpack.c.l.b16 %v306
  %v834 = vunpack.c.h.b16 %v306
  %v835 = vunpack.c.l.b16 %v307
  %v836 = vunpack.c.h.b16 %v307
  %v837 = vunpack.c.l.b16 %v308
  %v838 = vunpack.c.h.b16 %v308
  %v839 = vunpack.c.l.b16 %v309
  %v840 = vunpack.c.h.b16 %v309
  %v841 = vunpack.c.l.b16 %v310
  %v842 = vunpack.c.h.b16 %v310
  %v843 = vunpack.c.l.b16 %v311
  %v844 = vunpack.c.h.b16 %v311
  %v845 = vunpack.c.l.b16 %v312
  %v846 = vunpack.c.h.b16 %v312
  %v847 = vunpack.c.l.b16 %v313
  %v848 = vunpack.c.h.b16 %v313
  %v849 = vunpack.c.l.b16 %v314
  %v850 = vunpack.c.h.b16 %v314
  %v851 = vunpack.c.l.b16 %v315
  %v852 = vunpack.c.h.b16 %v315
  %v853 = vunpack.c.l.b16 %v316
  %v854 = vunpack.c.h.b16 %v316
  %v855 = vunpack.c.l.b16 %v317
  %v856 = vunpack.c.h.b16 %v317
  %v857 = vunpack.c.l.b16 %v318
  %v858 = vunpack.c.h.b16 %v318
  %v859 = vunpack.c.l.b16 %v319
  %v860 = vunpack.c.h.b16 %v319
  %v861 = vunpack.c.l.b16 %v320
  %v862 = vunpack.c.h.b16 %v320
  %v863 = vunpack.c.l.b16 %v321
  %v864 = vunpack.c.h.b16 %v321
  %v865 = vunpack.c.l.b16 %v322
  %v866 = vunpack.c.h.b16 %v322
  %v867 = vunpack.c.l.b16 %v323
  %v868 = vunpack.c.h.b16 %v323
  %v869 = vunpack.c.l.b16 %v324
  %v870 = vunpack.c.h.b16 %v324
  %v871 = vunpack.c.l.b16 %v325
  %v872 = vunpack.c.h.b16 %v325
  %v873 = vunpack.c.l.b16 %v326
  %v874 = vunpack.c.h.b16 %v326
  %v875 = vunpack.c.l.b16 %v327
  %v876 = vunpack.c.h.b16 %v327
  %v877 = vunpack.c.l.b16 %v328
  %v878 = vunpack.c.h.b16 %v328
  %v879 = vunpack.c.l.b16 %v329
  %v880 = vunpack.c.h.b16 %v329
  %v881 = vunpack.c.l.b16 %v330
  %v882 = vunpack.c.h.b16 %v330
  %v883 = vunpack.c.l.b16 %v331
  %v884 = vunpack.c.h.b16 %v331
  %v885 = vunpack.c.l.b16 %v332
  %v886 = vunpack.c.h.b16 %v332
  %v887 = vunpack.c.l.b16 %v333
  %v888 = vunpack.c.h.b16 %v333
  %v889 = vunpack.c.l.b16 %v334
  %v890 = vunpack.c.h.b16 %v334
  %v891 = vunpack.c.l.b16 %v335
  %v892 = vunpack.c.h.b16 %v335
  %v893 = vunpack.c.l.b16 %v336
  %v894 = vunpack.c.h.b16 %v336
  %v895 = vunpack.c.l.b16 %v337
  %v896 = vunpack.c.h.b16 %v337
  %v897 = vunpack.c.l.b16 %v338
  %v898 = vunpack.c.h.b16 %v338
  %v899 = vunpack.c.l.b16 %v339
  %v900 = vunpack.c.h.b16 %v339
  %v901 = vunpack.c.l.b16 %v340
  %v902 = vunpack.c.h.b16 %v340
  %v903 = vunpack.c.l.b16 %v341
  %v904 = vunpack.c.h.b16 %v341
  %v905 = vunpack.c.l.b16 %v342
  %v906 = vunpack.c.h.b16 %v342
  %v907 = vunpack.c.l.b16 %v343
  %v908 = vunpack.c.h.b16 %v343
  %v909 = vunpack.c.l.b16 %v344
  %v910 = vunpack.c.h.b16 %v344
  %v911 = vunpack.c.l.b16 %v345
  %v912 = vunpack.c.h.b16 %v345
  %v913 = vunpack.c.l.b16 %v346
  %v914 = vunpack.c.h.b16 %v346
  %v915 = vunpack.c.l.b16 %v347
  %v916 = vunpack.c.h.b16 %v347
  %v917 = vunpack.c.l.b16 %v348
  %v918 = vunpack.c.h.b16 %v348
  %v919 = vpack.c.b16 %v549, %v539
  %v920 = vpack.c.b16 %v550, %v540
  %v921 = vpack.c.b16 %v551, %v541
  %v922 = vpack.c.b16 %v552, %v542
  %v923 = vpack.c.b16 %v553, %v543
  %v924 = vpack.c.b16 %v554, %v544
  %v925 = vpack.c.b16 %v555, %v545
  %v926 = vpack.c.b16 %v556, %v546
  %v927 = vpack.c.b16 %v557, %v547
  %v928 = vpack.c.b16 %v558, %v548
  %v929 = vpack.c.b16 %v569, %v559
  %v930 = vpack.c.b16 %v570, %v560
  %v931 = vpack.c.b16 %v571, %v561
  %v932 = vpack.c.b16 %v572, %v562
  %v933 = vpack.c.b16 %v573, %v563
  %v934 = vpack.c.b16 %v574, %v564
  %v935 = vpack.c.b16 %v575, %v565
  %v936 = vpack.c.b16 %v576, %v566
  %v937 = vpack.c.b16 %v577, %v567
  %v938 = vpack.c.b16 %v578, %v568
  %v939 = vpack.c.b16 %v589, %v579
  %v940 = vpack.c.b16 %v590, %v580
  %v941 = vpack.c.b16 %v591, %v581
  %v942 = vpack.c.b16 %v592, %v582
  %v943 = vpack.c.b16 %v593, %v583
  %v944 = vpack.c.b16 %v594, %v584
  %v945 = vpack.c.b16 %v595, %v585
  %v946 = vpack.c.b16 %v596, %v586
  %v947 = vpack.c.b16 %v597, %v587
  %v948 = vpack.c.b16 %v598, %v588
  %v949 = vpack.c.b16 %v609, %v599
  %v950 = vpack.c.b16 %v610, %v600
  %v951 = vpack.c.b16 %v611, %v601
  %v952 = vpack.c.b16 %v612, %v602
  %v953 = vpack.c.b16 %v613, %v603
  %v954 = vpack.c.b16 %v614, %v604
  %v955 = vpack.c.b16 %v615, %v605
  %v956 = vpack.c.b16 %v616, %v606
  %v957 = vpack.c.b16 %v617, %v607
  %v958 = vpack.c.b16 %v618, %v608
  %v959 = vpack.c.b16 %v629, %v619
  %v960 = vpack.c.b16 %v630, %v620
  %v961 = vpack.c.b16 %v631, %v621
  %v962 = vpack.c.b16 %v632, %v622
  %v963 = vpack.c.b16 %v633, %v623
  %v964 = vpack.c.b16 %v634, %v624
  %v965 = vpack.c.b16 %v635, %v625
  %v966 = vpack.c.b16 %v636, %v626
  %v967 = vpack.c.b16 %v637, %v627
  %v968 = vpack.c.b16 %v638, %v628
  %v969 = vpack.c.b16 %v649, %v639
  %v970 = vpack.c.b16 %v650, %v640
  %v971 = vpack.c.b16 %v651, %v641
  %v972 = vpack.c.b16 %v652, %v642
  %v973 = vpack.c.b16 %v653, %v643
  %v974 = vpack.c.b16 %v654, %v644
  %v975 = vpack.c.b16 %v655, %v645
  %v976 = vpack.c.b16 %v656, %v646
  %v977 = vpack.c.b16 %v657, %v647
  %v978 = vpack.c.b16 %v658, %v648
  %v979 = vpack.c.b16 %v669, %v659
  %v980 = vpack.c.b16 %v670, %v660
  %v981 = vpack.c.b16 %v671, %v661
  %v982 = vpack.c.b16 %v672, %v662
  %v983 = vpack.c.b16 %v673, %v663
  %v984 = vpack.c.b16 %v674, %v664
  %v985 = vpack.c.b16 %v675, %v665
  %v986 = vpack.c.b16 %v676, %v666
  %v987 = vpack.c.b16 %v677, %v667
  %v988 = vpack.c.b16 %v678, %v668
  %v989 = vpack.c.b16 %v689, %v679
  %v990 = vpack.c.b16 %v690, %v680
  %v991 = vpack.c.b16 %v691, %v681
  %v992 = vpack.c.b16 %v692, %v682
  %v993 = vpack.c.b16 %v693, %v683
  %v994 = vpack.c.b16 %v694, %v684
  %v995 = vpack.c.b16 %v695, %v685
  %v996 = vpack.c.b16 %v696, %v686
  %v997 = vpack.c.b16 %v697, %v687
  %v998 = vpack.c.b16 %v698, %v688
  %v999 = vpack.c.b16 %v709, %v699
  %v1000 = vpack.c.b16 %v710, %v700
  %v1001 = vpack.c.b16 %v711, %v701
  %v1002 = vpack.c.b16 %v712, %v702
  %v1003 = vpack.c.b16 %v713, %v703
  %v1004 = vpack.c.b16 %v714, %v704
  %v1005 = vpack.c.b16 %v715, %v705
  %v1006 = vpack.c.b16 %v716, %v706
  %v1007 = vpack.c.b16 %v717, %v707
  %v1008 = vpack.c.b16 %v718, %v708
  %v1009 = vpack.c.b16 %v729, %v719
  %v1010 = vpack.c.b16 %v730, %v720
  %v1011 = vpack.c.b16 %v731, %v721
  %v1012 = vpack.c.b16 %v732, %v722
  %v1013 = vpack.c.b16 %v733, %v723
  %v1014 = vpack.c.b16 %v734, %v724
  %v1015 = vpack.c.b16 %v735, %v725
  %v1016 = vpack.c.b16 %v736, %v726
  %v1017 = vpack.c.b16 %v737, %v727
  %v1018 = vpack.c.b16 %v738, %v728
  %v1019 = vpack.c.b16 %v749, %v739
  %v1020 = vpack.c.b16 %v750, %v740
  %v1021 = vpack.c.b16 %v751, %v741
  %v1022 = vpack.c.b16 %v752, %v742
  %v1023 = vpack.c.b16 %v753, %v743
  %v1024 = vpack.c.b16 %v754, %v744
  %v1025 = vpack.c.b16 %v755, %v745
  %v1026 = vpack.c.b16 %v756, %v746
  %v1027 = vpack.c.b16 %v757, %v747
  %v1028 = vpack.c.b16 %v758, %v748
  %v1029 = vpack.c.b16 %v769, %v759
  %v1030 = vpack.c.b16 %v770, %v760
  %v1031 = vpack.c.b16 %v771, %v761
  %v1032 = vpack.c.b16 %v772, %v762
  %v1033 = vpack.c.b16 %v773, %v763
  %v1034 = vpack.c.b16 %v774, %v764
  %v1035 = vpack.c.b16 %v775, %v765
  %v1036 = vpack.c.b16 %v776, %v766
  %v1037 = vpack.c.b16 %v777, %v767
  %v1038 = vpack.c.b16 %v778, %v768
  %v1039 = vpack.c.b16 %v789, %v779
  %v1040 = vpack.c.b16 %v790, %v780
  %v1041 = vpack.c.b16 %v791, %v781
  %v1042 = vpack.c.b16 %v792, %v782
  %v1043 = vpack.c.b16 %v793, %v783
  %v1044 = vpack.c.b16 %v794, %v784
  %v1045 = vpack.c.b16 %v795, %v785
  %v1046 = vpack.c.b16 %v796, %v786
  %v1047 = vpack.c.b16 %v797, %v787
  %v1048 = vpack.c.b16 %v798, %v788
  %v1049 = vpack.c.b16 %v809, %v799
  %v1050 = vpack.c.b16 %v810, %v800
  %v1051 = vpack.c.b16 %v811, %v801
  %v1052 = vpack.c.b16 %v812, %v802
  %v1053 = vpack.c.b16 %v813, %v803
  %v1054 = vpack.c.b16 %v814, %v804
  %v1055 = vpack.c.b16 %v815, %v805
  %v1056 = vpack.c.b16 %v816, %v806
  %v1057 = vpack.c.b16 %v817, %v807
  %v1058 = vpack.c.b16 %v818, %v808
  %v1059 = vpack.c.b16 %v829, %v819
  %v1060 = vpack.c.b16 %v830, %v820
  %v1061 = vpack.c.b16 %v831, %v821
  %v1062 = vpack.c.b16 %v832, %v822
  %v1063 = vpack.c.b16 %v833, %v823
  %v1064 = vpack.c.b16 %v834, %v824
  %v1065 = vpack.c.b16 %v835, %v825
  %v1066 = vpack.c.b16 %v836, %v826
  %v1067 = vpack.c.b16 %v837, %v827
  %v1068 = vpack.c.b16 %v838, %v828
  %v1069 = vpack.c.b16 %v849, %v839
  %v1070 = vpack.c.b16 %v850, %v840
  %v1071 = vpack.c.b16 %v851, %v841
  %v1072 = vpack.c.b16 %v852, %v842
  %v1073 = vpack.c.b16 %v853, %v843
  %v1074 = vpack.c.b16 %v854, %v844
  %v1075 = vpack.c.b16 %v855, %v845
  %v1076 = vpack.c.b16 %v856, %v846
  %v1077 = vpack.c.b16 %v857, %v847
  %v1078 = vpack.c.b16 %v858, %v848
  %v1079 = vpack.c.b16 %v869, %v859
  %v1080 = vpack.c.b16 %v870, %v860
  %v1081 = vpack.c.b16 %v871, %v861
  %v1082 = vpack.c.b16 %v872, %v862
  %v1083 = vpack.c.b16 %v873, %v863
  %v1084 = vpack.c.b16 %v874, %v864
  %v1085 = vpack.c.b16 %v875, %v865
  %v1086 = vpack.c.b16 %v876, %v866
  %v1087 = vpack.c.b16 %v877, %v867
  %v1088 = vpack.c.b16 %v878, %v868
  %v1089 = vpack.c.b16 %v889, %v879
  %v1090 = vpack.c.b16 %v890, %v880
  %v1091 = vpack.c.b16 %v891, %v881
  %v1092 = vpack.c.b16 %v892, %v882
  %v1093 = vpack.c.b16 %v893, %v883
  %v1094 = vpack.c.b16 %v894, %v884
  %v1095 = vpack.c.b16 %v895, %v885
  %v1096 = vpack.c.b16 %v896, %v886
  %v1097 = vpack.c.b16 %v897, %v887
  %v1098 = vpack.c.b16 %v898, %v888
  %v1099 = vpack.c.b16 %v909, %v899
  %v1100 = vpack.c.b16 %v910, %v900
  %v1101 = vpack.c.b16 %v911, %v901
  %v1102 = vpack.c.b16 %v912, %v902
  %v1103 = vpack.c.b16 %v913, %v903
  %v1104 = vpack.c.b16 %v914, %v904
  %v1105 = vpack.c.b16 %v915, %v905
  %v1106 = vpack.c.b16 %v916, %v906
  %v1107 = vpack.c.b16 %v917, %v907
  %v1108 = vpack.c.b16 %v918, %v908
  %vm1289 = vcmask 359424
  %v1291 = vsel %vm1289, %v131, 0
  %v1294 = vsel %vm1289, %v134, 0
  %v1297 = vsel %vm1289, %v137, 0
  %v1300 = vsel %vm1289, %v140, 0
  %v1303 = vsel %vm1289, %v143, 0
  %vm1305 = vcmask 1045504
  %v1307 = vsel %vm1305, %v1099, 0
  %v1310 = vsel %vm1305, %v1100, 0
  %v1313 = vsel %vm1305, %v1101, 0
  %v1316 = vsel %vm1305, %v1102, 0
  %v1319 = vsel %vm1305, %v1103, 0
  %v1322 = vsel %vm1305, %v1104, 0
  %v1325 = vsel %vm1305, %v1105, 0
  %v1328 = vsel %vm1305, %v1106, 0
  %v1331 = vsel %vm1305, %v1107, 0
  %v1334 = vsel %vm1305, %v1108, 0
  %1336 = vmatprep.subr.bf16.mxu0 %v920
  %1337 = vmatpush1.bf16.msra.mxu0 %v919
  %1338 = vmatprep.subr.bf16.mxu0 %v930
  %1339 = vmatpush1.bf16.msra.mxu0 %v929
  %1340 = vmatprep.subr.bf16.mxu0 %v940
  %1341 = vmatpush1.bf16.msra.mxu0 %v939
  %1342 = vmatprep.subr.bf16.mxu0 %v950
  %1343 = vmatpush1.bf16.msra.mxu0 %v949
  %1344 = vmatprep.subr.bf16.mxu0 %v960
  %1345 = vmatpush1.bf16.msra.mxu0 %v959
  %1346 = vmatprep.subr.bf16.mxu0 %v970
  %1347 = vmatpush1.bf16.msra.mxu0 %v969
  %1348 = vmatprep.subr.bf16.mxu0 %v980
  %1349 = vmatpush1.bf16.msra.mxu0 %v979
  %1350 = vmatprep.subr.bf16.mxu0 %v990
  %1351 = vmatpush1.bf16.msra.mxu0 %v989
  %1352 = vmatprep.subr.bf16.mxu0 %v1000
  %1353 = vmatpush1.bf16.msra.mxu0 %v999
  %1354 = vmatprep.subr.bf16.mxu0 %v1010
  %1355 = vmatpush1.bf16.msra.mxu0 %v1009
  %1356 = vmatprep.subr.bf16.mxu0 %v1020
  %1357 = vmatpush1.bf16.msra.mxu0 %v1019
  %1358 = vmatprep.subr.bf16.mxu0 %v1030
  %1359 = vmatpush1.bf16.msra.mxu0 %v1029
  %1360 = vmatprep.subr.bf16.mxu0 %v1040
  %1361 = vmatpush1.bf16.msra.mxu0 %v1039
  %1362 = vmatprep.subr.bf16.mxu0 %v1050
  %1363 = vmatpush1.bf16.msra.mxu0 %v1049
  %1364 = vmatprep.subr.bf16.mxu0 %v1060
  %1365 = vmatpush1.bf16.msra.mxu0 %v1059
  %1366 = vmatprep.subr.bf16.mxu0 %v1070
  %1367 = vmatpush1.bf16.msra.mxu0 %v1069
  %1368 = vmatprep.mubr.bf16.mxu0 %v130
  %1369 = vmatmul.mubr.bf16.gmra.mrb[0].mxu0 %v129
  %v1370 = vpop.f32.mrb[0].mxu0
  %v1371 = vadd.f32 0.0, %v1370
  %v1372 = vpop.f32.mrb[0].mxu0
  %v1373 = vadd.f32 0.0, %v1372
  %v1374 = vpop.f32.mrb[0].mxu0
  %v1375 = vadd.f32 0.0, %v1374
  %v1376 = vpop.f32.mrb[0].mxu0
  %v1377 = vadd.f32 0.0, %v1376
  %1378 = vmatprep.mubr.bf16.mxu0 %v133
  %1379 = vmatmul.mubr.bf16.gmra.mrb[0].mxu0 %v132
  %v1380 = vpop.f32.mrb[0].mxu0
  %v1381 = vadd.f32 0.0, %v1380
  %v1382 = vpop.f32.mrb[0].mxu0
  %v1383 = vadd.f32 0.0, %v1382
  %v1384 = vpop.f32.mrb[0].mxu0
  %v1385 = vadd.f32 0.0, %v1384
  %v1386 = vpop.f32.mrb[0].mxu0
  %v1387 = vadd.f32 0.0, %v1386
  %1388 = vmatprep.mubr.bf16.mxu0 %v136
  %1389 = vmatmul.mubr.bf16.gmra.mrb[0].mxu0 %v135
  %v1390 = vpop.f32.mrb[0].mxu0
  %v1391 = vadd.f32 0.0, %v1390
  %v1392 = vpop.f32.mrb[0].mxu0
  %v1393 = vadd.f32 0.0, %v1392
  %v1394 = vpop.f32.mrb[0].mxu0
  %v1395 = vadd.f32 0.0, %v1394
  %v1396 = vpop.f32.mrb[0].mxu0
  %v1397 = vadd.f32 0.0, %v1396
  %1398 = vmatprep.mubr.bf16.mxu0 %v139
  %1399 = vmatmul.mubr.bf16.gmra.mrb[0].mxu0 %v138
  %v1400 = vpop.f32.mrb[0].mxu0
  %v1401 = vadd.f32 0.0, %v1400
  %v1402 = vpop.f32.mrb[0].mxu0
  %v1403 = vadd.f32 0.0, %v1402
  %v1404 = vpop.f32.mrb[0].mxu0
  %v1405 = vadd.f32 0.0, %v1404
  %v1406 = vpop.f32.mrb[0].mxu0
  %v1407 = vadd.f32 0.0, %v1406
  %1408 = vmatprep.mubr.bf16.mxu0 %v142
  %1409 = vmatmul.mubr.bf16.gmra.mrb[0].mxu0 %v141
  %v1410 = vpop.f32.mrb[0].mxu0
  %v1411 = vadd.f32 0.0, %v1410
  %v1412 = vpop.f32.mrb[0].mxu0
  %v1413 = vadd.f32 0.0, %v1412
  %v1414 = vpop.f32.mrb[0].mxu0
  %v1415 = vpop.f32.mrb[0].mxu0
  %1416 = vdwg.mxu0
  %1417 = vmatprep.subr.bf16.mxu0 %v1080
  %1418 = vmatpush1.bf16.msra.mxu0 %v1079
  %1419 = vmatprep.subr.bf16.mxu0 %v1090
  %1420 = vmatpush1.bf16.msra.mxu0 %v1089
  %1421 = vmatprep.subr.bf16.mxu0 %v1310
  %1422 = vmatpush1.bf16.msra.mxu0 %v1307
  %1423 = vmatprep.subr.bf16.mxu0 0
  %1424 = vmatpush1.bf16.msra.mxu0 0
  %1425 = vmatprep.subr.bf16.mxu0 0
  %1426 = vmatpush1.bf16.msra.mxu0 0
  %1427 = vmatprep.subr.bf16.mxu0 0
  %1428 = vmatpush1.bf16.msra.mxu0 0
  %1429 = vmatprep.subr.bf16.mxu0 0
  %1430 = vmatpush1.bf16.msra.mxu0 0
  %1431 = vmatprep.subr.bf16.mxu0 0
  %1432 = vmatpush1.bf16.msra.mxu0 0
  %1433 = vmatprep.subr.bf16.mxu0 0
  %1434 = vmatpush1.bf16.msra.mxu0 0
  %1435 = vmatprep.subr.bf16.mxu0 0
  %1436 = vmatpush1.bf16.msra.mxu0 0
  %1437 = vmatprep.subr.bf16.mxu0 0
  %1438 = vmatpush1.bf16.msra.mxu0 0
  %1439 = vmatprep.subr.bf16.mxu0 0
  %1440 = vmatpush1.bf16.msra.mxu0 0
  %1441 = vmatprep.subr.bf16.mxu0 0
  %1442 = vmatpush1.bf16.msra.mxu0 0
  %1443 = vmatprep.subr.bf16.mxu0 0
  %1444 = vmatpush1.bf16.msra.mxu0 0
  %1445 = vmatprep.subr.bf16.mxu0 0
  %1446 = vmatpush1.bf16.msra.mxu0 0
  %1447 = vmatprep.subr.bf16.mxu0 0
  %1448 = vmatpush1.bf16.msra.mxu0 0
  %1449 = vmatprep.mubr.bf16.mxu0 0
  %1450 = vmatmul.mubr.bf16.gmra.mrb[0].mxu0 %v1291
  %v1451 = vpop.f32.mrb[0].mxu0
  %v1452 = vadd.f32 %v1371, %v1451
  %v1453 = vpop.f32.mrb[0].mxu0
  %v1454 = vadd.f32 %v1373, %v1453
  %v1455 = vpop.f32.mrb[0].mxu0
  %v1456 = vadd.f32 %v1375, %v1455
  %v1457 = vpop.f32.mrb[0].mxu0
  %v1458 = vadd.f32 %v1377, %v1457
  %1459 = vmatprep.mubr.bf16.mxu0 0
  %1460 = vmatmul.mubr.bf16.gmra.mrb[0].mxu0 %v1294
  %v1461 = vpop.f32.mrb[0].mxu0
  %v1462 = vadd.f32 %v1381, %v1461
  %v1463 = vpop.f32.mrb[0].mxu0
  %v1464 = vadd.f32 %v1383, %v1463
  %v1465 = vpop.f32.mrb[0].mxu0
  %v1466 = vadd.f32 %v1385, %v1465
  %v1467 = vpop.f32.mrb[0].mxu0
  %v1468 = vadd.f32 %v1387, %v1467
  %1469 = vmatprep.mubr.bf16.mxu0 0
  %1470 = vmatmul.mubr.bf16.gmra.mrb[0].mxu0 %v1297
  %v1471 = vpop.f32.mrb[0].mxu0
  %v1472 = vadd.f32 %v1391, %v1471
  %v1473 = vpop.f32.mrb[0].mxu0
  %v1474 = vadd.f32 %v1393, %v1473
  %v1475 = vpop.f32.mrb[0].mxu0
  %v1476 = vadd.f32 %v1395, %v1475
  %v1477 = vpop.f32.mrb[0].mxu0
  %v1478 = vadd.f32 %v1397, %v1477
  %1479 = vmatprep.mubr.bf16.mxu0 0
  %1480 = vmatmul.mubr.bf16.gmra.mrb[0].mxu0 %v1300
  %v1481 = vpop.f32.mrb[0].mxu0
  %v1482 = vadd.f32 %v1401, %v1481
  %v1483 = vpop.f32.mrb[0].mxu0
  %v1484 = vadd.f32 %v1403, %v1483
  %v1485 = vpop.f32.mrb[0].mxu0
  %v1486 = vadd.f32 %v1405, %v1485
  %v1487 = vpop.f32.mrb[0].mxu0
  %v1488 = vadd.f32 %v1407, %v1487
  %1489 = vmatprep.mubr.bf16.mxu0 0
  %1490 = vmatmul.mubr.bf16.gmra.mrb[0].mxu0 %v1303
  %v1491 = vpop.f32.mrb[0].mxu0
  %v1492 = vadd.f32 %v1411, %v1491
  %v1493 = vpop.f32.mrb[0].mxu0
  %v1494 = vadd.f32 %v1413, %v1493
  %v1495 = vpop.f32.mrb[0].mxu0
  %v1496 = vpop.f32.mrb[0].mxu0
  %1497 = vdwg.mxu0
  %1498 = vmatprep.subr.bf16.mxu0 %v922
  %1499 = vmatpush1.bf16.msra.mxu0 %v921
  %1500 = vmatprep.subr.bf16.mxu0 %v932
  %1501 = vmatpush1.bf16.msra.mxu0 %v931
  %1502 = vmatprep.subr.bf16.mxu0 %v942
  %1503 = vmatpush1.bf16.msra.mxu0 %v941
  %1504 = vmatprep.subr.bf16.mxu0 %v952
  %1505 = vmatpush1.bf16.msra.mxu0 %v951
  %1506 = vmatprep.subr.bf16.mxu0 %v962
  %1507 = vmatpush1.bf16.msra.mxu0 %v961
  %1508 = vmatprep.subr.bf16.mxu0 %v972
  %1509 = vmatpush1.bf16.msra.mxu0 %v971
  %1510 = vmatprep.subr.bf16.mxu0 %v982
  %1511 = vmatpush1.bf16.msra.mxu0 %v981
  %1512 = vmatprep.subr.bf16.mxu0 %v992
  %1513 = vmatpush1.bf16.msra.mxu0 %v991
  %1514 = vmatprep.subr.bf16.mxu0 %v1002
  %1515 = vmatpush1.bf16.msra.mxu0 %v1001
  %1516 = vmatprep.subr.bf16.mxu0 %v1012
  %1517 = vmatpush1.bf16.msra.mxu0 %v1011
  %1518 = vmatprep.subr.bf16.mxu0 %v1022
  %1519 = vmatpush1.bf16.msra.mxu0 %v1021
  %1520 = vmatprep.subr.bf16.mxu0 %v1032
  %1521 = vmatpush1.bf16.msra.mxu0 %v1031
  %1522 = vmatprep.subr.bf16.mxu0 %v1042
  %1523 = vmatpush1.bf16.msra.mxu0 %v1041
  %1524 = vmatprep.subr.bf16.mxu0 %v1052
  %1525 = vmatpush1.bf16.msra.mxu0 %v1051
  %1526 = vmatprep.subr.bf16.mxu0 %v1062
  %1527 = vmatpush1.bf16.msra.mxu0 %v1061
  %1528 = vmatprep.subr.bf16.mxu0 %v1072
  %1529 = vmatpush1.bf16.msra.mxu0 %v1071
  %1530 = vmatprep.mubr.bf16.mxu0 %v130
  %1531 = vmatmul.mubr.bf16.gmra.mrb[0].mxu0 %v129
  %v1532 = vpop.f32.mrb[0].mxu0
  %v1533 = vadd.f32 0.0, %v1532
  %v1534 = vpop.f32.mrb[0].mxu0
  %v1535 = vadd.f32 0.0, %v1534
  %v1536 = vpop.f32.mrb[0].mxu0
  %v1537 = vadd.f32 0.0, %v1536
  %v1538 = vpop.f32.mrb[0].mxu0
  %v1539 = vadd.f32 0.0, %v1538
  %1540 = vmatprep.mubr.bf16.mxu0 %v133
  %1541 = vmatmul.mubr.bf16.gmra.mrb[0].mxu0 %v132
  %v1542 = vpop.f32.mrb[0].mxu0
  %v1543 = vadd.f32 0.0, %v1542
  %v1544 = vpop.f32.mrb[0].mxu0
  %v1545 = vadd.f32 0.0, %v1544
  %v1546 = vpop.f32.mrb[0].mxu0
  %v1547 = vadd.f32 0.0, %v1546
  %v1548 = vpop.f32.mrb[0].mxu0
  %v1549 = vadd.f32 0.0, %v1548
  %1550 = vmatprep.mubr.bf16.mxu0 %v136
  %1551 = vmatmul.mubr.bf16.gmra.mrb[0].mxu0 %v135
  %v1552 = vpop.f32.mrb[0].mxu0
  %v1553 = vadd.f32 0.0, %v1552
  %v1554 = vpop.f32.mrb[0].mxu0
  %v1555 = vadd.f32 0.0, %v1554
  %v1556 = vpop.f32.mrb[0].mxu0
  %v1557 = vadd.f32 0.0, %v1556
  %v1558 = vpop.f32.mrb[0].mxu0
  %v1559 = vadd.f32 0.0, %v1558
  %1560 = vmatprep.mubr.bf16.mxu0 %v139
  %1561 = vmatmul.mubr.bf16.gmra.mrb[0].mxu0 %v138
  %v1562 = vpop.f32.mrb[0].mxu0
  %v1563 = vadd.f32 0.0, %v1562
  %v1564 = vpop.f32.mrb[0].mxu0
  %v1565 = vadd.f32 0.0, %v1564
  %v1566 = vpop.f32.mrb[0].mxu0
  %v1567 = vadd.f32 0.0, %v1566
  %v1568 = vpop.f32.mrb[0].mxu0
  %v1569 = vadd.f32 0.0, %v1568
  %1570 = vmatprep.mubr.bf16.mxu0 %v142
  %1571 = vmatmul.mubr.bf16.gmra.mrb[0].mxu0 %v141
  %v1572 = vpop.f32.mrb[0].mxu0
  %v1573 = vadd.f32 0.0, %v1572
  %v1574 = vpop.f32.mrb[0].mxu0
  %v1575 = vadd.f32 0.0, %v1574
  %v1576 = vpop.f32.mrb[0].mxu0
  %v1577 = vpop.f32.mrb[0].mxu0
  %1578 = vdwg.mxu0
  %1579 = vmatprep.subr.bf16.mxu0 %v1082
  %1580 = vmatpush1.bf16.msra.mxu0 %v1081
  %1581 = vmatprep.subr.bf16.mxu0 %v1092
  %1582 = vmatpush1.bf16.msra.mxu0 %v1091
  %1583 = vmatprep.subr.bf16.mxu0 %v1316
  %1584 = vmatpush1.bf16.msra.mxu0 %v1313
  %1585 = vmatprep.subr.bf16.mxu0 0
  %1586 = vmatpush1.bf16.msra.mxu0 0
  %1587 = vmatprep.subr.bf16.mxu0 0
  %1588 = vmatpush1.bf16.msra.mxu0 0
  %1589 = vmatprep.subr.bf16.mxu0 0
  %1590 = vmatpush1.bf16.msra.mxu0 0
  %1591 = vmatprep.subr.bf16.mxu0 0
  %1592 = vmatpush1.bf16.msra.mxu0 0
  %1593 = vmatprep.subr.bf16.mxu0 0
  %1594 = vmatpush1.bf16.msra.mxu0 0
  %1595 = vmatprep.subr.bf16.mxu0 0
  %1596 = vmatpush1.bf16.msra.mxu0 0
  %1597 = vmatprep.subr.bf16.mxu0 0
  %1598 = vmatpush1.bf16.msra.mxu0 0
  %1599 = vmatprep.subr.bf16.mxu0 0
  %1600 = vmatpush1.bf16.msra.mxu0 0
  %1601 = vmatprep.subr.bf16.mxu0 0
  %1602 = vmatpush1.bf16.msra.mxu0 0
  %1603 = vmatprep.subr.bf16.mxu0 0
  %1604 = vmatpush1.bf16.msra.mxu0 0
  %1605 = vmatprep.subr.bf16.mxu0 0
  %1606 = vmatpush1.bf16.msra.mxu0 0
  %1607 = vmatprep.subr.bf16.mxu0 0
  %1608 = vmatpush1.bf16.msra.mxu0 0
  %1609 = vmatprep.subr.bf16.mxu0 0
  %1610 = vmatpush1.bf16.msra.mxu0 0
  %1611 = vmatprep.mubr.bf16.mxu0 0
  %1612 = vmatmul.mubr.bf16.gmra.mrb[0].mxu0 %v1291
  %v1613 = vpop.f32.mrb[0].mxu0
  %v1614 = vadd.f32 %v1533, %v1613
  %v1615 = vpop.f32.mrb[0].mxu0
  %v1616 = vadd.f32 %v1535, %v1615
  %v1617 = vpop.f32.mrb[0].mxu0
  %v1618 = vadd.f32 %v1537, %v1617
  %v1619 = vpop.f32.mrb[0].mxu0
  %v1620 = vadd.f32 %v1539, %v1619
  %1621 = vmatprep.mubr.bf16.mxu0 0
  %1622 = vmatmul.mubr.bf16.gmra.mrb[0].mxu0 %v1294
  %v1623 = vpop.f32.mrb[0].mxu0
  %v1624 = vadd.f32 %v1543, %v1623
  %v1625 = vpop.f32.mrb[0].mxu0
  %v1626 = vadd.f32 %v1545, %v1625
  %v1627 = vpop.f32.mrb[0].mxu0
  %v1628 = vadd.f32 %v1547, %v1627
  %v1629 = vpop.f32.mrb[0].mxu0
  %v1630 = vadd.f32 %v1549, %v1629
  %1631 = vmatprep.mubr.bf16.mxu0 0
  %1632 = vmatmul.mubr.bf16.gmra.mrb[0].mxu0 %v1297
  %v1633 = vpop.f32.mrb[0].mxu0
  %v1634 = vadd.f32 %v1553, %v1633
  %v1635 = vpop.f32.mrb[0].mxu0
  %v1636 = vadd.f32 %v1555, %v1635
  %v1637 = vpop.f32.mrb[0].mxu0
  %v1638 = vadd.f32 %v1557, %v1637
  %v1639 = vpop.f32.mrb[0].mxu0
  %v1640 = vadd.f32 %v1559, %v1639
  %1641 = vmatprep.mubr.bf16.mxu0 0
  %1642 = vmatmul.mubr.bf16.gmra.mrb[0].mxu0 %v1300
  %v1643 = vpop.f32.mrb[0].mxu0
  %v1644 = vadd.f32 %v1563, %v1643
  %v1645 = vpop.f32.mrb[0].mxu0
  %v1646 = vadd.f32 %v1565, %v1645
  %v1647 = vpop.f32.mrb[0].mxu0
  %v1648 = vadd.f32 %v1567, %v1647
  %v1649 = vpop.f32.mrb[0].mxu0
  %v1650 = vadd.f32 %v1569, %v1649
  %1651 = vmatprep.mubr.bf16.mxu0 0
  %1652 = vmatmul.mubr.bf16.gmra.mrb[0].mxu0 %v1303
  %v1653 = vpop.f32.mrb[0].mxu0
  %v1654 = vadd.f32 %v1573, %v1653
  %v1655 = vpop.f32.mrb[0].mxu0
  %v1656 = vadd.f32 %v1575, %v1655
  %v1657 = vpop.f32.mrb[0].mxu0
  %v1658 = vpop.f32.mrb[0].mxu0
  %1659 = vdwg.mxu0
  %1660 = vmatprep.subr.bf16.mxu0 %v924
  %1661 = vmatpush1.bf16.msra.mxu0 %v923
  %1662 = vmatprep.subr.bf16.mxu0 %v934
  %1663 = vmatpush1.bf16.msra.mxu0 %v933
  %1664 = vmatprep.subr.bf16.mxu0 %v944
  %1665 = vmatpush1.bf16.msra.mxu0 %v943
  %1666 = vmatprep.subr.bf16.mxu0 %v954
  %1667 = vmatpush1.bf16.msra.mxu0 %v953
  %1668 = vmatprep.subr.bf16.mxu0 %v964
  %1669 = vmatpush1.bf16.msra.mxu0 %v963
  %1670 = vmatprep.subr.bf16.mxu0 %v974
  %1671 = vmatpush1.bf16.msra.mxu0 %v973
  %1672 = vmatprep.subr.bf16.mxu0 %v984
  %1673 = vmatpush1.bf16.msra.mxu0 %v983
  %1674 = vmatprep.subr.bf16.mxu0 %v994
  %1675 = vmatpush1.bf16.msra.mxu0 %v993
  %1676 = vmatprep.subr.bf16.mxu0 %v1004
  %1677 = vmatpush1.bf16.msra.mxu0 %v1003
  %1678 = vmatprep.subr.bf16.mxu0 %v1014
  %1679 = vmatpush1.bf16.msra.mxu0 %v1013
  %1680 = vmatprep.subr.bf16.mxu0 %v1024
  %1681 = vmatpush1.bf16.msra.mxu0 %v1023
  %1682 = vmatprep.subr.bf16.mxu0 %v1034
  %1683 = vmatpush1.bf16.msra.mxu0 %v1033
  %1684 = vmatprep.subr.bf16.mxu0 %v1044
  %1685 = vmatpush1.bf16.msra.mxu0 %v1043
  %1686 = vmatprep.subr.bf16.mxu0 %v1054
  %1687 = vmatpush1.bf16.msra.mxu0 %v1053
  %1688 = vmatprep.subr.bf16.mxu0 %v1064
  %1689 = vmatpush1.bf16.msra.mxu0 %v1063
  %1690 = vmatprep.subr.bf16.mxu0 %v1074
  %1691 = vmatpush1.bf16.msra.mxu0 %v1073
  %1692 = vmatprep.mubr.bf16.mxu0 %v130
  %1693 = vmatmul.mubr.bf16.gmra.mrb[0].mxu0 %v129
  %v1694 = vpop.f32.mrb[0].mxu0
  %v1695 = vadd.f32 0.0, %v1694
  %v1696 = vpop.f32.mrb[0].mxu0
  %v1697 = vadd.f32 0.0, %v1696
  %v1698 = vpop.f32.mrb[0].mxu0
  %v1699 = vadd.f32 0.0, %v1698
  %v1700 = vpop.f32.mrb[0].mxu0
  %v1701 = vadd.f32 0.0, %v1700
  %1702 = vmatprep.mubr.bf16.mxu0 %v133
  %1703 = vmatmul.mubr.bf16.gmra.mrb[0].mxu0 %v132
  %v1704 = vpop.f32.mrb[0].mxu0
  %v1705 = vadd.f32 0.0, %v1704
  %v1706 = vpop.f32.mrb[0].mxu0
  %v1707 = vadd.f32 0.0, %v1706
  %v1708 = vpop.f32.mrb[0].mxu0
  %v1709 = vadd.f32 0.0, %v1708
  %v1710 = vpop.f32.mrb[0].mxu0
  %v1711 = vadd.f32 0.0, %v1710
  %1712 = vmatprep.mubr.bf16.mxu0 %v136
  %1713 = vmatmul.mubr.bf16.gmra.mrb[0].mxu0 %v135
  %v1714 = vpop.f32.mrb[0].mxu0
  %v1715 = vadd.f32 0.0, %v1714
  %v1716 = vpop.f32.mrb[0].mxu0
  %v1717 = vadd.f32 0.0, %v1716
  %v1718 = vpop.f32.mrb[0].mxu0
  %v1719 = vadd.f32 0.0, %v1718
  %v1720 = vpop.f32.mrb[0].mxu0
  %v1721 = vadd.f32 0.0, %v1720
  %1722 = vmatprep.mubr.bf16.mxu0 %v139
  %1723 = vmatmul.mubr.bf16.gmra.mrb[0].mxu0 %v138
  %v1724 = vpop.f32.mrb[0].mxu0
  %v1725 = vadd.f32 0.0, %v1724
  %v1726 = vpop.f32.mrb[0].mxu0
  %v1727 = vadd.f32 0.0, %v1726
  %v1728 = vpop.f32.mrb[0].mxu0
  %v1729 = vadd.f32 0.0, %v1728
  %v1730 = vpop.f32.mrb[0].mxu0
  %v1731 = vadd.f32 0.0, %v1730
  %1732 = vmatprep.mubr.bf16.mxu0 %v142
  %1733 = vmatmul.mubr.bf16.gmra.mrb[0].mxu0 %v141
  %v1734 = vpop.f32.mrb[0].mxu0
  %v1735 = vadd.f32 0.0, %v1734
  %v1736 = vpop.f32.mrb[0].mxu0
  %v1737 = vadd.f32 0.0, %v1736
  %v1738 = vpop.f32.mrb[0].mxu0
  %v1739 = vpop.f32.mrb[0].mxu0
  %1740 = vdwg.mxu0
  %1741 = vmatprep.subr.bf16.mxu0 %v1084
  %1742 = vmatpush1.bf16.msra.mxu0 %v1083
  %1743 = vmatprep.subr.bf16.mxu0 %v1094
  %1744 = vmatpush1.bf16.msra.mxu0 %v1093
  %1745 = vmatprep.subr.bf16.mxu0 %v1322
  %1746 = vmatpush1.bf16.msra.mxu0 %v1319
  %1747 = vmatprep.subr.bf16.mxu0 0
  %1748 = vmatpush1.bf16.msra.mxu0 0
  %1749 = vmatprep.subr.bf16.mxu0 0
  %1750 = vmatpush1.bf16.msra.mxu0 0
  %1751 = vmatprep.subr.bf16.mxu0 0
  %1752 = vmatpush1.bf16.msra.mxu0 0
  %1753 = vmatprep.subr.bf16.mxu0 0
  %1754 = vmatpush1.bf16.msra.mxu0 0
  %1755 = vmatprep.subr.bf16.mxu0 0
  %1756 = vmatpush1.bf16.msra.mxu0 0
  %1757 = vmatprep.subr.bf16.mxu0 0
  %1758 = vmatpush1.bf16.msra.mxu0 0
  %1759 = vmatprep.subr.bf16.mxu0 0
  %1760 = vmatpush1.bf16.msra.mxu0 0
  %1761 = vmatprep.subr.bf16.mxu0 0
  %1762 = vmatpush1.bf16.msra.mxu0 0
  %1763 = vmatprep.subr.bf16.mxu0 0
  %1764 = vmatpush1.bf16.msra.mxu0 0
  %1765 = vmatprep.subr.bf16.mxu0 0
  %1766 = vmatpush1.bf16.msra.mxu0 0
  %1767 = vmatprep.subr.bf16.mxu0 0
  %1768 = vmatpush1.bf16.msra.mxu0 0
  %1769 = vmatprep.subr.bf16.mxu0 0
  %1770 = vmatpush1.bf16.msra.mxu0 0
  %1771 = vmatprep.subr.bf16.mxu0 0
  %1772 = vmatpush1.bf16.msra.mxu0 0
  %1773 = vmatprep.mubr.bf16.mxu0 0
  %1774 = vmatmul.mubr.bf16.gmra.mrb[0].mxu0 %v1291
  %v1775 = vpop.f32.mrb[0].mxu0
  %v1776 = vadd.f32 %v1695, %v1775
  %v1777 = vpop.f32.mrb[0].mxu0
  %v1778 = vadd.f32 %v1697, %v1777
  %v1779 = vpop.f32.mrb[0].mxu0
  %v1780 = vadd.f32 %v1699, %v1779
  %v1781 = vpop.f32.mrb[0].mxu0
  %v1782 = vadd.f32 %v1701, %v1781
  %1783 = vmatprep.mubr.bf16.mxu0 0
  %1784 = vmatmul.mubr.bf16.gmra.mrb[0].mxu0 %v1294
  %v1785 = vpop.f32.mrb[0].mxu0
  %v1786 = vadd.f32 %v1705, %v1785
  %v1787 = vpop.f32.mrb[0].mxu0
  %v1788 = vadd.f32 %v1707, %v1787
  %v1789 = vpop.f32.mrb[0].mxu0
  %v1790 = vadd.f32 %v1709, %v1789
  %v1791 = vpop.f32.mrb[0].mxu0
  %v1792 = vadd.f32 %v1711, %v1791
  %1793 = vmatprep.mubr.bf16.mxu0 0
  %1794 = vmatmul.mubr.bf16.gmra.mrb[0].mxu0 %v1297
  %v1795 = vpop.f32.mrb[0].mxu0
  %v1796 = vadd.f32 %v1715, %v1795
  %v1797 = vpop.f32.mrb[0].mxu0
  %v1798 = vadd.f32 %v1717, %v1797
  %v1799 = vpop.f32.mrb[0].mxu0
  %v1800 = vadd.f32 %v1719, %v1799
  %v1801 = vpop.f32.mrb[0].mxu0
  %v1802 = vadd.f32 %v1721, %v1801
  %1803 = vmatprep.mubr.bf16.mxu0 0
  %1804 = vmatmul.mubr.bf16.gmra.mrb[0].mxu0 %v1300
  %v1805 = vpop.f32.mrb[0].mxu0
  %v1806 = vadd.f32 %v1725, %v1805
  %v1807 = vpop.f32.mrb[0].mxu0
  %v1808 = vadd.f32 %v1727, %v1807
  %v1809 = vpop.f32.mrb[0].mxu0
  %v1810 = vadd.f32 %v1729, %v1809
  %v1811 = vpop.f32.mrb[0].mxu0
  %v1812 = vadd.f32 %v1731, %v1811
  %1813 = vmatprep.mubr.bf16.mxu0 0
  %1814 = vmatmul.mubr.bf16.gmra.mrb[0].mxu0 %v1303
  %v1815 = vpop.f32.mrb[0].mxu0
  %v1816 = vadd.f32 %v1735, %v1815
  %v1817 = vpop.f32.mrb[0].mxu0
  %v1818 = vadd.f32 %v1737, %v1817
  %v1819 = vpop.f32.mrb[0].mxu0
  %v1820 = vpop.f32.mrb[0].mxu0
  %1821 = vdwg.mxu0
  %1822 = vmatprep.subr.bf16.mxu0 %v926
  %1823 = vmatpush1.bf16.msra.mxu0 %v925
  %1824 = vmatprep.subr.bf16.mxu0 %v936
  %1825 = vmatpush1.bf16.msra.mxu0 %v935
  %1826 = vmatprep.subr.bf16.mxu0 %v946
  %1827 = vmatpush1.bf16.msra.mxu0 %v945
  %1828 = vmatprep.subr.bf16.mxu0 %v956
  %1829 = vmatpush1.bf16.msra.mxu0 %v955
  %1830 = vmatprep.subr.bf16.mxu0 %v966
  %1831 = vmatpush1.bf16.msra.mxu0 %v965
  %1832 = vmatprep.subr.bf16.mxu0 %v976
  %1833 = vmatpush1.bf16.msra.mxu0 %v975
  %1834 = vmatprep.subr.bf16.mxu0 %v986
  %1835 = vmatpush1.bf16.msra.mxu0 %v985
  %1836 = vmatprep.subr.bf16.mxu0 %v996
  %1837 = vmatpush1.bf16.msra.mxu0 %v995
  %1838 = vmatprep.subr.bf16.mxu0 %v1006
  %1839 = vmatpush1.bf16.msra.mxu0 %v1005
  %1840 = vmatprep.subr.bf16.mxu0 %v1016
  %1841 = vmatpush1.bf16.msra.mxu0 %v1015
  %1842 = vmatprep.subr.bf16.mxu0 %v1026
  %1843 = vmatpush1.bf16.msra.mxu0 %v1025
  %1844 = vmatprep.subr.bf16.mxu0 %v1036
  %1845 = vmatpush1.bf16.msra.mxu0 %v1035
  %1846 = vmatprep.subr.bf16.mxu0 %v1046
  %1847 = vmatpush1.bf16.msra.mxu0 %v1045
  %1848 = vmatprep.subr.bf16.mxu0 %v1056
  %1849 = vmatpush1.bf16.msra.mxu0 %v1055
  %1850 = vmatprep.subr.bf16.mxu0 %v1066
  %1851 = vmatpush1.bf16.msra.mxu0 %v1065
  %1852 = vmatprep.subr.bf16.mxu0 %v1076
  %1853 = vmatpush1.bf16.msra.mxu0 %v1075
  %1854 = vmatprep.mubr.bf16.mxu0 %v130
  %1855 = vmatmul.mubr.bf16.gmra.mrb[0].mxu0 %v129
  %v1856 = vpop.f32.mrb[0].mxu0
  %v1857 = vadd.f32 0.0, %v1856
  %v1858 = vpop.f32.mrb[0].mxu0
  %v1859 = vadd.f32 0.0, %v1858
  %v1860 = vpop.f32.mrb[0].mxu0
  %v1861 = vadd.f32 0.0, %v1860
  %v1862 = vpop.f32.mrb[0].mxu0
  %v1863 = vadd.f32 0.0, %v1862
  %1864 = vmatprep.mubr.bf16.mxu0 %v133
  %1865 = vmatmul.mubr.bf16.gmra.mrb[0].mxu0 %v132
  %v1866 = vpop.f32.mrb[0].mxu0
  %v1867 = vadd.f32 0.0, %v1866
  %v1868 = vpop.f32.mrb[0].mxu0
  %v1869 = vadd.f32 0.0, %v1868
  %v1870 = vpop.f32.mrb[0].mxu0
  %v1871 = vadd.f32 0.0, %v1870
  %v1872 = vpop.f32.mrb[0].mxu0
  %v1873 = vadd.f32 0.0, %v1872
  %1874 = vmatprep.mubr.bf16.mxu0 %v136
  %1875 = vmatmul.mubr.bf16.gmra.mrb[0].mxu0 %v135
  %v1876 = vpop.f32.mrb[0].mxu0
  %v1877 = vadd.f32 0.0, %v1876
  %v1878 = vpop.f32.mrb[0].mxu0
  %v1879 = vadd.f32 0.0, %v1878
  %v1880 = vpop.f32.mrb[0].mxu0
  %v1881 = vadd.f32 0.0, %v1880
  %v1882 = vpop.f32.mrb[0].mxu0
  %v1883 = vadd.f32 0.0, %v1882
  %1884 = vmatprep.mubr.bf16.mxu0 %v139
  %1885 = vmatmul.mubr.bf16.gmra.mrb[0].mxu0 %v138
  %v1886 = vpop.f32.mrb[0].mxu0
  %v1887 = vadd.f32 0.0, %v1886
  %v1888 = vpop.f32.mrb[0].mxu0
  %v1889 = vadd.f32 0.0, %v1888
  %v1890 = vpop.f32.mrb[0].mxu0
  %v1891 = vadd.f32 0.0, %v1890
  %v1892 = vpop.f32.mrb[0].mxu0
  %v1893 = vadd.f32 0.0, %v1892
  %1894 = vmatprep.mubr.bf16.mxu0 %v142
  %1895 = vmatmul.mubr.bf16.gmra.mrb[0].mxu0 %v141
  %v1896 = vpop.f32.mrb[0].mxu0
  %v1897 = vadd.f32 0.0, %v1896
  %v1898 = vpop.f32.mrb[0].mxu0
  %v1899 = vadd.f32 0.0, %v1898
  %v1900 = vpop.f32.mrb[0].mxu0
  %v1901 = vpop.f32.mrb[0].mxu0
  %1902 = vdwg.mxu0
  %1903 = vmatprep.subr.bf16.mxu0 %v1086
  %1904 = vmatpush1.bf16.msra.mxu0 %v1085
  %1905 = vmatprep.subr.bf16.mxu0 %v1096
  %1906 = vmatpush1.bf16.msra.mxu0 %v1095
  %1907 = vmatprep.subr.bf16.mxu0 %v1328
  %1908 = vmatpush1.bf16.msra.mxu0 %v1325
  %1909 = vmatprep.subr.bf16.mxu0 0
  %1910 = vmatpush1.bf16.msra.mxu0 0
  %1911 = vmatprep.subr.bf16.mxu0 0
  %1912 = vmatpush1.bf16.msra.mxu0 0
  %1913 = vmatprep.subr.bf16.mxu0 0
  %1914 = vmatpush1.bf16.msra.mxu0 0
  %1915 = vmatprep.subr.bf16.mxu0 0
  %1916 = vmatpush1.bf16.msra.mxu0 0
  %1917 = vmatprep.subr.bf16.mxu0 0
  %1918 = vmatpush1.bf16.msra.mxu0 0
  %1919 = vmatprep.subr.bf16.mxu0 0
  %1920 = vmatpush1.bf16.msra.mxu0 0
  %1921 = vmatprep.subr.bf16.mxu0 0
  %1922 = vmatpush1.bf16.msra.mxu0 0
  %1923 = vmatprep.subr.bf16.mxu0 0
  %1924 = vmatpush1.bf16.msra.mxu0 0
  %1925 = vmatprep.subr.bf16.mxu0 0
  %1926 = vmatpush1.bf16.msra.mxu0 0
  %1927 = vmatprep.subr.bf16.mxu0 0
  %1928 = vmatpush1.bf16.msra.mxu0 0
  %1929 = vmatprep.subr.bf16.mxu0 0
  %1930 = vmatpush1.bf16.msra.mxu0 0
  %1931 = vmatprep.subr.bf16.mxu0 0
  %1932 = vmatpush1.bf16.msra.mxu0 0
  %1933 = vmatprep.subr.bf16.mxu0 0
  %1934 = vmatpush1.bf16.msra.mxu0 0
  %1935 = vmatprep.mubr.bf16.mxu0 0
  %1936 = vmatmul.mubr.bf16.gmra.mrb[0].mxu0 %v1291
  %v1937 = vpop.f32.mrb[0].mxu0
  %v1938 = vadd.f32 %v1857, %v1937
  %v1939 = vpop.f32.mrb[0].mxu0
  %v1940 = vadd.f32 %v1859, %v1939
  %v1941 = vpop.f32.mrb[0].mxu0
  %v1942 = vadd.f32 %v1861, %v1941
  %v1943 = vpop.f32.mrb[0].mxu0
  %v1944 = vadd.f32 %v1863, %v1943
  %1945 = vmatprep.mubr.bf16.mxu0 0
  %1946 = vmatmul.mubr.bf16.gmra.mrb[0].mxu0 %v1294
  %v1947 = vpop.f32.mrb[0].mxu0
  %v1948 = vadd.f32 %v1867, %v1947
  %v1949 = vpop.f32.mrb[0].mxu0
  %v1950 = vadd.f32 %v1869, %v1949
  %v1951 = vpop.f32.mrb[0].mxu0
  %v1952 = vadd.f32 %v1871, %v1951
  %v1953 = vpop.f32.mrb[0].mxu0
  %v1954 = vadd.f32 %v1873, %v1953
  %1955 = vmatprep.mubr.bf16.mxu0 0
  %1956 = vmatmul.mubr.bf16.gmra.mrb[0].mxu0 %v1297
  %v1957 = vpop.f32.mrb[0].mxu0
  %v1958 = vadd.f32 %v1877, %v1957
  %v1959 = vpop.f32.mrb[0].mxu0
  %v1960 = vadd.f32 %v1879, %v1959
  %v1961 = vpop.f32.mrb[0].mxu0
  %v1962 = vadd.f32 %v1881, %v1961
  %v1963 = vpop.f32.mrb[0].mxu0
  %v1964 = vadd.f32 %v1883, %v1963
  %1965 = vmatprep.mubr.bf16.mxu0 0
  %1966 = vmatmul.mubr.bf16.gmra.mrb[0].mxu0 %v1300
  %v1967 = vpop.f32.mrb[0].mxu0
  %v1968 = vadd.f32 %v1887, %v1967
  %v1969 = vpop.f32.mrb[0].mxu0
  %v1970 = vadd.f32 %v1889, %v1969
  %v1971 = vpop.f32.mrb[0].mxu0
  %v1972 = vadd.f32 %v1891, %v1971
  %v1973 = vpop.f32.mrb[0].mxu0
  %v1974 = vadd.f32 %v1893, %v1973
  %1975 = vmatprep.mubr.bf16.mxu0 0
  %1976 = vmatmul.mubr.bf16.gmra.mrb[0].mxu0 %v1303
  %v1977 = vpop.f32.mrb[0].mxu0
  %v1978 = vadd.f32 %v1897, %v1977
  %v1979 = vpop.f32.mrb[0].mxu0
  %v1980 = vadd.f32 %v1899, %v1979
  %v1981 = vpop.f32.mrb[0].mxu0
  %v1982 = vpop.f32.mrb[0].mxu0
  %1983 = vdwg.mxu0
  %1984 = vmatprep.subr.bf16.mxu0 %v928
  %1985 = vmatpush1.bf16.msra.mxu0 %v927
  %1986 = vmatprep.subr.bf16.mxu0 %v938
  %1987 = vmatpush1.bf16.msra.mxu0 %v937
  %1988 = vmatprep.subr.bf16.mxu0 %v948
  %1989 = vmatpush1.bf16.msra.mxu0 %v947
  %1990 = vmatprep.subr.bf16.mxu0 %v958
  %1991 = vmatpush1.bf16.msra.mxu0 %v957
  %1992 = vmatprep.subr.bf16.mxu0 %v968
  %1993 = vmatpush1.bf16.msra.mxu0 %v967
  %1994 = vmatprep.subr.bf16.mxu0 %v978
  %1995 = vmatpush1.bf16.msra.mxu0 %v977
  %1996 = vmatprep.subr.bf16.mxu0 %v988
  %1997 = vmatpush1.bf16.msra.mxu0 %v987
  %1998 = vmatprep.subr.bf16.mxu0 %v998
  %1999 = vmatpush1.bf16.msra.mxu0 %v997
  %2000 = vmatprep.subr.bf16.mxu0 %v1008
  %2001 = vmatpush1.bf16.msra.mxu0 %v1007
  %2002 = vmatprep.subr.bf16.mxu0 %v1018
  %2003 = vmatpush1.bf16.msra.mxu0 %v1017
  %2004 = vmatprep.subr.bf16.mxu0 %v1028
  %2005 = vmatpush1.bf16.msra.mxu0 %v1027
  %2006 = vmatprep.subr.bf16.mxu0 %v1038
  %2007 = vmatpush1.bf16.msra.mxu0 %v1037
  %2008 = vmatprep.subr.bf16.mxu0 %v1048
  %2009 = vmatpush1.bf16.msra.mxu0 %v1047
  %2010 = vmatprep.subr.bf16.mxu0 %v1058
  %2011 = vmatpush1.bf16.msra.mxu0 %v1057
  %2012 = vmatprep.subr.bf16.mxu0 %v1068
  %2013 = vmatpush1.bf16.msra.mxu0 %v1067
  %2014 = vmatprep.subr.bf16.mxu0 %v1078
  %2015 = vmatpush1.bf16.msra.mxu0 %v1077
  %2016 = vmatprep.mubr.bf16.mxu0 %v130
  %2017 = vmatmul.mubr.bf16.gmra.mrb[0].mxu0 %v129
  %v2018 = vpop.f32.mrb[0].mxu0
  %v2019 = vadd.f32 0.0, %v2018
  %v2020 = vpop.f32.mrb[0].mxu0
  %v2021 = vadd.f32 0.0, %v2020
  %v2022 = vpop.f32.mrb[0].mxu0
  %v2023 = vadd.f32 0.0, %v2022
  %v2024 = vpop.f32.mrb[0].mxu0
  %v2025 = vadd.f32 0.0, %v2024
  %2026 = vmatprep.mubr.bf16.mxu0 %v133
  %2027 = vmatmul.mubr.bf16.gmra.mrb[0].mxu0 %v132
  %v2028 = vpop.f32.mrb[0].mxu0
  %v2029 = vadd.f32 0.0, %v2028
  %v2030 = vpop.f32.mrb[0].mxu0
  %v2031 = vadd.f32 0.0, %v2030
  %v2032 = vpop.f32.mrb[0].mxu0
  %v2033 = vadd.f32 0.0, %v2032
  %v2034 = vpop.f32.mrb[0].mxu0
  %v2035 = vadd.f32 0.0, %v2034
  %2036 = vmatprep.mubr.bf16.mxu0 %v136
  %2037 = vmatmul.mubr.bf16.gmra.mrb[0].mxu0 %v135
  %v2038 = vpop.f32.mrb[0].mxu0
  %v2039 = vadd.f32 0.0, %v2038
  %v2040 = vpop.f32.mrb[0].mxu0
  %v2041 = vadd.f32 0.0, %v2040
  %v2042 = vpop.f32.mrb[0].mxu0
  %v2043 = vadd.f32 0.0, %v2042
  %v2044 = vpop.f32.mrb[0].mxu0
  %v2045 = vadd.f32 0.0, %v2044
  %2046 = vmatprep.mubr.bf16.mxu0 %v139
  %2047 = vmatmul.mubr.bf16.gmra.mrb[0].mxu0 %v138
  %v2048 = vpop.f32.mrb[0].mxu0
  %v2049 = vadd.f32 0.0, %v2048
  %v2050 = vpop.f32.mrb[0].mxu0
  %v2051 = vadd.f32 0.0, %v2050
  %v2052 = vpop.f32.mrb[0].mxu0
  %v2053 = vadd.f32 0.0, %v2052
  %v2054 = vpop.f32.mrb[0].mxu0
  %v2055 = vadd.f32 0.0, %v2054
  %2056 = vmatprep.mubr.bf16.mxu0 %v142
  %2057 = vmatmul.mubr.bf16.gmra.mrb[0].mxu0 %v141
  %v2058 = vpop.f32.mrb[0].mxu0
  %v2059 = vadd.f32 0.0, %v2058
  %v2060 = vpop.f32.mrb[0].mxu0
  %v2061 = vadd.f32 0.0, %v2060
  %v2062 = vpop.f32.mrb[0].mxu0
  %v2063 = vpop.f32.mrb[0].mxu0
  %2064 = vdwg.mxu0
  %2065 = vmatprep.subr.bf16.mxu0 %v1088
  %2066 = vmatpush1.bf16.msra.mxu0 %v1087
  %2067 = vmatprep.subr.bf16.mxu0 %v1098
  %2068 = vmatpush1.bf16.msra.mxu0 %v1097
  %2069 = vmatprep.subr.bf16.mxu0 %v1334
  %2070 = vmatpush1.bf16.msra.mxu0 %v1331
  %2071 = vmatprep.subr.bf16.mxu0 0
  %2072 = vmatpush1.bf16.msra.mxu0 0
  %2073 = vmatprep.subr.bf16.mxu0 0
  %2074 = vmatpush1.bf16.msra.mxu0 0
  %2075 = vmatprep.subr.bf16.mxu0 0
  %2076 = vmatpush1.bf16.msra.mxu0 0
  %2077 = vmatprep.subr.bf16.mxu0 0
  %2078 = vmatpush1.bf16.msra.mxu0 0
  %2079 = vmatprep.subr.bf16.mxu0 0
  %2080 = vmatpush1.bf16.msra.mxu0 0
  %2081 = vmatprep.subr.bf16.mxu0 0
  %2082 = vmatpush1.bf16.msra.mxu0 0
  %2083 = vmatprep.subr.bf16.mxu0 0
  %2084 = vmatpush1.bf16.msra.mxu0 0
  %2085 = vmatprep.subr.bf16.mxu0 0
  %2086 = vmatpush1.bf16.msra.mxu0 0
  %2087 = vmatprep.subr.bf16.mxu0 0
  %2088 = vmatpush1.bf16.msra.mxu0 0
  %2089 = vmatprep.subr.bf16.mxu0 0
  %2090 = vmatpush1.bf16.msra.mxu0 0
  %2091 = vmatprep.subr.bf16.mxu0 0
  %2092 = vmatpush1.bf16.msra.mxu0 0
  %2093 = vmatprep.subr.bf16.mxu0 0
  %2094 = vmatpush1.bf16.msra.mxu0 0
  %2095 = vmatprep.subr.bf16.mxu0 0
  %2096 = vmatpush1.bf16.msra.mxu0 0
  %2097 = vmatprep.mubr.bf16.mxu0 0
  %2098 = vmatmul.mubr.bf16.gmra.mrb[0].mxu0 %v1291
  %v2099 = vpop.f32.mrb[0].mxu0
  %v2100 = vadd.f32 %v2019, %v2099
  %v2101 = vpop.f32.mrb[0].mxu0
  %v2102 = vadd.f32 %v2021, %v2101
  %v2103 = vpop.f32.mrb[0].mxu0
  %v2104 = vadd.f32 %v2023, %v2103
  %v2105 = vpop.f32.mrb[0].mxu0
  %v2106 = vadd.f32 %v2025, %v2105
  %2107 = vmatprep.mubr.bf16.mxu0 0
  %2108 = vmatmul.mubr.bf16.gmra.mrb[0].mxu0 %v1294
  %v2109 = vpop.f32.mrb[0].mxu0
  %v2110 = vadd.f32 %v2029, %v2109
  %v2111 = vpop.f32.mrb[0].mxu0
  %v2112 = vadd.f32 %v2031, %v2111
  %v2113 = vpop.f32.mrb[0].mxu0
  %v2114 = vadd.f32 %v2033, %v2113
  %v2115 = vpop.f32.mrb[0].mxu0
  %v2116 = vadd.f32 %v2035, %v2115
  %2117 = vmatprep.mubr.bf16.mxu0 0
  %2118 = vmatmul.mubr.bf16.gmra.mrb[0].mxu0 %v1297
  %v2119 = vpop.f32.mrb[0].mxu0
  %v2120 = vadd.f32 %v2039, %v2119
  %v2121 = vpop.f32.mrb[0].mxu0
  %v2122 = vadd.f32 %v2041, %v2121
  %v2123 = vpop.f32.mrb[0].mxu0
  %v2124 = vadd.f32 %v2043, %v2123
  %v2125 = vpop.f32.mrb[0].mxu0
  %v2126 = vadd.f32 %v2045, %v2125
  %2127 = vmatprep.mubr.bf16.mxu0 0
  %2128 = vmatmul.mubr.bf16.gmra.mrb[0].mxu0 %v1300
  %v2129 = vpop.f32.mrb[0].mxu0
  %v2130 = vadd.f32 %v2049, %v2129
  %v2131 = vpop.f32.mrb[0].mxu0
  %v2132 = vadd.f32 %v2051, %v2131
  %v2133 = vpop.f32.mrb[0].mxu0
  %v2134 = vadd.f32 %v2053, %v2133
  %v2135 = vpop.f32.mrb[0].mxu0
  %v2136 = vadd.f32 %v2055, %v2135
  %2137 = vmatprep.mubr.bf16.mxu0 0
  %2138 = vmatmul.mubr.bf16.gmra.mrb[0].mxu0 %v1303
  %v2139 = vpop.f32.mrb[0].mxu0
  %v2140 = vadd.f32 %v2059, %v2139
  %v2141 = vpop.f32.mrb[0].mxu0
  %v2142 = vadd.f32 %v2061, %v2141
  %v2143 = vpop.f32.mrb[0].mxu0
  %v2144 = vpop.f32.mrb[0].mxu0
  %2145 = vdwg.mxu0
  %v2146 = vmul.f32 %v1452, %v75
  %v2147 = vmul.f32 %v1454, %v76
  %v2148 = vmul.f32 %v1614, %v77
  %v2149 = vmul.f32 %v1456, %v78
  %v2150 = vmul.f32 %v1458, %v79
  %v2151 = vmul.f32 %v1618, %v80
  %v2152 = vmul.f32 %v1462, %v81
  %v2153 = vmul.f32 %v1464, %v82
  %v2154 = vmul.f32 %v1624, %v83
  %v2155 = vmul.f32 %v1466, %v84
  %v2156 = vmul.f32 %v1468, %v85
  %v2157 = vmul.f32 %v1628, %v86
  %v2158 = vmul.f32 %v1472, %v87
  %v2159 = vmul.f32 %v1474, %v88
  %v2160 = vmul.f32 %v1634, %v89
  %v2161 = vmul.f32 %v1476, %v90
  %v2162 = vmul.f32 %v1478, %v91
  %v2163 = vmul.f32 %v1638, %v92
  %v2164 = vmul.f32 %v1482, %v93
  %v2165 = vmul.f32 %v1484, %v94
  %v2166 = vmul.f32 %v1644, %v95
  %v2167 = vmul.f32 %v1486, %v96
  %v2168 = vmul.f32 %v1488, %v97
  %v2169 = vmul.f32 %v1648, %v98
  %v2170 = vmul.f32 %v1492, %v99
  %v2171 = vmul.f32 %v1494, %v100
  %v2172 = vmul.f32 %v1654, %v101
  %v2173 = vadd.f32 %v2146, %v2147
  %v2174 = vsel %vm1289, %v2148, 0.0
  %v2175 = vadd.f32 %v2173, %v2174
  %2176 = vadd.xlane.f32.xlu0 %v2175
  %v2177 = vpop.xlane.xlu0 %2176
  %v2178 = vadd.f32 %v2149, %v2150
  %v2179 = vsel %vm1289, %v2151, 0.0
  %v2180 = vadd.f32 %v2178, %v2179
  %2181 = vadd.xlane.f32.xlu0 %v2180
  %v2182 = vpop.xlane.xlu0 %2181
  %v2183 = vadd.f32 %v2152, %v2153
  %v2184 = vsel %vm1289, %v2154, 0.0
  %v2185 = vadd.f32 %v2183, %v2184
  %2186 = vadd.xlane.f32.xlu0 %v2185
  %v2187 = vpop.xlane.xlu0 %2186
  %v2188 = vadd.f32 %v2155, %v2156
  %v2189 = vsel %vm1289, %v2157, 0.0
  %v2190 = vadd.f32 %v2188, %v2189
  %2191 = vadd.xlane.f32.xlu0 %v2190
  %v2192 = vpop.xlane.xlu0 %2191
  %v2193 = vadd.f32 %v2158, %v2159
  %v2194 = vsel %vm1289, %v2160, 0.0
  %v2195 = vadd.f32 %v2193, %v2194
  %2196 = vadd.xlane.f32.xlu0 %v2195
  %v2197 = vpop.xlane.xlu0 %2196
  %v2198 = vadd.f32 %v2161, %v2162
  %v2199 = vsel %vm1289, %v2163, 0.0
  %v2200 = vadd.f32 %v2198, %v2199
  %2201 = vadd.xlane.f32.xlu0 %v2200
  %v2202 = vpop.xlane.xlu0 %2201
  %v2203 = vadd.f32 %v2164, %v2165
  %v2204 = vsel %vm1289, %v2166, 0.0
  %v2205 = vadd.f32 %v2203, %v2204
  %2206 = vadd.xlane.f32.xlu0 %v2205
  %v2207 = vpop.xlane.xlu0 %2206
  %v2208 = vadd.f32 %v2167, %v2168
  %v2209 = vsel %vm1289, %v2169, 0.0
  %v2210 = vadd.f32 %v2208, %v2209
  %2211 = vadd.xlane.f32.xlu0 %v2210
  %v2212 = vpop.xlane.xlu0 %2211
  %v2213 = vsel %vm1305, %v2170, 0.0
  %v2214 = vsel %vm1305, %v2171, 0.0
  %v2215 = vadd.f32 %v2213, %v2214
  %vm2216 = vcmask 357376
  %v2217 = vsel %vm2216, %v2172, 0.0
  %v2218 = vadd.f32 %v2215, %v2217
  %2219 = vadd.xlane.f32.xlu0 %v2218
  %v2220 = vpop.xlane.xlu0 %2219
  %2248 = vrot.lane.b32.xlu0 %v75, 44
  %v2249 = vpop.permute.xlu0 %2248
  %2250 = vrot.lane.b32.xlu0 %v76, 44
  %v2251 = vpop.permute.xlu0 %2250
  %2252 = vrot.lane.b32.xlu0 %v77, 44
  %v2253 = vpop.permute.xlu0 %2252
  %2254 = vrot.lane.b32.xlu0 %v78, 44
  %v2255 = vpop.permute.xlu0 %2254
  %2256 = vrot.lane.b32.xlu0 %v79, 44
  %v2257 = vpop.permute.xlu0 %2256
  %2258 = vrot.lane.b32.xlu0 %v80, 44
  %v2259 = vpop.permute.xlu0 %2258
  %2260 = vrot.lane.b32.xlu0 %v81, 44
  %v2261 = vpop.permute.xlu0 %2260
  %2262 = vrot.lane.b32.xlu0 %v82, 44
  %v2263 = vpop.permute.xlu0 %2262
  %2264 = vrot.lane.b32.xlu0 %v83, 44
  %v2265 = vpop.permute.xlu0 %2264
  %2266 = vrot.lane.b32.xlu0 %v84, 44
  %v2267 = vpop.permute.xlu0 %2266
  %2268 = vrot.lane.b32.xlu0 %v85, 44
  %v2269 = vpop.permute.xlu0 %2268
  %2270 = vrot.lane.b32.xlu0 %v86, 44
  %v2271 = vpop.permute.xlu0 %2270
  %2272 = vrot.lane.b32.xlu0 %v87, 44
  %v2273 = vpop.permute.xlu0 %2272
  %2274 = vrot.lane.b32.xlu0 %v88, 44
  %v2275 = vpop.permute.xlu0 %2274
  %2276 = vrot.lane.b32.xlu0 %v89, 44
  %v2277 = vpop.permute.xlu0 %2276
  %2278 = vrot.lane.b32.xlu0 %v90, 44
  %v2279 = vpop.permute.xlu0 %2278
  %2280 = vrot.lane.b32.xlu0 %v91, 44
  %v2281 = vpop.permute.xlu0 %2280
  %2282 = vrot.lane.b32.xlu0 %v92, 44
  %v2283 = vpop.permute.xlu0 %2282
  %2284 = vrot.lane.b32.xlu0 %v93, 44
  %v2285 = vpop.permute.xlu0 %2284
  %2286 = vrot.lane.b32.xlu0 %v94, 44
  %v2287 = vpop.permute.xlu0 %2286
  %2288 = vrot.lane.b32.xlu0 %v95, 44
  %v2289 = vpop.permute.xlu0 %2288
  %2290 = vrot.lane.b32.xlu0 %v96, 44
  %v2291 = vpop.permute.xlu0 %2290
  %2292 = vrot.lane.b32.xlu0 %v97, 44
  %v2293 = vpop.permute.xlu0 %2292
  %2294 = vrot.lane.b32.xlu0 %v98, 44
  %v2295 = vpop.permute.xlu0 %2294
  %2296 = vrot.lane.b32.xlu0 %v99, 44
  %v2297 = vpop.permute.xlu0 %2296
  %2298 = vrot.lane.b32.xlu0 %v100, 44
  %v2299 = vpop.permute.xlu0 %2298
  %2300 = vrot.lane.b32.xlu0 %v101, 44
  %v2301 = vpop.permute.xlu0 %2300
  %v2302 = vsel %vm1289, %v2249, %v2251
  %v2303 = vsel %vm1289, %v2251, %v2253
  %v2304 = vsel %vm1289, %v2255, %v2257
  %v2305 = vsel %vm1289, %v2257, %v2259
  %v2306 = vsel %vm1289, %v2261, %v2263
  %v2307 = vsel %vm1289, %v2263, %v2265
  %v2308 = vsel %vm1289, %v2267, %v2269
  %v2309 = vsel %vm1289, %v2269, %v2271
  %v2310 = vsel %vm1289, %v2273, %v2275
  %v2311 = vsel %vm1289, %v2275, %v2277
  %v2312 = vsel %vm1289, %v2279, %v2281
  %v2313 = vsel %vm1289, %v2281, %v2283
  %v2314 = vsel %vm1289, %v2285, %v2287
  %v2315 = vsel %vm1289, %v2287, %v2289
  %v2316 = vsel %vm1289, %v2291, %v2293
  %v2317 = vsel %vm1289, %v2293, %v2295
  %v2318 = vsel %vm1289, %v2297, %v2299
  %v2319 = vsel %vm1289, %v2299, %v2301
  %v2347 = vmul.f32 %v1614, %v2249
  %v2348 = vmul.f32 %v1616, %v2302
  %v2349 = vmul.f32 %v1776, %v2303
  %v2350 = vmul.f32 %v1618, %v2255
  %v2351 = vmul.f32 %v1620, %v2304
  %v2352 = vmul.f32 %v1780, %v2305
  %v2353 = vmul.f32 %v1624, %v2261
  %v2354 = vmul.f32 %v1626, %v2306
  %v2355 = vmul.f32 %v1786, %v2307
  %v2356 = vmul.f32 %v1628, %v2267
  %v2357 = vmul.f32 %v1630, %v2308
  %v2358 = vmul.f32 %v1790, %v2309
  %v2359 = vmul.f32 %v1634, %v2273
  %v2360 = vmul.f32 %v1636, %v2310
  %v2361 = vmul.f32 %v1796, %v2311
  %v2362 = vmul.f32 %v1638, %v2279
  %v2363 = vmul.f32 %v1640, %v2312
  %v2364 = vmul.f32 %v1800, %v2313
  %v2365 = vmul.f32 %v1644, %v2285
  %v2366 = vmul.f32 %v1646, %v2314
  %v2367 = vmul.f32 %v1806, %v2315
  %v2368 = vmul.f32 %v1648, %v2291
  %v2369 = vmul.f32 %v1650, %v2316
  %v2370 = vmul.f32 %v1810, %v2317
  %v2371 = vmul.f32 %v1654, %v2297
  %v2372 = vmul.f32 %v1656, %v2318
  %v2373 = vmul.f32 %v1816, %v2319
  %2401 = vrot.lane.b32.xlu0 %v2347, 84
  %v2402 = vpop.permute.xlu0 %2401
  %2403 = vrot.lane.b32.xlu0 %v2348, 84
  %v2404 = vpop.permute.xlu0 %2403
  %2405 = vrot.lane.b32.xlu0 %v2349, 84
  %v2406 = vpop.permute.xlu0 %2405
  %2407 = vrot.lane.b32.xlu0 %v2350, 84
  %v2408 = vpop.permute.xlu0 %2407
  %2409 = vrot.lane.b32.xlu0 %v2351, 84
  %v2410 = vpop.permute.xlu0 %2409
  %2411 = vrot.lane.b32.xlu0 %v2352, 84
  %v2412 = vpop.permute.xlu0 %2411
  %2413 = vrot.lane.b32.xlu0 %v2353, 84
  %v2414 = vpop.permute.xlu0 %2413
  %2415 = vrot.lane.b32.xlu0 %v2354, 84
  %v2416 = vpop.permute.xlu0 %2415
  %2417 = vrot.lane.b32.xlu0 %v2355, 84
  %v2418 = vpop.permute.xlu0 %2417
  %2419 = vrot.lane.b32.xlu0 %v2356, 84
  %v2420 = vpop.permute.xlu0 %2419
  %2421 = vrot.lane.b32.xlu0 %v2357, 84
  %v2422 = vpop.permute.xlu0 %2421
  %2423 = vrot.lane.b32.xlu0 %v2358, 84
  %v2424 = vpop.permute.xlu0 %2423
  %2425 = vrot.lane.b32.xlu0 %v2359, 84
  %v2426 = vpop.permute.xlu0 %2425
  %2427 = vrot.lane.b32.xlu0 %v2360, 84
  %v2428 = vpop.permute.xlu0 %2427
  %2429 = vrot.lane.b32.xlu0 %v2361, 84
  %v2430 = vpop.permute.xlu0 %2429
  %2431 = vrot.lane.b32.xlu0 %v2362, 84
  %v2432 = vpop.permute.xlu0 %2431
  %2433 = vrot.lane.b32.xlu0 %v2363, 84
  %v2434 = vpop.permute.xlu0 %2433
  %2435 = vrot.lane.b32.xlu0 %v2364, 84
  %v2436 = vpop.permute.xlu0 %2435
  %2437 = vrot.lane.b32.xlu0 %v2365, 84
  %v2438 = vpop.permute.xlu0 %2437
  %2439 = vrot.lane.b32.xlu0 %v2366, 84
  %v2440 = vpop.permute.xlu0 %2439
  %2441 = vrot.lane.b32.xlu0 %v2367, 84
  %v2442 = vpop.permute.xlu0 %2441
  %2443 = vrot.lane.b32.xlu0 %v2368, 84
  %v2444 = vpop.permute.xlu0 %2443
  %2445 = vrot.lane.b32.xlu0 %v2369, 84
  %v2446 = vpop.permute.xlu0 %2445
  %2447 = vrot.lane.b32.xlu0 %v2370, 84
  %v2448 = vpop.permute.xlu0 %2447
  %2449 = vrot.lane.b32.xlu0 %v2371, 84
  %v2450 = vpop.permute.xlu0 %2449
  %2451 = vrot.lane.b32.xlu0 %v2372, 84
  %v2452 = vpop.permute.xlu0 %2451
  %2453 = vrot.lane.b32.xlu0 %v2373, 84
  %v2454 = vpop.permute.xlu0 %2453
  %vm2455 = vcmask 687104
  %v2456 = vsel %vm2455, %v2402, %v2404
  %v2457 = vsel %vm2455, %v2404, %v2406
  %v2458 = vsel %vm2455, %v2408, %v2410
  %v2459 = vsel %vm2455, %v2410, %v2412
  %v2460 = vsel %vm2455, %v2414, %v2416
  %v2461 = vsel %vm2455, %v2416, %v2418
  %v2462 = vsel %vm2455, %v2420, %v2422
  %v2463 = vsel %vm2455, %v2422, %v2424
  %v2464 = vsel %vm2455, %v2426, %v2428
  %v2465 = vsel %vm2455, %v2428, %v2430
  %v2466 = vsel %vm2455, %v2432, %v2434
  %v2467 = vsel %vm2455, %v2434, %v2436
  %v2468 = vsel %vm2455, %v2438, %v2440
  %v2469 = vsel %vm2455, %v2440, %v2442
  %v2470 = vsel %vm2455, %v2444, %v2446
  %v2471 = vsel %vm2455, %v2446, %v2448
  %v2472 = vsel %vm2455, %v2450, %v2452
  %v2473 = vsel %vm2455, %v2452, %v2454
  %v2501 = vadd.f32 %v2456, %v2457
  %v2502 = vsel %vm1289, %v2406, 0.0
  %v2503 = vadd.f32 %v2501, %v2502
  %2504 = vadd.xlane.f32.xlu0 %v2503
  %v2505 = vpop.xlane.xlu0 %2504
  %v2506 = vadd.f32 %v2458, %v2459
  %v2507 = vsel %vm1289, %v2412, 0.0
  %v2508 = vadd.f32 %v2506, %v2507
  %2509 = vadd.xlane.f32.xlu0 %v2508
  %v2510 = vpop.xlane.xlu0 %2509
  %v2511 = vadd.f32 %v2460, %v2461
  %v2512 = vsel %vm1289, %v2418, 0.0
  %v2513 = vadd.f32 %v2511, %v2512
  %2514 = vadd.xlane.f32.xlu0 %v2513
  %v2515 = vpop.xlane.xlu0 %2514
  %v2516 = vadd.f32 %v2462, %v2463
  %v2517 = vsel %vm1289, %v2424, 0.0
  %v2518 = vadd.f32 %v2516, %v2517
  %2519 = vadd.xlane.f32.xlu0 %v2518
  %v2520 = vpop.xlane.xlu0 %2519
  %v2521 = vadd.f32 %v2464, %v2465
  %v2522 = vsel %vm1289, %v2430, 0.0
  %v2523 = vadd.f32 %v2521, %v2522
  %2524 = vadd.xlane.f32.xlu0 %v2523
  %v2525 = vpop.xlane.xlu0 %2524
  %v2526 = vadd.f32 %v2466, %v2467
  %v2527 = vsel %vm1289, %v2436, 0.0
  %v2528 = vadd.f32 %v2526, %v2527
  %2529 = vadd.xlane.f32.xlu0 %v2528
  %v2530 = vpop.xlane.xlu0 %2529
  %v2531 = vadd.f32 %v2468, %v2469
  %v2532 = vsel %vm1289, %v2442, 0.0
  %v2533 = vadd.f32 %v2531, %v2532
  %2534 = vadd.xlane.f32.xlu0 %v2533
  %v2535 = vpop.xlane.xlu0 %2534
  %v2536 = vadd.f32 %v2470, %v2471
  %v2537 = vsel %vm1289, %v2448, 0.0
  %v2538 = vadd.f32 %v2536, %v2537
  %2539 = vadd.xlane.f32.xlu0 %v2538
  %v2540 = vpop.xlane.xlu0 %2539
  %v2541 = vsel %vm1305, %v2472, 0.0
  %v2542 = vsel %vm1305, %v2473, 0.0
  %v2543 = vadd.f32 %v2541, %v2542
  %v2544 = vsel %vm2216, %v2454, 0.0
  %v2545 = vadd.f32 %v2543, %v2544
  %2546 = vadd.xlane.f32.xlu0 %v2545
  %v2547 = vpop.xlane.xlu0 %2546
  %2548 = vrot.lane.b32.xlu0 %v75, 88
  %v2549 = vpop.permute.xlu0 %2548
  %2550 = vrot.lane.b32.xlu0 %v76, 88
  %v2551 = vpop.permute.xlu0 %2550
  %2552 = vrot.lane.b32.xlu0 %v77, 88
  %v2553 = vpop.permute.xlu0 %2552
  %2554 = vrot.lane.b32.xlu0 %v78, 88
  %v2555 = vpop.permute.xlu0 %2554
  %2556 = vrot.lane.b32.xlu0 %v79, 88
  %v2557 = vpop.permute.xlu0 %2556
  %2558 = vrot.lane.b32.xlu0 %v80, 88
  %v2559 = vpop.permute.xlu0 %2558
  %2560 = vrot.lane.b32.xlu0 %v81, 88
  %v2561 = vpop.permute.xlu0 %2560
  %2562 = vrot.lane.b32.xlu0 %v82, 88
  %v2563 = vpop.permute.xlu0 %2562
  %2564 = vrot.lane.b32.xlu0 %v83, 88
  %v2565 = vpop.permute.xlu0 %2564
  %2566 = vrot.lane.b32.xlu0 %v84, 88
  %v2567 = vpop.permute.xlu0 %2566
  %2568 = vrot.lane.b32.xlu0 %v85, 88
  %v2569 = vpop.permute.xlu0 %2568
  %2570 = vrot.lane.b32.xlu0 %v86, 88
  %v2571 = vpop.permute.xlu0 %2570
  %2572 = vrot.lane.b32.xlu0 %v87, 88
  %v2573 = vpop.permute.xlu0 %2572
  %2574 = vrot.lane.b32.xlu0 %v88, 88
  %v2575 = vpop.permute.xlu0 %2574
  %2576 = vrot.lane.b32.xlu0 %v89, 88
  %v2577 = vpop.permute.xlu0 %2576
  %2578 = vrot.lane.b32.xlu0 %v90, 88
  %v2579 = vpop.permute.xlu0 %2578
  %2580 = vrot.lane.b32.xlu0 %v91, 88
  %v2581 = vpop.permute.xlu0 %2580
  %2582 = vrot.lane.b32.xlu0 %v92, 88
  %v2583 = vpop.permute.xlu0 %2582
  %2584 = vrot.lane.b32.xlu0 %v93, 88
  %v2585 = vpop.permute.xlu0 %2584
  %2586 = vrot.lane.b32.xlu0 %v94, 88
  %v2587 = vpop.permute.xlu0 %2586
  %2588 = vrot.lane.b32.xlu0 %v95, 88
  %v2589 = vpop.permute.xlu0 %2588
  %2590 = vrot.lane.b32.xlu0 %v96, 88
  %v2591 = vpop.permute.xlu0 %2590
  %2592 = vrot.lane.b32.xlu0 %v97, 88
  %v2593 = vpop.permute.xlu0 %2592
  %2594 = vrot.lane.b32.xlu0 %v98, 88
  %v2595 = vpop.permute.xlu0 %2594
  %2596 = vrot.lane.b32.xlu0 %v99, 88
  %v2597 = vpop.permute.xlu0 %2596
  %2598 = vrot.lane.b32.xlu0 %v100, 88
  %v2599 = vpop.permute.xlu0 %2598
  %2600 = vrot.lane.b32.xlu0 %v101, 88
  %v2601 = vpop.permute.xlu0 %2600
  %vm2602 = vcmask 719872
  %v2603 = vsel %vm2602, %v2549, %v2551
  %v2604 = vsel %vm2602, %v2551, %v2553
  %v2605 = vsel %vm2602, %v2555, %v2557
  %v2606 = vsel %vm2602, %v2557, %v2559
  %v2607 = vsel %vm2602, %v2561, %v2563
  %v2608 = vsel %vm2602, %v2563, %v2565
  %v2609 = vsel %vm2602, %v2567, %v2569
  %v2610 = vsel %vm2602, %v2569, %v2571
  %v2611 = vsel %vm2602, %v2573, %v2575
  %v2612 = vsel %vm2602, %v2575, %v2577
  %v2613 = vsel %vm2602, %v2579, %v2581
  %v2614 = vsel %vm2602, %v2581, %v2583
  %v2615 = vsel %vm2602, %v2585, %v2587
  %v2616 = vsel %vm2602, %v2587, %v2589
  %v2617 = vsel %vm2602, %v2591, %v2593
  %v2618 = vsel %vm2602, %v2593, %v2595
  %v2619 = vsel %vm2602, %v2597, %v2599
  %v2620 = vsel %vm2602, %v2599, %v2601
  %v2657 = vmul.f32 %v1776, %v2549
  %v2658 = vmul.f32 %v1778, %v2603
  %v2659 = vmul.f32 %v1938, %v2604
  %v2660 = vmul.f32 %v1940, %v2553
  %v2661 = vmul.f32 %v1780, %v2555
  %v2662 = vmul.f32 %v1782, %v2605
  %v2663 = vmul.f32 %v1942, %v2606
  %v2664 = vmul.f32 %v1944, %v2559
  %v2665 = vmul.f32 %v1786, %v2561
  %v2666 = vmul.f32 %v1788, %v2607
  %v2667 = vmul.f32 %v1948, %v2608
  %v2668 = vmul.f32 %v1950, %v2565
  %v2669 = vmul.f32 %v1790, %v2567
  %v2670 = vmul.f32 %v1792, %v2609
  %v2671 = vmul.f32 %v1952, %v2610
  %v2672 = vmul.f32 %v1954, %v2571
  %v2673 = vmul.f32 %v1796, %v2573
  %v2674 = vmul.f32 %v1798, %v2611
  %v2675 = vmul.f32 %v1958, %v2612
  %v2676 = vmul.f32 %v1960, %v2577
  %v2677 = vmul.f32 %v1800, %v2579
  %v2678 = vmul.f32 %v1802, %v2613
  %v2679 = vmul.f32 %v1962, %v2614
  %v2680 = vmul.f32 %v1964, %v2583
  %v2681 = vmul.f32 %v1806, %v2585
  %v2682 = vmul.f32 %v1808, %v2615
  %v2683 = vmul.f32 %v1968, %v2616
  %v2684 = vmul.f32 %v1970, %v2589
  %v2685 = vmul.f32 %v1810, %v2591
  %v2686 = vmul.f32 %v1812, %v2617
  %v2687 = vmul.f32 %v1972, %v2618
  %v2688 = vmul.f32 %v1974, %v2595
  %v2689 = vmul.f32 %v1816, %v2597
  %v2690 = vmul.f32 %v1818, %v2619
  %v2691 = vmul.f32 %v1978, %v2620
  %v2692 = vmul.f32 %v1980, %v2601
  %2729 = vrot.lane.b32.xlu0 %v2657, 40
  %v2730 = vpop.permute.xlu0 %2729
  %2731 = vrot.lane.b32.xlu0 %v2658, 40
  %v2732 = vpop.permute.xlu0 %2731
  %2733 = vrot.lane.b32.xlu0 %v2659, 40
  %v2734 = vpop.permute.xlu0 %2733
  %2735 = vrot.lane.b32.xlu0 %v2660, 40
  %v2736 = vpop.permute.xlu0 %2735
  %2737 = vrot.lane.b32.xlu0 %v2661, 40
  %v2738 = vpop.permute.xlu0 %2737
  %2739 = vrot.lane.b32.xlu0 %v2662, 40
  %v2740 = vpop.permute.xlu0 %2739
  %2741 = vrot.lane.b32.xlu0 %v2663, 40
  %v2742 = vpop.permute.xlu0 %2741
  %2743 = vrot.lane.b32.xlu0 %v2664, 40
  %v2744 = vpop.permute.xlu0 %2743
  %2745 = vrot.lane.b32.xlu0 %v2665, 40
  %v2746 = vpop.permute.xlu0 %2745
  %2747 = vrot.lane.b32.xlu0 %v2666, 40
  %v2748 = vpop.permute.xlu0 %2747
  %2749 = vrot.lane.b32.xlu0 %v2667, 40
  %v2750 = vpop.permute.xlu0 %2749
  %2751 = vrot.lane.b32.xlu0 %v2668, 40
  %v2752 = vpop.permute.xlu0 %2751
  %2753 = vrot.lane.b32.xlu0 %v2669, 40
  %v2754 = vpop.permute.xlu0 %2753
  %2755 = vrot.lane.b32.xlu0 %v2670, 40
  %v2756 = vpop.permute.xlu0 %2755
  %2757 = vrot.lane.b32.xlu0 %v2671, 40
  %v2758 = vpop.permute.xlu0 %2757
  %2759 = vrot.lane.b32.xlu0 %v2672, 40
  %v2760 = vpop.permute.xlu0 %2759
  %2761 = vrot.lane.b32.xlu0 %v2673, 40
  %v2762 = vpop.permute.xlu0 %2761
  %2763 = vrot.lane.b32.xlu0 %v2674, 40
  %v2764 = vpop.permute.xlu0 %2763
  %2765 = vrot.lane.b32.xlu0 %v2675, 40
  %v2766 = vpop.permute.xlu0 %2765
  %2767 = vrot.lane.b32.xlu0 %v2676, 40
  %v2768 = vpop.permute.xlu0 %2767
  %2769 = vrot.lane.b32.xlu0 %v2677, 40
  %v2770 = vpop.permute.xlu0 %2769
  %2771 = vrot.lane.b32.xlu0 %v2678, 40
  %v2772 = vpop.permute.xlu0 %2771
  %2773 = vrot.lane.b32.xlu0 %v2679, 40
  %v2774 = vpop.permute.xlu0 %2773
  %2775 = vrot.lane.b32.xlu0 %v2680, 40
  %v2776 = vpop.permute.xlu0 %2775
  %2777 = vrot.lane.b32.xlu0 %v2681, 40
  %v2778 = vpop.permute.xlu0 %2777
  %2779 = vrot.lane.b32.xlu0 %v2682, 40
  %v2780 = vpop.permute.xlu0 %2779
  %2781 = vrot.lane.b32.xlu0 %v2683, 40
  %v2782 = vpop.permute.xlu0 %2781
  %2783 = vrot.lane.b32.xlu0 %v2684, 40
  %v2784 = vpop.permute.xlu0 %2783
  %2785 = vrot.lane.b32.xlu0 %v2685, 40
  %v2786 = vpop.permute.xlu0 %2785
  %2787 = vrot.lane.b32.xlu0 %v2686, 40
  %v2788 = vpop.permute.xlu0 %2787
  %2789 = vrot.lane.b32.xlu0 %v2687, 40
  %v2790 = vpop.permute.xlu0 %2789
  %2791 = vrot.lane.b32.xlu0 %v2688, 40
  %v2792 = vpop.permute.xlu0 %2791
  %2793 = vrot.lane.b32.xlu0 %v2689, 40
  %v2794 = vpop.permute.xlu0 %2793
  %2795 = vrot.lane.b32.xlu0 %v2690, 40
  %v2796 = vpop.permute.xlu0 %2795
  %2797 = vrot.lane.b32.xlu0 %v2691, 40
  %v2798 = vpop.permute.xlu0 %2797
  %2799 = vrot.lane.b32.xlu0 %v2692, 40
  %v2800 = vpop.permute.xlu0 %2799
  %vm2801 = vcmask 326656
  %v2802 = vsel %vm2801, %v2730, %v2732
  %v2803 = vsel %vm2801, %v2732, %v2734
  %v2804 = vsel %vm2801, %v2734, %v2736
  %v2805 = vsel %vm2801, %v2738, %v2740
  %v2806 = vsel %vm2801, %v2740, %v2742
  %v2807 = vsel %vm2801, %v2742, %v2744
  %v2808 = vsel %vm2801, %v2746, %v2748
  %v2809 = vsel %vm2801, %v2748, %v2750
  %v2810 = vsel %vm2801, %v2750, %v2752
  %v2811 = vsel %vm2801, %v2754, %v2756
  %v2812 = vsel %vm2801, %v2756, %v2758
  %v2813 = vsel %vm2801, %v2758, %v2760
  %v2814 = vsel %vm2801, %v2762, %v2764
  %v2815 = vsel %vm2801, %v2764, %v2766
  %v2816 = vsel %vm2801, %v2766, %v2768
  %v2817 = vsel %vm2801, %v2770, %v2772
  %v2818 = vsel %vm2801, %v2772, %v2774
  %v2819 = vsel %vm2801, %v2774, %v2776
  %v2820 = vsel %vm2801, %v2778, %v2780
  %v2821 = vsel %vm2801, %v2780, %v2782
  %v2822 = vsel %vm2801, %v2782, %v2784
  %v2823 = vsel %vm2801, %v2786, %v2788
  %v2824 = vsel %vm2801, %v2788, %v2790
  %v2825 = vsel %vm2801, %v2790, %v2792
  %v2826 = vsel %vm2801, %v2794, %v2796
  %v2827 = vsel %vm2801, %v2796, %v2798
  %v2828 = vsel %vm2801, %v2798, %v2800
  %v2856 = vadd.f32 %v2802, %v2803
  %v2857 = vsel %vm1289, %v2804, 0.0
  %v2858 = vadd.f32 %v2856, %v2857
  %2859 = vadd.xlane.f32.xlu0 %v2858
  %v2860 = vpop.xlane.xlu0 %2859
  %v2861 = vadd.f32 %v2805, %v2806
  %v2862 = vsel %vm1289, %v2807, 0.0
  %v2863 = vadd.f32 %v2861, %v2862
  %2864 = vadd.xlane.f32.xlu0 %v2863
  %v2865 = vpop.xlane.xlu0 %2864
  %v2866 = vadd.f32 %v2808, %v2809
  %v2867 = vsel %vm1289, %v2810, 0.0
  %v2868 = vadd.f32 %v2866, %v2867
  %2869 = vadd.xlane.f32.xlu0 %v2868
  %v2870 = vpop.xlane.xlu0 %2869
  %v2871 = vadd.f32 %v2811, %v2812
  %v2872 = vsel %vm1289, %v2813, 0.0
  %v2873 = vadd.f32 %v2871, %v2872
  %2874 = vadd.xlane.f32.xlu0 %v2873
  %v2875 = vpop.xlane.xlu0 %2874
  %v2876 = vadd.f32 %v2814, %v2815
  %v2877 = vsel %vm1289, %v2816, 0.0
  %v2878 = vadd.f32 %v2876, %v2877
  %2879 = vadd.xlane.f32.xlu0 %v2878
  %v2880 = vpop.xlane.xlu0 %2879
  %v2881 = vadd.f32 %v2817, %v2818
  %v2882 = vsel %vm1289, %v2819, 0.0
  %v2883 = vadd.f32 %v2881, %v2882
  %2884 = vadd.xlane.f32.xlu0 %v2883
  %v2885 = vpop.xlane.xlu0 %2884
  %v2886 = vadd.f32 %v2820, %v2821
  %v2887 = vsel %vm1289, %v2822, 0.0
  %v2888 = vadd.f32 %v2886, %v2887
  %2889 = vadd.xlane.f32.xlu0 %v2888
  %v2890 = vpop.xlane.xlu0 %2889
  %v2891 = vadd.f32 %v2823, %v2824
  %v2892 = vsel %vm1289, %v2825, 0.0
  %v2893 = vadd.f32 %v2891, %v2892
  %2894 = vadd.xlane.f32.xlu0 %v2893
  %v2895 = vpop.xlane.xlu0 %2894
  %v2896 = vsel %vm1305, %v2826, 0.0
  %v2897 = vsel %vm1305, %v2827, 0.0
  %v2898 = vadd.f32 %v2896, %v2897
  %v2899 = vsel %vm2216, %v2828, 0.0
  %v2900 = vadd.f32 %v2898, %v2899
  %2901 = vadd.xlane.f32.xlu0 %v2900
  %v2902 = vpop.xlane.xlu0 %2901
  %2903 = vrot.lane.b32.xlu0 %v75, 4
  %v2904 = vpop.permute.xlu0 %2903
  %2905 = vrot.lane.b32.xlu0 %v76, 4
  %v2906 = vpop.permute.xlu0 %2905
  %2907 = vrot.lane.b32.xlu0 %v77, 4
  %v2908 = vpop.permute.xlu0 %2907
  %2909 = vrot.lane.b32.xlu0 %v78, 4
  %v2910 = vpop.permute.xlu0 %2909
  %2911 = vrot.lane.b32.xlu0 %v79, 4
  %v2912 = vpop.permute.xlu0 %2911
  %2913 = vrot.lane.b32.xlu0 %v80, 4
  %v2914 = vpop.permute.xlu0 %2913
  %2915 = vrot.lane.b32.xlu0 %v81, 4
  %v2916 = vpop.permute.xlu0 %2915
  %2917 = vrot.lane.b32.xlu0 %v82, 4
  %v2918 = vpop.permute.xlu0 %2917
  %2919 = vrot.lane.b32.xlu0 %v83, 4
  %v2920 = vpop.permute.xlu0 %2919
  %2921 = vrot.lane.b32.xlu0 %v84, 4
  %v2922 = vpop.permute.xlu0 %2921
  %2923 = vrot.lane.b32.xlu0 %v85, 4
  %v2924 = vpop.permute.xlu0 %2923
  %2925 = vrot.lane.b32.xlu0 %v86, 4
  %v2926 = vpop.permute.xlu0 %2925
  %2927 = vrot.lane.b32.xlu0 %v87, 4
  %v2928 = vpop.permute.xlu0 %2927
  %2929 = vrot.lane.b32.xlu0 %v88, 4
  %v2930 = vpop.permute.xlu0 %2929
  %2931 = vrot.lane.b32.xlu0 %v89, 4
  %v2932 = vpop.permute.xlu0 %2931
  %2933 = vrot.lane.b32.xlu0 %v90, 4
  %v2934 = vpop.permute.xlu0 %2933
  %2935 = vrot.lane.b32.xlu0 %v91, 4
  %v2936 = vpop.permute.xlu0 %2935
  %2937 = vrot.lane.b32.xlu0 %v92, 4
  %v2938 = vpop.permute.xlu0 %2937
  %2939 = vrot.lane.b32.xlu0 %v93, 4
  %v2940 = vpop.permute.xlu0 %2939
  %2941 = vrot.lane.b32.xlu0 %v94, 4
  %v2942 = vpop.permute.xlu0 %2941
  %2943 = vrot.lane.b32.xlu0 %v95, 4
  %v2944 = vpop.permute.xlu0 %2943
  %2945 = vrot.lane.b32.xlu0 %v96, 4
  %v2946 = vpop.permute.xlu0 %2945
  %2947 = vrot.lane.b32.xlu0 %v97, 4
  %v2948 = vpop.permute.xlu0 %2947
  %2949 = vrot.lane.b32.xlu0 %v98, 4
  %v2950 = vpop.permute.xlu0 %2949
  %2951 = vrot.lane.b32.xlu0 %v99, 4
  %v2952 = vpop.permute.xlu0 %2951
  %2953 = vrot.lane.b32.xlu0 %v100, 4
  %v2954 = vpop.permute.xlu0 %2953
  %2955 = vrot.lane.b32.xlu0 %v101, 4
  %v2956 = vpop.permute.xlu0 %2955
  %vm2957 = vcmask 31744
  %v2958 = vsel %vm2957, %v2904, %v2906
  %v2959 = vsel %vm2957, %v2906, %v2908
  %v2960 = vsel %vm2957, %v2910, %v2912
  %v2961 = vsel %vm2957, %v2912, %v2914
  %v2962 = vsel %vm2957, %v2916, %v2918
  %v2963 = vsel %vm2957, %v2918, %v2920
  %v2964 = vsel %vm2957, %v2922, %v2924
  %v2965 = vsel %vm2957, %v2924, %v2926
  %v2966 = vsel %vm2957, %v2928, %v2930
  %v2967 = vsel %vm2957, %v2930, %v2932
  %v2968 = vsel %vm2957, %v2934, %v2936
  %v2969 = vsel %vm2957, %v2936, %v2938
  %v2970 = vsel %vm2957, %v2940, %v2942
  %v2971 = vsel %vm2957, %v2942, %v2944
  %v2972 = vsel %vm2957, %v2946, %v2948
  %v2973 = vsel %vm2957, %v2948, %v2950
  %v2974 = vsel %vm2957, %v2952, %v2954
  %v2975 = vsel %vm2957, %v2954, %v2956
  %v3003 = vmul.f32 %v1940, %v2904
  %v3004 = vmul.f32 %v2100, %v2958
  %v3005 = vmul.f32 %v2102, %v2959
  %v3006 = vmul.f32 %v1944, %v2910
  %v3007 = vmul.f32 %v2104, %v2960
  %v3008 = vmul.f32 %v2106, %v2961
  %v3009 = vmul.f32 %v1950, %v2916
  %v3010 = vmul.f32 %v2110, %v2962
  %v3011 = vmul.f32 %v2112, %v2963
  %v3012 = vmul.f32 %v1954, %v2922
  %v3013 = vmul.f32 %v2114, %v2964
  %v3014 = vmul.f32 %v2116, %v2965
  %v3015 = vmul.f32 %v1960, %v2928
  %v3016 = vmul.f32 %v2120, %v2966
  %v3017 = vmul.f32 %v2122, %v2967
  %v3018 = vmul.f32 %v1964, %v2934
  %v3019 = vmul.f32 %v2124, %v2968
  %v3020 = vmul.f32 %v2126, %v2969
  %v3021 = vmul.f32 %v1970, %v2940
  %v3022 = vmul.f32 %v2130, %v2970
  %v3023 = vmul.f32 %v2132, %v2971
  %v3024 = vmul.f32 %v1974, %v2946
  %v3025 = vmul.f32 %v2134, %v2972
  %v3026 = vmul.f32 %v2136, %v2973
  %v3027 = vmul.f32 %v1980, %v2952
  %v3028 = vmul.f32 %v2140, %v2974
  %v3029 = vmul.f32 %v2142, %v2975
  %3057 = vrot.lane.b32.xlu0 %v3003, 124
  %v3058 = vpop.permute.xlu0 %3057
  %3059 = vrot.lane.b32.xlu0 %v3004, 124
  %v3060 = vpop.permute.xlu0 %3059
  %3061 = vrot.lane.b32.xlu0 %v3005, 124
  %v3062 = vpop.permute.xlu0 %3061
  %3063 = vrot.lane.b32.xlu0 %v3006, 124
  %v3064 = vpop.permute.xlu0 %3063
  %3065 = vrot.lane.b32.xlu0 %v3007, 124
  %v3066 = vpop.permute.xlu0 %3065
  %3067 = vrot.lane.b32.xlu0 %v3008, 124
  %v3068 = vpop.permute.xlu0 %3067
  %3069 = vrot.lane.b32.xlu0 %v3009, 124
  %v3070 = vpop.permute.xlu0 %3069
  %3071 = vrot.lane.b32.xlu0 %v3010, 124
  %v3072 = vpop.permute.xlu0 %3071
  %3073 = vrot.lane.b32.xlu0 %v3011, 124
  %v3074 = vpop.permute.xlu0 %3073
  %3075 = vrot.lane.b32.xlu0 %v3012, 124
  %v3076 = vpop.permute.xlu0 %3075
  %3077 = vrot.lane.b32.xlu0 %v3013, 124
  %v3078 = vpop.permute.xlu0 %3077
  %3079 = vrot.lane.b32.xlu0 %v3014, 124
  %v3080 = vpop.permute.xlu0 %3079
  %3081 = vrot.lane.b32.xlu0 %v3015, 124
  %v3082 = vpop.permute.xlu0 %3081
  %3083 = vrot.lane.b32.xlu0 %v3016, 124
  %v3084 = vpop.permute.xlu0 %3083
  %3085 = vrot.lane.b32.xlu0 %v3017, 124
  %v3086 = vpop.permute.xlu0 %3085
  %3087 = vrot.lane.b32.xlu0 %v3018, 124
  %v3088 = vpop.permute.xlu0 %3087
  %3089 = vrot.lane.b32.xlu0 %v3019, 124
  %v3090 = vpop.permute.xlu0 %3089
  %3091 = vrot.lane.b32.xlu0 %v3020, 124
  %v3092 = vpop.permute.xlu0 %3091
  %3093 = vrot.lane.b32.xlu0 %v3021, 124
  %v3094 = vpop.permute.xlu0 %3093
  %3095 = vrot.lane.b32.xlu0 %v3022, 124
  %v3096 = vpop.permute.xlu0 %3095
  %3097 = vrot.lane.b32.xlu0 %v3023, 124
  %v3098 = vpop.permute.xlu0 %3097
  %3099 = vrot.lane.b32.xlu0 %v3024, 124
  %v3100 = vpop.permute.xlu0 %3099
  %3101 = vrot.lane.b32.xlu0 %v3025, 124
  %v3102 = vpop.permute.xlu0 %3101
  %3103 = vrot.lane.b32.xlu0 %v3026, 124
  %v3104 = vpop.permute.xlu0 %3103
  %3105 = vrot.lane.b32.xlu0 %v3027, 124
  %v3106 = vpop.permute.xlu0 %3105
  %3107 = vrot.lane.b32.xlu0 %v3028, 124
  %v3108 = vpop.permute.xlu0 %3107
  %3109 = vrot.lane.b32.xlu0 %v3029, 124
  %v3110 = vpop.permute.xlu0 %3109
  %vm3111 = vcmask 1014784
  %v3112 = vsel %vm3111, %v3058, %v3060
  %v3113 = vsel %vm3111, %v3060, %v3062
  %v3114 = vsel %vm3111, %v3064, %v3066
  %v3115 = vsel %vm3111, %v3066, %v3068
  %v3116 = vsel %vm3111, %v3070, %v3072
  %v3117 = vsel %vm3111, %v3072, %v3074
  %v3118 = vsel %vm3111, %v3076, %v3078
  %v3119 = vsel %vm3111, %v3078, %v3080
  %v3120 = vsel %vm3111, %v3082, %v3084
  %v3121 = vsel %vm3111, %v3084, %v3086
  %v3122 = vsel %vm3111, %v3088, %v3090
  %v3123 = vsel %vm3111, %v3090, %v3092
  %v3124 = vsel %vm3111, %v3094, %v3096
  %v3125 = vsel %vm3111, %v3096, %v3098
  %v3126 = vsel %vm3111, %v3100, %v3102
  %v3127 = vsel %vm3111, %v3102, %v3104
  %v3128 = vsel %vm3111, %v3106, %v3108
  %v3129 = vsel %vm3111, %v3108, %v3110
  %v3157 = vadd.f32 %v3112, %v3113
  %v3158 = vsel %vm1289, %v3062, 0.0
  %v3159 = vadd.f32 %v3157, %v3158
  %3160 = vadd.xlane.f32.xlu0 %v3159
  %v3161 = vpop.xlane.xlu0 %3160
  %v3162 = vadd.f32 %v3114, %v3115
  %v3163 = vsel %vm1289, %v3068, 0.0
  %v3164 = vadd.f32 %v3162, %v3163
  %3165 = vadd.xlane.f32.xlu0 %v3164
  %v3166 = vpop.xlane.xlu0 %3165
  %v3167 = vadd.f32 %v3116, %v3117
  %v3168 = vsel %vm1289, %v3074, 0.0
  %v3169 = vadd.f32 %v3167, %v3168
  %3170 = vadd.xlane.f32.xlu0 %v3169
  %v3171 = vpop.xlane.xlu0 %3170
  %v3172 = vadd.f32 %v3118, %v3119
  %v3173 = vsel %vm1289, %v3080, 0.0
  %v3174 = vadd.f32 %v3172, %v3173
  %3175 = vadd.xlane.f32.xlu0 %v3174
  %v3176 = vpop.xlane.xlu0 %3175
  %v3177 = vadd.f32 %v3120, %v3121
  %v3178 = vsel %vm1289, %v3086, 0.0
  %v3179 = vadd.f32 %v3177, %v3178
  %3180 = vadd.xlane.f32.xlu0 %v3179
  %v3181 = vpop.xlane.xlu0 %3180
  %v3182 = vadd.f32 %v3122, %v3123
  %v3183 = vsel %vm1289, %v3092, 0.0
  %v3184 = vadd.f32 %v3182, %v3183
  %3185 = vadd.xlane.f32.xlu0 %v3184
  %v3186 = vpop.xlane.xlu0 %3185
  %v3187 = vadd.f32 %v3124, %v3125
  %v3188 = vsel %vm1289, %v3098, 0.0
  %v3189 = vadd.f32 %v3187, %v3188
  %3190 = vadd.xlane.f32.xlu0 %v3189
  %v3191 = vpop.xlane.xlu0 %3190
  %v3192 = vadd.f32 %v3126, %v3127
  %v3193 = vsel %vm1289, %v3104, 0.0
  %v3194 = vadd.f32 %v3192, %v3193
  %3195 = vadd.xlane.f32.xlu0 %v3194
  %v3196 = vpop.xlane.xlu0 %3195
  %v3197 = vsel %vm1305, %v3128, 0.0
  %v3198 = vsel %vm1305, %v3129, 0.0
  %v3199 = vadd.f32 %v3197, %v3198
  %v3200 = vsel %vm2216, %v3110, 0.0
  %v3201 = vadd.f32 %v3199, %v3200
  %3202 = vadd.xlane.f32.xlu0 %v3201
  %v3203 = vpop.xlane.xlu0 %3202
  %s3204 = scalar_lea.vmem %s3, 1520
  %v3205 = vld [vmem:[%s3204] sm:$0xff]
  %v3206 = vld [vmem:[%s3204 + $0x8] sm:$0xff]
  %v3207 = vld [vmem:[%s3204 + $0x10] sm:$0xff]
  %v3208 = vld [vmem:[%s3204 + $0x18] sm:$0xff]
  %v3209 = vld [vmem:[%s3204 + $0x20] sm:$0xff]
  %v3210 = vld [vmem:[%s3204 + $0x28] sm:$0xff]
  %v3211 = vld [vmem:[%s3204 + $0x30] sm:$0xff]
  %v3212 = vld [vmem:[%s3204 + $0x38] sm:$0xff]
  %v3213 = vld [vmem:[%s3204 + $0x40] sm:$0xff]
  %v3214 = vld [vmem:[%s3204 + $0x48] sm:$0xff]
  %v3215 = vld [vmem:[%s3204 + $0x50] sm:$0xff]
  %v3216 = vld [vmem:[%s3204 + $0x58] sm:$0xff]
  %v3217 = vld [vmem:[%s3204 + $0x60] sm:$0xff]
  %v3218 = vld [vmem:[%s3204 + $0x68] sm:$0xff]
  %v3219 = vld [vmem:[%s3204 + $0x70] sm:$0xff]
  %v3220 = vld [vmem:[%s3204 + $0x78] sm:$0xff]
  %v3221 = vld [vmem:[%s3204 + $0x80] sm:$0xff]
  %v3222 = vld [vmem:[%s3204 + $0x88] sm:$0xff]
  %v3223 = vld [vmem:[%s3204 + $0x90] sm:$0xff]
  %v3224 = vld [vmem:[%s3204 + $0x98] sm:$0xff]
  %v3225 = vld [vmem:[%s3204 + $0xa0] sm:$0xff]
  %v3226 = vld [vmem:[%s3204 + $0xa8] sm:$0xff]
  %v3227 = vld [vmem:[%s3204 + $0xb0] sm:$0xff]
  %v3228 = vld [vmem:[%s3204 + $0xb8] sm:$0xff]
  %v3229 = vld [vmem:[%s3204 + $0xc0] sm:$0xff]
  %v3230 = vld [vmem:[%s3204 + $0xc8] sm:$0xff]
  %v3231 = vld [vmem:[%s3204 + $0xd0] sm:$0xff]
  %v3232 = vld [vmem:[%s3204 + $0xd8] sm:$0xff]
  %v3233 = vld [vmem:[%s3204 + $0xe0] sm:$0xff]
  %v3234 = vld [vmem:[%s3204 + $0xe8] sm:$0xff]
  %v3235 = vld [vmem:[%s3204 + $0xf0] sm:$0xff]
  %v3236 = vld [vmem:[%s3204 + $0xf8] sm:$0xff]
  %v3237 = vld [vmem:[%s3204 + $0x100] sm:$0xff]
  %v3238 = vld [vmem:[%s3204 + $0x108] sm:$0xff]
  %v3239 = vld [vmem:[%s3204 + $0x110] sm:$0xff]
  %v3240 = vld [vmem:[%s3204 + $0x118] sm:$0xff]
  %v3241 = vld [vmem:[%s3204 + $0x120] sm:$0xff]
  %v3242 = vld [vmem:[%s3204 + $0x128] sm:$0xff]
  %v3243 = vld [vmem:[%s3204 + $0x130] sm:$0xff]
  %v3244 = vld [vmem:[%s3204 + $0x138] sm:$0xff]
  %v3245 = vld [vmem:[%s3204 + $0x140] sm:$0xff]
  %v3246 = vld [vmem:[%s3204 + $0x148] sm:$0xff]
  %v3247 = vld [vmem:[%s3204 + $0x150] sm:$0xff]
  %v3248 = vld [vmem:[%s3204 + $0x158] sm:$0xff]
  %v3249 = vld [vmem:[%s3204 + $0x160] sm:$0xff]
  %v3250 = vld [vmem:[%s3204 + $0x168] sm:$0xff]
  %v3251 = vld [vmem:[%s3204 + $0x170] sm:$0xff]
  %v3252 = vld [vmem:[%s3204 + $0x178] sm:$0xff]
  %v3253 = vld [vmem:[%s3204 + $0x180] sm:$0xff]
  %v3254 = vld [vmem:[%s3204 + $0x188] sm:$0xff]
  %v3255 = vld [vmem:[%s3204 + $0x190] sm:$0xff]
  %v3256 = vld [vmem:[%s3204 + $0x198] sm:$0xff]
  %v3257 = vld [vmem:[%s3204 + $0x1a0] sm:$0xff]
  %v3258 = vld [vmem:[%s3204 + $0x1a8] sm:$0xff]
  %v3259 = vld [vmem:[%s3204 + $0x1b0] sm:$0xff]
  %v3260 = vld [vmem:[%s3204 + $0x1b8] sm:$0xff]
  %v3261 = vld [vmem:[%s3204 + $0x1c0] sm:$0xff]
  %v3262 = vld [vmem:[%s3204 + $0x1c8] sm:$0xff]
  %v3263 = vld [vmem:[%s3204 + $0x1d0] sm:$0xff]
  %v3264 = vld [vmem:[%s3204 + $0x1d8] sm:$0xff]
  %v3265 = vld [vmem:[%s3204 + $0x1e0] sm:$0xff]
  %v3266 = vld [vmem:[%s3204 + $0x1e8] sm:$0xff]
  %v3267 = vld [vmem:[%s3204 + $0x1f0] sm:$0xff]
  %v3268 = vld [vmem:[%s3204 + $0x1f8] sm:$0xff]
  %v3269 = vld [vmem:[%s3204 + $0x200] sm:$0xff]
  %v3270 = vld [vmem:[%s3204 + $0x208] sm:$0xff]
  %v3271 = vld [vmem:[%s3204 + $0x210] sm:$0xff]
  %v3272 = vld [vmem:[%s3204 + $0x218] sm:$0xff]
  %v3273 = vld [vmem:[%s3204 + $0x220] sm:$0xff]
  %v3274 = vld [vmem:[%s3204 + $0x228] sm:$0xff]
  %v3275 = vld [vmem:[%s3204 + $0x230] sm:$0xff]
  %v3276 = vld [vmem:[%s3204 + $0x238] sm:$0xff]
  %v3277 = vld [vmem:[%s3204 + $0x240] sm:$0xff]
  %v3278 = vld [vmem:[%s3204 + $0x248] sm:$0xff]
  %v3279 = vld [vmem:[%s3204 + $0x250] sm:$0xff]
  %v3280 = vld [vmem:[%s3204 + $0x258] sm:$0xff]
  %v3281 = vld [vmem:[%s3204 + $0x260] sm:$0xff]
  %v3282 = vld [vmem:[%s3204 + $0x268] sm:$0xff]
  %v3283 = vld [vmem:[%s3204 + $0x270] sm:$0xff]
  %v3284 = vld [vmem:[%s3204 + $0x278] sm:$0xff]
  %v3285 = vld [vmem:[%s3204 + $0x280] sm:$0xff]
  %v3286 = vld [vmem:[%s3204 + $0x288] sm:$0xff]
  %v3287 = vld [vmem:[%s3204 + $0x290] sm:$0xff]
  %v3288 = vld [vmem:[%s3204 + $0x298] sm:$0xff]
  %v3289 = vld [vmem:[%s3204 + $0x2a0] sm:$0xff]
  %v3290 = vld [vmem:[%s3204 + $0x2a8] sm:$0xff]
  %v3291 = vld [vmem:[%s3204 + $0x2b0] sm:$0xff]
  %v3292 = vld [vmem:[%s3204 + $0x2b8] sm:$0xff]
  %v3293 = vld [vmem:[%s3204 + $0x2c0] sm:$0xff]
  %v3294 = vld [vmem:[%s3204 + $0x2c8] sm:$0xff]
  %v3295 = vld [vmem:[%s3204 + $0x2d0] sm:$0xff]
  %v3296 = vld [vmem:[%s3204 + $0x2d8] sm:$0xff]
  %v3297 = vld [vmem:[%s3204 + $0x2e0] sm:$0xff]
  %v3298 = vld [vmem:[%s3204 + $0x2e8] sm:$0xff]
  %v3299 = vld [vmem:[%s3204 + $0x2f0] sm:$0xff]
  %v3300 = vld [vmem:[%s3204 + $0x2f8] sm:$0xff]
  %v3301 = vld [vmem:[%s3204 + $0x300] sm:$0xff]
  %v3302 = vld [vmem:[%s3204 + $0x308] sm:$0xff]
  %v3303 = vld [vmem:[%s3204 + $0x310] sm:$0xff]
  %v3304 = vld [vmem:[%s3204 + $0x318] sm:$0xff]
  %v3305 = vld [vmem:[%s3204 + $0x320] sm:$0xff]
  %v3306 = vld [vmem:[%s3204 + $0x328] sm:$0xff]
  %v3307 = vld [vmem:[%s3204 + $0x330] sm:$0xff]
  %v3308 = vld [vmem:[%s3204 + $0x338] sm:$0xff]
  %v3309 = vld [vmem:[%s3204 + $0x340] sm:$0xff]
  %v3310 = vld [vmem:[%s3204 + $0x348] sm:$0xff]
  %v3311 = vld [vmem:[%s3204 + $0x350] sm:$0xff]
  %v3312 = vld [vmem:[%s3204 + $0x358] sm:$0xff]
  %v3313 = vld [vmem:[%s3204 + $0x360] sm:$0xff]
  %v3314 = vld [vmem:[%s3204 + $0x368] sm:$0xff]
  %v3315 = vld [vmem:[%s3204 + $0x370] sm:$0xff]
  %v3316 = vld [vmem:[%s3204 + $0x378] sm:$0xff]
  %v3317 = vld [vmem:[%s3204 + $0x380] sm:$0xff]
  %v3318 = vld [vmem:[%s3204 + $0x388] sm:$0xff]
  %v3319 = vld [vmem:[%s3204 + $0x390] sm:$0xff]
  %v3320 = vld [vmem:[%s3204 + $0x398] sm:$0xff]
  %v3321 = vld [vmem:[%s3204 + $0x3a0] sm:$0xff]
  %v3322 = vld [vmem:[%s3204 + $0x3a8] sm:$0xff]
  %v3323 = vld [vmem:[%s3204 + $0x3b0] sm:$0xff]
  %v3324 = vld [vmem:[%s3204 + $0x3b8] sm:$0xff]
  %v3325 = vld [vmem:[%s3204 + $0x3c0] sm:$0xff]
  %v3326 = vld [vmem:[%s3204 + $0x3c8] sm:$0xff]
  %v3327 = vld [vmem:[%s3204 + $0x3d0] sm:$0xff]
  %v3328 = vld [vmem:[%s3204 + $0x3d8] sm:$0xff]
  %v3329 = vld [vmem:[%s3204 + $0x3e0] sm:$0xff]
  %v3330 = vld [vmem:[%s3204 + $0x3e8] sm:$0xff]
  %v3331 = vld [vmem:[%s3204 + $0x3f0] sm:$0xff]
  %v3332 = vld [vmem:[%s3204 + $0x3f8] sm:$0xff]
  %v3333 = vld [vmem:[%s3204 + $0x400] sm:$0xff]
  %v3334 = vld [vmem:[%s3204 + $0x408] sm:$0xff]
  %v3335 = vld [vmem:[%s3204 + $0x410] sm:$0xff]
  %v3336 = vld [vmem:[%s3204 + $0x418] sm:$0xff]
  %v3337 = vld [vmem:[%s3204 + $0x420] sm:$0xff]
  %v3338 = vld [vmem:[%s3204 + $0x428] sm:$0xff]
  %v3339 = vld [vmem:[%s3204 + $0x430] sm:$0xff]
  %v3340 = vld [vmem:[%s3204 + $0x438] sm:$0xff]
  %v3341 = vld [vmem:[%s3204 + $0x440] sm:$0xff]
  %v3342 = vld [vmem:[%s3204 + $0x448] sm:$0xff]
  %v3343 = vld [vmem:[%s3204 + $0x450] sm:$0xff]
  %v3344 = vld [vmem:[%s3204 + $0x458] sm:$0xff]
  %v3345 = vld [vmem:[%s3204 + $0x460] sm:$0xff]
  %v3346 = vld [vmem:[%s3204 + $0x468] sm:$0xff]
  %v3347 = vld [vmem:[%s3204 + $0x470] sm:$0xff]
  %v3348 = vld [vmem:[%s3204 + $0x478] sm:$0xff]
  %v3349 = vld [vmem:[%s3204 + $0x480] sm:$0xff]
  %v3350 = vld [vmem:[%s3204 + $0x488] sm:$0xff]
  %v3351 = vld [vmem:[%s3204 + $0x490] sm:$0xff]
  %v3352 = vld [vmem:[%s3204 + $0x498] sm:$0xff]
  %v3353 = vld [vmem:[%s3204 + $0x4a0] sm:$0xff]
  %v3354 = vld [vmem:[%s3204 + $0x4a8] sm:$0xff]
  %v3355 = vld [vmem:[%s3204 + $0x4b0] sm:$0xff]
  %v3356 = vld [vmem:[%s3204 + $0x4b8] sm:$0xff]
  %v3357 = vld [vmem:[%s3204 + $0x4c0] sm:$0xff]
  %v3358 = vld [vmem:[%s3204 + $0x4c8] sm:$0xff]
  %v3359 = vld [vmem:[%s3204 + $0x4d0] sm:$0xff]
  %v3360 = vld [vmem:[%s3204 + $0x4d8] sm:$0xff]
  %v3361 = vld [vmem:[%s3204 + $0x4e0] sm:$0xff]
  %v3362 = vld [vmem:[%s3204 + $0x4e8] sm:$0xff]
  %v3363 = vld [vmem:[%s3204 + $0x4f0] sm:$0xff]
  %v3364 = vld [vmem:[%s3204 + $0x4f8] sm:$0xff]
  %v3365 = vld [vmem:[%s3204 + $0x500] sm:$0xff]
  %v3366 = vld [vmem:[%s3204 + $0x508] sm:$0xff]
  %v3367 = vld [vmem:[%s3204 + $0x510] sm:$0xff]
  %v3368 = vld [vmem:[%s3204 + $0x518] sm:$0xff]
  %v3369 = vld [vmem:[%s3204 + $0x520] sm:$0xff]
  %v3370 = vld [vmem:[%s3204 + $0x528] sm:$0xff]
  %v3371 = vld [vmem:[%s3204 + $0x530] sm:$0xff]
  %v3372 = vld [vmem:[%s3204 + $0x538] sm:$0xff]
  %v3373 = vld [vmem:[%s3204 + $0x540] sm:$0xff]
  %v3374 = vld [vmem:[%s3204 + $0x548] sm:$0xff]
  %v3375 = vld [vmem:[%s3204 + $0x550] sm:$0xff]
  %v3376 = vld [vmem:[%s3204 + $0x558] sm:$0xff]
  %v3377 = vld [vmem:[%s3204 + $0x560] sm:$0xff]
  %v3378 = vld [vmem:[%s3204 + $0x568] sm:$0xff]
  %v3379 = vld [vmem:[%s3204 + $0x570] sm:$0xff]
  %v3380 = vld [vmem:[%s3204 + $0x578] sm:$0xff]
  %v3381 = vld [vmem:[%s3204 + $0x580] sm:$0xff]
  %v3382 = vld [vmem:[%s3204 + $0x588] sm:$0xff]
  %v3383 = vld [vmem:[%s3204 + $0x590] sm:$0xff]
  %v3384 = vld [vmem:[%s3204 + $0x598] sm:$0xff]
  %v3385 = vld [vmem:[%s3204 + $0x5a0] sm:$0xff]
  %v3386 = vld [vmem:[%s3204 + $0x5a8] sm:$0xff]
  %v3387 = vld [vmem:[%s3204 + $0x5b0] sm:$0xff]
  %v3388 = vld [vmem:[%s3204 + $0x5b8] sm:$0xff]
  %v3389 = vld [vmem:[%s3204 + $0x5c0] sm:$0xff]
  %v3390 = vld [vmem:[%s3204 + $0x5c8] sm:$0x33]
  %v3391 = vld [vmem:[%s3204 + $0x5d0] sm:$0x33]
  %v3392 = vld [vmem:[%s3204 + $0x5d8] sm:$0x33]
  %v3393 = vld [vmem:[%s3204 + $0x5e0] sm:$0x33]
  %v3394 = vld [vmem:[%s3204 + $0x5e8] sm:$0x33]
  %v3585 = vunpack.c.l.b16 %v3205
  %v3586 = vunpack.c.h.b16 %v3205
  %v3587 = vunpack.c.l.b16 %v3206
  %v3588 = vunpack.c.h.b16 %v3206
  %v3589 = vunpack.c.l.b16 %v3207
  %v3590 = vunpack.c.h.b16 %v3207
  %v3591 = vunpack.c.l.b16 %v3208
  %v3592 = vunpack.c.h.b16 %v3208
  %v3593 = vunpack.c.l.b16 %v3209
  %v3594 = vunpack.c.h.b16 %v3209
  %v3595 = vunpack.c.l.b16 %v3210
  %v3596 = vunpack.c.h.b16 %v3210
  %v3597 = vunpack.c.l.b16 %v3211
  %v3598 = vunpack.c.h.b16 %v3211
  %v3599 = vunpack.c.l.b16 %v3212
  %v3600 = vunpack.c.h.b16 %v3212
  %v3601 = vunpack.c.l.b16 %v3213
  %v3602 = vunpack.c.h.b16 %v3213
  %v3603 = vunpack.c.l.b16 %v3214
  %v3604 = vunpack.c.h.b16 %v3214
  %v3605 = vunpack.c.l.b16 %v3215
  %v3606 = vunpack.c.h.b16 %v3215
  %v3607 = vunpack.c.l.b16 %v3216
  %v3608 = vunpack.c.h.b16 %v3216
  %v3609 = vunpack.c.l.b16 %v3217
  %v3610 = vunpack.c.h.b16 %v3217
  %v3611 = vunpack.c.l.b16 %v3218
  %v3612 = vunpack.c.h.b16 %v3218
  %v3613 = vunpack.c.l.b16 %v3219
  %v3614 = vunpack.c.h.b16 %v3219
  %v3615 = vunpack.c.l.b16 %v3220
  %v3616 = vunpack.c.h.b16 %v3220
  %v3617 = vunpack.c.l.b16 %v3221
  %v3618 = vunpack.c.h.b16 %v3221
  %v3619 = vunpack.c.l.b16 %v3222
  %v3620 = vunpack.c.h.b16 %v3222
  %v3621 = vunpack.c.l.b16 %v3223
  %v3622 = vunpack.c.h.b16 %v3223
  %v3623 = vunpack.c.l.b16 %v3224
  %v3624 = vunpack.c.h.b16 %v3224
  %v3625 = vunpack.c.l.b16 %v3225
  %v3626 = vunpack.c.h.b16 %v3225
  %v3627 = vunpack.c.l.b16 %v3226
  %v3628 = vunpack.c.h.b16 %v3226
  %v3629 = vunpack.c.l.b16 %v3227
  %v3630 = vunpack.c.h.b16 %v3227
  %v3631 = vunpack.c.l.b16 %v3228
  %v3632 = vunpack.c.h.b16 %v3228
  %v3633 = vunpack.c.l.b16 %v3229
  %v3634 = vunpack.c.h.b16 %v3229
  %v3635 = vunpack.c.l.b16 %v3230
  %v3636 = vunpack.c.h.b16 %v3230
  %v3637 = vunpack.c.l.b16 %v3231
  %v3638 = vunpack.c.h.b16 %v3231
  %v3639 = vunpack.c.l.b16 %v3232
  %v3640 = vunpack.c.h.b16 %v3232
  %v3641 = vunpack.c.l.b16 %v3233
  %v3642 = vunpack.c.h.b16 %v3233
  %v3643 = vunpack.c.l.b16 %v3234
  %v3644 = vunpack.c.h.b16 %v3234
  %v3645 = vunpack.c.l.b16 %v3235
  %v3646 = vunpack.c.h.b16 %v3235
  %v3647 = vunpack.c.l.b16 %v3236
  %v3648 = vunpack.c.h.b16 %v3236
  %v3649 = vunpack.c.l.b16 %v3237
  %v3650 = vunpack.c.h.b16 %v3237
  %v3651 = vunpack.c.l.b16 %v3238
  %v3652 = vunpack.c.h.b16 %v3238
  %v3653 = vunpack.c.l.b16 %v3239
  %v3654 = vunpack.c.h.b16 %v3239
  %v3655 = vunpack.c.l.b16 %v3240
  %v3656 = vunpack.c.h.b16 %v3240
  %v3657 = vunpack.c.l.b16 %v3241
  %v3658 = vunpack.c.h.b16 %v3241
  %v3659 = vunpack.c.l.b16 %v3242
  %v3660 = vunpack.c.h.b16 %v3242
  %v3661 = vunpack.c.l.b16 %v3243
  %v3662 = vunpack.c.h.b16 %v3243
  %v3663 = vunpack.c.l.b16 %v3244
  %v3664 = vunpack.c.h.b16 %v3244
  %v3665 = vunpack.c.l.b16 %v3245
  %v3666 = vunpack.c.h.b16 %v3245
  %v3667 = vunpack.c.l.b16 %v3246
  %v3668 = vunpack.c.h.b16 %v3246
  %v3669 = vunpack.c.l.b16 %v3247
  %v3670 = vunpack.c.h.b16 %v3247
  %v3671 = vunpack.c.l.b16 %v3248
  %v3672 = vunpack.c.h.b16 %v3248
  %v3673 = vunpack.c.l.b16 %v3249
  %v3674 = vunpack.c.h.b16 %v3249
  %v3675 = vunpack.c.l.b16 %v3250
  %v3676 = vunpack.c.h.b16 %v3250
  %v3677 = vunpack.c.l.b16 %v3251
  %v3678 = vunpack.c.h.b16 %v3251
  %v3679 = vunpack.c.l.b16 %v3252
  %v3680 = vunpack.c.h.b16 %v3252
  %v3681 = vunpack.c.l.b16 %v3253
  %v3682 = vunpack.c.h.b16 %v3253
  %v3683 = vunpack.c.l.b16 %v3254
  %v3684 = vunpack.c.h.b16 %v3254
  %v3685 = vunpack.c.l.b16 %v3255
  %v3686 = vunpack.c.h.b16 %v3255
  %v3687 = vunpack.c.l.b16 %v3256
  %v3688 = vunpack.c.h.b16 %v3256
  %v3689 = vunpack.c.l.b16 %v3257
  %v3690 = vunpack.c.h.b16 %v3257
  %v3691 = vunpack.c.l.b16 %v3258
  %v3692 = vunpack.c.h.b16 %v3258
  %v3693 = vunpack.c.l.b16 %v3259
  %v3694 = vunpack.c.h.b16 %v3259
  %v3695 = vunpack.c.l.b16 %v3260
  %v3696 = vunpack.c.h.b16 %v3260
  %v3697 = vunpack.c.l.b16 %v3261
  %v3698 = vunpack.c.h.b16 %v3261
  %v3699 = vunpack.c.l.b16 %v3262
  %v3700 = vunpack.c.h.b16 %v3262
  %v3701 = vunpack.c.l.b16 %v3263
  %v3702 = vunpack.c.h.b16 %v3263
  %v3703 = vunpack.c.l.b16 %v3264
  %v3704 = vunpack.c.h.b16 %v3264
  %v3705 = vunpack.c.l.b16 %v3265
  %v3706 = vunpack.c.h.b16 %v3265
  %v3707 = vunpack.c.l.b16 %v3266
  %v3708 = vunpack.c.h.b16 %v3266
  %v3709 = vunpack.c.l.b16 %v3267
  %v3710 = vunpack.c.h.b16 %v3267
  %v3711 = vunpack.c.l.b16 %v3268
  %v3712 = vunpack.c.h.b16 %v3268
  %v3713 = vunpack.c.l.b16 %v3269
  %v3714 = vunpack.c.h.b16 %v3269
  %v3715 = vunpack.c.l.b16 %v3270
  %v3716 = vunpack.c.h.b16 %v3270
  %v3717 = vunpack.c.l.b16 %v3271
  %v3718 = vunpack.c.h.b16 %v3271
  %v3719 = vunpack.c.l.b16 %v3272
  %v3720 = vunpack.c.h.b16 %v3272
  %v3721 = vunpack.c.l.b16 %v3273
  %v3722 = vunpack.c.h.b16 %v3273
  %v3723 = vunpack.c.l.b16 %v3274
  %v3724 = vunpack.c.h.b16 %v3274
  %v3725 = vunpack.c.l.b16 %v3275
  %v3726 = vunpack.c.h.b16 %v3275
  %v3727 = vunpack.c.l.b16 %v3276
  %v3728 = vunpack.c.h.b16 %v3276
  %v3729 = vunpack.c.l.b16 %v3277
  %v3730 = vunpack.c.h.b16 %v3277
  %v3731 = vunpack.c.l.b16 %v3278
  %v3732 = vunpack.c.h.b16 %v3278
  %v3733 = vunpack.c.l.b16 %v3279
  %v3734 = vunpack.c.h.b16 %v3279
  %v3735 = vunpack.c.l.b16 %v3280
  %v3736 = vunpack.c.h.b16 %v3280
  %v3737 = vunpack.c.l.b16 %v3281
  %v3738 = vunpack.c.h.b16 %v3281
  %v3739 = vunpack.c.l.b16 %v3282
  %v3740 = vunpack.c.h.b16 %v3282
  %v3741 = vunpack.c.l.b16 %v3283
  %v3742 = vunpack.c.h.b16 %v3283
  %v3743 = vunpack.c.l.b16 %v3284
  %v3744 = vunpack.c.h.b16 %v3284
  %v3745 = vunpack.c.l.b16 %v3285
  %v3746 = vunpack.c.h.b16 %v3285
  %v3747 = vunpack.c.l.b16 %v3286
  %v3748 = vunpack.c.h.b16 %v3286
  %v3749 = vunpack.c.l.b16 %v3287
  %v3750 = vunpack.c.h.b16 %v3287
  %v3751 = vunpack.c.l.b16 %v3288
  %v3752 = vunpack.c.h.b16 %v3288
  %v3753 = vunpack.c.l.b16 %v3289
  %v3754 = vunpack.c.h.b16 %v3289
  %v3755 = vunpack.c.l.b16 %v3290
  %v3756 = vunpack.c.h.b16 %v3290
  %v3757 = vunpack.c.l.b16 %v3291
  %v3758 = vunpack.c.h.b16 %v3291
  %v3759 = vunpack.c.l.b16 %v3292
  %v3760 = vunpack.c.h.b16 %v3292
  %v3761 = vunpack.c.l.b16 %v3293
  %v3762 = vunpack.c.h.b16 %v3293
  %v3763 = vunpack.c.l.b16 %v3294
  %v3764 = vunpack.c.h.b16 %v3294
  %v3765 = vunpack.c.l.b16 %v3295
  %v3766 = vunpack.c.h.b16 %v3295
  %v3767 = vunpack.c.l.b16 %v3296
  %v3768 = vunpack.c.h.b16 %v3296
  %v3769 = vunpack.c.l.b16 %v3297
  %v3770 = vunpack.c.h.b16 %v3297
  %v3771 = vunpack.c.l.b16 %v3298
  %v3772 = vunpack.c.h.b16 %v3298
  %v3773 = vunpack.c.l.b16 %v3299
  %v3774 = vunpack.c.h.b16 %v3299
  %v3775 = vunpack.c.l.b16 %v3300
  %v3776 = vunpack.c.h.b16 %v3300
  %v3777 = vunpack.c.l.b16 %v3301
  %v3778 = vunpack.c.h.b16 %v3301
  %v3779 = vunpack.c.l.b16 %v3302
  %v3780 = vunpack.c.h.b16 %v3302
  %v3781 = vunpack.c.l.b16 %v3303
  %v3782 = vunpack.c.h.b16 %v3303
  %v3783 = vunpack.c.l.b16 %v3304
  %v3784 = vunpack.c.h.b16 %v3304
  %v3785 = vunpack.c.l.b16 %v3305
  %v3786 = vunpack.c.h.b16 %v3305
  %v3787 = vunpack.c.l.b16 %v3306
  %v3788 = vunpack.c.h.b16 %v3306
  %v3789 = vunpack.c.l.b16 %v3307
  %v3790 = vunpack.c.h.b16 %v3307
  %v3791 = vunpack.c.l.b16 %v3308
  %v3792 = vunpack.c.h.b16 %v3308
  %v3793 = vunpack.c.l.b16 %v3309
  %v3794 = vunpack.c.h.b16 %v3309
  %v3795 = vunpack.c.l.b16 %v3310
  %v3796 = vunpack.c.h.b16 %v3310
  %v3797 = vunpack.c.l.b16 %v3311
  %v3798 = vunpack.c.h.b16 %v3311
  %v3799 = vunpack.c.l.b16 %v3312
  %v3800 = vunpack.c.h.b16 %v3312
  %v3801 = vunpack.c.l.b16 %v3313
  %v3802 = vunpack.c.h.b16 %v3313
  %v3803 = vunpack.c.l.b16 %v3314
  %v3804 = vunpack.c.h.b16 %v3314
  %v3805 = vunpack.c.l.b16 %v3315
  %v3806 = vunpack.c.h.b16 %v3315
  %v3807 = vunpack.c.l.b16 %v3316
  %v3808 = vunpack.c.h.b16 %v3316
  %v3809 = vunpack.c.l.b16 %v3317
  %v3810 = vunpack.c.h.b16 %v3317
  %v3811 = vunpack.c.l.b16 %v3318
  %v3812 = vunpack.c.h.b16 %v3318
  %v3813 = vunpack.c.l.b16 %v3319
  %v3814 = vunpack.c.h.b16 %v3319
  %v3815 = vunpack.c.l.b16 %v3320
  %v3816 = vunpack.c.h.b16 %v3320
  %v3817 = vunpack.c.l.b16 %v3321
  %v3818 = vunpack.c.h.b16 %v3321
  %v3819 = vunpack.c.l.b16 %v3322
  %v3820 = vunpack.c.h.b16 %v3322
  %v3821 = vunpack.c.l.b16 %v3323
  %v3822 = vunpack.c.h.b16 %v3323
  %v3823 = vunpack.c.l.b16 %v3324
  %v3824 = vunpack.c.h.b16 %v3324
  %v3825 = vunpack.c.l.b16 %v3325
  %v3826 = vunpack.c.h.b16 %v3325
  %v3827 = vunpack.c.l.b16 %v3326
  %v3828 = vunpack.c.h.b16 %v3326
  %v3829 = vunpack.c.l.b16 %v3327
  %v3830 = vunpack.c.h.b16 %v3327
  %v3831 = vunpack.c.l.b16 %v3328
  %v3832 = vunpack.c.h.b16 %v3328
  %v3833 = vunpack.c.l.b16 %v3329
  %v3834 = vunpack.c.h.b16 %v3329
  %v3835 = vunpack.c.l.b16 %v3330
  %v3836 = vunpack.c.h.b16 %v3330
  %v3837 = vunpack.c.l.b16 %v3331
  %v3838 = vunpack.c.h.b16 %v3331
  %v3839 = vunpack.c.l.b16 %v3332
  %v3840 = vunpack.c.h.b16 %v3332
  %v3841 = vunpack.c.l.b16 %v3333
  %v3842 = vunpack.c.h.b16 %v3333
  %v3843 = vunpack.c.l.b16 %v3334
  %v3844 = vunpack.c.h.b16 %v3334
  %v3845 = vunpack.c.l.b16 %v3335
  %v3846 = vunpack.c.h.b16 %v3335
  %v3847 = vunpack.c.l.b16 %v3336
  %v3848 = vunpack.c.h.b16 %v3336
  %v3849 = vunpack.c.l.b16 %v3337
  %v3850 = vunpack.c.h.b16 %v3337
  %v3851 = vunpack.c.l.b16 %v3338
  %v3852 = vunpack.c.h.b16 %v3338
  %v3853 = vunpack.c.l.b16 %v3339
  %v3854 = vunpack.c.h.b16 %v3339
  %v3855 = vunpack.c.l.b16 %v3340
  %v3856 = vunpack.c.h.b16 %v3340
  %v3857 = vunpack.c.l.b16 %v3341
  %v3858 = vunpack.c.h.b16 %v3341
  %v3859 = vunpack.c.l.b16 %v3342
  %v3860 = vunpack.c.h.b16 %v3342
  %v3861 = vunpack.c.l.b16 %v3343
  %v3862 = vunpack.c.h.b16 %v3343
  %v3863 = vunpack.c.l.b16 %v3344
  %v3864 = vunpack.c.h.b16 %v3344
  %v3865 = vunpack.c.l.b16 %v3345
  %v3866 = vunpack.c.h.b16 %v3345
  %v3867 = vunpack.c.l.b16 %v3346
  %v3868 = vunpack.c.h.b16 %v3346
  %v3869 = vunpack.c.l.b16 %v3347
  %v3870 = vunpack.c.h.b16 %v3347
  %v3871 = vunpack.c.l.b16 %v3348
  %v3872 = vunpack.c.h.b16 %v3348
  %v3873 = vunpack.c.l.b16 %v3349
  %v3874 = vunpack.c.h.b16 %v3349
  %v3875 = vunpack.c.l.b16 %v3350
  %v3876 = vunpack.c.h.b16 %v3350
  %v3877 = vunpack.c.l.b16 %v3351
  %v3878 = vunpack.c.h.b16 %v3351
  %v3879 = vunpack.c.l.b16 %v3352
  %v3880 = vunpack.c.h.b16 %v3352
  %v3881 = vunpack.c.l.b16 %v3353
  %v3882 = vunpack.c.h.b16 %v3353
  %v3883 = vunpack.c.l.b16 %v3354
  %v3884 = vunpack.c.h.b16 %v3354
  %v3885 = vunpack.c.l.b16 %v3355
  %v3886 = vunpack.c.h.b16 %v3355
  %v3887 = vunpack.c.l.b16 %v3356
  %v3888 = vunpack.c.h.b16 %v3356
  %v3889 = vunpack.c.l.b16 %v3357
  %v3890 = vunpack.c.h.b16 %v3357
  %v3891 = vunpack.c.l.b16 %v3358
  %v3892 = vunpack.c.h.b16 %v3358
  %v3893 = vunpack.c.l.b16 %v3359
  %v3894 = vunpack.c.h.b16 %v3359
  %v3895 = vunpack.c.l.b16 %v3360
  %v3896 = vunpack.c.h.b16 %v3360
  %v3897 = vunpack.c.l.b16 %v3361
  %v3898 = vunpack.c.h.b16 %v3361
  %v3899 = vunpack.c.l.b16 %v3362
  %v3900 = vunpack.c.h.b16 %v3362
  %v3901 = vunpack.c.l.b16 %v3363
  %v3902 = vunpack.c.h.b16 %v3363
  %v3903 = vunpack.c.l.b16 %v3364
  %v3904 = vunpack.c.h.b16 %v3364
  %v3905 = vunpack.c.l.b16 %v3365
  %v3906 = vunpack.c.h.b16 %v3365
  %v3907 = vunpack.c.l.b16 %v3366
  %v3908 = vunpack.c.h.b16 %v3366
  %v3909 = vunpack.c.l.b16 %v3367
  %v3910 = vunpack.c.h.b16 %v3367
  %v3911 = vunpack.c.l.b16 %v3368
  %v3912 = vunpack.c.h.b16 %v3368
  %v3913 = vunpack.c.l.b16 %v3369
  %v3914 = vunpack.c.h.b16 %v3369
  %v3915 = vunpack.c.l.b16 %v3370
  %v3916 = vunpack.c.h.b16 %v3370
  %v3917 = vunpack.c.l.b16 %v3371
  %v3918 = vunpack.c.h.b16 %v3371
  %v3919 = vunpack.c.l.b16 %v3372
  %v3920 = vunpack.c.h.b16 %v3372
  %v3921 = vunpack.c.l.b16 %v3373
  %v3922 = vunpack.c.h.b16 %v3373
  %v3923 = vunpack.c.l.b16 %v3374
  %v3924 = vunpack.c.h.b16 %v3374
  %v3925 = vunpack.c.l.b16 %v3375
  %v3926 = vunpack.c.h.b16 %v3375
  %v3927 = vunpack.c.l.b16 %v3376
  %v3928 = vunpack.c.h.b16 %v3376
  %v3929 = vunpack.c.l.b16 %v3377
  %v3930 = vunpack.c.h.b16 %v3377
  %v3931 = vunpack.c.l.b16 %v3378
  %v3932 = vunpack.c.h.b16 %v3378
  %v3933 = vunpack.c.l.b16 %v3379
  %v3934 = vunpack.c.h.b16 %v3379
  %v3935 = vunpack.c.l.b16 %v3380
  %v3936 = vunpack.c.h.b16 %v3380
  %v3937 = vunpack.c.l.b16 %v3381
  %v3938 = vunpack.c.h.b16 %v3381
  %v3939 = vunpack.c.l.b16 %v3382
  %v3940 = vunpack.c.h.b16 %v3382
  %v3941 = vunpack.c.l.b16 %v3383
  %v3942 = vunpack.c.h.b16 %v3383
  %v3943 = vunpack.c.l.b16 %v3384
  %v3944 = vunpack.c.h.b16 %v3384
  %v3945 = vunpack.c.l.b16 %v3385
  %v3946 = vunpack.c.h.b16 %v3385
  %v3947 = vunpack.c.l.b16 %v3386
  %v3948 = vunpack.c.h.b16 %v3386
  %v3949 = vunpack.c.l.b16 %v3387
  %v3950 = vunpack.c.h.b16 %v3387
  %v3951 = vunpack.c.l.b16 %v3388
  %v3952 = vunpack.c.h.b16 %v3388
  %v3953 = vunpack.c.l.b16 %v3389
  %v3954 = vunpack.c.h.b16 %v3389
  %v3955 = vunpack.c.l.b16 %v3390
  %v3956 = vunpack.c.h.b16 %v3390
  %v3957 = vunpack.c.l.b16 %v3391
  %v3958 = vunpack.c.h.b16 %v3391
  %v3959 = vunpack.c.l.b16 %v3392
  %v3960 = vunpack.c.h.b16 %v3392
  %v3961 = vunpack.c.l.b16 %v3393
  %v3962 = vunpack.c.h.b16 %v3393
  %v3963 = vunpack.c.l.b16 %v3394
  %v3964 = vunpack.c.h.b16 %v3394
  %v3965 = vpack.c.b16 %v3595, %v3585
  %v3966 = vpack.c.b16 %v3596, %v3586
  %v3967 = vpack.c.b16 %v3597, %v3587
  %v3968 = vpack.c.b16 %v3598, %v3588
  %v3969 = vpack.c.b16 %v3599, %v3589
  %v3970 = vpack.c.b16 %v3600, %v3590
  %v3971 = vpack.c.b16 %v3601, %v3591
  %v3972 = vpack.c.b16 %v3602, %v3592
  %v3973 = vpack.c.b16 %v3603, %v3593
  %v3974 = vpack.c.b16 %v3604, %v3594
  %v3975 = vpack.c.b16 %v3615, %v3605
  %v3976 = vpack.c.b16 %v3616, %v3606
  %v3977 = vpack.c.b16 %v3617, %v3607
  %v3978 = vpack.c.b16 %v3618, %v3608
  %v3979 = vpack.c.b16 %v3619, %v3609
  %v3980 = vpack.c.b16 %v3620, %v3610
  %v3981 = vpack.c.b16 %v3621, %v3611
  %v3982 = vpack.c.b16 %v3622, %v3612
  %v3983 = vpack.c.b16 %v3623, %v3613
  %v3984 = vpack.c.b16 %v3624, %v3614
  %v3985 = vpack.c.b16 %v3635, %v3625
  %v3986 = vpack.c.b16 %v3636, %v3626
  %v3987 = vpack.c.b16 %v3637, %v3627
  %v3988 = vpack.c.b16 %v3638, %v3628
  %v3989 = vpack.c.b16 %v3639, %v3629
  %v3990 = vpack.c.b16 %v3640, %v3630
  %v3991 = vpack.c.b16 %v3641, %v3631
  %v3992 = vpack.c.b16 %v3642, %v3632
  %v3993 = vpack.c.b16 %v3643, %v3633
  %v3994 = vpack.c.b16 %v3644, %v3634
  %v3995 = vpack.c.b16 %v3655, %v3645
  %v3996 = vpack.c.b16 %v3656, %v3646
  %v3997 = vpack.c.b16 %v3657, %v3647
  %v3998 = vpack.c.b16 %v3658, %v3648
  %v3999 = vpack.c.b16 %v3659, %v3649
  %v4000 = vpack.c.b16 %v3660, %v3650
  %v4001 = vpack.c.b16 %v3661, %v3651
  %v4002 = vpack.c.b16 %v3662, %v3652
  %v4003 = vpack.c.b16 %v3663, %v3653
  %v4004 = vpack.c.b16 %v3664, %v3654
  %v4005 = vpack.c.b16 %v3675, %v3665
  %v4006 = vpack.c.b16 %v3676, %v3666
  %v4007 = vpack.c.b16 %v3677, %v3667
  %v4008 = vpack.c.b16 %v3678, %v3668
  %v4009 = vpack.c.b16 %v3679, %v3669
  %v4010 = vpack.c.b16 %v3680, %v3670
  %v4011 = vpack.c.b16 %v3681, %v3671
  %v4012 = vpack.c.b16 %v3682, %v3672
  %v4013 = vpack.c.b16 %v3683, %v3673
  %v4014 = vpack.c.b16 %v3684, %v3674
  %v4015 = vpack.c.b16 %v3695, %v3685
  %v4016 = vpack.c.b16 %v3696, %v3686
  %v4017 = vpack.c.b16 %v3697, %v3687
  %v4018 = vpack.c.b16 %v3698, %v3688
  %v4019 = vpack.c.b16 %v3699, %v3689
  %v4020 = vpack.c.b16 %v3700, %v3690
  %v4021 = vpack.c.b16 %v3701, %v3691
  %v4022 = vpack.c.b16 %v3702, %v3692
  %v4023 = vpack.c.b16 %v3703, %v3693
  %v4024 = vpack.c.b16 %v3704, %v3694
  %v4025 = vpack.c.b16 %v3715, %v3705
  %v4026 = vpack.c.b16 %v3716, %v3706
  %v4027 = vpack.c.b16 %v3717, %v3707
  %v4028 = vpack.c.b16 %v3718, %v3708
  %v4029 = vpack.c.b16 %v3719, %v3709
  %v4030 = vpack.c.b16 %v3720, %v3710
  %v4031 = vpack.c.b16 %v3721, %v3711
  %v4032 = vpack.c.b16 %v3722, %v3712
  %v4033 = vpack.c.b16 %v3723, %v3713
  %v4034 = vpack.c.b16 %v3724, %v3714
  %v4035 = vpack.c.b16 %v3735, %v3725
  %v4036 = vpack.c.b16 %v3736, %v3726
  %v4037 = vpack.c.b16 %v3737, %v3727
  %v4038 = vpack.c.b16 %v3738, %v3728
  %v4039 = vpack.c.b16 %v3739, %v3729
  %v4040 = vpack.c.b16 %v3740, %v3730
  %v4041 = vpack.c.b16 %v3741, %v3731
  %v4042 = vpack.c.b16 %v3742, %v3732
  %v4043 = vpack.c.b16 %v3743, %v3733
  %v4044 = vpack.c.b16 %v3744, %v3734
  %v4045 = vpack.c.b16 %v3755, %v3745
  %v4046 = vpack.c.b16 %v3756, %v3746
  %v4047 = vpack.c.b16 %v3757, %v3747
  %v4048 = vpack.c.b16 %v3758, %v3748
  %v4049 = vpack.c.b16 %v3759, %v3749
  %v4050 = vpack.c.b16 %v3760, %v3750
  %v4051 = vpack.c.b16 %v3761, %v3751
  %v4052 = vpack.c.b16 %v3762, %v3752
  %v4053 = vpack.c.b16 %v3763, %v3753
  %v4054 = vpack.c.b16 %v3764, %v3754
  %v4055 = vpack.c.b16 %v3775, %v3765
  %v4056 = vpack.c.b16 %v3776, %v3766
  %v4057 = vpack.c.b16 %v3777, %v3767
  %v4058 = vpack.c.b16 %v3778, %v3768
  %v4059 = vpack.c.b16 %v3779, %v3769
  %v4060 = vpack.c.b16 %v3780, %v3770
  %v4061 = vpack.c.b16 %v3781, %v3771
  %v4062 = vpack.c.b16 %v3782, %v3772
  %v4063 = vpack.c.b16 %v3783, %v3773
  %v4064 = vpack.c.b16 %v3784, %v3774
  %v4065 = vpack.c.b16 %v3795, %v3785
  %v4066 = vpack.c.b16 %v3796, %v3786
  %v4067 = vpack.c.b16 %v3797, %v3787
  %v4068 = vpack.c.b16 %v3798, %v3788
  %v4069 = vpack.c.b16 %v3799, %v3789
  %v4070 = vpack.c.b16 %v3800, %v3790
  %v4071 = vpack.c.b16 %v3801, %v3791
  %v4072 = vpack.c.b16 %v3802, %v3792
  %v4073 = vpack.c.b16 %v3803, %v3793
  %v4074 = vpack.c.b16 %v3804, %v3794
  %v4075 = vpack.c.b16 %v3815, %v3805
  %v4076 = vpack.c.b16 %v3816, %v3806
  %v4077 = vpack.c.b16 %v3817, %v3807
  %v4078 = vpack.c.b16 %v3818, %v3808
  %v4079 = vpack.c.b16 %v3819, %v3809
  %v4080 = vpack.c.b16 %v3820, %v3810
  %v4081 = vpack.c.b16 %v3821, %v3811
  %v4082 = vpack.c.b16 %v3822, %v3812
  %v4083 = vpack.c.b16 %v3823, %v3813
  %v4084 = vpack.c.b16 %v3824, %v3814
  %v4085 = vpack.c.b16 %v3835, %v3825
  %v4086 = vpack.c.b16 %v3836, %v3826
  %v4087 = vpack.c.b16 %v3837, %v3827
  %v4088 = vpack.c.b16 %v3838, %v3828
  %v4089 = vpack.c.b16 %v3839, %v3829
  %v4090 = vpack.c.b16 %v3840, %v3830
  %v4091 = vpack.c.b16 %v3841, %v3831
  %v4092 = vpack.c.b16 %v3842, %v3832
  %v4093 = vpack.c.b16 %v3843, %v3833
  %v4094 = vpack.c.b16 %v3844, %v3834
  %v4095 = vpack.c.b16 %v3855, %v3845
  %v4096 = vpack.c.b16 %v3856, %v3846
  %v4097 = vpack.c.b16 %v3857, %v3847
  %v4098 = vpack.c.b16 %v3858, %v3848
  %v4099 = vpack.c.b16 %v3859, %v3849
  %v4100 = vpack.c.b16 %v3860, %v3850
  %v4101 = vpack.c.b16 %v3861, %v3851
  %v4102 = vpack.c.b16 %v3862, %v3852
  %v4103 = vpack.c.b16 %v3863, %v3853
  %v4104 = vpack.c.b16 %v3864, %v3854
  %v4105 = vpack.c.b16 %v3875, %v3865
  %v4106 = vpack.c.b16 %v3876, %v3866
  %v4107 = vpack.c.b16 %v3877, %v3867
  %v4108 = vpack.c.b16 %v3878, %v3868
  %v4109 = vpack.c.b16 %v3879, %v3869
  %v4110 = vpack.c.b16 %v3880, %v3870
  %v4111 = vpack.c.b16 %v3881, %v3871
  %v4112 = vpack.c.b16 %v3882, %v3872
  %v4113 = vpack.c.b16 %v3883, %v3873
  %v4114 = vpack.c.b16 %v3884, %v3874
  %v4115 = vpack.c.b16 %v3895, %v3885
  %v4116 = vpack.c.b16 %v3896, %v3886
  %v4117 = vpack.c.b16 %v3897, %v3887
  %v4118 = vpack.c.b16 %v3898, %v3888
  %v4119 = vpack.c.b16 %v3899, %v3889
  %v4120 = vpack.c.b16 %v3900, %v3890
  %v4121 = vpack.c.b16 %v3901, %v3891
  %v4122 = vpack.c.b16 %v3902, %v3892
  %v4123 = vpack.c.b16 %v3903, %v3893
  %v4124 = vpack.c.b16 %v3904, %v3894
  %v4125 = vpack.c.b16 %v3915, %v3905
  %v4126 = vpack.c.b16 %v3916, %v3906
  %v4127 = vpack.c.b16 %v3917, %v3907
  %v4128 = vpack.c.b16 %v3918, %v3908
  %v4129 = vpack.c.b16 %v3919, %v3909
  %v4130 = vpack.c.b16 %v3920, %v3910
  %v4131 = vpack.c.b16 %v3921, %v3911
  %v4132 = vpack.c.b16 %v3922, %v3912
  %v4133 = vpack.c.b16 %v3923, %v3913
  %v4134 = vpack.c.b16 %v3924, %v3914
  %v4135 = vpack.c.b16 %v3935, %v3925
  %v4136 = vpack.c.b16 %v3936, %v3926
  %v4137 = vpack.c.b16 %v3937, %v3927
  %v4138 = vpack.c.b16 %v3938, %v3928
  %v4139 = vpack.c.b16 %v3939, %v3929
  %v4140 = vpack.c.b16 %v3940, %v3930
  %v4141 = vpack.c.b16 %v3941, %v3931
  %v4142 = vpack.c.b16 %v3942, %v3932
  %v4143 = vpack.c.b16 %v3943, %v3933
  %v4144 = vpack.c.b16 %v3944, %v3934
  %v4145 = vpack.c.b16 %v3955, %v3945
  %v4146 = vpack.c.b16 %v3956, %v3946
  %v4147 = vpack.c.b16 %v3957, %v3947
  %v4148 = vpack.c.b16 %v3958, %v3948
  %v4149 = vpack.c.b16 %v3959, %v3949
  %v4150 = vpack.c.b16 %v3960, %v3950
  %v4151 = vpack.c.b16 %v3961, %v3951
  %v4152 = vpack.c.b16 %v3962, %v3952
  %v4153 = vpack.c.b16 %v3963, %v3953
  %v4154 = vpack.c.b16 %v3964, %v3954
  %v4336 = vsel %vm1305, %v4145, 0
  %v4339 = vsel %vm1305, %v4146, 0
  %v4342 = vsel %vm1305, %v4147, 0
  %v4345 = vsel %vm1305, %v4148, 0
  %v4348 = vsel %vm1305, %v4149, 0
  %v4351 = vsel %vm1305, %v4150, 0
  %v4354 = vsel %vm1305, %v4151, 0
  %v4357 = vsel %vm1305, %v4152, 0
  %v4360 = vsel %vm1305, %v4153, 0
  %v4363 = vsel %vm1305, %v4154, 0
  %4365 = vmatprep.subr.bf16.mxu0 %v3966
  %4366 = vmatpush1.bf16.msra.mxu0 %v3965
  %4367 = vmatprep.subr.bf16.mxu0 %v3976
  %4368 = vmatpush1.bf16.msra.mxu0 %v3975
  %4369 = vmatprep.subr.bf16.mxu0 %v3986
  %4370 = vmatpush1.bf16.msra.mxu0 %v3985
  %4371 = vmatprep.subr.bf16.mxu0 %v3996
  %4372 = vmatpush1.bf16.msra.mxu0 %v3995
  %4373 = vmatprep.subr.bf16.mxu0 %v4006
  %4374 = vmatpush1.bf16.msra.mxu0 %v4005
  %4375 = vmatprep.subr.bf16.mxu0 %v4016
  %4376 = vmatpush1.bf16.msra.mxu0 %v4015
  %4377 = vmatprep.subr.bf16.mxu0 %v4026
  %4378 = vmatpush1.bf16.msra.mxu0 %v4025
  %4379 = vmatprep.subr.bf16.mxu0 %v4036
  %4380 = vmatpush1.bf16.msra.mxu0 %v4035
  %4381 = vmatprep.subr.bf16.mxu0 %v4046
  %4382 = vmatpush1.bf16.msra.mxu0 %v4045
  %4383 = vmatprep.subr.bf16.mxu0 %v4056
  %4384 = vmatpush1.bf16.msra.mxu0 %v4055
  %4385 = vmatprep.subr.bf16.mxu0 %v4066
  %4386 = vmatpush1.bf16.msra.mxu0 %v4065
  %4387 = vmatprep.subr.bf16.mxu0 %v4076
  %4388 = vmatpush1.bf16.msra.mxu0 %v4075
  %4389 = vmatprep.subr.bf16.mxu0 %v4086
  %4390 = vmatpush1.bf16.msra.mxu0 %v4085
  %4391 = vmatprep.subr.bf16.mxu0 %v4096
  %4392 = vmatpush1.bf16.msra.mxu0 %v4095
  %4393 = vmatprep.subr.bf16.mxu0 %v4106
  %4394 = vmatpush1.bf16.msra.mxu0 %v4105
  %4395 = vmatprep.subr.bf16.mxu0 %v4116
  %4396 = vmatpush1.bf16.msra.mxu0 %v4115
  %4397 = vmatprep.mubr.bf16.mxu0 %v130
  %4398 = vmatmul.mubr.bf16.gmra.mrb[0].mxu0 %v129
  %v4399 = vpop.f32.mrb[0].mxu0
  %v4400 = vadd.f32 0.0, %v4399
  %v4401 = vpop.f32.mrb[0].mxu0
  %v4402 = vadd.f32 0.0, %v4401
  %v4403 = vpop.f32.mrb[0].mxu0
  %v4404 = vadd.f32 0.0, %v4403
  %v4405 = vpop.f32.mrb[0].mxu0
  %v4406 = vadd.f32 0.0, %v4405
  %4407 = vmatprep.mubr.bf16.mxu0 %v133
  %4408 = vmatmul.mubr.bf16.gmra.mrb[0].mxu0 %v132
  %v4409 = vpop.f32.mrb[0].mxu0
  %v4410 = vadd.f32 0.0, %v4409
  %v4411 = vpop.f32.mrb[0].mxu0
  %v4412 = vadd.f32 0.0, %v4411
  %v4413 = vpop.f32.mrb[0].mxu0
  %v4414 = vadd.f32 0.0, %v4413
  %v4415 = vpop.f32.mrb[0].mxu0
  %v4416 = vadd.f32 0.0, %v4415
  %4417 = vmatprep.mubr.bf16.mxu0 %v136
  %4418 = vmatmul.mubr.bf16.gmra.mrb[0].mxu0 %v135
  %v4419 = vpop.f32.mrb[0].mxu0
  %v4420 = vadd.f32 0.0, %v4419
  %v4421 = vpop.f32.mrb[0].mxu0
  %v4422 = vadd.f32 0.0, %v4421
  %v4423 = vpop.f32.mrb[0].mxu0
  %v4424 = vadd.f32 0.0, %v4423
  %v4425 = vpop.f32.mrb[0].mxu0
  %v4426 = vadd.f32 0.0, %v4425
  %4427 = vmatprep.mubr.bf16.mxu0 %v139
  %4428 = vmatmul.mubr.bf16.gmra.mrb[0].mxu0 %v138
  %v4429 = vpop.f32.mrb[0].mxu0
  %v4430 = vadd.f32 0.0, %v4429
  %v4431 = vpop.f32.mrb[0].mxu0
  %v4432 = vadd.f32 0.0, %v4431
  %v4433 = vpop.f32.mrb[0].mxu0
  %v4434 = vadd.f32 0.0, %v4433
  %v4435 = vpop.f32.mrb[0].mxu0
  %v4436 = vadd.f32 0.0, %v4435
  %4437 = vmatprep.mubr.bf16.mxu0 %v142
  %4438 = vmatmul.mubr.bf16.gmra.mrb[0].mxu0 %v141
  %v4439 = vpop.f32.mrb[0].mxu0
  %v4440 = vadd.f32 0.0, %v4439
  %v4441 = vpop.f32.mrb[0].mxu0
  %v4442 = vadd.f32 0.0, %v4441
  %v4443 = vpop.f32.mrb[0].mxu0
  %v4444 = vpop.f32.mrb[0].mxu0
  %4445 = vdwg.mxu0
  %4446 = vmatprep.subr.bf16.mxu0 %v4126
  %4447 = vmatpush1.bf16.msra.mxu0 %v4125
  %4448 = vmatprep.subr.bf16.mxu0 %v4136
  %4449 = vmatpush1.bf16.msra.mxu0 %v4135
  %4450 = vmatprep.subr.bf16.mxu0 %v4339
  %4451 = vmatpush1.bf16.msra.mxu0 %v4336
  %4452 = vmatprep.subr.bf16.mxu0 0
  %4453 = vmatpush1.bf16.msra.mxu0 0
  %4454 = vmatprep.subr.bf16.mxu0 0
  %4455 = vmatpush1.bf16.msra.mxu0 0
  %4456 = vmatprep.subr.bf16.mxu0 0
  %4457 = vmatpush1.bf16.msra.mxu0 0
  %4458 = vmatprep.subr.bf16.mxu0 0
  %4459 = vmatpush1.bf16.msra.mxu0 0
  %4460 = vmatprep.subr.bf16.mxu0 0
  %4461 = vmatpush1.bf16.msra.mxu0 0
  %4462 = vmatprep.subr.bf16.mxu0 0
  %4463 = vmatpush1.bf16.msra.mxu0 0
  %4464 = vmatprep.subr.bf16.mxu0 0
  %4465 = vmatpush1.bf16.msra.mxu0 0
  %4466 = vmatprep.subr.bf16.mxu0 0
  %4467 = vmatpush1.bf16.msra.mxu0 0
  %4468 = vmatprep.subr.bf16.mxu0 0
  %4469 = vmatpush1.bf16.msra.mxu0 0
  %4470 = vmatprep.subr.bf16.mxu0 0
  %4471 = vmatpush1.bf16.msra.mxu0 0
  %4472 = vmatprep.subr.bf16.mxu0 0
  %4473 = vmatpush1.bf16.msra.mxu0 0
  %4474 = vmatprep.subr.bf16.mxu0 0
  %4475 = vmatpush1.bf16.msra.mxu0 0
  %4476 = vmatprep.subr.bf16.mxu0 0
  %4477 = vmatpush1.bf16.msra.mxu0 0
  %4478 = vmatprep.mubr.bf16.mxu0 0
  %4479 = vmatmul.mubr.bf16.gmra.mrb[0].mxu0 %v1291
  %v4480 = vpop.f32.mrb[0].mxu0
  %v4481 = vadd.f32 %v4400, %v4480
  %v4482 = vpop.f32.mrb[0].mxu0
  %v4483 = vadd.f32 %v4402, %v4482
  %v4484 = vpop.f32.mrb[0].mxu0
  %v4485 = vadd.f32 %v4404, %v4484
  %v4486 = vpop.f32.mrb[0].mxu0
  %v4487 = vadd.f32 %v4406, %v4486
  %4488 = vmatprep.mubr.bf16.mxu0 0
  %4489 = vmatmul.mubr.bf16.gmra.mrb[0].mxu0 %v1294
  %v4490 = vpop.f32.mrb[0].mxu0
  %v4491 = vadd.f32 %v4410, %v4490
  %v4492 = vpop.f32.mrb[0].mxu0
  %v4493 = vadd.f32 %v4412, %v4492
  %v4494 = vpop.f32.mrb[0].mxu0
  %v4495 = vadd.f32 %v4414, %v4494
  %v4496 = vpop.f32.mrb[0].mxu0
  %v4497 = vadd.f32 %v4416, %v4496
  %4498 = vmatprep.mubr.bf16.mxu0 0
  %4499 = vmatmul.mubr.bf16.gmra.mrb[0].mxu0 %v1297
  %v4500 = vpop.f32.mrb[0].mxu0
  %v4501 = vadd.f32 %v4420, %v4500
  %v4502 = vpop.f32.mrb[0].mxu0
  %v4503 = vadd.f32 %v4422, %v4502
  %v4504 = vpop.f32.mrb[0].mxu0
  %v4505 = vadd.f32 %v4424, %v4504
  %v4506 = vpop.f32.mrb[0].mxu0
  %v4507 = vadd.f32 %v4426, %v4506
  %4508 = vmatprep.mubr.bf16.mxu0 0
  %4509 = vmatmul.mubr.bf16.gmra.mrb[0].mxu0 %v1300
  %v4510 = vpop.f32.mrb[0].mxu0
  %v4511 = vadd.f32 %v4430, %v4510
  %v4512 = vpop.f32.mrb[0].mxu0
  %v4513 = vadd.f32 %v4432, %v4512
  %v4514 = vpop.f32.mrb[0].mxu0
  %v4515 = vadd.f32 %v4434, %v4514
  %v4516 = vpop.f32.mrb[0].mxu0
  %v4517 = vadd.f32 %v4436, %v4516
  %4518 = vmatprep.mubr.bf16.mxu0 0
  %4519 = vmatmul.mubr.bf16.gmra.mrb[0].mxu0 %v1303
  %v4520 = vpop.f32.mrb[0].mxu0
  %v4521 = vadd.f32 %v4440, %v4520
  %v4522 = vpop.f32.mrb[0].mxu0
  %v4523 = vadd.f32 %v4442, %v4522
  %v4524 = vpop.f32.mrb[0].mxu0
  %v4525 = vpop.f32.mrb[0].mxu0
  %4526 = vdwg.mxu0
  %4527 = vmatprep.subr.bf16.mxu0 %v3968
  %4528 = vmatpush1.bf16.msra.mxu0 %v3967
  %4529 = vmatprep.subr.bf16.mxu0 %v3978
  %4530 = vmatpush1.bf16.msra.mxu0 %v3977
  %4531 = vmatprep.subr.bf16.mxu0 %v3988
  %4532 = vmatpush1.bf16.msra.mxu0 %v3987
  %4533 = vmatprep.subr.bf16.mxu0 %v3998
  %4534 = vmatpush1.bf16.msra.mxu0 %v3997
  %4535 = vmatprep.subr.bf16.mxu0 %v4008
  %4536 = vmatpush1.bf16.msra.mxu0 %v4007
  %4537 = vmatprep.subr.bf16.mxu0 %v4018
  %4538 = vmatpush1.bf16.msra.mxu0 %v4017
  %4539 = vmatprep.subr.bf16.mxu0 %v4028
  %4540 = vmatpush1.bf16.msra.mxu0 %v4027
  %4541 = vmatprep.subr.bf16.mxu0 %v4038
  %4542 = vmatpush1.bf16.msra.mxu0 %v4037
  %4543 = vmatprep.subr.bf16.mxu0 %v4048
  %4544 = vmatpush1.bf16.msra.mxu0 %v4047
  %4545 = vmatprep.subr.bf16.mxu0 %v4058
  %4546 = vmatpush1.bf16.msra.mxu0 %v4057
  %4547 = vmatprep.subr.bf16.mxu0 %v4068
  %4548 = vmatpush1.bf16.msra.mxu0 %v4067
  %4549 = vmatprep.subr.bf16.mxu0 %v4078
  %4550 = vmatpush1.bf16.msra.mxu0 %v4077
  %4551 = vmatprep.subr.bf16.mxu0 %v4088
  %4552 = vmatpush1.bf16.msra.mxu0 %v4087
  %4553 = vmatprep.subr.bf16.mxu0 %v4098
  %4554 = vmatpush1.bf16.msra.mxu0 %v4097
  %4555 = vmatprep.subr.bf16.mxu0 %v4108
  %4556 = vmatpush1.bf16.msra.mxu0 %v4107
  %4557 = vmatprep.subr.bf16.mxu0 %v4118
  %4558 = vmatpush1.bf16.msra.mxu0 %v4117
  %4559 = vmatprep.mubr.bf16.mxu0 %v130
  %4560 = vmatmul.mubr.bf16.gmra.mrb[0].mxu0 %v129
  %v4561 = vpop.f32.mrb[0].mxu0
  %v4562 = vadd.f32 0.0, %v4561
  %v4563 = vpop.f32.mrb[0].mxu0
  %v4564 = vadd.f32 0.0, %v4563
  %v4565 = vpop.f32.mrb[0].mxu0
  %v4566 = vadd.f32 0.0, %v4565
  %v4567 = vpop.f32.mrb[0].mxu0
  %v4568 = vadd.f32 0.0, %v4567
  %4569 = vmatprep.mubr.bf16.mxu0 %v133
  %4570 = vmatmul.mubr.bf16.gmra.mrb[0].mxu0 %v132
  %v4571 = vpop.f32.mrb[0].mxu0
  %v4572 = vadd.f32 0.0, %v4571
  %v4573 = vpop.f32.mrb[0].mxu0
  %v4574 = vadd.f32 0.0, %v4573
  %v4575 = vpop.f32.mrb[0].mxu0
  %v4576 = vadd.f32 0.0, %v4575
  %v4577 = vpop.f32.mrb[0].mxu0
  %v4578 = vadd.f32 0.0, %v4577
  %4579 = vmatprep.mubr.bf16.mxu0 %v136
  %4580 = vmatmul.mubr.bf16.gmra.mrb[0].mxu0 %v135
  %v4581 = vpop.f32.mrb[0].mxu0
  %v4582 = vadd.f32 0.0, %v4581
  %v4583 = vpop.f32.mrb[0].mxu0
  %v4584 = vadd.f32 0.0, %v4583
  %v4585 = vpop.f32.mrb[0].mxu0
  %v4586 = vadd.f32 0.0, %v4585
  %v4587 = vpop.f32.mrb[0].mxu0
  %v4588 = vadd.f32 0.0, %v4587
  %4589 = vmatprep.mubr.bf16.mxu0 %v139
  %4590 = vmatmul.mubr.bf16.gmra.mrb[0].mxu0 %v138
  %v4591 = vpop.f32.mrb[0].mxu0
  %v4592 = vadd.f32 0.0, %v4591
  %v4593 = vpop.f32.mrb[0].mxu0
  %v4594 = vadd.f32 0.0, %v4593
  %v4595 = vpop.f32.mrb[0].mxu0
  %v4596 = vadd.f32 0.0, %v4595
  %v4597 = vpop.f32.mrb[0].mxu0
  %v4598 = vadd.f32 0.0, %v4597
  %4599 = vmatprep.mubr.bf16.mxu0 %v142
  %4600 = vmatmul.mubr.bf16.gmra.mrb[0].mxu0 %v141
  %v4601 = vpop.f32.mrb[0].mxu0
  %v4602 = vadd.f32 0.0, %v4601
  %v4603 = vpop.f32.mrb[0].mxu0
  %v4604 = vadd.f32 0.0, %v4603
  %v4605 = vpop.f32.mrb[0].mxu0
  %v4606 = vpop.f32.mrb[0].mxu0
  %4607 = vdwg.mxu0
  %4608 = vmatprep.subr.bf16.mxu0 %v4128
  %4609 = vmatpush1.bf16.msra.mxu0 %v4127
  %4610 = vmatprep.subr.bf16.mxu0 %v4138
  %4611 = vmatpush1.bf16.msra.mxu0 %v4137
  %4612 = vmatprep.subr.bf16.mxu0 %v4345
  %4613 = vmatpush1.bf16.msra.mxu0 %v4342
  %4614 = vmatprep.subr.bf16.mxu0 0
  %4615 = vmatpush1.bf16.msra.mxu0 0
  %4616 = vmatprep.subr.bf16.mxu0 0
  %4617 = vmatpush1.bf16.msra.mxu0 0
  %4618 = vmatprep.subr.bf16.mxu0 0
  %4619 = vmatpush1.bf16.msra.mxu0 0
  %4620 = vmatprep.subr.bf16.mxu0 0
  %4621 = vmatpush1.bf16.msra.mxu0 0
  %4622 = vmatprep.subr.bf16.mxu0 0
  %4623 = vmatpush1.bf16.msra.mxu0 0
  %4624 = vmatprep.subr.bf16.mxu0 0
  %4625 = vmatpush1.bf16.msra.mxu0 0
  %4626 = vmatprep.subr.bf16.mxu0 0
  %4627 = vmatpush1.bf16.msra.mxu0 0
  %4628 = vmatprep.subr.bf16.mxu0 0
  %4629 = vmatpush1.bf16.msra.mxu0 0
  %4630 = vmatprep.subr.bf16.mxu0 0
  %4631 = vmatpush1.bf16.msra.mxu0 0
  %4632 = vmatprep.subr.bf16.mxu0 0
  %4633 = vmatpush1.bf16.msra.mxu0 0
  %4634 = vmatprep.subr.bf16.mxu0 0
  %4635 = vmatpush1.bf16.msra.mxu0 0
  %4636 = vmatprep.subr.bf16.mxu0 0
  %4637 = vmatpush1.bf16.msra.mxu0 0
  %4638 = vmatprep.subr.bf16.mxu0 0
  %4639 = vmatpush1.bf16.msra.mxu0 0
  %4640 = vmatprep.mubr.bf16.mxu0 0
  %4641 = vmatmul.mubr.bf16.gmra.mrb[0].mxu0 %v1291
  %v4642 = vpop.f32.mrb[0].mxu0
  %v4643 = vadd.f32 %v4562, %v4642
  %v4644 = vpop.f32.mrb[0].mxu0
  %v4645 = vadd.f32 %v4564, %v4644
  %v4646 = vpop.f32.mrb[0].mxu0
  %v4647 = vadd.f32 %v4566, %v4646
  %v4648 = vpop.f32.mrb[0].mxu0
  %v4649 = vadd.f32 %v4568, %v4648
  %4650 = vmatprep.mubr.bf16.mxu0 0
  %4651 = vmatmul.mubr.bf16.gmra.mrb[0].mxu0 %v1294
  %v4652 = vpop.f32.mrb[0].mxu0
  %v4653 = vadd.f32 %v4572, %v4652
  %v4654 = vpop.f32.mrb[0].mxu0
  %v4655 = vadd.f32 %v4574, %v4654
  %v4656 = vpop.f32.mrb[0].mxu0
  %v4657 = vadd.f32 %v4576, %v4656
  %v4658 = vpop.f32.mrb[0].mxu0
  %v4659 = vadd.f32 %v4578, %v4658
  %4660 = vmatprep.mubr.bf16.mxu0 0
  %4661 = vmatmul.mubr.bf16.gmra.mrb[0].mxu0 %v1297
  %v4662 = vpop.f32.mrb[0].mxu0
  %v4663 = vadd.f32 %v4582, %v4662
  %v4664 = vpop.f32.mrb[0].mxu0
  %v4665 = vadd.f32 %v4584, %v4664
  %v4666 = vpop.f32.mrb[0].mxu0
  %v4667 = vadd.f32 %v4586, %v4666
  %v4668 = vpop.f32.mrb[0].mxu0
  %v4669 = vadd.f32 %v4588, %v4668
  %4670 = vmatprep.mubr.bf16.mxu0 0
  %4671 = vmatmul.mubr.bf16.gmra.mrb[0].mxu0 %v1300
  %v4672 = vpop.f32.mrb[0].mxu0
  %v4673 = vadd.f32 %v4592, %v4672
  %v4674 = vpop.f32.mrb[0].mxu0
  %v4675 = vadd.f32 %v4594, %v4674
  %v4676 = vpop.f32.mrb[0].mxu0
  %v4677 = vadd.f32 %v4596, %v4676
  %v4678 = vpop.f32.mrb[0].mxu0
  %v4679 = vadd.f32 %v4598, %v4678
  %4680 = vmatprep.mubr.bf16.mxu0 0
  %4681 = vmatmul.mubr.bf16.gmra.mrb[0].mxu0 %v1303
  %v4682 = vpop.f32.mrb[0].mxu0
  %v4683 = vadd.f32 %v4602, %v4682
  %v4684 = vpop.f32.mrb[0].mxu0
  %v4685 = vadd.f32 %v4604, %v4684
  %v4686 = vpop.f32.mrb[0].mxu0
  %v4687 = vpop.f32.mrb[0].mxu0
  %4688 = vdwg.mxu0
  %4689 = vmatprep.subr.bf16.mxu0 %v3970
  %4690 = vmatpush1.bf16.msra.mxu0 %v3969
  %4691 = vmatprep.subr.bf16.mxu0 %v3980
  %4692 = vmatpush1.bf16.msra.mxu0 %v3979
  %4693 = vmatprep.subr.bf16.mxu0 %v3990
  %4694 = vmatpush1.bf16.msra.mxu0 %v3989
  %4695 = vmatprep.subr.bf16.mxu0 %v4000
  %4696 = vmatpush1.bf16.msra.mxu0 %v3999
  %4697 = vmatprep.subr.bf16.mxu0 %v4010
  %4698 = vmatpush1.bf16.msra.mxu0 %v4009
  %4699 = vmatprep.subr.bf16.mxu0 %v4020
  %4700 = vmatpush1.bf16.msra.mxu0 %v4019
  %4701 = vmatprep.subr.bf16.mxu0 %v4030
  %4702 = vmatpush1.bf16.msra.mxu0 %v4029
  %4703 = vmatprep.subr.bf16.mxu0 %v4040
  %4704 = vmatpush1.bf16.msra.mxu0 %v4039
  %4705 = vmatprep.subr.bf16.mxu0 %v4050
  %4706 = vmatpush1.bf16.msra.mxu0 %v4049
  %4707 = vmatprep.subr.bf16.mxu0 %v4060
  %4708 = vmatpush1.bf16.msra.mxu0 %v4059
  %4709 = vmatprep.subr.bf16.mxu0 %v4070
  %4710 = vmatpush1.bf16.msra.mxu0 %v4069
  %4711 = vmatprep.subr.bf16.mxu0 %v4080
  %4712 = vmatpush1.bf16.msra.mxu0 %v4079
  %4713 = vmatprep.subr.bf16.mxu0 %v4090
  %4714 = vmatpush1.bf16.msra.mxu0 %v4089
  %4715 = vmatprep.subr.bf16.mxu0 %v4100
  %4716 = vmatpush1.bf16.msra.mxu0 %v4099
  %4717 = vmatprep.subr.bf16.mxu0 %v4110
  %4718 = vmatpush1.bf16.msra.mxu0 %v4109
  %4719 = vmatprep.subr.bf16.mxu0 %v4120
  %4720 = vmatpush1.bf16.msra.mxu0 %v4119
  %4721 = vmatprep.mubr.bf16.mxu0 %v130
  %4722 = vmatmul.mubr.bf16.gmra.mrb[0].mxu0 %v129
  %v4723 = vpop.f32.mrb[0].mxu0
  %v4724 = vadd.f32 0.0, %v4723
  %v4725 = vpop.f32.mrb[0].mxu0
  %v4726 = vadd.f32 0.0, %v4725
  %v4727 = vpop.f32.mrb[0].mxu0
  %v4728 = vadd.f32 0.0, %v4727
  %v4729 = vpop.f32.mrb[0].mxu0
  %v4730 = vadd.f32 0.0, %v4729
  %4731 = vmatprep.mubr.bf16.mxu0 %v133
  %4732 = vmatmul.mubr.bf16.gmra.mrb[0].mxu0 %v132
  %v4733 = vpop.f32.mrb[0].mxu0
  %v4734 = vadd.f32 0.0, %v4733
  %v4735 = vpop.f32.mrb[0].mxu0
  %v4736 = vadd.f32 0.0, %v4735
  %v4737 = vpop.f32.mrb[0].mxu0
  %v4738 = vadd.f32 0.0, %v4737
  %v4739 = vpop.f32.mrb[0].mxu0
  %v4740 = vadd.f32 0.0, %v4739
  %4741 = vmatprep.mubr.bf16.mxu0 %v136
  %4742 = vmatmul.mubr.bf16.gmra.mrb[0].mxu0 %v135
  %v4743 = vpop.f32.mrb[0].mxu0
  %v4744 = vadd.f32 0.0, %v4743
  %v4745 = vpop.f32.mrb[0].mxu0
  %v4746 = vadd.f32 0.0, %v4745
  %v4747 = vpop.f32.mrb[0].mxu0
  %v4748 = vadd.f32 0.0, %v4747
  %v4749 = vpop.f32.mrb[0].mxu0
  %v4750 = vadd.f32 0.0, %v4749
  %4751 = vmatprep.mubr.bf16.mxu0 %v139
  %4752 = vmatmul.mubr.bf16.gmra.mrb[0].mxu0 %v138
  %v4753 = vpop.f32.mrb[0].mxu0
  %v4754 = vadd.f32 0.0, %v4753
  %v4755 = vpop.f32.mrb[0].mxu0
  %v4756 = vadd.f32 0.0, %v4755
  %v4757 = vpop.f32.mrb[0].mxu0
  %v4758 = vadd.f32 0.0, %v4757
  %v4759 = vpop.f32.mrb[0].mxu0
  %v4760 = vadd.f32 0.0, %v4759
  %4761 = vmatprep.mubr.bf16.mxu0 %v142
  %4762 = vmatmul.mubr.bf16.gmra.mrb[0].mxu0 %v141
  %v4763 = vpop.f32.mrb[0].mxu0
  %v4764 = vadd.f32 0.0, %v4763
  %v4765 = vpop.f32.mrb[0].mxu0
  %v4766 = vadd.f32 0.0, %v4765
  %v4767 = vpop.f32.mrb[0].mxu0
  %v4768 = vpop.f32.mrb[0].mxu0
  %4769 = vdwg.mxu0
  %4770 = vmatprep.subr.bf16.mxu0 %v4130
  %4771 = vmatpush1.bf16.msra.mxu0 %v4129
  %4772 = vmatprep.subr.bf16.mxu0 %v4140
  %4773 = vmatpush1.bf16.msra.mxu0 %v4139
  %4774 = vmatprep.subr.bf16.mxu0 %v4351
  %4775 = vmatpush1.bf16.msra.mxu0 %v4348
  %4776 = vmatprep.subr.bf16.mxu0 0
  %4777 = vmatpush1.bf16.msra.mxu0 0
  %4778 = vmatprep.subr.bf16.mxu0 0
  %4779 = vmatpush1.bf16.msra.mxu0 0
  %4780 = vmatprep.subr.bf16.mxu0 0
  %4781 = vmatpush1.bf16.msra.mxu0 0
  %4782 = vmatprep.subr.bf16.mxu0 0
  %4783 = vmatpush1.bf16.msra.mxu0 0
  %4784 = vmatprep.subr.bf16.mxu0 0
  %4785 = vmatpush1.bf16.msra.mxu0 0
  %4786 = vmatprep.subr.bf16.mxu0 0
  %4787 = vmatpush1.bf16.msra.mxu0 0
  %4788 = vmatprep.subr.bf16.mxu0 0
  %4789 = vmatpush1.bf16.msra.mxu0 0
  %4790 = vmatprep.subr.bf16.mxu0 0
  %4791 = vmatpush1.bf16.msra.mxu0 0
  %4792 = vmatprep.subr.bf16.mxu0 0
  %4793 = vmatpush1.bf16.msra.mxu0 0
  %4794 = vmatprep.subr.bf16.mxu0 0
  %4795 = vmatpush1.bf16.msra.mxu0 0
  %4796 = vmatprep.subr.bf16.mxu0 0
  %4797 = vmatpush1.bf16.msra.mxu0 0
  %4798 = vmatprep.subr.bf16.mxu0 0
  %4799 = vmatpush1.bf16.msra.mxu0 0
  %4800 = vmatprep.subr.bf16.mxu0 0
  %4801 = vmatpush1.bf16.msra.mxu0 0
  %4802 = vmatprep.mubr.bf16.mxu0 0
  %4803 = vmatmul.mubr.bf16.gmra.mrb[0].mxu0 %v1291
  %v4804 = vpop.f32.mrb[0].mxu0
  %v4805 = vadd.f32 %v4724, %v4804
  %v4806 = vpop.f32.mrb[0].mxu0
  %v4807 = vadd.f32 %v4726, %v4806
  %v4808 = vpop.f32.mrb[0].mxu0
  %v4809 = vadd.f32 %v4728, %v4808
  %v4810 = vpop.f32.mrb[0].mxu0
  %v4811 = vadd.f32 %v4730, %v4810
  %4812 = vmatprep.mubr.bf16.mxu0 0
  %4813 = vmatmul.mubr.bf16.gmra.mrb[0].mxu0 %v1294
  %v4814 = vpop.f32.mrb[0].mxu0
  %v4815 = vadd.f32 %v4734, %v4814
  %v4816 = vpop.f32.mrb[0].mxu0
  %v4817 = vadd.f32 %v4736, %v4816
  %v4818 = vpop.f32.mrb[0].mxu0
  %v4819 = vadd.f32 %v4738, %v4818
  %v4820 = vpop.f32.mrb[0].mxu0
  %v4821 = vadd.f32 %v4740, %v4820
  %4822 = vmatprep.mubr.bf16.mxu0 0
  %4823 = vmatmul.mubr.bf16.gmra.mrb[0].mxu0 %v1297
  %v4824 = vpop.f32.mrb[0].mxu0
  %v4825 = vadd.f32 %v4744, %v4824
  %v4826 = vpop.f32.mrb[0].mxu0
  %v4827 = vadd.f32 %v4746, %v4826
  %v4828 = vpop.f32.mrb[0].mxu0
  %v4829 = vadd.f32 %v4748, %v4828
  %v4830 = vpop.f32.mrb[0].mxu0
  %v4831 = vadd.f32 %v4750, %v4830
  %4832 = vmatprep.mubr.bf16.mxu0 0
  %4833 = vmatmul.mubr.bf16.gmra.mrb[0].mxu0 %v1300
  %v4834 = vpop.f32.mrb[0].mxu0
  %v4835 = vadd.f32 %v4754, %v4834
  %v4836 = vpop.f32.mrb[0].mxu0
  %v4837 = vadd.f32 %v4756, %v4836
  %v4838 = vpop.f32.mrb[0].mxu0
  %v4839 = vadd.f32 %v4758, %v4838
  %v4840 = vpop.f32.mrb[0].mxu0
  %v4841 = vadd.f32 %v4760, %v4840
  %4842 = vmatprep.mubr.bf16.mxu0 0
  %4843 = vmatmul.mubr.bf16.gmra.mrb[0].mxu0 %v1303
  %v4844 = vpop.f32.mrb[0].mxu0
  %v4845 = vadd.f32 %v4764, %v4844
  %v4846 = vpop.f32.mrb[0].mxu0
  %v4847 = vadd.f32 %v4766, %v4846
  %v4848 = vpop.f32.mrb[0].mxu0
  %v4849 = vpop.f32.mrb[0].mxu0
  %4850 = vdwg.mxu0
  %4851 = vmatprep.subr.bf16.mxu0 %v3972
  %4852 = vmatpush1.bf16.msra.mxu0 %v3971
  %4853 = vmatprep.subr.bf16.mxu0 %v3982
  %4854 = vmatpush1.bf16.msra.mxu0 %v3981
  %4855 = vmatprep.subr.bf16.mxu0 %v3992
  %4856 = vmatpush1.bf16.msra.mxu0 %v3991
  %4857 = vmatprep.subr.bf16.mxu0 %v4002
  %4858 = vmatpush1.bf16.msra.mxu0 %v4001
  %4859 = vmatprep.subr.bf16.mxu0 %v4012
  %4860 = vmatpush1.bf16.msra.mxu0 %v4011
  %4861 = vmatprep.subr.bf16.mxu0 %v4022
  %4862 = vmatpush1.bf16.msra.mxu0 %v4021
  %4863 = vmatprep.subr.bf16.mxu0 %v4032
  %4864 = vmatpush1.bf16.msra.mxu0 %v4031
  %4865 = vmatprep.subr.bf16.mxu0 %v4042
  %4866 = vmatpush1.bf16.msra.mxu0 %v4041
  %4867 = vmatprep.subr.bf16.mxu0 %v4052
  %4868 = vmatpush1.bf16.msra.mxu0 %v4051
  %4869 = vmatprep.subr.bf16.mxu0 %v4062
  %4870 = vmatpush1.bf16.msra.mxu0 %v4061
  %4871 = vmatprep.subr.bf16.mxu0 %v4072
  %4872 = vmatpush1.bf16.msra.mxu0 %v4071
  %4873 = vmatprep.subr.bf16.mxu0 %v4082
  %4874 = vmatpush1.bf16.msra.mxu0 %v4081
  %4875 = vmatprep.subr.bf16.mxu0 %v4092
  %4876 = vmatpush1.bf16.msra.mxu0 %v4091
  %4877 = vmatprep.subr.bf16.mxu0 %v4102
  %4878 = vmatpush1.bf16.msra.mxu0 %v4101
  %4879 = vmatprep.subr.bf16.mxu0 %v4112
  %4880 = vmatpush1.bf16.msra.mxu0 %v4111
  %4881 = vmatprep.subr.bf16.mxu0 %v4122
  %4882 = vmatpush1.bf16.msra.mxu0 %v4121
  %4883 = vmatprep.mubr.bf16.mxu0 %v130
  %4884 = vmatmul.mubr.bf16.gmra.mrb[0].mxu0 %v129
  %v4885 = vpop.f32.mrb[0].mxu0
  %v4886 = vadd.f32 0.0, %v4885
  %v4887 = vpop.f32.mrb[0].mxu0
  %v4888 = vadd.f32 0.0, %v4887
  %v4889 = vpop.f32.mrb[0].mxu0
  %v4890 = vadd.f32 0.0, %v4889
  %v4891 = vpop.f32.mrb[0].mxu0
  %v4892 = vadd.f32 0.0, %v4891
  %4893 = vmatprep.mubr.bf16.mxu0 %v133
  %4894 = vmatmul.mubr.bf16.gmra.mrb[0].mxu0 %v132
  %v4895 = vpop.f32.mrb[0].mxu0
  %v4896 = vadd.f32 0.0, %v4895
  %v4897 = vpop.f32.mrb[0].mxu0
  %v4898 = vadd.f32 0.0, %v4897
  %v4899 = vpop.f32.mrb[0].mxu0
  %v4900 = vadd.f32 0.0, %v4899
  %v4901 = vpop.f32.mrb[0].mxu0
  %v4902 = vadd.f32 0.0, %v4901
  %4903 = vmatprep.mubr.bf16.mxu0 %v136
  %4904 = vmatmul.mubr.bf16.gmra.mrb[0].mxu0 %v135
  %v4905 = vpop.f32.mrb[0].mxu0
  %v4906 = vadd.f32 0.0, %v4905
  %v4907 = vpop.f32.mrb[0].mxu0
  %v4908 = vadd.f32 0.0, %v4907
  %v4909 = vpop.f32.mrb[0].mxu0
  %v4910 = vadd.f32 0.0, %v4909
  %v4911 = vpop.f32.mrb[0].mxu0
  %v4912 = vadd.f32 0.0, %v4911
  %4913 = vmatprep.mubr.bf16.mxu0 %v139
  %4914 = vmatmul.mubr.bf16.gmra.mrb[0].mxu0 %v138
  %v4915 = vpop.f32.mrb[0].mxu0
  %v4916 = vadd.f32 0.0, %v4915
  %v4917 = vpop.f32.mrb[0].mxu0
  %v4918 = vadd.f32 0.0, %v4917
  %v4919 = vpop.f32.mrb[0].mxu0
  %v4920 = vadd.f32 0.0, %v4919
  %v4921 = vpop.f32.mrb[0].mxu0
  %v4922 = vadd.f32 0.0, %v4921
  %4923 = vmatprep.mubr.bf16.mxu0 %v142
  %4924 = vmatmul.mubr.bf16.gmra.mrb[0].mxu0 %v141
  %v4925 = vpop.f32.mrb[0].mxu0
  %v4926 = vadd.f32 0.0, %v4925
  %v4927 = vpop.f32.mrb[0].mxu0
  %v4928 = vadd.f32 0.0, %v4927
  %v4929 = vpop.f32.mrb[0].mxu0
  %v4930 = vpop.f32.mrb[0].mxu0
  %4931 = vdwg.mxu0
  %4932 = vmatprep.subr.bf16.mxu0 %v4132
  %4933 = vmatpush1.bf16.msra.mxu0 %v4131
  %4934 = vmatprep.subr.bf16.mxu0 %v4142
  %4935 = vmatpush1.bf16.msra.mxu0 %v4141
  %4936 = vmatprep.subr.bf16.mxu0 %v4357
  %4937 = vmatpush1.bf16.msra.mxu0 %v4354
  %4938 = vmatprep.subr.bf16.mxu0 0
  %4939 = vmatpush1.bf16.msra.mxu0 0
  %4940 = vmatprep.subr.bf16.mxu0 0
  %4941 = vmatpush1.bf16.msra.mxu0 0
  %4942 = vmatprep.subr.bf16.mxu0 0
  %4943 = vmatpush1.bf16.msra.mxu0 0
  %4944 = vmatprep.subr.bf16.mxu0 0
  %4945 = vmatpush1.bf16.msra.mxu0 0
  %4946 = vmatprep.subr.bf16.mxu0 0
  %4947 = vmatpush1.bf16.msra.mxu0 0
  %4948 = vmatprep.subr.bf16.mxu0 0
  %4949 = vmatpush1.bf16.msra.mxu0 0
  %4950 = vmatprep.subr.bf16.mxu0 0
  %4951 = vmatpush1.bf16.msra.mxu0 0
  %4952 = vmatprep.subr.bf16.mxu0 0
  %4953 = vmatpush1.bf16.msra.mxu0 0
  %4954 = vmatprep.subr.bf16.mxu0 0
  %4955 = vmatpush1.bf16.msra.mxu0 0
  %4956 = vmatprep.subr.bf16.mxu0 0
  %4957 = vmatpush1.bf16.msra.mxu0 0
  %4958 = vmatprep.subr.bf16.mxu0 0
  %4959 = vmatpush1.bf16.msra.mxu0 0
  %4960 = vmatprep.subr.bf16.mxu0 0
  %4961 = vmatpush1.bf16.msra.mxu0 0
  %4962 = vmatprep.subr.bf16.mxu0 0
  %4963 = vmatpush1.bf16.msra.mxu0 0
  %4964 = vmatprep.mubr.bf16.mxu0 0
  %4965 = vmatmul.mubr.bf16.gmra.mrb[0].mxu0 %v1291
  %v4966 = vpop.f32.mrb[0].mxu0
  %v4967 = vadd.f32 %v4886, %v4966
  %v4968 = vpop.f32.mrb[0].mxu0
  %v4969 = vadd.f32 %v4888, %v4968
  %v4970 = vpop.f32.mrb[0].mxu0
  %v4971 = vadd.f32 %v4890, %v4970
  %v4972 = vpop.f32.mrb[0].mxu0
  %v4973 = vadd.f32 %v4892, %v4972
  %4974 = vmatprep.mubr.bf16.mxu0 0
  %4975 = vmatmul.mubr.bf16.gmra.mrb[0].mxu0 %v1294
  %v4976 = vpop.f32.mrb[0].mxu0
  %v4977 = vadd.f32 %v4896, %v4976
  %v4978 = vpop.f32.mrb[0].mxu0
  %v4979 = vadd.f32 %v4898, %v4978
  %v4980 = vpop.f32.mrb[0].mxu0
  %v4981 = vadd.f32 %v4900, %v4980
  %v4982 = vpop.f32.mrb[0].mxu0
  %v4983 = vadd.f32 %v4902, %v4982
  %4984 = vmatprep.mubr.bf16.mxu0 0
  %4985 = vmatmul.mubr.bf16.gmra.mrb[0].mxu0 %v1297
  %v4986 = vpop.f32.mrb[0].mxu0
  %v4987 = vadd.f32 %v4906, %v4986
  %v4988 = vpop.f32.mrb[0].mxu0
  %v4989 = vadd.f32 %v4908, %v4988
  %v4990 = vpop.f32.mrb[0].mxu0
  %v4991 = vadd.f32 %v4910, %v4990
  %v4992 = vpop.f32.mrb[0].mxu0
  %v4993 = vadd.f32 %v4912, %v4992
  %4994 = vmatprep.mubr.bf16.mxu0 0
  %4995 = vmatmul.mubr.bf16.gmra.mrb[0].mxu0 %v1300
  %v4996 = vpop.f32.mrb[0].mxu0
  %v4997 = vadd.f32 %v4916, %v4996
  %v4998 = vpop.f32.mrb[0].mxu0
  %v4999 = vadd.f32 %v4918, %v4998
  %v5000 = vpop.f32.mrb[0].mxu0
  %v5001 = vadd.f32 %v4920, %v5000
  %v5002 = vpop.f32.mrb[0].mxu0
  %v5003 = vadd.f32 %v4922, %v5002
  %5004 = vmatprep.mubr.bf16.mxu0 0
  %5005 = vmatmul.mubr.bf16.gmra.mrb[0].mxu0 %v1303
  %v5006 = vpop.f32.mrb[0].mxu0
  %v5007 = vadd.f32 %v4926, %v5006
  %v5008 = vpop.f32.mrb[0].mxu0
  %v5009 = vadd.f32 %v4928, %v5008
  %v5010 = vpop.f32.mrb[0].mxu0
  %v5011 = vpop.f32.mrb[0].mxu0
  %5012 = vdwg.mxu0
  %5013 = vmatprep.subr.bf16.mxu0 %v3974
  %5014 = vmatpush1.bf16.msra.mxu0 %v3973
  %5015 = vmatprep.subr.bf16.mxu0 %v3984
  %5016 = vmatpush1.bf16.msra.mxu0 %v3983
  %5017 = vmatprep.subr.bf16.mxu0 %v3994
  %5018 = vmatpush1.bf16.msra.mxu0 %v3993
  %5019 = vmatprep.subr.bf16.mxu0 %v4004
  %5020 = vmatpush1.bf16.msra.mxu0 %v4003
  %5021 = vmatprep.subr.bf16.mxu0 %v4014
  %5022 = vmatpush1.bf16.msra.mxu0 %v4013
  %5023 = vmatprep.subr.bf16.mxu0 %v4024
  %5024 = vmatpush1.bf16.msra.mxu0 %v4023
  %5025 = vmatprep.subr.bf16.mxu0 %v4034
  %5026 = vmatpush1.bf16.msra.mxu0 %v4033
  %5027 = vmatprep.subr.bf16.mxu0 %v4044
  %5028 = vmatpush1.bf16.msra.mxu0 %v4043
  %5029 = vmatprep.subr.bf16.mxu0 %v4054
  %5030 = vmatpush1.bf16.msra.mxu0 %v4053
  %5031 = vmatprep.subr.bf16.mxu0 %v4064
  %5032 = vmatpush1.bf16.msra.mxu0 %v4063
  %5033 = vmatprep.subr.bf16.mxu0 %v4074
  %5034 = vmatpush1.bf16.msra.mxu0 %v4073
  %5035 = vmatprep.subr.bf16.mxu0 %v4084
  %5036 = vmatpush1.bf16.msra.mxu0 %v4083
  %5037 = vmatprep.subr.bf16.mxu0 %v4094
  %5038 = vmatpush1.bf16.msra.mxu0 %v4093
  %5039 = vmatprep.subr.bf16.mxu0 %v4104
  %5040 = vmatpush1.bf16.msra.mxu0 %v4103
  %5041 = vmatprep.subr.bf16.mxu0 %v4114
  %5042 = vmatpush1.bf16.msra.mxu0 %v4113
  %5043 = vmatprep.subr.bf16.mxu0 %v4124
  %5044 = vmatpush1.bf16.msra.mxu0 %v4123
  %5045 = vmatprep.mubr.bf16.mxu0 %v130
  %5046 = vmatmul.mubr.bf16.gmra.mrb[0].mxu0 %v129
  %v5047 = vpop.f32.mrb[0].mxu0
  %v5048 = vadd.f32 0.0, %v5047
  %v5049 = vpop.f32.mrb[0].mxu0
  %v5050 = vadd.f32 0.0, %v5049
  %v5051 = vpop.f32.mrb[0].mxu0
  %v5052 = vadd.f32 0.0, %v5051
  %v5053 = vpop.f32.mrb[0].mxu0
  %v5054 = vadd.f32 0.0, %v5053
  %5055 = vmatprep.mubr.bf16.mxu0 %v133
  %5056 = vmatmul.mubr.bf16.gmra.mrb[0].mxu0 %v132
  %v5057 = vpop.f32.mrb[0].mxu0
  %v5058 = vadd.f32 0.0, %v5057
  %v5059 = vpop.f32.mrb[0].mxu0
  %v5060 = vadd.f32 0.0, %v5059
  %v5061 = vpop.f32.mrb[0].mxu0
  %v5062 = vadd.f32 0.0, %v5061
  %v5063 = vpop.f32.mrb[0].mxu0
  %v5064 = vadd.f32 0.0, %v5063
  %5065 = vmatprep.mubr.bf16.mxu0 %v136
  %5066 = vmatmul.mubr.bf16.gmra.mrb[0].mxu0 %v135
  %v5067 = vpop.f32.mrb[0].mxu0
  %v5068 = vadd.f32 0.0, %v5067
  %v5069 = vpop.f32.mrb[0].mxu0
  %v5070 = vadd.f32 0.0, %v5069
  %v5071 = vpop.f32.mrb[0].mxu0
  %v5072 = vadd.f32 0.0, %v5071
  %v5073 = vpop.f32.mrb[0].mxu0
  %v5074 = vadd.f32 0.0, %v5073
  %5075 = vmatprep.mubr.bf16.mxu0 %v139
  %5076 = vmatmul.mubr.bf16.gmra.mrb[0].mxu0 %v138
  %v5077 = vpop.f32.mrb[0].mxu0
  %v5078 = vadd.f32 0.0, %v5077
  %v5079 = vpop.f32.mrb[0].mxu0
  %v5080 = vadd.f32 0.0, %v5079
  %v5081 = vpop.f32.mrb[0].mxu0
  %v5082 = vadd.f32 0.0, %v5081
  %v5083 = vpop.f32.mrb[0].mxu0
  %v5084 = vadd.f32 0.0, %v5083
  %5085 = vmatprep.mubr.bf16.mxu0 %v142
  %5086 = vmatmul.mubr.bf16.gmra.mrb[0].mxu0 %v141
  %v5087 = vpop.f32.mrb[0].mxu0
  %v5088 = vadd.f32 0.0, %v5087
  %v5089 = vpop.f32.mrb[0].mxu0
  %v5090 = vadd.f32 0.0, %v5089
  %v5091 = vpop.f32.mrb[0].mxu0
  %v5092 = vpop.f32.mrb[0].mxu0
  %5093 = vdwg.mxu0
  %5094 = vmatprep.subr.bf16.mxu0 %v4134
  %5095 = vmatpush1.bf16.msra.mxu0 %v4133
  %5096 = vmatprep.subr.bf16.mxu0 %v4144
  %5097 = vmatpush1.bf16.msra.mxu0 %v4143
  %5098 = vmatprep.subr.bf16.mxu0 %v4363
  %5099 = vmatpush1.bf16.msra.mxu0 %v4360
  %5100 = vmatprep.subr.bf16.mxu0 0
  %5101 = vmatpush1.bf16.msra.mxu0 0
  %5102 = vmatprep.subr.bf16.mxu0 0
  %5103 = vmatpush1.bf16.msra.mxu0 0
  %5104 = vmatprep.subr.bf16.mxu0 0
  %5105 = vmatpush1.bf16.msra.mxu0 0
  %5106 = vmatprep.subr.bf16.mxu0 0
  %5107 = vmatpush1.bf16.msra.mxu0 0
  %5108 = vmatprep.subr.bf16.mxu0 0
  %5109 = vmatpush1.bf16.msra.mxu0 0
  %5110 = vmatprep.subr.bf16.mxu0 0
  %5111 = vmatpush1.bf16.msra.mxu0 0
  %5112 = vmatprep.subr.bf16.mxu0 0
  %5113 = vmatpush1.bf16.msra.mxu0 0
  %5114 = vmatprep.subr.bf16.mxu0 0
  %5115 = vmatpush1.bf16.msra.mxu0 0
  %5116 = vmatprep.subr.bf16.mxu0 0
  %5117 = vmatpush1.bf16.msra.mxu0 0
  %5118 = vmatprep.subr.bf16.mxu0 0
  %5119 = vmatpush1.bf16.msra.mxu0 0
  %5120 = vmatprep.subr.bf16.mxu0 0
  %5121 = vmatpush1.bf16.msra.mxu0 0
  %5122 = vmatprep.subr.bf16.mxu0 0
  %5123 = vmatpush1.bf16.msra.mxu0 0
  %5124 = vmatprep.subr.bf16.mxu0 0
  %5125 = vmatpush1.bf16.msra.mxu0 0
  %5126 = vmatprep.mubr.bf16.mxu0 0
  %5127 = vmatmul.mubr.bf16.gmra.mrb[0].mxu0 %v1291
  %v5128 = vpop.f32.mrb[0].mxu0
  %v5129 = vadd.f32 %v5048, %v5128
  %v5130 = vpop.f32.mrb[0].mxu0
  %v5131 = vadd.f32 %v5050, %v5130
  %v5132 = vpop.f32.mrb[0].mxu0
  %v5133 = vadd.f32 %v5052, %v5132
  %v5134 = vpop.f32.mrb[0].mxu0
  %v5135 = vadd.f32 %v5054, %v5134
  %5136 = vmatprep.mubr.bf16.mxu0 0
  %5137 = vmatmul.mubr.bf16.gmra.mrb[0].mxu0 %v1294
  %v5138 = vpop.f32.mrb[0].mxu0
  %v5139 = vadd.f32 %v5058, %v5138
  %v5140 = vpop.f32.mrb[0].mxu0
  %v5141 = vadd.f32 %v5060, %v5140
  %v5142 = vpop.f32.mrb[0].mxu0
  %v5143 = vadd.f32 %v5062, %v5142
  %v5144 = vpop.f32.mrb[0].mxu0
  %v5145 = vadd.f32 %v5064, %v5144
  %5146 = vmatprep.mubr.bf16.mxu0 0
  %5147 = vmatmul.mubr.bf16.gmra.mrb[0].mxu0 %v1297
  %v5148 = vpop.f32.mrb[0].mxu0
  %v5149 = vadd.f32 %v5068, %v5148
  %v5150 = vpop.f32.mrb[0].mxu0
  %v5151 = vadd.f32 %v5070, %v5150
  %v5152 = vpop.f32.mrb[0].mxu0
  %v5153 = vadd.f32 %v5072, %v5152
  %v5154 = vpop.f32.mrb[0].mxu0
  %v5155 = vadd.f32 %v5074, %v5154
  %5156 = vmatprep.mubr.bf16.mxu0 0
  %5157 = vmatmul.mubr.bf16.gmra.mrb[0].mxu0 %v1300
  %v5158 = vpop.f32.mrb[0].mxu0
  %v5159 = vadd.f32 %v5078, %v5158
  %v5160 = vpop.f32.mrb[0].mxu0
  %v5161 = vadd.f32 %v5080, %v5160
  %v5162 = vpop.f32.mrb[0].mxu0
  %v5163 = vadd.f32 %v5082, %v5162
  %v5164 = vpop.f32.mrb[0].mxu0
  %v5165 = vadd.f32 %v5084, %v5164
  %5166 = vmatprep.mubr.bf16.mxu0 0
  %5167 = vmatmul.mubr.bf16.gmra.mrb[0].mxu0 %v1303
  %v5168 = vpop.f32.mrb[0].mxu0
  %v5169 = vadd.f32 %v5088, %v5168
  %v5170 = vpop.f32.mrb[0].mxu0
  %v5171 = vadd.f32 %v5090, %v5170
  %v5172 = vpop.f32.mrb[0].mxu0
  %v5173 = vpop.f32.mrb[0].mxu0
  %5174 = vdwg.mxu0
  %v5175 = vmul.f32 %v4481, %v75
  %v5176 = vmul.f32 %v4483, %v76
  %v5177 = vmul.f32 %v4643, %v77
  %v5178 = vmul.f32 %v4485, %v78
  %v5179 = vmul.f32 %v4487, %v79
  %v5180 = vmul.f32 %v4647, %v80
  %v5181 = vmul.f32 %v4491, %v81
  %v5182 = vmul.f32 %v4493, %v82
  %v5183 = vmul.f32 %v4653, %v83
  %v5184 = vmul.f32 %v4495, %v84
  %v5185 = vmul.f32 %v4497, %v85
  %v5186 = vmul.f32 %v4657, %v86
  %v5187 = vmul.f32 %v4501, %v87
  %v5188 = vmul.f32 %v4503, %v88
  %v5189 = vmul.f32 %v4663, %v89
  %v5190 = vmul.f32 %v4505, %v90
  %v5191 = vmul.f32 %v4507, %v91
  %v5192 = vmul.f32 %v4667, %v92
  %v5193 = vmul.f32 %v4511, %v93
  %v5194 = vmul.f32 %v4513, %v94
  %v5195 = vmul.f32 %v4673, %v95
  %v5196 = vmul.f32 %v4515, %v96
  %v5197 = vmul.f32 %v4517, %v97
  %v5198 = vmul.f32 %v4677, %v98
  %v5199 = vmul.f32 %v4521, %v99
  %v5200 = vmul.f32 %v4523, %v100
  %v5201 = vmul.f32 %v4683, %v101
  %v5202 = vadd.f32 %v5175, %v5176
  %v5203 = vsel %vm1289, %v5177, 0.0
  %v5204 = vadd.f32 %v5202, %v5203
  %5205 = vadd.xlane.f32.xlu0 %v5204
  %v5206 = vpop.xlane.xlu0 %5205
  %v5207 = vadd.f32 %v5178, %v5179
  %v5208 = vsel %vm1289, %v5180, 0.0
  %v5209 = vadd.f32 %v5207, %v5208
  %5210 = vadd.xlane.f32.xlu0 %v5209
  %v5211 = vpop.xlane.xlu0 %5210
  %v5212 = vadd.f32 %v5181, %v5182
  %v5213 = vsel %vm1289, %v5183, 0.0
  %v5214 = vadd.f32 %v5212, %v5213
  %5215 = vadd.xlane.f32.xlu0 %v5214
  %v5216 = vpop.xlane.xlu0 %5215
  %v5217 = vadd.f32 %v5184, %v5185
  %v5218 = vsel %vm1289, %v5186, 0.0
  %v5219 = vadd.f32 %v5217, %v5218
  %5220 = vadd.xlane.f32.xlu0 %v5219
  %v5221 = vpop.xlane.xlu0 %5220
  %v5222 = vadd.f32 %v5187, %v5188
  %v5223 = vsel %vm1289, %v5189, 0.0
  %v5224 = vadd.f32 %v5222, %v5223
  %5225 = vadd.xlane.f32.xlu0 %v5224
  %v5226 = vpop.xlane.xlu0 %5225
  %v5227 = vadd.f32 %v5190, %v5191
  %v5228 = vsel %vm1289, %v5192, 0.0
  %v5229 = vadd.f32 %v5227, %v5228
  %5230 = vadd.xlane.f32.xlu0 %v5229
  %v5231 = vpop.xlane.xlu0 %5230
  %v5232 = vadd.f32 %v5193, %v5194
  %v5233 = vsel %vm1289, %v5195, 0.0
  %v5234 = vadd.f32 %v5232, %v5233
  %5235 = vadd.xlane.f32.xlu0 %v5234
  %v5236 = vpop.xlane.xlu0 %5235
  %v5237 = vadd.f32 %v5196, %v5197
  %v5238 = vsel %vm1289, %v5198, 0.0
  %v5239 = vadd.f32 %v5237, %v5238
  %5240 = vadd.xlane.f32.xlu0 %v5239
  %v5241 = vpop.xlane.xlu0 %5240
  %v5242 = vsel %vm1305, %v5199, 0.0
  %v5243 = vsel %vm1305, %v5200, 0.0
  %v5244 = vadd.f32 %v5242, %v5243
  %v5245 = vsel %vm2216, %v5201, 0.0
  %v5246 = vadd.f32 %v5244, %v5245
  %5247 = vadd.xlane.f32.xlu0 %v5246
  %v5248 = vpop.xlane.xlu0 %5247
  %v5249 = vmul.f32 %v4643, %v2249
  %v5250 = vmul.f32 %v4645, %v2302
  %v5251 = vmul.f32 %v4805, %v2303
  %v5252 = vmul.f32 %v4647, %v2255
  %v5253 = vmul.f32 %v4649, %v2304
  %v5254 = vmul.f32 %v4809, %v2305
  %v5255 = vmul.f32 %v4653, %v2261
  %v5256 = vmul.f32 %v4655, %v2306
  %v5257 = vmul.f32 %v4815, %v2307
  %v5258 = vmul.f32 %v4657, %v2267
  %v5259 = vmul.f32 %v4659, %v2308
  %v5260 = vmul.f32 %v4819, %v2309
  %v5261 = vmul.f32 %v4663, %v2273
  %v5262 = vmul.f32 %v4665, %v2310
  %v5263 = vmul.f32 %v4825, %v2311
  %v5264 = vmul.f32 %v4667, %v2279
  %v5265 = vmul.f32 %v4669, %v2312
  %v5266 = vmul.f32 %v4829, %v2313
  %v5267 = vmul.f32 %v4673, %v2285
  %v5268 = vmul.f32 %v4675, %v2314
  %v5269 = vmul.f32 %v4835, %v2315
  %v5270 = vmul.f32 %v4677, %v2291
  %v5271 = vmul.f32 %v4679, %v2316
  %v5272 = vmul.f32 %v4839, %v2317
  %v5273 = vmul.f32 %v4683, %v2297
  %v5274 = vmul.f32 %v4685, %v2318
  %v5275 = vmul.f32 %v4845, %v2319
  %5303 = vrot.lane.b32.xlu0 %v5249, 84
  %v5304 = vpop.permute.xlu0 %5303
  %5305 = vrot.lane.b32.xlu0 %v5250, 84
  %v5306 = vpop.permute.xlu0 %5305
  %5307 = vrot.lane.b32.xlu0 %v5251, 84
  %v5308 = vpop.permute.xlu0 %5307
  %5309 = vrot.lane.b32.xlu0 %v5252, 84
  %v5310 = vpop.permute.xlu0 %5309
  %5311 = vrot.lane.b32.xlu0 %v5253, 84
  %v5312 = vpop.permute.xlu0 %5311
  %5313 = vrot.lane.b32.xlu0 %v5254, 84
  %v5314 = vpop.permute.xlu0 %5313
  %5315 = vrot.lane.b32.xlu0 %v5255, 84
  %v5316 = vpop.permute.xlu0 %5315
  %5317 = vrot.lane.b32.xlu0 %v5256, 84
  %v5318 = vpop.permute.xlu0 %5317
  %5319 = vrot.lane.b32.xlu0 %v5257, 84
  %v5320 = vpop.permute.xlu0 %5319
  %5321 = vrot.lane.b32.xlu0 %v5258, 84
  %v5322 = vpop.permute.xlu0 %5321
  %5323 = vrot.lane.b32.xlu0 %v5259, 84
  %v5324 = vpop.permute.xlu0 %5323
  %5325 = vrot.lane.b32.xlu0 %v5260, 84
  %v5326 = vpop.permute.xlu0 %5325
  %5327 = vrot.lane.b32.xlu0 %v5261, 84
  %v5328 = vpop.permute.xlu0 %5327
  %5329 = vrot.lane.b32.xlu0 %v5262, 84
  %v5330 = vpop.permute.xlu0 %5329
  %5331 = vrot.lane.b32.xlu0 %v5263, 84
  %v5332 = vpop.permute.xlu0 %5331
  %5333 = vrot.lane.b32.xlu0 %v5264, 84
  %v5334 = vpop.permute.xlu0 %5333
  %5335 = vrot.lane.b32.xlu0 %v5265, 84
  %v5336 = vpop.permute.xlu0 %5335
  %5337 = vrot.lane.b32.xlu0 %v5266, 84
  %v5338 = vpop.permute.xlu0 %5337
  %5339 = vrot.lane.b32.xlu0 %v5267, 84
  %v5340 = vpop.permute.xlu0 %5339
  %5341 = vrot.lane.b32.xlu0 %v5268, 84
  %v5342 = vpop.permute.xlu0 %5341
  %5343 = vrot.lane.b32.xlu0 %v5269, 84
  %v5344 = vpop.permute.xlu0 %5343
  %5345 = vrot.lane.b32.xlu0 %v5270, 84
  %v5346 = vpop.permute.xlu0 %5345
  %5347 = vrot.lane.b32.xlu0 %v5271, 84
  %v5348 = vpop.permute.xlu0 %5347
  %5349 = vrot.lane.b32.xlu0 %v5272, 84
  %v5350 = vpop.permute.xlu0 %5349
  %5351 = vrot.lane.b32.xlu0 %v5273, 84
  %v5352 = vpop.permute.xlu0 %5351
  %5353 = vrot.lane.b32.xlu0 %v5274, 84
  %v5354 = vpop.permute.xlu0 %5353
  %5355 = vrot.lane.b32.xlu0 %v5275, 84
  %v5356 = vpop.permute.xlu0 %5355
  %v5357 = vsel %vm2455, %v5304, %v5306
  %v5358 = vsel %vm2455, %v5306, %v5308
  %v5359 = vsel %vm2455, %v5310, %v5312
  %v5360 = vsel %vm2455, %v5312, %v5314
  %v5361 = vsel %vm2455, %v5316, %v5318
  %v5362 = vsel %vm2455, %v5318, %v5320
  %v5363 = vsel %vm2455, %v5322, %v5324
  %v5364 = vsel %vm2455, %v5324, %v5326
  %v5365 = vsel %vm2455, %v5328, %v5330
  %v5366 = vsel %vm2455, %v5330, %v5332
  %v5367 = vsel %vm2455, %v5334, %v5336
  %v5368 = vsel %vm2455, %v5336, %v5338
  %v5369 = vsel %vm2455, %v5340, %v5342
  %v5370 = vsel %vm2455, %v5342, %v5344
  %v5371 = vsel %vm2455, %v5346, %v5348
  %v5372 = vsel %vm2455, %v5348, %v5350
  %v5373 = vsel %vm2455, %v5352, %v5354
  %v5374 = vsel %vm2455, %v5354, %v5356
  %v5402 = vadd.f32 %v5357, %v5358
  %v5403 = vsel %vm1289, %v5308, 0.0
  %v5404 = vadd.f32 %v5402, %v5403
  %5405 = vadd.xlane.f32.xlu0 %v5404
  %v5406 = vpop.xlane.xlu0 %5405
  %v5407 = vadd.f32 %v5359, %v5360
  %v5408 = vsel %vm1289, %v5314, 0.0
  %v5409 = vadd.f32 %v5407, %v5408
  %5410 = vadd.xlane.f32.xlu0 %v5409
  %v5411 = vpop.xlane.xlu0 %5410
  %v5412 = vadd.f32 %v5361, %v5362
  %v5413 = vsel %vm1289, %v5320, 0.0
  %v5414 = vadd.f32 %v5412, %v5413
  %5415 = vadd.xlane.f32.xlu0 %v5414
  %v5416 = vpop.xlane.xlu0 %5415
  %v5417 = vadd.f32 %v5363, %v5364
  %v5418 = vsel %vm1289, %v5326, 0.0
  %v5419 = vadd.f32 %v5417, %v5418
  %5420 = vadd.xlane.f32.xlu0 %v5419
  %v5421 = vpop.xlane.xlu0 %5420
  %v5422 = vadd.f32 %v5365, %v5366
  %v5423 = vsel %vm1289, %v5332, 0.0
  %v5424 = vadd.f32 %v5422, %v5423
  %5425 = vadd.xlane.f32.xlu0 %v5424
  %v5426 = vpop.xlane.xlu0 %5425
  %v5427 = vadd.f32 %v5367, %v5368
  %v5428 = vsel %vm1289, %v5338, 0.0
  %v5429 = vadd.f32 %v5427, %v5428
  %5430 = vadd.xlane.f32.xlu0 %v5429
  %v5431 = vpop.xlane.xlu0 %5430
  %v5432 = vadd.f32 %v5369, %v5370
  %v5433 = vsel %vm1289, %v5344, 0.0
  %v5434 = vadd.f32 %v5432, %v5433
  %5435 = vadd.xlane.f32.xlu0 %v5434
  %v5436 = vpop.xlane.xlu0 %5435
  %v5437 = vadd.f32 %v5371, %v5372
  %v5438 = vsel %vm1289, %v5350, 0.0
  %v5439 = vadd.f32 %v5437, %v5438
  %5440 = vadd.xlane.f32.xlu0 %v5439
  %v5441 = vpop.xlane.xlu0 %5440
  %v5442 = vsel %vm1305, %v5373, 0.0
  %v5443 = vsel %vm1305, %v5374, 0.0
  %v5444 = vadd.f32 %v5442, %v5443
  %v5445 = vsel %vm2216, %v5356, 0.0
  %v5446 = vadd.f32 %v5444, %v5445
  %5447 = vadd.xlane.f32.xlu0 %v5446
  %v5448 = vpop.xlane.xlu0 %5447
  %v5449 = vmul.f32 %v4805, %v2549
  %v5450 = vmul.f32 %v4807, %v2603
  %v5451 = vmul.f32 %v4967, %v2604
  %v5452 = vmul.f32 %v4969, %v2553
  %v5453 = vmul.f32 %v4809, %v2555
  %v5454 = vmul.f32 %v4811, %v2605
  %v5455 = vmul.f32 %v4971, %v2606
  %v5456 = vmul.f32 %v4973, %v2559
  %v5457 = vmul.f32 %v4815, %v2561
  %v5458 = vmul.f32 %v4817, %v2607
  %v5459 = vmul.f32 %v4977, %v2608
  %v5460 = vmul.f32 %v4979, %v2565
  %v5461 = vmul.f32 %v4819, %v2567
  %v5462 = vmul.f32 %v4821, %v2609
  %v5463 = vmul.f32 %v4981, %v2610
  %v5464 = vmul.f32 %v4983, %v2571
  %v5465 = vmul.f32 %v4825, %v2573
  %v5466 = vmul.f32 %v4827, %v2611
  %v5467 = vmul.f32 %v4987, %v2612
  %v5468 = vmul.f32 %v4989, %v2577
  %v5469 = vmul.f32 %v4829, %v2579
  %v5470 = vmul.f32 %v4831, %v2613
  %v5471 = vmul.f32 %v4991, %v2614
  %v5472 = vmul.f32 %v4993, %v2583
  %v5473 = vmul.f32 %v4835, %v2585
  %v5474 = vmul.f32 %v4837, %v2615
  %v5475 = vmul.f32 %v4997, %v2616
  %v5476 = vmul.f32 %v4999, %v2589
  %v5477 = vmul.f32 %v4839, %v2591
  %v5478 = vmul.f32 %v4841, %v2617
  %v5479 = vmul.f32 %v5001, %v2618
  %v5480 = vmul.f32 %v5003, %v2595
  %v5481 = vmul.f32 %v4845, %v2597
  %v5482 = vmul.f32 %v4847, %v2619
  %v5483 = vmul.f32 %v5007, %v2620
  %v5484 = vmul.f32 %v5009, %v2601
  %5521 = vrot.lane.b32.xlu0 %v5449, 40
  %v5522 = vpop.permute.xlu0 %5521
  %5523 = vrot.lane.b32.xlu0 %v5450, 40
  %v5524 = vpop.permute.xlu0 %5523
  %5525 = vrot.lane.b32.xlu0 %v5451, 40
  %v5526 = vpop.permute.xlu0 %5525
  %5527 = vrot.lane.b32.xlu0 %v5452, 40
  %v5528 = vpop.permute.xlu0 %5527
  %5529 = vrot.lane.b32.xlu0 %v5453, 40
  %v5530 = vpop.permute.xlu0 %5529
  %5531 = vrot.lane.b32.xlu0 %v5454, 40
  %v5532 = vpop.permute.xlu0 %5531
  %5533 = vrot.lane.b32.xlu0 %v5455, 40
  %v5534 = vpop.permute.xlu0 %5533
  %5535 = vrot.lane.b32.xlu0 %v5456, 40
  %v5536 = vpop.permute.xlu0 %5535
  %5537 = vrot.lane.b32.xlu0 %v5457, 40
  %v5538 = vpop.permute.xlu0 %5537
  %5539 = vrot.lane.b32.xlu0 %v5458, 40
  %v5540 = vpop.permute.xlu0 %5539
  %5541 = vrot.lane.b32.xlu0 %v5459, 40
  %v5542 = vpop.permute.xlu0 %5541
  %5543 = vrot.lane.b32.xlu0 %v5460, 40
  %v5544 = vpop.permute.xlu0 %5543
  %5545 = vrot.lane.b32.xlu0 %v5461, 40
  %v5546 = vpop.permute.xlu0 %5545
  %5547 = vrot.lane.b32.xlu0 %v5462, 40
  %v5548 = vpop.permute.xlu0 %5547
  %5549 = vrot.lane.b32.xlu0 %v5463, 40
  %v5550 = vpop.permute.xlu0 %5549
  %5551 = vrot.lane.b32.xlu0 %v5464, 40
  %v5552 = vpop.permute.xlu0 %5551
  %5553 = vrot.lane.b32.xlu0 %v5465, 40
  %v5554 = vpop.permute.xlu0 %5553
  %5555 = vrot.lane.b32.xlu0 %v5466, 40
  %v5556 = vpop.permute.xlu0 %5555
  %5557 = vrot.lane.b32.xlu0 %v5467, 40
  %v5558 = vpop.permute.xlu0 %5557
  %5559 = vrot.lane.b32.xlu0 %v5468, 40
  %v5560 = vpop.permute.xlu0 %5559
  %5561 = vrot.lane.b32.xlu0 %v5469, 40
  %v5562 = vpop.permute.xlu0 %5561
  %5563 = vrot.lane.b32.xlu0 %v5470, 40
  %v5564 = vpop.permute.xlu0 %5563
  %5565 = vrot.lane.b32.xlu0 %v5471, 40
  %v5566 = vpop.permute.xlu0 %5565
  %5567 = vrot.lane.b32.xlu0 %v5472, 40
  %v5568 = vpop.permute.xlu0 %5567
  %5569 = vrot.lane.b32.xlu0 %v5473, 40
  %v5570 = vpop.permute.xlu0 %5569
  %5571 = vrot.lane.b32.xlu0 %v5474, 40
  %v5572 = vpop.permute.xlu0 %5571
  %5573 = vrot.lane.b32.xlu0 %v5475, 40
  %v5574 = vpop.permute.xlu0 %5573
  %5575 = vrot.lane.b32.xlu0 %v5476, 40
  %v5576 = vpop.permute.xlu0 %5575
  %5577 = vrot.lane.b32.xlu0 %v5477, 40
  %v5578 = vpop.permute.xlu0 %5577
  %5579 = vrot.lane.b32.xlu0 %v5478, 40
  %v5580 = vpop.permute.xlu0 %5579
  %5581 = vrot.lane.b32.xlu0 %v5479, 40
  %v5582 = vpop.permute.xlu0 %5581
  %5583 = vrot.lane.b32.xlu0 %v5480, 40
  %v5584 = vpop.permute.xlu0 %5583
  %5585 = vrot.lane.b32.xlu0 %v5481, 40
  %v5586 = vpop.permute.xlu0 %5585
  %5587 = vrot.lane.b32.xlu0 %v5482, 40
  %v5588 = vpop.permute.xlu0 %5587
  %5589 = vrot.lane.b32.xlu0 %v5483, 40
  %v5590 = vpop.permute.xlu0 %5589
  %5591 = vrot.lane.b32.xlu0 %v5484, 40
  %v5592 = vpop.permute.xlu0 %5591
  %v5593 = vsel %vm2801, %v5522, %v5524
  %v5594 = vsel %vm2801, %v5524, %v5526
  %v5595 = vsel %vm2801, %v5526, %v5528
  %v5596 = vsel %vm2801, %v5530, %v5532
  %v5597 = vsel %vm2801, %v5532, %v5534
  %v5598 = vsel %vm2801, %v5534, %v5536
  %v5599 = vsel %vm2801, %v5538, %v5540
  %v5600 = vsel %vm2801, %v5540, %v5542
  %v5601 = vsel %vm2801, %v5542, %v5544
  %v5602 = vsel %vm2801, %v5546, %v5548
  %v5603 = vsel %vm2801, %v5548, %v5550
  %v5604 = vsel %vm2801, %v5550, %v5552
  %v5605 = vsel %vm2801, %v5554, %v5556
  %v5606 = vsel %vm2801, %v5556, %v5558
  %v5607 = vsel %vm2801, %v5558, %v5560
  %v5608 = vsel %vm2801, %v5562, %v5564
  %v5609 = vsel %vm2801, %v5564, %v5566
  %v5610 = vsel %vm2801, %v5566, %v5568
  %v5611 = vsel %vm2801, %v5570, %v5572
  %v5612 = vsel %vm2801, %v5572, %v5574
  %v5613 = vsel %vm2801, %v5574, %v5576
  %v5614 = vsel %vm2801, %v5578, %v5580
  %v5615 = vsel %vm2801, %v5580, %v5582
  %v5616 = vsel %vm2801, %v5582, %v5584
  %v5617 = vsel %vm2801, %v5586, %v5588
  %v5618 = vsel %vm2801, %v5588, %v5590
  %v5619 = vsel %vm2801, %v5590, %v5592
  %v5647 = vadd.f32 %v5593, %v5594
  %v5648 = vsel %vm1289, %v5595, 0.0
  %v5649 = vadd.f32 %v5647, %v5648
  %5650 = vadd.xlane.f32.xlu0 %v5649
  %v5651 = vpop.xlane.xlu0 %5650
  %v5652 = vadd.f32 %v5596, %v5597
  %v5653 = vsel %vm1289, %v5598, 0.0
  %v5654 = vadd.f32 %v5652, %v5653
  %5655 = vadd.xlane.f32.xlu0 %v5654
  %v5656 = vpop.xlane.xlu0 %5655
  %v5657 = vadd.f32 %v5599, %v5600
  %v5658 = vsel %vm1289, %v5601, 0.0
  %v5659 = vadd.f32 %v5657, %v5658
  %5660 = vadd.xlane.f32.xlu0 %v5659
  %v5661 = vpop.xlane.xlu0 %5660
  %v5662 = vadd.f32 %v5602, %v5603
  %v5663 = vsel %vm1289, %v5604, 0.0
  %v5664 = vadd.f32 %v5662, %v5663
  %5665 = vadd.xlane.f32.xlu0 %v5664
  %v5666 = vpop.xlane.xlu0 %5665
  %v5667 = vadd.f32 %v5605, %v5606
  %v5668 = vsel %vm1289, %v5607, 0.0
  %v5669 = vadd.f32 %v5667, %v5668
  %5670 = vadd.xlane.f32.xlu0 %v5669
  %v5671 = vpop.xlane.xlu0 %5670
  %v5672 = vadd.f32 %v5608, %v5609
  %v5673 = vsel %vm1289, %v5610, 0.0
  %v5674 = vadd.f32 %v5672, %v5673
  %5675 = vadd.xlane.f32.xlu0 %v5674
  %v5676 = vpop.xlane.xlu0 %5675
  %v5677 = vadd.f32 %v5611, %v5612
  %v5678 = vsel %vm1289, %v5613, 0.0
  %v5679 = vadd.f32 %v5677, %v5678
  %5680 = vadd.xlane.f32.xlu0 %v5679
  %v5681 = vpop.xlane.xlu0 %5680
  %v5682 = vadd.f32 %v5614, %v5615
  %v5683 = vsel %vm1289, %v5616, 0.0
  %v5684 = vadd.f32 %v5682, %v5683
  %5685 = vadd.xlane.f32.xlu0 %v5684
  %v5686 = vpop.xlane.xlu0 %5685
  %v5687 = vsel %vm1305, %v5617, 0.0
  %v5688 = vsel %vm1305, %v5618, 0.0
  %v5689 = vadd.f32 %v5687, %v5688
  %v5690 = vsel %vm2216, %v5619, 0.0
  %v5691 = vadd.f32 %v5689, %v5690
  %5692 = vadd.xlane.f32.xlu0 %v5691
  %v5693 = vpop.xlane.xlu0 %5692
  %v5694 = vmul.f32 %v4969, %v2904
  %v5695 = vmul.f32 %v5129, %v2958
  %v5696 = vmul.f32 %v5131, %v2959
  %v5697 = vmul.f32 %v4973, %v2910
  %v5698 = vmul.f32 %v5133, %v2960
  %v5699 = vmul.f32 %v5135, %v2961
  %v5700 = vmul.f32 %v4979, %v2916
  %v5701 = vmul.f32 %v5139, %v2962
  %v5702 = vmul.f32 %v5141, %v2963
  %v5703 = vmul.f32 %v4983, %v2922
  %v5704 = vmul.f32 %v5143, %v2964
  %v5705 = vmul.f32 %v5145, %v2965
  %v5706 = vmul.f32 %v4989, %v2928
  %v5707 = vmul.f32 %v5149, %v2966
  %v5708 = vmul.f32 %v5151, %v2967
  %v5709 = vmul.f32 %v4993, %v2934
  %v5710 = vmul.f32 %v5153, %v2968
  %v5711 = vmul.f32 %v5155, %v2969
  %v5712 = vmul.f32 %v4999, %v2940
  %v5713 = vmul.f32 %v5159, %v2970
  %v5714 = vmul.f32 %v5161, %v2971
  %v5715 = vmul.f32 %v5003, %v2946
  %v5716 = vmul.f32 %v5163, %v2972
  %v5717 = vmul.f32 %v5165, %v2973
  %v5718 = vmul.f32 %v5009, %v2952
  %v5719 = vmul.f32 %v5169, %v2974
  %v5720 = vmul.f32 %v5171, %v2975
  %5748 = vrot.lane.b32.xlu0 %v5694, 124
  %v5749 = vpop.permute.xlu0 %5748
  %5750 = vrot.lane.b32.xlu0 %v5695, 124
  %v5751 = vpop.permute.xlu0 %5750
  %5752 = vrot.lane.b32.xlu0 %v5696, 124
  %v5753 = vpop.permute.xlu0 %5752
  %5754 = vrot.lane.b32.xlu0 %v5697, 124
  %v5755 = vpop.permute.xlu0 %5754
  %5756 = vrot.lane.b32.xlu0 %v5698, 124
  %v5757 = vpop.permute.xlu0 %5756
  %5758 = vrot.lane.b32.xlu0 %v5699, 124
  %v5759 = vpop.permute.xlu0 %5758
  %5760 = vrot.lane.b32.xlu0 %v5700, 124
  %v5761 = vpop.permute.xlu0 %5760
  %5762 = vrot.lane.b32.xlu0 %v5701, 124
  %v5763 = vpop.permute.xlu0 %5762
  %5764 = vrot.lane.b32.xlu0 %v5702, 124
  %v5765 = vpop.permute.xlu0 %5764
  %5766 = vrot.lane.b32.xlu0 %v5703, 124
  %v5767 = vpop.permute.xlu0 %5766
  %5768 = vrot.lane.b32.xlu0 %v5704, 124
  %v5769 = vpop.permute.xlu0 %5768
  %5770 = vrot.lane.b32.xlu0 %v5705, 124
  %v5771 = vpop.permute.xlu0 %5770
  %5772 = vrot.lane.b32.xlu0 %v5706, 124
  %v5773 = vpop.permute.xlu0 %5772
  %5774 = vrot.lane.b32.xlu0 %v5707, 124
  %v5775 = vpop.permute.xlu0 %5774
  %5776 = vrot.lane.b32.xlu0 %v5708, 124
  %v5777 = vpop.permute.xlu0 %5776
  %5778 = vrot.lane.b32.xlu0 %v5709, 124
  %v5779 = vpop.permute.xlu0 %5778
  %5780 = vrot.lane.b32.xlu0 %v5710, 124
  %v5781 = vpop.permute.xlu0 %5780
  %5782 = vrot.lane.b32.xlu0 %v5711, 124
  %v5783 = vpop.permute.xlu0 %5782
  %5784 = vrot.lane.b32.xlu0 %v5712, 124
  %v5785 = vpop.permute.xlu0 %5784
  %5786 = vrot.lane.b32.xlu0 %v5713, 124
  %v5787 = vpop.permute.xlu0 %5786
  %5788 = vrot.lane.b32.xlu0 %v5714, 124
  %v5789 = vpop.permute.xlu0 %5788
  %5790 = vrot.lane.b32.xlu0 %v5715, 124
  %v5791 = vpop.permute.xlu0 %5790
  %5792 = vrot.lane.b32.xlu0 %v5716, 124
  %v5793 = vpop.permute.xlu0 %5792
  %5794 = vrot.lane.b32.xlu0 %v5717, 124
  %v5795 = vpop.permute.xlu0 %5794
  %5796 = vrot.lane.b32.xlu0 %v5718, 124
  %v5797 = vpop.permute.xlu0 %5796
  %5798 = vrot.lane.b32.xlu0 %v5719, 124
  %v5799 = vpop.permute.xlu0 %5798
  %5800 = vrot.lane.b32.xlu0 %v5720, 124
  %v5801 = vpop.permute.xlu0 %5800
  %v5802 = vsel %vm3111, %v5749, %v5751
  %v5803 = vsel %vm3111, %v5751, %v5753
  %v5804 = vsel %vm3111, %v5755, %v5757
  %v5805 = vsel %vm3111, %v5757, %v5759
  %v5806 = vsel %vm3111, %v5761, %v5763
  %v5807 = vsel %vm3111, %v5763, %v5765
  %v5808 = vsel %vm3111, %v5767, %v5769
  %v5809 = vsel %vm3111, %v5769, %v5771
  %v5810 = vsel %vm3111, %v5773, %v5775
  %v5811 = vsel %vm3111, %v5775, %v5777
  %v5812 = vsel %vm3111, %v5779, %v5781
  %v5813 = vsel %vm3111, %v5781, %v5783
  %v5814 = vsel %vm3111, %v5785, %v5787
  %v5815 = vsel %vm3111, %v5787, %v5789
  %v5816 = vsel %vm3111, %v5791, %v5793
  %v5817 = vsel %vm3111, %v5793, %v5795
  %v5818 = vsel %vm3111, %v5797, %v5799
  %v5819 = vsel %vm3111, %v5799, %v5801
  %v5847 = vadd.f32 %v5802, %v5803
  %v5848 = vsel %vm1289, %v5753, 0.0
  %v5849 = vadd.f32 %v5847, %v5848
  %5850 = vadd.xlane.f32.xlu0 %v5849
  %v5851 = vpop.xlane.xlu0 %5850
  %v5852 = vadd.f32 %v5804, %v5805
  %v5853 = vsel %vm1289, %v5759, 0.0
  %v5854 = vadd.f32 %v5852, %v5853
  %5855 = vadd.xlane.f32.xlu0 %v5854
  %v5856 = vpop.xlane.xlu0 %5855
  %v5857 = vadd.f32 %v5806, %v5807
  %v5858 = vsel %vm1289, %v5765, 0.0
  %v5859 = vadd.f32 %v5857, %v5858
  %5860 = vadd.xlane.f32.xlu0 %v5859
  %v5861 = vpop.xlane.xlu0 %5860
  %v5862 = vadd.f32 %v5808, %v5809
  %v5863 = vsel %vm1289, %v5771, 0.0
  %v5864 = vadd.f32 %v5862, %v5863
  %5865 = vadd.xlane.f32.xlu0 %v5864
  %v5866 = vpop.xlane.xlu0 %5865
  %v5867 = vadd.f32 %v5810, %v5811
  %v5868 = vsel %vm1289, %v5777, 0.0
  %v5869 = vadd.f32 %v5867, %v5868
  %5870 = vadd.xlane.f32.xlu0 %v5869
  %v5871 = vpop.xlane.xlu0 %5870
  %v5872 = vadd.f32 %v5812, %v5813
  %v5873 = vsel %vm1289, %v5783, 0.0
  %v5874 = vadd.f32 %v5872, %v5873
  %5875 = vadd.xlane.f32.xlu0 %v5874
  %v5876 = vpop.xlane.xlu0 %5875
  %v5877 = vadd.f32 %v5814, %v5815
  %v5878 = vsel %vm1289, %v5789, 0.0
  %v5879 = vadd.f32 %v5877, %v5878
  %5880 = vadd.xlane.f32.xlu0 %v5879
  %v5881 = vpop.xlane.xlu0 %5880
  %v5882 = vadd.f32 %v5816, %v5817
  %v5883 = vsel %vm1289, %v5795, 0.0
  %v5884 = vadd.f32 %v5882, %v5883
  %5885 = vadd.xlane.f32.xlu0 %v5884
  %v5886 = vpop.xlane.xlu0 %5885
  %v5887 = vsel %vm1305, %v5818, 0.0
  %v5888 = vsel %vm1305, %v5819, 0.0
  %v5889 = vadd.f32 %v5887, %v5888
  %v5890 = vsel %vm2216, %v5801, 0.0
  %v5891 = vadd.f32 %v5889, %v5890
  %5892 = vadd.xlane.f32.xlu0 %v5891
  %v5893 = vpop.xlane.xlu0 %5892
  %vm5894 = vcmask 7168
  %v5895 = vsel %vm5894, %v2177, %v2505
  %v5896 = vsel %vm5894, %v2182, %v2510
  %v5897 = vsel %vm5894, %v2187, %v2515
  %v5898 = vsel %vm5894, %v2192, %v2520
  %v5899 = vsel %vm5894, %v2197, %v2525
  %v5900 = vsel %vm5894, %v2202, %v2530
  %v5901 = vsel %vm5894, %v2207, %v2535
  %v5902 = vsel %vm5894, %v2212, %v2540
  %v5903 = vsel %vm5894, %v2220, %v2547
  %vm5904 = vcmask 15360
  %v5905 = vsel %vm5904, %v5895, %v2860
  %v5906 = vsel %vm5904, %v5896, %v2865
  %v5907 = vsel %vm5904, %v5897, %v2870
  %v5908 = vsel %vm5904, %v5898, %v2875
  %v5909 = vsel %vm5904, %v5899, %v2880
  %v5910 = vsel %vm5904, %v5900, %v2885
  %v5911 = vsel %vm5904, %v5901, %v2890
  %v5912 = vsel %vm5904, %v5902, %v2895
  %v5913 = vsel %vm5904, %v5903, %v2902
  %vm5914 = vcmask 23552
  %v5915 = vsel %vm5914, %v5905, %v3161
  %v5916 = vsel %vm5914, %v5906, %v3166
  %v5917 = vsel %vm5914, %v5907, %v3171
  %v5918 = vsel %vm5914, %v5908, %v3176
  %v5919 = vsel %vm5914, %v5909, %v3181
  %v5920 = vsel %vm5914, %v5910, %v3186
  %v5921 = vsel %vm5914, %v5911, %v3191
  %v5922 = vsel %vm5914, %v5912, %v3196
  %v5923 = vsel %vm5914, %v5913, %v3203
  %v5924 = vsel %vm2957, %v5915, %v5206
  %v5925 = vsel %vm2957, %v5916, %v5211
  %v5926 = vsel %vm2957, %v5917, %v5216
  %v5927 = vsel %vm2957, %v5918, %v5221
  %v5928 = vsel %vm2957, %v5919, %v5226
  %v5929 = vsel %vm2957, %v5920, %v5231
  %v5930 = vsel %vm2957, %v5921, %v5236
  %v5931 = vsel %vm2957, %v5922, %v5241
  %v5932 = vsel %vm2957, %v5923, %v5248
  %vm5933 = vcmask 39936
  %v5934 = vsel %vm5933, %v5924, %v5406
  %v5935 = vsel %vm5933, %v5925, %v5411
  %v5936 = vsel %vm5933, %v5926, %v5416
  %v5937 = vsel %vm5933, %v5927, %v5421
  %v5938 = vsel %vm5933, %v5928, %v5426
  %v5939 = vsel %vm5933, %v5929, %v5431
  %v5940 = vsel %vm5933, %v5930, %v5436
  %v5941 = vsel %vm5933, %v5931, %v5441
  %v5942 = vsel %vm5933, %v5932, %v5448
  %vm5943 = vcmask 48128
  %v5944 = vsel %vm5943, %v5934, %v5651
  %v5945 = vsel %vm5943, %v5935, %v5656
  %v5946 = vsel %vm5943, %v5936, %v5661
  %v5947 = vsel %vm5943, %v5937, %v5666
  %v5948 = vsel %vm5943, %v5938, %v5671
  %v5949 = vsel %vm5943, %v5939, %v5676
  %v5950 = vsel %vm5943, %v5940, %v5681
  %v5951 = vsel %vm5943, %v5941, %v5686
  %v5952 = vsel %vm5943, %v5942, %v5693
  %vm5953 = vcmask 56320
  %v5954 = vsel %vm5953, %v5944, %v5851
  %v5955 = vsel %vm5953, %v5945, %v5856
  %v5956 = vsel %vm5953, %v5946, %v5861
  %v5957 = vsel %vm5953, %v5947, %v5866
  %v5958 = vsel %vm5953, %v5948, %v5871
  %v5959 = vsel %vm5953, %v5949, %v5876
  %v5960 = vsel %vm5953, %v5950, %v5881
  %v5961 = vsel %vm5953, %v5951, %v5886
  %v5962 = vsel %vm5953, %v5952, %v5893
  %v5963 = vld [vmem:[%s4] sm:$0xff]
  %v5964 = vld [vmem:[%s4 + $0x8] sm:$0xff]
  %v5965 = vld [vmem:[%s4 + $0x10] sm:$0xff]
  %v5966 = vld [vmem:[%s4 + $0x18] sm:$0xff]
  %v5967 = vld [vmem:[%s4 + $0x20] sm:$0xff]
  %v5968 = vld [vmem:[%s4 + $0x28] sm:$0xff]
  %v5969 = vld [vmem:[%s4 + $0x30] sm:$0xff]
  %v5970 = vld [vmem:[%s4 + $0x38] sm:$0xff]
  %v5971 = vld [vmem:[%s4 + $0x40] sm:$0xff]
  %v5972 = vld [vmem:[%s4 + $0x48] sm:$0xff]
  %v5973 = vld [vmem:[%s4 + $0x50] sm:$0xff]
  %v5974 = vld [vmem:[%s4 + $0x58] sm:$0xff]
  %v5975 = vld [vmem:[%s4 + $0x60] sm:$0xff]
  %v5976 = vld [vmem:[%s4 + $0x68] sm:$0xff]
  %v5977 = vld [vmem:[%s4 + $0x70] sm:$0xff]
  %v5978 = vld [vmem:[%s4 + $0x78] sm:$0xff]
  %v5979 = vld [vmem:[%s4 + $0x80] sm:$0xff]
  %v5980 = vld [vmem:[%s4 + $0x88] sm:$0xff]
  %v5981 = vld [vmem:[%s4 + $0x90] sm:$0xff]
  %v5982 = vld [vmem:[%s4 + $0x98] sm:$0xff]
  %v5983 = vld [vmem:[%s4 + $0xa0] sm:$0xff]
  %v5984 = vld [vmem:[%s4 + $0xa8] sm:$0xff]
  %v5985 = vld [vmem:[%s4 + $0xb0] sm:$0xff]
  %v5986 = vld [vmem:[%s4 + $0xb8] sm:$0xff]
  %v5987 = vld [vmem:[%s4 + $0xc0] sm:$0xff]
  %v5988 = vld [vmem:[%s4 + $0xc8] sm:$0xff]
  %v5989 = vld [vmem:[%s4 + $0xd0] sm:$0xff]
  %v5990 = vld [vmem:[%s4 + $0xd8] sm:$0xff]
  %v5991 = vld [vmem:[%s4 + $0xe0] sm:$0xff]
  %v5992 = vld [vmem:[%s4 + $0xe8] sm:$0xff]
  %v5993 = vld [vmem:[%s4 + $0xf0] sm:$0xff]
  %v5994 = vld [vmem:[%s4 + $0xf8] sm:$0xff]
  %v5995 = vld [vmem:[%s4 + $0x100] sm:$0xff]
  %v5996 = vld [vmem:[%s4 + $0x108] sm:$0xff]
  %v5997 = vld [vmem:[%s4 + $0x110] sm:$0xff]
  %v5998 = vld [vmem:[%s4 + $0x118] sm:$0xff]
  %v5999 = vld [vmem:[%s4 + $0x120] sm:$0xff]
  %v6000 = vld [vmem:[%s4 + $0x128] sm:$0xff]
  %v6001 = vld [vmem:[%s4 + $0x130] sm:$0xff]
  %v6002 = vld [vmem:[%s4 + $0x138] sm:$0xff]
  %v6003 = vld [vmem:[%s4 + $0x140] sm:$0xff]
  %v6004 = vld [vmem:[%s4 + $0x148] sm:$0xff]
  %v6005 = vld [vmem:[%s4 + $0x150] sm:$0xff]
  %v6006 = vld [vmem:[%s4 + $0x158] sm:$0xff]
  %v6007 = vld [vmem:[%s4 + $0x160] sm:$0xff]
  %v6008 = vld [vmem:[%s4 + $0x168] sm:$0xff]
  %v6009 = vld [vmem:[%s4 + $0x170] sm:$0xff]
  %v6010 = vld [vmem:[%s4 + $0x178] sm:$0xff]
  %v6011 = vld [vmem:[%s4 + $0x180] sm:$0xff]
  %v6012 = vld [vmem:[%s4 + $0x188] sm:$0xff]
  %v6013 = vld [vmem:[%s4 + $0x190] sm:$0xff]
  %v6014 = vld [vmem:[%s4 + $0x198] sm:$0xff]
  %v6015 = vld [vmem:[%s4 + $0x1a0] sm:$0xff]
  %v6016 = vld [vmem:[%s4 + $0x1a8] sm:$0xff]
  %v6017 = vld [vmem:[%s4 + $0x1b0] sm:$0xff]
  %v6018 = vld [vmem:[%s4 + $0x1b8] sm:$0xff]
  %v6019 = vld [vmem:[%s4 + $0x1c0] sm:$0xff]
  %v6020 = vld [vmem:[%s4 + $0x1c8] sm:$0xff]
  %v6021 = vld [vmem:[%s4 + $0x1d0] sm:$0xff]
  %v6022 = vld [vmem:[%s4 + $0x1d8] sm:$0xff]
  %v6023 = vld [vmem:[%s4 + $0x1e0] sm:$0xff]
  %v6024 = vld [vmem:[%s4 + $0x1e8] sm:$0xff]
  %v6025 = vld [vmem:[%s4 + $0x1f0] sm:$0xff]
  %v6026 = vld [vmem:[%s4 + $0x1f8] sm:$0xff]
  %v6027 = vld [vmem:[%s4 + $0x200] sm:$0xff]
  %v6028 = vld [vmem:[%s4 + $0x208] sm:$0xff]
  %v6029 = vld [vmem:[%s4 + $0x210] sm:$0xff]
  %v6030 = vld [vmem:[%s4 + $0x218] sm:$0xff]
  %v6031 = vld [vmem:[%s4 + $0x220] sm:$0xff]
  %v6032 = vld [vmem:[%s4 + $0x228] sm:$0xff]
  %v6033 = vld [vmem:[%s4 + $0x230] sm:$0xff]
  %v6034 = vld [vmem:[%s4 + $0x238] sm:$0xff]
  %v6035 = vld [vmem:[%s4 + $0x240] sm:$0xff]
  %v6036 = vld [vmem:[%s4 + $0x248] sm:$0xff]
  %v6037 = vld [vmem:[%s4 + $0x250] sm:$0xff]
  %v6038 = vld [vmem:[%s4 + $0x258] sm:$0xff]
  %v6039 = vld [vmem:[%s4 + $0x260] sm:$0xff]
  %v6040 = vld [vmem:[%s4 + $0x268] sm:$0xff]
  %v6041 = vld [vmem:[%s4 + $0x270] sm:$0xff]
  %v6042 = vld [vmem:[%s4 + $0x278] sm:$0xff]
  %v6043 = vld [vmem:[%s4 + $0x280] sm:$0xff]
  %v6044 = vld [vmem:[%s4 + $0x288] sm:$0xff]
  %v6045 = vld [vmem:[%s4 + $0x290] sm:$0xff]
  %v6046 = vld [vmem:[%s4 + $0x298] sm:$0xff]
  %v6047 = vld [vmem:[%s4 + $0x2a0] sm:$0xff]
  %v6048 = vld [vmem:[%s4 + $0x2a8] sm:$0xff]
  %v6049 = vld [vmem:[%s4 + $0x2b0] sm:$0xff]
  %v6050 = vld [vmem:[%s4 + $0x2b8] sm:$0xff]
  %v6051 = vld [vmem:[%s4 + $0x2c0] sm:$0xff]
  %v6052 = vld [vmem:[%s4 + $0x2c8] sm:$0xff]
  %v6053 = vld [vmem:[%s4 + $0x2d0] sm:$0xff]
  %v6054 = vld [vmem:[%s4 + $0x2d8] sm:$0xff]
  %v6055 = vld [vmem:[%s4 + $0x2e0] sm:$0xff]
  %v6056 = vld [vmem:[%s4 + $0x2e8] sm:$0xff]
  %v6057 = vld [vmem:[%s4 + $0x2f0] sm:$0xff]
  %v6058 = vld [vmem:[%s4 + $0x2f8] sm:$0xff]
  %v6059 = vld [vmem:[%s4 + $0x300] sm:$0xff]
  %v6060 = vld [vmem:[%s4 + $0x308] sm:$0xff]
  %v6061 = vld [vmem:[%s4 + $0x310] sm:$0xff]
  %v6062 = vld [vmem:[%s4 + $0x318] sm:$0xff]
  %v6063 = vld [vmem:[%s4 + $0x320] sm:$0xff]
  %v6064 = vld [vmem:[%s4 + $0x328] sm:$0xff]
  %v6065 = vld [vmem:[%s4 + $0x330] sm:$0xff]
  %v6066 = vld [vmem:[%s4 + $0x338] sm:$0xff]
  %v6067 = vld [vmem:[%s4 + $0x340] sm:$0xff]
  %v6068 = vld [vmem:[%s4 + $0x348] sm:$0xff]
  %v6069 = vld [vmem:[%s4 + $0x350] sm:$0xff]
  %v6070 = vld [vmem:[%s4 + $0x358] sm:$0xff]
  %v6071 = vld [vmem:[%s4 + $0x360] sm:$0xff]
  %v6072 = vld [vmem:[%s4 + $0x368] sm:$0xff]
  %v6073 = vld [vmem:[%s4 + $0x370] sm:$0xff]
  %v6074 = vld [vmem:[%s4 + $0x378] sm:$0xff]
  %v6075 = vld [vmem:[%s4 + $0x380] sm:$0xff]
  %v6076 = vld [vmem:[%s4 + $0x388] sm:$0xff]
  %v6077 = vld [vmem:[%s4 + $0x390] sm:$0xff]
  %v6078 = vld [vmem:[%s4 + $0x398] sm:$0xff]
  %v6079 = vld [vmem:[%s4 + $0x3a0] sm:$0xff]
  %v6080 = vld [vmem:[%s4 + $0x3a8] sm:$0xff]
  %v6081 = vld [vmem:[%s4 + $0x3b0] sm:$0xff]
  %v6082 = vld [vmem:[%s4 + $0x3b8] sm:$0xff]
  %v6083 = vld [vmem:[%s4 + $0x3c0] sm:$0xff]
  %v6084 = vld [vmem:[%s4 + $0x3c8] sm:$0xff]
  %v6085 = vld [vmem:[%s4 + $0x3d0] sm:$0xff]
  %v6086 = vld [vmem:[%s4 + $0x3d8] sm:$0xff]
  %v6087 = vld [vmem:[%s4 + $0x3e0] sm:$0xff]
  %v6088 = vld [vmem:[%s4 + $0x3e8] sm:$0xff]
  %v6089 = vld [vmem:[%s4 + $0x3f0] sm:$0xff]
  %v6090 = vld [vmem:[%s4 + $0x3f8] sm:$0xff]
  %v6091 = vld [vmem:[%s4 + $0x400] sm:$0xff]
  %v6092 = vld [vmem:[%s4 + $0x408] sm:$0xff]
  %v6093 = vld [vmem:[%s4 + $0x410] sm:$0xff]
  %v6094 = vld [vmem:[%s4 + $0x418] sm:$0xff]
  %v6095 = vld [vmem:[%s4 + $0x420] sm:$0xff]
  %v6096 = vld [vmem:[%s4 + $0x428] sm:$0xff]
  %v6097 = vld [vmem:[%s4 + $0x430] sm:$0xff]
  %v6098 = vld [vmem:[%s4 + $0x438] sm:$0xff]
  %v6099 = vld [vmem:[%s4 + $0x440] sm:$0xff]
  %v6100 = vld [vmem:[%s4 + $0x448] sm:$0xff]
  %v6101 = vld [vmem:[%s4 + $0x450] sm:$0xff]
  %v6102 = vld [vmem:[%s4 + $0x458] sm:$0xff]
  %v6103 = vld [vmem:[%s4 + $0x460] sm:$0xff]
  %v6104 = vld [vmem:[%s4 + $0x468] sm:$0xff]
  %v6105 = vld [vmem:[%s4 + $0x470] sm:$0xff]
  %v6106 = vld [vmem:[%s4 + $0x478] sm:$0xff]
  %v6107 = vld [vmem:[%s4 + $0x480] sm:$0xff]
  %v6108 = vld [vmem:[%s4 + $0x488] sm:$0xff]
  %v6109 = vld [vmem:[%s4 + $0x490] sm:$0xff]
  %v6110 = vld [vmem:[%s4 + $0x498] sm:$0xff]
  %v6111 = vld [vmem:[%s4 + $0x4a0] sm:$0xff]
  %v6112 = vld [vmem:[%s4 + $0x4a8] sm:$0xff]
  %v6113 = vld [vmem:[%s4 + $0x4b0] sm:$0xff]
  %v6114 = vld [vmem:[%s4 + $0x4b8] sm:$0xff]
  %v6115 = vld [vmem:[%s4 + $0x4c0] sm:$0xff]
  %v6116 = vld [vmem:[%s4 + $0x4c8] sm:$0xff]
  %v6117 = vld [vmem:[%s4 + $0x4d0] sm:$0xff]
  %v6118 = vld [vmem:[%s4 + $0x4d8] sm:$0xff]
  %v6119 = vld [vmem:[%s4 + $0x4e0] sm:$0xff]
  %v6120 = vld [vmem:[%s4 + $0x4e8] sm:$0xff]
  %v6121 = vld [vmem:[%s4 + $0x4f0] sm:$0xff]
  %v6122 = vld [vmem:[%s4 + $0x4f8] sm:$0xff]
  %v6123 = vld [vmem:[%s4 + $0x500] sm:$0xff]
  %v6124 = vld [vmem:[%s4 + $0x508] sm:$0xff]
  %v6125 = vld [vmem:[%s4 + $0x510] sm:$0xff]
  %v6126 = vld [vmem:[%s4 + $0x518] sm:$0xff]
  %v6127 = vld [vmem:[%s4 + $0x520] sm:$0xff]
  %v6128 = vld [vmem:[%s4 + $0x528] sm:$0xff]
  %v6129 = vld [vmem:[%s4 + $0x530] sm:$0xff]
  %v6130 = vld [vmem:[%s4 + $0x538] sm:$0xff]
  %v6131 = vld [vmem:[%s4 + $0x540] sm:$0xff]
  %v6132 = vld [vmem:[%s4 + $0x548] sm:$0xff]
  %v6133 = vld [vmem:[%s4 + $0x550] sm:$0xff]
  %v6134 = vld [vmem:[%s4 + $0x558] sm:$0xff]
  %v6135 = vld [vmem:[%s4 + $0x560] sm:$0xff]
  %v6136 = vld [vmem:[%s4 + $0x568] sm:$0xff]
  %v6137 = vld [vmem:[%s4 + $0x570] sm:$0xff]
  %v6138 = vld [vmem:[%s4 + $0x578] sm:$0xff]
  %v6139 = vld [vmem:[%s4 + $0x580] sm:$0xff]
  %v6140 = vld [vmem:[%s4 + $0x588] sm:$0xff]
  %v6141 = vld [vmem:[%s4 + $0x590] sm:$0xff]
  %v6142 = vld [vmem:[%s4 + $0x598] sm:$0xff]
  %v6143 = vld [vmem:[%s4 + $0x5a0] sm:$0xff]
  %v6144 = vld [vmem:[%s4 + $0x5a8] sm:$0xff]
  %v6145 = vld [vmem:[%s4 + $0x5b0] sm:$0xff]
  %v6146 = vld [vmem:[%s4 + $0x5b8] sm:$0xff]
  %v6147 = vld [vmem:[%s4 + $0x5c0] sm:$0xff]
  %v6148 = vld [vmem:[%s4 + $0x5c8] sm:$0x33]
  %v6149 = vld [vmem:[%s4 + $0x5d0] sm:$0x33]
  %v6150 = vld [vmem:[%s4 + $0x5d8] sm:$0x33]
  %v6151 = vld [vmem:[%s4 + $0x5e0] sm:$0x33]
  %v6152 = vld [vmem:[%s4 + $0x5e8] sm:$0x33]
  %v6343 = vunpack.c.l.b16 %v5963
  %v6344 = vunpack.c.h.b16 %v5963
  %v6345 = vunpack.c.l.b16 %v5964
  %v6346 = vunpack.c.h.b16 %v5964
  %v6347 = vunpack.c.l.b16 %v5965
  %v6348 = vunpack.c.h.b16 %v5965
  %v6349 = vunpack.c.l.b16 %v5966
  %v6350 = vunpack.c.h.b16 %v5966
  %v6351 = vunpack.c.l.b16 %v5967
  %v6352 = vunpack.c.h.b16 %v5967
  %v6353 = vunpack.c.l.b16 %v5968
  %v6354 = vunpack.c.h.b16 %v5968
  %v6355 = vunpack.c.l.b16 %v5969
  %v6356 = vunpack.c.h.b16 %v5969
  %v6357 = vunpack.c.l.b16 %v5970
  %v6358 = vunpack.c.h.b16 %v5970
  %v6359 = vunpack.c.l.b16 %v5971
  %v6360 = vunpack.c.h.b16 %v5971
  %v6361 = vunpack.c.l.b16 %v5972
  %v6362 = vunpack.c.h.b16 %v5972
  %v6363 = vunpack.c.l.b16 %v5973
  %v6364 = vunpack.c.h.b16 %v5973
  %v6365 = vunpack.c.l.b16 %v5974
  %v6366 = vunpack.c.h.b16 %v5974
  %v6367 = vunpack.c.l.b16 %v5975
  %v6368 = vunpack.c.h.b16 %v5975
  %v6369 = vunpack.c.l.b16 %v5976
  %v6370 = vunpack.c.h.b16 %v5976
  %v6371 = vunpack.c.l.b16 %v5977
  %v6372 = vunpack.c.h.b16 %v5977
  %v6373 = vunpack.c.l.b16 %v5978
  %v6374 = vunpack.c.h.b16 %v5978
  %v6375 = vunpack.c.l.b16 %v5979
  %v6376 = vunpack.c.h.b16 %v5979
  %v6377 = vunpack.c.l.b16 %v5980
  %v6378 = vunpack.c.h.b16 %v5980
  %v6379 = vunpack.c.l.b16 %v5981
  %v6380 = vunpack.c.h.b16 %v5981
  %v6381 = vunpack.c.l.b16 %v5982
  %v6382 = vunpack.c.h.b16 %v5982
  %v6383 = vunpack.c.l.b16 %v5983
  %v6384 = vunpack.c.h.b16 %v5983
  %v6385 = vunpack.c.l.b16 %v5984
  %v6386 = vunpack.c.h.b16 %v5984
  %v6387 = vunpack.c.l.b16 %v5985
  %v6388 = vunpack.c.h.b16 %v5985
  %v6389 = vunpack.c.l.b16 %v5986
  %v6390 = vunpack.c.h.b16 %v5986
  %v6391 = vunpack.c.l.b16 %v5987
  %v6392 = vunpack.c.h.b16 %v5987
  %v6393 = vunpack.c.l.b16 %v5988
  %v6394 = vunpack.c.h.b16 %v5988
  %v6395 = vunpack.c.l.b16 %v5989
  %v6396 = vunpack.c.h.b16 %v5989
  %v6397 = vunpack.c.l.b16 %v5990
  %v6398 = vunpack.c.h.b16 %v5990
  %v6399 = vunpack.c.l.b16 %v5991
  %v6400 = vunpack.c.h.b16 %v5991
  %v6401 = vunpack.c.l.b16 %v5992
  %v6402 = vunpack.c.h.b16 %v5992
  %v6403 = vunpack.c.l.b16 %v5993
  %v6404 = vunpack.c.h.b16 %v5993
  %v6405 = vunpack.c.l.b16 %v5994
  %v6406 = vunpack.c.h.b16 %v5994
  %v6407 = vunpack.c.l.b16 %v5995
  %v6408 = vunpack.c.h.b16 %v5995
  %v6409 = vunpack.c.l.b16 %v5996
  %v6410 = vunpack.c.h.b16 %v5996
  %v6411 = vunpack.c.l.b16 %v5997
  %v6412 = vunpack.c.h.b16 %v5997
  %v6413 = vunpack.c.l.b16 %v5998
  %v6414 = vunpack.c.h.b16 %v5998
  %v6415 = vunpack.c.l.b16 %v5999
  %v6416 = vunpack.c.h.b16 %v5999
  %v6417 = vunpack.c.l.b16 %v6000
  %v6418 = vunpack.c.h.b16 %v6000
  %v6419 = vunpack.c.l.b16 %v6001
  %v6420 = vunpack.c.h.b16 %v6001
  %v6421 = vunpack.c.l.b16 %v6002
  %v6422 = vunpack.c.h.b16 %v6002
  %v6423 = vunpack.c.l.b16 %v6003
  %v6424 = vunpack.c.h.b16 %v6003
  %v6425 = vunpack.c.l.b16 %v6004
  %v6426 = vunpack.c.h.b16 %v6004
  %v6427 = vunpack.c.l.b16 %v6005
  %v6428 = vunpack.c.h.b16 %v6005
  %v6429 = vunpack.c.l.b16 %v6006
  %v6430 = vunpack.c.h.b16 %v6006
  %v6431 = vunpack.c.l.b16 %v6007
  %v6432 = vunpack.c.h.b16 %v6007
  %v6433 = vunpack.c.l.b16 %v6008
  %v6434 = vunpack.c.h.b16 %v6008
  %v6435 = vunpack.c.l.b16 %v6009
  %v6436 = vunpack.c.h.b16 %v6009
  %v6437 = vunpack.c.l.b16 %v6010
  %v6438 = vunpack.c.h.b16 %v6010
  %v6439 = vunpack.c.l.b16 %v6011
  %v6440 = vunpack.c.h.b16 %v6011
  %v6441 = vunpack.c.l.b16 %v6012
  %v6442 = vunpack.c.h.b16 %v6012
  %v6443 = vunpack.c.l.b16 %v6013
  %v6444 = vunpack.c.h.b16 %v6013
  %v6445 = vunpack.c.l.b16 %v6014
  %v6446 = vunpack.c.h.b16 %v6014
  %v6447 = vunpack.c.l.b16 %v6015
  %v6448 = vunpack.c.h.b16 %v6015
  %v6449 = vunpack.c.l.b16 %v6016
  %v6450 = vunpack.c.h.b16 %v6016
  %v6451 = vunpack.c.l.b16 %v6017
  %v6452 = vunpack.c.h.b16 %v6017
  %v6453 = vunpack.c.l.b16 %v6018
  %v6454 = vunpack.c.h.b16 %v6018
  %v6455 = vunpack.c.l.b16 %v6019
  %v6456 = vunpack.c.h.b16 %v6019
  %v6457 = vunpack.c.l.b16 %v6020
  %v6458 = vunpack.c.h.b16 %v6020
  %v6459 = vunpack.c.l.b16 %v6021
  %v6460 = vunpack.c.h.b16 %v6021
  %v6461 = vunpack.c.l.b16 %v6022
  %v6462 = vunpack.c.h.b16 %v6022
  %v6463 = vunpack.c.l.b16 %v6023
  %v6464 = vunpack.c.h.b16 %v6023
  %v6465 = vunpack.c.l.b16 %v6024
  %v6466 = vunpack.c.h.b16 %v6024
  %v6467 = vunpack.c.l.b16 %v6025
  %v6468 = vunpack.c.h.b16 %v6025
  %v6469 = vunpack.c.l.b16 %v6026
  %v6470 = vunpack.c.h.b16 %v6026
  %v6471 = vunpack.c.l.b16 %v6027
  %v6472 = vunpack.c.h.b16 %v6027
  %v6473 = vunpack.c.l.b16 %v6028
  %v6474 = vunpack.c.h.b16 %v6028
  %v6475 = vunpack.c.l.b16 %v6029
  %v6476 = vunpack.c.h.b16 %v6029
  %v6477 = vunpack.c.l.b16 %v6030
  %v6478 = vunpack.c.h.b16 %v6030
  %v6479 = vunpack.c.l.b16 %v6031
  %v6480 = vunpack.c.h.b16 %v6031
  %v6481 = vunpack.c.l.b16 %v6032
  %v6482 = vunpack.c.h.b16 %v6032
  %v6483 = vunpack.c.l.b16 %v6033
  %v6484 = vunpack.c.h.b16 %v6033
  %v6485 = vunpack.c.l.b16 %v6034
  %v6486 = vunpack.c.h.b16 %v6034
  %v6487 = vunpack.c.l.b16 %v6035
  %v6488 = vunpack.c.h.b16 %v6035
  %v6489 = vunpack.c.l.b16 %v6036
  %v6490 = vunpack.c.h.b16 %v6036
  %v6491 = vunpack.c.l.b16 %v6037
  %v6492 = vunpack.c.h.b16 %v6037
  %v6493 = vunpack.c.l.b16 %v6038
  %v6494 = vunpack.c.h.b16 %v6038
  %v6495 = vunpack.c.l.b16 %v6039
  %v6496 = vunpack.c.h.b16 %v6039
  %v6497 = vunpack.c.l.b16 %v6040
  %v6498 = vunpack.c.h.b16 %v6040
  %v6499 = vunpack.c.l.b16 %v6041
  %v6500 = vunpack.c.h.b16 %v6041
  %v6501 = vunpack.c.l.b16 %v6042
  %v6502 = vunpack.c.h.b16 %v6042
  %v6503 = vunpack.c.l.b16 %v6043
  %v6504 = vunpack.c.h.b16 %v6043
  %v6505 = vunpack.c.l.b16 %v6044
  %v6506 = vunpack.c.h.b16 %v6044
  %v6507 = vunpack.c.l.b16 %v6045
  %v6508 = vunpack.c.h.b16 %v6045
  %v6509 = vunpack.c.l.b16 %v6046
  %v6510 = vunpack.c.h.b16 %v6046
  %v6511 = vunpack.c.l.b16 %v6047
  %v6512 = vunpack.c.h.b16 %v6047
  %v6513 = vunpack.c.l.b16 %v6048
  %v6514 = vunpack.c.h.b16 %v6048
  %v6515 = vunpack.c.l.b16 %v6049
  %v6516 = vunpack.c.h.b16 %v6049
  %v6517 = vunpack.c.l.b16 %v6050
  %v6518 = vunpack.c.h.b16 %v6050
  %v6519 = vunpack.c.l.b16 %v6051
  %v6520 = vunpack.c.h.b16 %v6051
  %v6521 = vunpack.c.l.b16 %v6052
  %v6522 = vunpack.c.h.b16 %v6052
  %v6523 = vunpack.c.l.b16 %v6053
  %v6524 = vunpack.c.h.b16 %v6053
  %v6525 = vunpack.c.l.b16 %v6054
  %v6526 = vunpack.c.h.b16 %v6054
  %v6527 = vunpack.c.l.b16 %v6055
  %v6528 = vunpack.c.h.b16 %v6055
  %v6529 = vunpack.c.l.b16 %v6056
  %v6530 = vunpack.c.h.b16 %v6056
  %v6531 = vunpack.c.l.b16 %v6057
  %v6532 = vunpack.c.h.b16 %v6057
  %v6533 = vunpack.c.l.b16 %v6058
  %v6534 = vunpack.c.h.b16 %v6058
  %v6535 = vunpack.c.l.b16 %v6059
  %v6536 = vunpack.c.h.b16 %v6059
  %v6537 = vunpack.c.l.b16 %v6060
  %v6538 = vunpack.c.h.b16 %v6060
  %v6539 = vunpack.c.l.b16 %v6061
  %v6540 = vunpack.c.h.b16 %v6061
  %v6541 = vunpack.c.l.b16 %v6062
  %v6542 = vunpack.c.h.b16 %v6062
  %v6543 = vunpack.c.l.b16 %v6063
  %v6544 = vunpack.c.h.b16 %v6063
  %v6545 = vunpack.c.l.b16 %v6064
  %v6546 = vunpack.c.h.b16 %v6064
  %v6547 = vunpack.c.l.b16 %v6065
  %v6548 = vunpack.c.h.b16 %v6065
  %v6549 = vunpack.c.l.b16 %v6066
  %v6550 = vunpack.c.h.b16 %v6066
  %v6551 = vunpack.c.l.b16 %v6067
  %v6552 = vunpack.c.h.b16 %v6067
  %v6553 = vunpack.c.l.b16 %v6068
  %v6554 = vunpack.c.h.b16 %v6068
  %v6555 = vunpack.c.l.b16 %v6069
  %v6556 = vunpack.c.h.b16 %v6069
  %v6557 = vunpack.c.l.b16 %v6070
  %v6558 = vunpack.c.h.b16 %v6070
  %v6559 = vunpack.c.l.b16 %v6071
  %v6560 = vunpack.c.h.b16 %v6071
  %v6561 = vunpack.c.l.b16 %v6072
  %v6562 = vunpack.c.h.b16 %v6072
  %v6563 = vunpack.c.l.b16 %v6073
  %v6564 = vunpack.c.h.b16 %v6073
  %v6565 = vunpack.c.l.b16 %v6074
  %v6566 = vunpack.c.h.b16 %v6074
  %v6567 = vunpack.c.l.b16 %v6075
  %v6568 = vunpack.c.h.b16 %v6075
  %v6569 = vunpack.c.l.b16 %v6076
  %v6570 = vunpack.c.h.b16 %v6076
  %v6571 = vunpack.c.l.b16 %v6077
  %v6572 = vunpack.c.h.b16 %v6077
  %v6573 = vunpack.c.l.b16 %v6078
  %v6574 = vunpack.c.h.b16 %v6078
  %v6575 = vunpack.c.l.b16 %v6079
  %v6576 = vunpack.c.h.b16 %v6079
  %v6577 = vunpack.c.l.b16 %v6080
  %v6578 = vunpack.c.h.b16 %v6080
  %v6579 = vunpack.c.l.b16 %v6081
  %v6580 = vunpack.c.h.b16 %v6081
  %v6581 = vunpack.c.l.b16 %v6082
  %v6582 = vunpack.c.h.b16 %v6082
  %v6583 = vunpack.c.l.b16 %v6083
  %v6584 = vunpack.c.h.b16 %v6083
  %v6585 = vunpack.c.l.b16 %v6084
  %v6586 = vunpack.c.h.b16 %v6084
  %v6587 = vunpack.c.l.b16 %v6085
  %v6588 = vunpack.c.h.b16 %v6085
  %v6589 = vunpack.c.l.b16 %v6086
  %v6590 = vunpack.c.h.b16 %v6086
  %v6591 = vunpack.c.l.b16 %v6087
  %v6592 = vunpack.c.h.b16 %v6087
  %v6593 = vunpack.c.l.b16 %v6088
  %v6594 = vunpack.c.h.b16 %v6088
  %v6595 = vunpack.c.l.b16 %v6089
  %v6596 = vunpack.c.h.b16 %v6089
  %v6597 = vunpack.c.l.b16 %v6090
  %v6598 = vunpack.c.h.b16 %v6090
  %v6599 = vunpack.c.l.b16 %v6091
  %v6600 = vunpack.c.h.b16 %v6091
  %v6601 = vunpack.c.l.b16 %v6092
  %v6602 = vunpack.c.h.b16 %v6092
  %v6603 = vunpack.c.l.b16 %v6093
  %v6604 = vunpack.c.h.b16 %v6093
  %v6605 = vunpack.c.l.b16 %v6094
  %v6606 = vunpack.c.h.b16 %v6094
  %v6607 = vunpack.c.l.b16 %v6095
  %v6608 = vunpack.c.h.b16 %v6095
  %v6609 = vunpack.c.l.b16 %v6096
  %v6610 = vunpack.c.h.b16 %v6096
  %v6611 = vunpack.c.l.b16 %v6097
  %v6612 = vunpack.c.h.b16 %v6097
  %v6613 = vunpack.c.l.b16 %v6098
  %v6614 = vunpack.c.h.b16 %v6098
  %v6615 = vunpack.c.l.b16 %v6099
  %v6616 = vunpack.c.h.b16 %v6099
  %v6617 = vunpack.c.l.b16 %v6100
  %v6618 = vunpack.c.h.b16 %v6100
  %v6619 = vunpack.c.l.b16 %v6101
  %v6620 = vunpack.c.h.b16 %v6101
  %v6621 = vunpack.c.l.b16 %v6102
  %v6622 = vunpack.c.h.b16 %v6102
  %v6623 = vunpack.c.l.b16 %v6103
  %v6624 = vunpack.c.h.b16 %v6103
  %v6625 = vunpack.c.l.b16 %v6104
  %v6626 = vunpack.c.h.b16 %v6104
  %v6627 = vunpack.c.l.b16 %v6105
  %v6628 = vunpack.c.h.b16 %v6105
  %v6629 = vunpack.c.l.b16 %v6106
  %v6630 = vunpack.c.h.b16 %v6106
  %v6631 = vunpack.c.l.b16 %v6107
  %v6632 = vunpack.c.h.b16 %v6107
  %v6633 = vunpack.c.l.b16 %v6108
  %v6634 = vunpack.c.h.b16 %v6108
  %v6635 = vunpack.c.l.b16 %v6109
  %v6636 = vunpack.c.h.b16 %v6109
  %v6637 = vunpack.c.l.b16 %v6110
  %v6638 = vunpack.c.h.b16 %v6110
  %v6639 = vunpack.c.l.b16 %v6111
  %v6640 = vunpack.c.h.b16 %v6111
  %v6641 = vunpack.c.l.b16 %v6112
  %v6642 = vunpack.c.h.b16 %v6112
  %v6643 = vunpack.c.l.b16 %v6113
  %v6644 = vunpack.c.h.b16 %v6113
  %v6645 = vunpack.c.l.b16 %v6114
  %v6646 = vunpack.c.h.b16 %v6114
  %v6647 = vunpack.c.l.b16 %v6115
  %v6648 = vunpack.c.h.b16 %v6115
  %v6649 = vunpack.c.l.b16 %v6116
  %v6650 = vunpack.c.h.b16 %v6116
  %v6651 = vunpack.c.l.b16 %v6117
  %v6652 = vunpack.c.h.b16 %v6117
  %v6653 = vunpack.c.l.b16 %v6118
  %v6654 = vunpack.c.h.b16 %v6118
  %v6655 = vunpack.c.l.b16 %v6119
  %v6656 = vunpack.c.h.b16 %v6119
  %v6657 = vunpack.c.l.b16 %v6120
  %v6658 = vunpack.c.h.b16 %v6120
  %v6659 = vunpack.c.l.b16 %v6121
  %v6660 = vunpack.c.h.b16 %v6121
  %v6661 = vunpack.c.l.b16 %v6122
  %v6662 = vunpack.c.h.b16 %v6122
  %v6663 = vunpack.c.l.b16 %v6123
  %v6664 = vunpack.c.h.b16 %v6123
  %v6665 = vunpack.c.l.b16 %v6124
  %v6666 = vunpack.c.h.b16 %v6124
  %v6667 = vunpack.c.l.b16 %v6125
  %v6668 = vunpack.c.h.b16 %v6125
  %v6669 = vunpack.c.l.b16 %v6126
  %v6670 = vunpack.c.h.b16 %v6126
  %v6671 = vunpack.c.l.b16 %v6127
  %v6672 = vunpack.c.h.b16 %v6127
  %v6673 = vunpack.c.l.b16 %v6128
  %v6674 = vunpack.c.h.b16 %v6128
  %v6675 = vunpack.c.l.b16 %v6129
  %v6676 = vunpack.c.h.b16 %v6129
  %v6677 = vunpack.c.l.b16 %v6130
  %v6678 = vunpack.c.h.b16 %v6130
  %v6679 = vunpack.c.l.b16 %v6131
  %v6680 = vunpack.c.h.b16 %v6131
  %v6681 = vunpack.c.l.b16 %v6132
  %v6682 = vunpack.c.h.b16 %v6132
  %v6683 = vunpack.c.l.b16 %v6133
  %v6684 = vunpack.c.h.b16 %v6133
  %v6685 = vunpack.c.l.b16 %v6134
  %v6686 = vunpack.c.h.b16 %v6134
  %v6687 = vunpack.c.l.b16 %v6135
  %v6688 = vunpack.c.h.b16 %v6135
  %v6689 = vunpack.c.l.b16 %v6136
  %v6690 = vunpack.c.h.b16 %v6136
  %v6691 = vunpack.c.l.b16 %v6137
  %v6692 = vunpack.c.h.b16 %v6137
  %v6693 = vunpack.c.l.b16 %v6138
  %v6694 = vunpack.c.h.b16 %v6138
  %v6695 = vunpack.c.l.b16 %v6139
  %v6696 = vunpack.c.h.b16 %v6139
  %v6697 = vunpack.c.l.b16 %v6140
  %v6698 = vunpack.c.h.b16 %v6140
  %v6699 = vunpack.c.l.b16 %v6141
  %v6700 = vunpack.c.h.b16 %v6141
  %v6701 = vunpack.c.l.b16 %v6142
  %v6702 = vunpack.c.h.b16 %v6142
  %v6703 = vunpack.c.l.b16 %v6143
  %v6704 = vunpack.c.h.b16 %v6143
  %v6705 = vunpack.c.l.b16 %v6144
  %v6706 = vunpack.c.h.b16 %v6144
  %v6707 = vunpack.c.l.b16 %v6145
  %v6708 = vunpack.c.h.b16 %v6145
  %v6709 = vunpack.c.l.b16 %v6146
  %v6710 = vunpack.c.h.b16 %v6146
  %v6711 = vunpack.c.l.b16 %v6147
  %v6712 = vunpack.c.h.b16 %v6147
  %v6713 = vunpack.c.l.b16 %v6148
  %v6714 = vunpack.c.h.b16 %v6148
  %v6715 = vunpack.c.l.b16 %v6149
  %v6716 = vunpack.c.h.b16 %v6149
  %v6717 = vunpack.c.l.b16 %v6150
  %v6718 = vunpack.c.h.b16 %v6150
  %v6719 = vunpack.c.l.b16 %v6151
  %v6720 = vunpack.c.h.b16 %v6151
  %v6721 = vunpack.c.l.b16 %v6152
  %v6722 = vunpack.c.h.b16 %v6152
  %v6723 = vpack.c.b16 %v6353, %v6343
  %v6724 = vpack.c.b16 %v6354, %v6344
  %v6725 = vpack.c.b16 %v6355, %v6345
  %v6726 = vpack.c.b16 %v6356, %v6346
  %v6727 = vpack.c.b16 %v6357, %v6347
  %v6728 = vpack.c.b16 %v6358, %v6348
  %v6729 = vpack.c.b16 %v6359, %v6349
  %v6730 = vpack.c.b16 %v6360, %v6350
  %v6731 = vpack.c.b16 %v6361, %v6351
  %v6732 = vpack.c.b16 %v6362, %v6352
  %v6733 = vpack.c.b16 %v6373, %v6363
  %v6734 = vpack.c.b16 %v6374, %v6364
  %v6735 = vpack.c.b16 %v6375, %v6365
  %v6736 = vpack.c.b16 %v6376, %v6366
  %v6737 = vpack.c.b16 %v6377, %v6367
  %v6738 = vpack.c.b16 %v6378, %v6368
  %v6739 = vpack.c.b16 %v6379, %v6369
  %v6740 = vpack.c.b16 %v6380, %v6370
  %v6741 = vpack.c.b16 %v6381, %v6371
  %v6742 = vpack.c.b16 %v6382, %v6372
  %v6743 = vpack.c.b16 %v6393, %v6383
  %v6744 = vpack.c.b16 %v6394, %v6384
  %v6745 = vpack.c.b16 %v6395, %v6385
  %v6746 = vpack.c.b16 %v6396, %v6386
  %v6747 = vpack.c.b16 %v6397, %v6387
  %v6748 = vpack.c.b16 %v6398, %v6388
  %v6749 = vpack.c.b16 %v6399, %v6389
  %v6750 = vpack.c.b16 %v6400, %v6390
  %v6751 = vpack.c.b16 %v6401, %v6391
  %v6752 = vpack.c.b16 %v6402, %v6392
  %v6753 = vpack.c.b16 %v6413, %v6403
  %v6754 = vpack.c.b16 %v6414, %v6404
  %v6755 = vpack.c.b16 %v6415, %v6405
  %v6756 = vpack.c.b16 %v6416, %v6406
  %v6757 = vpack.c.b16 %v6417, %v6407
  %v6758 = vpack.c.b16 %v6418, %v6408
  %v6759 = vpack.c.b16 %v6419, %v6409
  %v6760 = vpack.c.b16 %v6420, %v6410
  %v6761 = vpack.c.b16 %v6421, %v6411
  %v6762 = vpack.c.b16 %v6422, %v6412
  %v6763 = vpack.c.b16 %v6433, %v6423
  %v6764 = vpack.c.b16 %v6434, %v6424
  %v6765 = vpack.c.b16 %v6435, %v6425
  %v6766 = vpack.c.b16 %v6436, %v6426
  %v6767 = vpack.c.b16 %v6437, %v6427
  %v6768 = vpack.c.b16 %v6438, %v6428
  %v6769 = vpack.c.b16 %v6439, %v6429
  %v6770 = vpack.c.b16 %v6440, %v6430
  %v6771 = vpack.c.b16 %v6441, %v6431
  %v6772 = vpack.c.b16 %v6442, %v6432
  %v6773 = vpack.c.b16 %v6453, %v6443
  %v6774 = vpack.c.b16 %v6454, %v6444
  %v6775 = vpack.c.b16 %v6455, %v6445
  %v6776 = vpack.c.b16 %v6456, %v6446
  %v6777 = vpack.c.b16 %v6457, %v6447
  %v6778 = vpack.c.b16 %v6458, %v6448
  %v6779 = vpack.c.b16 %v6459, %v6449
  %v6780 = vpack.c.b16 %v6460, %v6450
  %v6781 = vpack.c.b16 %v6461, %v6451
  %v6782 = vpack.c.b16 %v6462, %v6452
  %v6783 = vpack.c.b16 %v6473, %v6463
  %v6784 = vpack.c.b16 %v6474, %v6464
  %v6785 = vpack.c.b16 %v6475, %v6465
  %v6786 = vpack.c.b16 %v6476, %v6466
  %v6787 = vpack.c.b16 %v6477, %v6467
  %v6788 = vpack.c.b16 %v6478, %v6468
  %v6789 = vpack.c.b16 %v6479, %v6469
  %v6790 = vpack.c.b16 %v6480, %v6470
  %v6791 = vpack.c.b16 %v6481, %v6471
  %v6792 = vpack.c.b16 %v6482, %v6472
  %v6793 = vpack.c.b16 %v6493, %v6483
  %v6794 = vpack.c.b16 %v6494, %v6484
  %v6795 = vpack.c.b16 %v6495, %v6485
  %v6796 = vpack.c.b16 %v6496, %v6486
  %v6797 = vpack.c.b16 %v6497, %v6487
  %v6798 = vpack.c.b16 %v6498, %v6488
  %v6799 = vpack.c.b16 %v6499, %v6489
  %v6800 = vpack.c.b16 %v6500, %v6490
  %v6801 = vpack.c.b16 %v6501, %v6491
  %v6802 = vpack.c.b16 %v6502, %v6492
  %v6803 = vpack.c.b16 %v6513, %v6503
  %v6804 = vpack.c.b16 %v6514, %v6504
  %v6805 = vpack.c.b16 %v6515, %v6505
  %v6806 = vpack.c.b16 %v6516, %v6506
  %v6807 = vpack.c.b16 %v6517, %v6507
  %v6808 = vpack.c.b16 %v6518, %v6508
  %v6809 = vpack.c.b16 %v6519, %v6509
  %v6810 = vpack.c.b16 %v6520, %v6510
  %v6811 = vpack.c.b16 %v6521, %v6511
  %v6812 = vpack.c.b16 %v6522, %v6512
  %v6813 = vpack.c.b16 %v6533, %v6523
  %v6814 = vpack.c.b16 %v6534, %v6524
  %v6815 = vpack.c.b16 %v6535, %v6525
  %v6816 = vpack.c.b16 %v6536, %v6526
  %v6817 = vpack.c.b16 %v6537, %v6527
  %v6818 = vpack.c.b16 %v6538, %v6528
  %v6819 = vpack.c.b16 %v6539, %v6529
  %v6820 = vpack.c.b16 %v6540, %v6530
  %v6821 = vpack.c.b16 %v6541, %v6531
  %v6822 = vpack.c.b16 %v6542, %v6532
  %v6823 = vpack.c.b16 %v6553, %v6543
  %v6824 = vpack.c.b16 %v6554, %v6544
  %v6825 = vpack.c.b16 %v6555, %v6545
  %v6826 = vpack.c.b16 %v6556, %v6546
  %v6827 = vpack.c.b16 %v6557, %v6547
  %v6828 = vpack.c.b16 %v6558, %v6548
  %v6829 = vpack.c.b16 %v6559, %v6549
  %v6830 = vpack.c.b16 %v6560, %v6550
  %v6831 = vpack.c.b16 %v6561, %v6551
  %v6832 = vpack.c.b16 %v6562, %v6552
  %v6833 = vpack.c.b16 %v6573, %v6563
  %v6834 = vpack.c.b16 %v6574, %v6564
  %v6835 = vpack.c.b16 %v6575, %v6565
  %v6836 = vpack.c.b16 %v6576, %v6566
  %v6837 = vpack.c.b16 %v6577, %v6567
  %v6838 = vpack.c.b16 %v6578, %v6568
  %v6839 = vpack.c.b16 %v6579, %v6569
  %v6840 = vpack.c.b16 %v6580, %v6570
  %v6841 = vpack.c.b16 %v6581, %v6571
  %v6842 = vpack.c.b16 %v6582, %v6572
  %v6843 = vpack.c.b16 %v6593, %v6583
  %v6844 = vpack.c.b16 %v6594, %v6584
  %v6845 = vpack.c.b16 %v6595, %v6585
  %v6846 = vpack.c.b16 %v6596, %v6586
  %v6847 = vpack.c.b16 %v6597, %v6587
  %v6848 = vpack.c.b16 %v6598, %v6588
  %v6849 = vpack.c.b16 %v6599, %v6589
  %v6850 = vpack.c.b16 %v6600, %v6590
  %v6851 = vpack.c.b16 %v6601, %v6591
  %v6852 = vpack.c.b16 %v6602, %v6592
  %v6853 = vpack.c.b16 %v6613, %v6603
  %v6854 = vpack.c.b16 %v6614, %v6604
  %v6855 = vpack.c.b16 %v6615, %v6605
  %v6856 = vpack.c.b16 %v6616, %v6606
  %v6857 = vpack.c.b16 %v6617, %v6607
  %v6858 = vpack.c.b16 %v6618, %v6608
  %v6859 = vpack.c.b16 %v6619, %v6609
  %v6860 = vpack.c.b16 %v6620, %v6610
  %v6861 = vpack.c.b16 %v6621, %v6611
  %v6862 = vpack.c.b16 %v6622, %v6612
  %v6863 = vpack.c.b16 %v6633, %v6623
  %v6864 = vpack.c.b16 %v6634, %v6624
  %v6865 = vpack.c.b16 %v6635, %v6625
  %v6866 = vpack.c.b16 %v6636, %v6626
  %v6867 = vpack.c.b16 %v6637, %v6627
  %v6868 = vpack.c.b16 %v6638, %v6628
  %v6869 = vpack.c.b16 %v6639, %v6629
  %v6870 = vpack.c.b16 %v6640, %v6630
  %v6871 = vpack.c.b16 %v6641, %v6631
  %v6872 = vpack.c.b16 %v6642, %v6632
  %v6873 = vpack.c.b16 %v6653, %v6643
  %v6874 = vpack.c.b16 %v6654, %v6644
  %v6875 = vpack.c.b16 %v6655, %v6645
  %v6876 = vpack.c.b16 %v6656, %v6646
  %v6877 = vpack.c.b16 %v6657, %v6647
  %v6878 = vpack.c.b16 %v6658, %v6648
  %v6879 = vpack.c.b16 %v6659, %v6649
  %v6880 = vpack.c.b16 %v6660, %v6650
  %v6881 = vpack.c.b16 %v6661, %v6651
  %v6882 = vpack.c.b16 %v6662, %v6652
  %v6883 = vpack.c.b16 %v6673, %v6663
  %v6884 = vpack.c.b16 %v6674, %v6664
  %v6885 = vpack.c.b16 %v6675, %v6665
  %v6886 = vpack.c.b16 %v6676, %v6666
  %v6887 = vpack.c.b16 %v6677, %v6667
  %v6888 = vpack.c.b16 %v6678, %v6668
  %v6889 = vpack.c.b16 %v6679, %v6669
  %v6890 = vpack.c.b16 %v6680, %v6670
  %v6891 = vpack.c.b16 %v6681, %v6671
  %v6892 = vpack.c.b16 %v6682, %v6672
  %v6893 = vpack.c.b16 %v6693, %v6683
  %v6894 = vpack.c.b16 %v6694, %v6684
  %v6895 = vpack.c.b16 %v6695, %v6685
  %v6896 = vpack.c.b16 %v6696, %v6686
  %v6897 = vpack.c.b16 %v6697, %v6687
  %v6898 = vpack.c.b16 %v6698, %v6688
  %v6899 = vpack.c.b16 %v6699, %v6689
  %v6900 = vpack.c.b16 %v6700, %v6690
  %v6901 = vpack.c.b16 %v6701, %v6691
  %v6902 = vpack.c.b16 %v6702, %v6692
  %v6903 = vpack.c.b16 %v6713, %v6703
  %v6904 = vpack.c.b16 %v6714, %v6704
  %v6905 = vpack.c.b16 %v6715, %v6705
  %v6906 = vpack.c.b16 %v6716, %v6706
  %v6907 = vpack.c.b16 %v6717, %v6707
  %v6908 = vpack.c.b16 %v6718, %v6708
  %v6909 = vpack.c.b16 %v6719, %v6709
  %v6910 = vpack.c.b16 %v6720, %v6710
  %v6911 = vpack.c.b16 %v6721, %v6711
  %v6912 = vpack.c.b16 %v6722, %v6712
  %v7094 = vsel %vm1289, %v146, 0
  %v7097 = vsel %vm1289, %v149, 0
  %v7100 = vsel %vm1289, %v152, 0
  %v7103 = vsel %vm1289, %v155, 0
  %v7106 = vsel %vm1289, %v158, 0
  %v7109 = vsel %vm1305, %v6903, 0
  %v7112 = vsel %vm1305, %v6904, 0
  %v7115 = vsel %vm1305, %v6905, 0
  %v7118 = vsel %vm1305, %v6906, 0
  %v7121 = vsel %vm1305, %v6907, 0
  %v7124 = vsel %vm1305, %v6908, 0
  %v7127 = vsel %vm1305, %v6909, 0
  %v7130 = vsel %vm1305, %v6910, 0
  %v7133 = vsel %vm1305, %v6911, 0
  %v7136 = vsel %vm1305, %v6912, 0
  %7138 = vmatprep.subr.bf16.mxu0 %v6724
  %7139 = vmatpush1.bf16.msra.mxu0 %v6723
  %7140 = vmatprep.subr.bf16.mxu0 %v6734
  %7141 = vmatpush1.bf16.msra.mxu0 %v6733
  %7142 = vmatprep.subr.bf16.mxu0 %v6744
  %7143 = vmatpush1.bf16.msra.mxu0 %v6743
  %7144 = vmatprep.subr.bf16.mxu0 %v6754
  %7145 = vmatpush1.bf16.msra.mxu0 %v6753
  %7146 = vmatprep.subr.bf16.mxu0 %v6764
  %7147 = vmatpush1.bf16.msra.mxu0 %v6763
  %7148 = vmatprep.subr.bf16.mxu0 %v6774
  %7149 = vmatpush1.bf16.msra.mxu0 %v6773
  %7150 = vmatprep.subr.bf16.mxu0 %v6784
  %7151 = vmatpush1.bf16.msra.mxu0 %v6783
  %7152 = vmatprep.subr.bf16.mxu0 %v6794
  %7153 = vmatpush1.bf16.msra.mxu0 %v6793
  %7154 = vmatprep.subr.bf16.mxu0 %v6804
  %7155 = vmatpush1.bf16.msra.mxu0 %v6803
  %7156 = vmatprep.subr.bf16.mxu0 %v6814
  %7157 = vmatpush1.bf16.msra.mxu0 %v6813
  %7158 = vmatprep.subr.bf16.mxu0 %v6824
  %7159 = vmatpush1.bf16.msra.mxu0 %v6823
  %7160 = vmatprep.subr.bf16.mxu0 %v6834
  %7161 = vmatpush1.bf16.msra.mxu0 %v6833
  %7162 = vmatprep.subr.bf16.mxu0 %v6844
  %7163 = vmatpush1.bf16.msra.mxu0 %v6843
  %7164 = vmatprep.subr.bf16.mxu0 %v6854
  %7165 = vmatpush1.bf16.msra.mxu0 %v6853
  %7166 = vmatprep.subr.bf16.mxu0 %v6864
  %7167 = vmatpush1.bf16.msra.mxu0 %v6863
  %7168 = vmatprep.subr.bf16.mxu0 %v6874
  %7169 = vmatpush1.bf16.msra.mxu0 %v6873
  %7170 = vmatprep.mubr.bf16.mxu0 %v145
  %7171 = vmatmul.mubr.bf16.gmra.mrb[0].mxu0 %v144
  %v7172 = vpop.f32.mrb[0].mxu0
  %v7173 = vadd.f32 0.0, %v7172
  %v7174 = vpop.f32.mrb[0].mxu0
  %v7175 = vadd.f32 0.0, %v7174
  %v7176 = vpop.f32.mrb[0].mxu0
  %v7177 = vadd.f32 0.0, %v7176
  %v7178 = vpop.f32.mrb[0].mxu0
  %v7179 = vadd.f32 0.0, %v7178
  %7180 = vmatprep.mubr.bf16.mxu0 %v148
  %7181 = vmatmul.mubr.bf16.gmra.mrb[0].mxu0 %v147
  %v7182 = vpop.f32.mrb[0].mxu0
  %v7183 = vadd.f32 0.0, %v7182
  %v7184 = vpop.f32.mrb[0].mxu0
  %v7185 = vadd.f32 0.0, %v7184
  %v7186 = vpop.f32.mrb[0].mxu0
  %v7187 = vadd.f32 0.0, %v7186
  %v7188 = vpop.f32.mrb[0].mxu0
  %v7189 = vadd.f32 0.0, %v7188
  %7190 = vmatprep.mubr.bf16.mxu0 %v151
  %7191 = vmatmul.mubr.bf16.gmra.mrb[0].mxu0 %v150
  %v7192 = vpop.f32.mrb[0].mxu0
  %v7193 = vadd.f32 0.0, %v7192
  %v7194 = vpop.f32.mrb[0].mxu0
  %v7195 = vadd.f32 0.0, %v7194
  %v7196 = vpop.f32.mrb[0].mxu0
  %v7197 = vadd.f32 0.0, %v7196
  %v7198 = vpop.f32.mrb[0].mxu0
  %v7199 = vadd.f32 0.0, %v7198
  %7200 = vmatprep.mubr.bf16.mxu0 %v154
  %7201 = vmatmul.mubr.bf16.gmra.mrb[0].mxu0 %v153
  %v7202 = vpop.f32.mrb[0].mxu0
  %v7203 = vadd.f32 0.0, %v7202
  %v7204 = vpop.f32.mrb[0].mxu0
  %v7205 = vadd.f32 0.0, %v7204
  %v7206 = vpop.f32.mrb[0].mxu0
  %v7207 = vadd.f32 0.0, %v7206
  %v7208 = vpop.f32.mrb[0].mxu0
  %v7209 = vadd.f32 0.0, %v7208
  %7210 = vmatprep.mubr.bf16.mxu0 %v157
  %7211 = vmatmul.mubr.bf16.gmra.mrb[0].mxu0 %v156
  %v7212 = vpop.f32.mrb[0].mxu0
  %v7213 = vadd.f32 0.0, %v7212
  %v7214 = vpop.f32.mrb[0].mxu0
  %v7215 = vadd.f32 0.0, %v7214
  %v7216 = vpop.f32.mrb[0].mxu0
  %v7217 = vpop.f32.mrb[0].mxu0
  %7218 = vdwg.mxu0
  %7219 = vmatprep.subr.bf16.mxu0 %v6884
  %7220 = vmatpush1.bf16.msra.mxu0 %v6883
  %7221 = vmatprep.subr.bf16.mxu0 %v6894
  %7222 = vmatpush1.bf16.msra.mxu0 %v6893
  %7223 = vmatprep.subr.bf16.mxu0 %v7112
  %7224 = vmatpush1.bf16.msra.mxu0 %v7109
  %7225 = vmatprep.subr.bf16.mxu0 0
  %7226 = vmatpush1.bf16.msra.mxu0 0
  %7227 = vmatprep.subr.bf16.mxu0 0
  %7228 = vmatpush1.bf16.msra.mxu0 0
  %7229 = vmatprep.subr.bf16.mxu0 0
  %7230 = vmatpush1.bf16.msra.mxu0 0
  %7231 = vmatprep.subr.bf16.mxu0 0
  %7232 = vmatpush1.bf16.msra.mxu0 0
  %7233 = vmatprep.subr.bf16.mxu0 0
  %7234 = vmatpush1.bf16.msra.mxu0 0
  %7235 = vmatprep.subr.bf16.mxu0 0
  %7236 = vmatpush1.bf16.msra.mxu0 0
  %7237 = vmatprep.subr.bf16.mxu0 0
  %7238 = vmatpush1.bf16.msra.mxu0 0
  %7239 = vmatprep.subr.bf16.mxu0 0
  %7240 = vmatpush1.bf16.msra.mxu0 0
  %7241 = vmatprep.subr.bf16.mxu0 0
  %7242 = vmatpush1.bf16.msra.mxu0 0
  %7243 = vmatprep.subr.bf16.mxu0 0
  %7244 = vmatpush1.bf16.msra.mxu0 0
  %7245 = vmatprep.subr.bf16.mxu0 0
  %7246 = vmatpush1.bf16.msra.mxu0 0
  %7247 = vmatprep.subr.bf16.mxu0 0
  %7248 = vmatpush1.bf16.msra.mxu0 0
  %7249 = vmatprep.subr.bf16.mxu0 0
  %7250 = vmatpush1.bf16.msra.mxu0 0
  %7251 = vmatprep.mubr.bf16.mxu0 0
  %7252 = vmatmul.mubr.bf16.gmra.mrb[0].mxu0 %v7094
  %v7253 = vpop.f32.mrb[0].mxu0
  %v7254 = vadd.f32 %v7173, %v7253
  %v7255 = vpop.f32.mrb[0].mxu0
  %v7256 = vadd.f32 %v7175, %v7255
  %v7257 = vpop.f32.mrb[0].mxu0
  %v7258 = vadd.f32 %v7177, %v7257
  %v7259 = vpop.f32.mrb[0].mxu0
  %v7260 = vadd.f32 %v7179, %v7259
  %7261 = vmatprep.mubr.bf16.mxu0 0
  %7262 = vmatmul.mubr.bf16.gmra.mrb[0].mxu0 %v7097
  %v7263 = vpop.f32.mrb[0].mxu0
  %v7264 = vadd.f32 %v7183, %v7263
  %v7265 = vpop.f32.mrb[0].mxu0
  %v7266 = vadd.f32 %v7185, %v7265
  %v7267 = vpop.f32.mrb[0].mxu0
  %v7268 = vadd.f32 %v7187, %v7267
  %v7269 = vpop.f32.mrb[0].mxu0
  %v7270 = vadd.f32 %v7189, %v7269
  %7271 = vmatprep.mubr.bf16.mxu0 0
  %7272 = vmatmul.mubr.bf16.gmra.mrb[0].mxu0 %v7100
  %v7273 = vpop.f32.mrb[0].mxu0
  %v7274 = vadd.f32 %v7193, %v7273
  %v7275 = vpop.f32.mrb[0].mxu0
  %v7276 = vadd.f32 %v7195, %v7275
  %v7277 = vpop.f32.mrb[0].mxu0
  %v7278 = vadd.f32 %v7197, %v7277
  %v7279 = vpop.f32.mrb[0].mxu0
  %v7280 = vadd.f32 %v7199, %v7279
  %7281 = vmatprep.mubr.bf16.mxu0 0
  %7282 = vmatmul.mubr.bf16.gmra.mrb[0].mxu0 %v7103
  %v7283 = vpop.f32.mrb[0].mxu0
  %v7284 = vadd.f32 %v7203, %v7283
  %v7285 = vpop.f32.mrb[0].mxu0
  %v7286 = vadd.f32 %v7205, %v7285
  %v7287 = vpop.f32.mrb[0].mxu0
  %v7288 = vadd.f32 %v7207, %v7287
  %v7289 = vpop.f32.mrb[0].mxu0
  %v7290 = vadd.f32 %v7209, %v7289
  %7291 = vmatprep.mubr.bf16.mxu0 0
  %7292 = vmatmul.mubr.bf16.gmra.mrb[0].mxu0 %v7106
  %v7293 = vpop.f32.mrb[0].mxu0
  %v7294 = vadd.f32 %v7213, %v7293
  %v7295 = vpop.f32.mrb[0].mxu0
  %v7296 = vadd.f32 %v7215, %v7295
  %v7297 = vpop.f32.mrb[0].mxu0
  %v7298 = vpop.f32.mrb[0].mxu0
  %7299 = vdwg.mxu0
  %7300 = vmatprep.subr.bf16.mxu0 %v6726
  %7301 = vmatpush1.bf16.msra.mxu0 %v6725
  %7302 = vmatprep.subr.bf16.mxu0 %v6736
  %7303 = vmatpush1.bf16.msra.mxu0 %v6735
  %7304 = vmatprep.subr.bf16.mxu0 %v6746
  %7305 = vmatpush1.bf16.msra.mxu0 %v6745
  %7306 = vmatprep.subr.bf16.mxu0 %v6756
  %7307 = vmatpush1.bf16.msra.mxu0 %v6755
  %7308 = vmatprep.subr.bf16.mxu0 %v6766
  %7309 = vmatpush1.bf16.msra.mxu0 %v6765
  %7310 = vmatprep.subr.bf16.mxu0 %v6776
  %7311 = vmatpush1.bf16.msra.mxu0 %v6775
  %7312 = vmatprep.subr.bf16.mxu0 %v6786
  %7313 = vmatpush1.bf16.msra.mxu0 %v6785
  %7314 = vmatprep.subr.bf16.mxu0 %v6796
  %7315 = vmatpush1.bf16.msra.mxu0 %v6795
  %7316 = vmatprep.subr.bf16.mxu0 %v6806
  %7317 = vmatpush1.bf16.msra.mxu0 %v6805
  %7318 = vmatprep.subr.bf16.mxu0 %v6816
  %7319 = vmatpush1.bf16.msra.mxu0 %v6815
  %7320 = vmatprep.subr.bf16.mxu0 %v6826
  %7321 = vmatpush1.bf16.msra.mxu0 %v6825
  %7322 = vmatprep.subr.bf16.mxu0 %v6836
  %7323 = vmatpush1.bf16.msra.mxu0 %v6835
  %7324 = vmatprep.subr.bf16.mxu0 %v6846
  %7325 = vmatpush1.bf16.msra.mxu0 %v6845
  %7326 = vmatprep.subr.bf16.mxu0 %v6856
  %7327 = vmatpush1.bf16.msra.mxu0 %v6855
  %7328 = vmatprep.subr.bf16.mxu0 %v6866
  %7329 = vmatpush1.bf16.msra.mxu0 %v6865
  %7330 = vmatprep.subr.bf16.mxu0 %v6876
  %7331 = vmatpush1.bf16.msra.mxu0 %v6875
  %7332 = vmatprep.mubr.bf16.mxu0 %v145
  %7333 = vmatmul.mubr.bf16.gmra.mrb[0].mxu0 %v144
  %v7334 = vpop.f32.mrb[0].mxu0
  %v7335 = vadd.f32 0.0, %v7334
  %v7336 = vpop.f32.mrb[0].mxu0
  %v7337 = vadd.f32 0.0, %v7336
  %v7338 = vpop.f32.mrb[0].mxu0
  %v7339 = vadd.f32 0.0, %v7338
  %v7340 = vpop.f32.mrb[0].mxu0
  %v7341 = vadd.f32 0.0, %v7340
  %7342 = vmatprep.mubr.bf16.mxu0 %v148
  %7343 = vmatmul.mubr.bf16.gmra.mrb[0].mxu0 %v147
  %v7344 = vpop.f32.mrb[0].mxu0
  %v7345 = vadd.f32 0.0, %v7344
  %v7346 = vpop.f32.mrb[0].mxu0
  %v7347 = vadd.f32 0.0, %v7346
  %v7348 = vpop.f32.mrb[0].mxu0
  %v7349 = vadd.f32 0.0, %v7348
  %v7350 = vpop.f32.mrb[0].mxu0
  %v7351 = vadd.f32 0.0, %v7350
  %7352 = vmatprep.mubr.bf16.mxu0 %v151
  %7353 = vmatmul.mubr.bf16.gmra.mrb[0].mxu0 %v150
  %v7354 = vpop.f32.mrb[0].mxu0
  %v7355 = vadd.f32 0.0, %v7354
  %v7356 = vpop.f32.mrb[0].mxu0
  %v7357 = vadd.f32 0.0, %v7356
  %v7358 = vpop.f32.mrb[0].mxu0
  %v7359 = vadd.f32 0.0, %v7358
  %v7360 = vpop.f32.mrb[0].mxu0
  %v7361 = vadd.f32 0.0, %v7360
  %7362 = vmatprep.mubr.bf16.mxu0 %v154
  %7363 = vmatmul.mubr.bf16.gmra.mrb[0].mxu0 %v153
  %v7364 = vpop.f32.mrb[0].mxu0
  %v7365 = vadd.f32 0.0, %v7364
  %v7366 = vpop.f32.mrb[0].mxu0
  %v7367 = vadd.f32 0.0, %v7366
  %v7368 = vpop.f32.mrb[0].mxu0
  %v7369 = vadd.f32 0.0, %v7368
  %v7370 = vpop.f32.mrb[0].mxu0
  %v7371 = vadd.f32 0.0, %v7370
  %7372 = vmatprep.mubr.bf16.mxu0 %v157
  %7373 = vmatmul.mubr.bf16.gmra.mrb[0].mxu0 %v156
  %v7374 = vpop.f32.mrb[0].mxu0
  %v7375 = vadd.f32 0.0, %v7374
  %v7376 = vpop.f32.mrb[0].mxu0
  %v7377 = vadd.f32 0.0, %v7376
  %v7378 = vpop.f32.mrb[0].mxu0
  %v7379 = vpop.f32.mrb[0].mxu0
  %7380 = vdwg.mxu0
  %7381 = vmatprep.subr.bf16.mxu0 %v6886
  %7382 = vmatpush1.bf16.msra.mxu0 %v6885
  %7383 = vmatprep.subr.bf16.mxu0 %v6896
  %7384 = vmatpush1.bf16.msra.mxu0 %v6895
  %7385 = vmatprep.subr.bf16.mxu0 %v7118
  %7386 = vmatpush1.bf16.msra.mxu0 %v7115
  %7387 = vmatprep.subr.bf16.mxu0 0
  %7388 = vmatpush1.bf16.msra.mxu0 0
  %7389 = vmatprep.subr.bf16.mxu0 0
  %7390 = vmatpush1.bf16.msra.mxu0 0
  %7391 = vmatprep.subr.bf16.mxu0 0
  %7392 = vmatpush1.bf16.msra.mxu0 0
  %7393 = vmatprep.subr.bf16.mxu0 0
  %7394 = vmatpush1.bf16.msra.mxu0 0
  %7395 = vmatprep.subr.bf16.mxu0 0
  %7396 = vmatpush1.bf16.msra.mxu0 0
  %7397 = vmatprep.subr.bf16.mxu0 0
  %7398 = vmatpush1.bf16.msra.mxu0 0
  %7399 = vmatprep.subr.bf16.mxu0 0
  %7400 = vmatpush1.bf16.msra.mxu0 0
  %7401 = vmatprep.subr.bf16.mxu0 0
  %7402 = vmatpush1.bf16.msra.mxu0 0
  %7403 = vmatprep.subr.bf16.mxu0 0
  %7404 = vmatpush1.bf16.msra.mxu0 0
  %7405 = vmatprep.subr.bf16.mxu0 0
  %7406 = vmatpush1.bf16.msra.mxu0 0
  %7407 = vmatprep.subr.bf16.mxu0 0
  %7408 = vmatpush1.bf16.msra.mxu0 0
  %7409 = vmatprep.subr.bf16.mxu0 0
  %7410 = vmatpush1.bf16.msra.mxu0 0
  %7411 = vmatprep.subr.bf16.mxu0 0
  %7412 = vmatpush1.bf16.msra.mxu0 0
  %7413 = vmatprep.mubr.bf16.mxu0 0
  %7414 = vmatmul.mubr.bf16.gmra.mrb[0].mxu0 %v7094
  %v7415 = vpop.f32.mrb[0].mxu0
  %v7416 = vadd.f32 %v7335, %v7415
  %v7417 = vpop.f32.mrb[0].mxu0
  %v7418 = vadd.f32 %v7337, %v7417
  %v7419 = vpop.f32.mrb[0].mxu0
  %v7420 = vadd.f32 %v7339, %v7419
  %v7421 = vpop.f32.mrb[0].mxu0
  %v7422 = vadd.f32 %v7341, %v7421
  %7423 = vmatprep.mubr.bf16.mxu0 0
  %7424 = vmatmul.mubr.bf16.gmra.mrb[0].mxu0 %v7097
  %v7425 = vpop.f32.mrb[0].mxu0
  %v7426 = vadd.f32 %v7345, %v7425
  %v7427 = vpop.f32.mrb[0].mxu0
  %v7428 = vadd.f32 %v7347, %v7427
  %v7429 = vpop.f32.mrb[0].mxu0
  %v7430 = vadd.f32 %v7349, %v7429
  %v7431 = vpop.f32.mrb[0].mxu0
  %v7432 = vadd.f32 %v7351, %v7431
  %7433 = vmatprep.mubr.bf16.mxu0 0
  %7434 = vmatmul.mubr.bf16.gmra.mrb[0].mxu0 %v7100
  %v7435 = vpop.f32.mrb[0].mxu0
  %v7436 = vadd.f32 %v7355, %v7435
  %v7437 = vpop.f32.mrb[0].mxu0
  %v7438 = vadd.f32 %v7357, %v7437
  %v7439 = vpop.f32.mrb[0].mxu0
  %v7440 = vadd.f32 %v7359, %v7439
  %v7441 = vpop.f32.mrb[0].mxu0
  %v7442 = vadd.f32 %v7361, %v7441
  %7443 = vmatprep.mubr.bf16.mxu0 0
  %7444 = vmatmul.mubr.bf16.gmra.mrb[0].mxu0 %v7103
  %v7445 = vpop.f32.mrb[0].mxu0
  %v7446 = vadd.f32 %v7365, %v7445
  %v7447 = vpop.f32.mrb[0].mxu0
  %v7448 = vadd.f32 %v7367, %v7447
  %v7449 = vpop.f32.mrb[0].mxu0
  %v7450 = vadd.f32 %v7369, %v7449
  %v7451 = vpop.f32.mrb[0].mxu0
  %v7452 = vadd.f32 %v7371, %v7451
  %7453 = vmatprep.mubr.bf16.mxu0 0
  %7454 = vmatmul.mubr.bf16.gmra.mrb[0].mxu0 %v7106
  %v7455 = vpop.f32.mrb[0].mxu0
  %v7456 = vadd.f32 %v7375, %v7455
  %v7457 = vpop.f32.mrb[0].mxu0
  %v7458 = vadd.f32 %v7377, %v7457
  %v7459 = vpop.f32.mrb[0].mxu0
  %v7460 = vpop.f32.mrb[0].mxu0
  %7461 = vdwg.mxu0
  %7462 = vmatprep.subr.bf16.mxu0 %v6728
  %7463 = vmatpush1.bf16.msra.mxu0 %v6727
  %7464 = vmatprep.subr.bf16.mxu0 %v6738
  %7465 = vmatpush1.bf16.msra.mxu0 %v6737
  %7466 = vmatprep.subr.bf16.mxu0 %v6748
  %7467 = vmatpush1.bf16.msra.mxu0 %v6747
  %7468 = vmatprep.subr.bf16.mxu0 %v6758
  %7469 = vmatpush1.bf16.msra.mxu0 %v6757
  %7470 = vmatprep.subr.bf16.mxu0 %v6768
  %7471 = vmatpush1.bf16.msra.mxu0 %v6767
  %7472 = vmatprep.subr.bf16.mxu0 %v6778
  %7473 = vmatpush1.bf16.msra.mxu0 %v6777
  %7474 = vmatprep.subr.bf16.mxu0 %v6788
  %7475 = vmatpush1.bf16.msra.mxu0 %v6787
  %7476 = vmatprep.subr.bf16.mxu0 %v6798
  %7477 = vmatpush1.bf16.msra.mxu0 %v6797
  %7478 = vmatprep.subr.bf16.mxu0 %v6808
  %7479 = vmatpush1.bf16.msra.mxu0 %v6807
  %7480 = vmatprep.subr.bf16.mxu0 %v6818
  %7481 = vmatpush1.bf16.msra.mxu0 %v6817
  %7482 = vmatprep.subr.bf16.mxu0 %v6828
  %7483 = vmatpush1.bf16.msra.mxu0 %v6827
  %7484 = vmatprep.subr.bf16.mxu0 %v6838
  %7485 = vmatpush1.bf16.msra.mxu0 %v6837
  %7486 = vmatprep.subr.bf16.mxu0 %v6848
  %7487 = vmatpush1.bf16.msra.mxu0 %v6847
  %7488 = vmatprep.subr.bf16.mxu0 %v6858
  %7489 = vmatpush1.bf16.msra.mxu0 %v6857
  %7490 = vmatprep.subr.bf16.mxu0 %v6868
  %7491 = vmatpush1.bf16.msra.mxu0 %v6867
  %7492 = vmatprep.subr.bf16.mxu0 %v6878
  %7493 = vmatpush1.bf16.msra.mxu0 %v6877
  %7494 = vmatprep.mubr.bf16.mxu0 %v145
  %7495 = vmatmul.mubr.bf16.gmra.mrb[0].mxu0 %v144
  %v7496 = vpop.f32.mrb[0].mxu0
  %v7497 = vadd.f32 0.0, %v7496
  %v7498 = vpop.f32.mrb[0].mxu0
  %v7499 = vadd.f32 0.0, %v7498
  %v7500 = vpop.f32.mrb[0].mxu0
  %v7501 = vadd.f32 0.0, %v7500
  %v7502 = vpop.f32.mrb[0].mxu0
  %v7503 = vadd.f32 0.0, %v7502
  %7504 = vmatprep.mubr.bf16.mxu0 %v148
  %7505 = vmatmul.mubr.bf16.gmra.mrb[0].mxu0 %v147
  %v7506 = vpop.f32.mrb[0].mxu0
  %v7507 = vadd.f32 0.0, %v7506
  %v7508 = vpop.f32.mrb[0].mxu0
  %v7509 = vadd.f32 0.0, %v7508
  %v7510 = vpop.f32.mrb[0].mxu0
  %v7511 = vadd.f32 0.0, %v7510
  %v7512 = vpop.f32.mrb[0].mxu0
  %v7513 = vadd.f32 0.0, %v7512
  %7514 = vmatprep.mubr.bf16.mxu0 %v151
  %7515 = vmatmul.mubr.bf16.gmra.mrb[0].mxu0 %v150
  %v7516 = vpop.f32.mrb[0].mxu0
  %v7517 = vadd.f32 0.0, %v7516
  %v7518 = vpop.f32.mrb[0].mxu0
  %v7519 = vadd.f32 0.0, %v7518
  %v7520 = vpop.f32.mrb[0].mxu0
  %v7521 = vadd.f32 0.0, %v7520
  %v7522 = vpop.f32.mrb[0].mxu0
  %v7523 = vadd.f32 0.0, %v7522
  %7524 = vmatprep.mubr.bf16.mxu0 %v154
  %7525 = vmatmul.mubr.bf16.gmra.mrb[0].mxu0 %v153
  %v7526 = vpop.f32.mrb[0].mxu0
  %v7527 = vadd.f32 0.0, %v7526
  %v7528 = vpop.f32.mrb[0].mxu0
  %v7529 = vadd.f32 0.0, %v7528
  %v7530 = vpop.f32.mrb[0].mxu0
  %v7531 = vadd.f32 0.0, %v7530
  %v7532 = vpop.f32.mrb[0].mxu0
  %v7533 = vadd.f32 0.0, %v7532
  %7534 = vmatprep.mubr.bf16.mxu0 %v157
  %7535 = vmatmul.mubr.bf16.gmra.mrb[0].mxu0 %v156
  %v7536 = vpop.f32.mrb[0].mxu0
  %v7537 = vadd.f32 0.0, %v7536
  %v7538 = vpop.f32.mrb[0].mxu0
  %v7539 = vadd.f32 0.0, %v7538
  %v7540 = vpop.f32.mrb[0].mxu0
  %v7541 = vpop.f32.mrb[0].mxu0
  %7542 = vdwg.mxu0
  %7543 = vmatprep.subr.bf16.mxu0 %v6888
  %7544 = vmatpush1.bf16.msra.mxu0 %v6887
  %7545 = vmatprep.subr.bf16.mxu0 %v6898
  %7546 = vmatpush1.bf16.msra.mxu0 %v6897
  %7547 = vmatprep.subr.bf16.mxu0 %v7124
  %7548 = vmatpush1.bf16.msra.mxu0 %v7121
  %7549 = vmatprep.subr.bf16.mxu0 0
  %7550 = vmatpush1.bf16.msra.mxu0 0
  %7551 = vmatprep.subr.bf16.mxu0 0
  %7552 = vmatpush1.bf16.msra.mxu0 0
  %7553 = vmatprep.subr.bf16.mxu0 0
  %7554 = vmatpush1.bf16.msra.mxu0 0
  %7555 = vmatprep.subr.bf16.mxu0 0
  %7556 = vmatpush1.bf16.msra.mxu0 0
  %7557 = vmatprep.subr.bf16.mxu0 0
  %7558 = vmatpush1.bf16.msra.mxu0 0
  %7559 = vmatprep.subr.bf16.mxu0 0
  %7560 = vmatpush1.bf16.msra.mxu0 0
  %7561 = vmatprep.subr.bf16.mxu0 0
  %7562 = vmatpush1.bf16.msra.mxu0 0
  %7563 = vmatprep.subr.bf16.mxu0 0
  %7564 = vmatpush1.bf16.msra.mxu0 0
  %7565 = vmatprep.subr.bf16.mxu0 0
  %7566 = vmatpush1.bf16.msra.mxu0 0
  %7567 = vmatprep.subr.bf16.mxu0 0
  %7568 = vmatpush1.bf16.msra.mxu0 0
  %7569 = vmatprep.subr.bf16.mxu0 0
  %7570 = vmatpush1.bf16.msra.mxu0 0
  %7571 = vmatprep.subr.bf16.mxu0 0
  %7572 = vmatpush1.bf16.msra.mxu0 0
  %7573 = vmatprep.subr.bf16.mxu0 0
  %7574 = vmatpush1.bf16.msra.mxu0 0
  %7575 = vmatprep.mubr.bf16.mxu0 0
  %7576 = vmatmul.mubr.bf16.gmra.mrb[0].mxu0 %v7094
  %v7577 = vpop.f32.mrb[0].mxu0
  %v7578 = vadd.f32 %v7497, %v7577
  %v7579 = vpop.f32.mrb[0].mxu0
  %v7580 = vadd.f32 %v7499, %v7579
  %v7581 = vpop.f32.mrb[0].mxu0
  %v7582 = vadd.f32 %v7501, %v7581
  %v7583 = vpop.f32.mrb[0].mxu0
  %v7584 = vadd.f32 %v7503, %v7583
  %7585 = vmatprep.mubr.bf16.mxu0 0
  %7586 = vmatmul.mubr.bf16.gmra.mrb[0].mxu0 %v7097
  %v7587 = vpop.f32.mrb[0].mxu0
  %v7588 = vadd.f32 %v7507, %v7587
  %v7589 = vpop.f32.mrb[0].mxu0
  %v7590 = vadd.f32 %v7509, %v7589
  %v7591 = vpop.f32.mrb[0].mxu0
  %v7592 = vadd.f32 %v7511, %v7591
  %v7593 = vpop.f32.mrb[0].mxu0
  %v7594 = vadd.f32 %v7513, %v7593
  %7595 = vmatprep.mubr.bf16.mxu0 0
  %7596 = vmatmul.mubr.bf16.gmra.mrb[0].mxu0 %v7100
  %v7597 = vpop.f32.mrb[0].mxu0
  %v7598 = vadd.f32 %v7517, %v7597
  %v7599 = vpop.f32.mrb[0].mxu0
  %v7600 = vadd.f32 %v7519, %v7599
  %v7601 = vpop.f32.mrb[0].mxu0
  %v7602 = vadd.f32 %v7521, %v7601
  %v7603 = vpop.f32.mrb[0].mxu0
  %v7604 = vadd.f32 %v7523, %v7603
  %7605 = vmatprep.mubr.bf16.mxu0 0
  %7606 = vmatmul.mubr.bf16.gmra.mrb[0].mxu0 %v7103
  %v7607 = vpop.f32.mrb[0].mxu0
  %v7608 = vadd.f32 %v7527, %v7607
  %v7609 = vpop.f32.mrb[0].mxu0
  %v7610 = vadd.f32 %v7529, %v7609
  %v7611 = vpop.f32.mrb[0].mxu0
  %v7612 = vadd.f32 %v7531, %v7611
  %v7613 = vpop.f32.mrb[0].mxu0
  %v7614 = vadd.f32 %v7533, %v7613
  %7615 = vmatprep.mubr.bf16.mxu0 0
  %7616 = vmatmul.mubr.bf16.gmra.mrb[0].mxu0 %v7106
  %v7617 = vpop.f32.mrb[0].mxu0
  %v7618 = vadd.f32 %v7537, %v7617
  %v7619 = vpop.f32.mrb[0].mxu0
  %v7620 = vadd.f32 %v7539, %v7619
  %v7621 = vpop.f32.mrb[0].mxu0
  %v7622 = vpop.f32.mrb[0].mxu0
  %7623 = vdwg.mxu0
  %7624 = vmatprep.subr.bf16.mxu0 %v6730
  %7625 = vmatpush1.bf16.msra.mxu0 %v6729
  %7626 = vmatprep.subr.bf16.mxu0 %v6740
  %7627 = vmatpush1.bf16.msra.mxu0 %v6739
  %7628 = vmatprep.subr.bf16.mxu0 %v6750
  %7629 = vmatpush1.bf16.msra.mxu0 %v6749
  %7630 = vmatprep.subr.bf16.mxu0 %v6760
  %7631 = vmatpush1.bf16.msra.mxu0 %v6759
  %7632 = vmatprep.subr.bf16.mxu0 %v6770
  %7633 = vmatpush1.bf16.msra.mxu0 %v6769
  %7634 = vmatprep.subr.bf16.mxu0 %v6780
  %7635 = vmatpush1.bf16.msra.mxu0 %v6779
  %7636 = vmatprep.subr.bf16.mxu0 %v6790
  %7637 = vmatpush1.bf16.msra.mxu0 %v6789
  %7638 = vmatprep.subr.bf16.mxu0 %v6800
  %7639 = vmatpush1.bf16.msra.mxu0 %v6799
  %7640 = vmatprep.subr.bf16.mxu0 %v6810
  %7641 = vmatpush1.bf16.msra.mxu0 %v6809
  %7642 = vmatprep.subr.bf16.mxu0 %v6820
  %7643 = vmatpush1.bf16.msra.mxu0 %v6819
  %7644 = vmatprep.subr.bf16.mxu0 %v6830
  %7645 = vmatpush1.bf16.msra.mxu0 %v6829
  %7646 = vmatprep.subr.bf16.mxu0 %v6840
  %7647 = vmatpush1.bf16.msra.mxu0 %v6839
  %7648 = vmatprep.subr.bf16.mxu0 %v6850
  %7649 = vmatpush1.bf16.msra.mxu0 %v6849
  %7650 = vmatprep.subr.bf16.mxu0 %v6860
  %7651 = vmatpush1.bf16.msra.mxu0 %v6859
  %7652 = vmatprep.subr.bf16.mxu0 %v6870
  %7653 = vmatpush1.bf16.msra.mxu0 %v6869
  %7654 = vmatprep.subr.bf16.mxu0 %v6880
  %7655 = vmatpush1.bf16.msra.mxu0 %v6879
  %7656 = vmatprep.mubr.bf16.mxu0 %v145
  %7657 = vmatmul.mubr.bf16.gmra.mrb[0].mxu0 %v144
  %v7658 = vpop.f32.mrb[0].mxu0
  %v7659 = vadd.f32 0.0, %v7658
  %v7660 = vpop.f32.mrb[0].mxu0
  %v7661 = vadd.f32 0.0, %v7660
  %v7662 = vpop.f32.mrb[0].mxu0
  %v7663 = vadd.f32 0.0, %v7662
  %v7664 = vpop.f32.mrb[0].mxu0
  %v7665 = vadd.f32 0.0, %v7664
  %7666 = vmatprep.mubr.bf16.mxu0 %v148
  %7667 = vmatmul.mubr.bf16.gmra.mrb[0].mxu0 %v147
  %v7668 = vpop.f32.mrb[0].mxu0
  %v7669 = vadd.f32 0.0, %v7668
  %v7670 = vpop.f32.mrb[0].mxu0
  %v7671 = vadd.f32 0.0, %v7670
  %v7672 = vpop.f32.mrb[0].mxu0
  %v7673 = vadd.f32 0.0, %v7672
  %v7674 = vpop.f32.mrb[0].mxu0
  %v7675 = vadd.f32 0.0, %v7674
  %7676 = vmatprep.mubr.bf16.mxu0 %v151
  %7677 = vmatmul.mubr.bf16.gmra.mrb[0].mxu0 %v150
  %v7678 = vpop.f32.mrb[0].mxu0
  %v7679 = vadd.f32 0.0, %v7678
  %v7680 = vpop.f32.mrb[0].mxu0
  %v7681 = vadd.f32 0.0, %v7680
  %v7682 = vpop.f32.mrb[0].mxu0
  %v7683 = vadd.f32 0.0, %v7682
  %v7684 = vpop.f32.mrb[0].mxu0
  %v7685 = vadd.f32 0.0, %v7684
  %7686 = vmatprep.mubr.bf16.mxu0 %v154
  %7687 = vmatmul.mubr.bf16.gmra.mrb[0].mxu0 %v153
  %v7688 = vpop.f32.mrb[0].mxu0
  %v7689 = vadd.f32 0.0, %v7688
  %v7690 = vpop.f32.mrb[0].mxu0
  %v7691 = vadd.f32 0.0, %v7690
  %v7692 = vpop.f32.mrb[0].mxu0
  %v7693 = vadd.f32 0.0, %v7692
  %v7694 = vpop.f32.mrb[0].mxu0
  %v7695 = vadd.f32 0.0, %v7694
  %7696 = vmatprep.mubr.bf16.mxu0 %v157
  %7697 = vmatmul.mubr.bf16.gmra.mrb[0].mxu0 %v156
  %v7698 = vpop.f32.mrb[0].mxu0
  %v7699 = vadd.f32 0.0, %v7698
  %v7700 = vpop.f32.mrb[0].mxu0
  %v7701 = vadd.f32 0.0, %v7700
  %v7702 = vpop.f32.mrb[0].mxu0
  %v7703 = vpop.f32.mrb[0].mxu0
  %7704 = vdwg.mxu0
  %7705 = vmatprep.subr.bf16.mxu0 %v6890
  %7706 = vmatpush1.bf16.msra.mxu0 %v6889
  %7707 = vmatprep.subr.bf16.mxu0 %v6900
  %7708 = vmatpush1.bf16.msra.mxu0 %v6899
  %7709 = vmatprep.subr.bf16.mxu0 %v7130
  %7710 = vmatpush1.bf16.msra.mxu0 %v7127
  %7711 = vmatprep.subr.bf16.mxu0 0
  %7712 = vmatpush1.bf16.msra.mxu0 0
  %7713 = vmatprep.subr.bf16.mxu0 0
  %7714 = vmatpush1.bf16.msra.mxu0 0
  %7715 = vmatprep.subr.bf16.mxu0 0
  %7716 = vmatpush1.bf16.msra.mxu0 0
  %7717 = vmatprep.subr.bf16.mxu0 0
  %7718 = vmatpush1.bf16.msra.mxu0 0
  %7719 = vmatprep.subr.bf16.mxu0 0
  %7720 = vmatpush1.bf16.msra.mxu0 0
  %7721 = vmatprep.subr.bf16.mxu0 0
  %7722 = vmatpush1.bf16.msra.mxu0 0
  %7723 = vmatprep.subr.bf16.mxu0 0
  %7724 = vmatpush1.bf16.msra.mxu0 0
  %7725 = vmatprep.subr.bf16.mxu0 0
  %7726 = vmatpush1.bf16.msra.mxu0 0
  %7727 = vmatprep.subr.bf16.mxu0 0
  %7728 = vmatpush1.bf16.msra.mxu0 0
  %7729 = vmatprep.subr.bf16.mxu0 0
  %7730 = vmatpush1.bf16.msra.mxu0 0
  %7731 = vmatprep.subr.bf16.mxu0 0
  %7732 = vmatpush1.bf16.msra.mxu0 0
  %7733 = vmatprep.subr.bf16.mxu0 0
  %7734 = vmatpush1.bf16.msra.mxu0 0
  %7735 = vmatprep.subr.bf16.mxu0 0
  %7736 = vmatpush1.bf16.msra.mxu0 0
  %7737 = vmatprep.mubr.bf16.mxu0 0
  %7738 = vmatmul.mubr.bf16.gmra.mrb[0].mxu0 %v7094
  %v7739 = vpop.f32.mrb[0].mxu0
  %v7740 = vadd.f32 %v7659, %v7739
  %v7741 = vpop.f32.mrb[0].mxu0
  %v7742 = vadd.f32 %v7661, %v7741
  %v7743 = vpop.f32.mrb[0].mxu0
  %v7744 = vadd.f32 %v7663, %v7743
  %v7745 = vpop.f32.mrb[0].mxu0
  %v7746 = vadd.f32 %v7665, %v7745
  %7747 = vmatprep.mubr.bf16.mxu0 0
  %7748 = vmatmul.mubr.bf16.gmra.mrb[0].mxu0 %v7097
  %v7749 = vpop.f32.mrb[0].mxu0
  %v7750 = vadd.f32 %v7669, %v7749
  %v7751 = vpop.f32.mrb[0].mxu0
  %v7752 = vadd.f32 %v7671, %v7751
  %v7753 = vpop.f32.mrb[0].mxu0
  %v7754 = vadd.f32 %v7673, %v7753
  %v7755 = vpop.f32.mrb[0].mxu0
  %v7756 = vadd.f32 %v7675, %v7755
  %7757 = vmatprep.mubr.bf16.mxu0 0
  %7758 = vmatmul.mubr.bf16.gmra.mrb[0].mxu0 %v7100
  %v7759 = vpop.f32.mrb[0].mxu0
  %v7760 = vadd.f32 %v7679, %v7759
  %v7761 = vpop.f32.mrb[0].mxu0
  %v7762 = vadd.f32 %v7681, %v7761
  %v7763 = vpop.f32.mrb[0].mxu0
  %v7764 = vadd.f32 %v7683, %v7763
  %v7765 = vpop.f32.mrb[0].mxu0
  %v7766 = vadd.f32 %v7685, %v7765
  %7767 = vmatprep.mubr.bf16.mxu0 0
  %7768 = vmatmul.mubr.bf16.gmra.mrb[0].mxu0 %v7103
  %v7769 = vpop.f32.mrb[0].mxu0
  %v7770 = vadd.f32 %v7689, %v7769
  %v7771 = vpop.f32.mrb[0].mxu0
  %v7772 = vadd.f32 %v7691, %v7771
  %v7773 = vpop.f32.mrb[0].mxu0
  %v7774 = vadd.f32 %v7693, %v7773
  %v7775 = vpop.f32.mrb[0].mxu0
  %v7776 = vadd.f32 %v7695, %v7775
  %7777 = vmatprep.mubr.bf16.mxu0 0
  %7778 = vmatmul.mubr.bf16.gmra.mrb[0].mxu0 %v7106
  %v7779 = vpop.f32.mrb[0].mxu0
  %v7780 = vadd.f32 %v7699, %v7779
  %v7781 = vpop.f32.mrb[0].mxu0
  %v7782 = vadd.f32 %v7701, %v7781
  %v7783 = vpop.f32.mrb[0].mxu0
  %v7784 = vpop.f32.mrb[0].mxu0
  %7785 = vdwg.mxu0
  %7786 = vmatprep.subr.bf16.mxu0 %v6732
  %7787 = vmatpush1.bf16.msra.mxu0 %v6731
  %7788 = vmatprep.subr.bf16.mxu0 %v6742
  %7789 = vmatpush1.bf16.msra.mxu0 %v6741
  %7790 = vmatprep.subr.bf16.mxu0 %v6752
  %7791 = vmatpush1.bf16.msra.mxu0 %v6751
  %7792 = vmatprep.subr.bf16.mxu0 %v6762
  %7793 = vmatpush1.bf16.msra.mxu0 %v6761
  %7794 = vmatprep.subr.bf16.mxu0 %v6772
  %7795 = vmatpush1.bf16.msra.mxu0 %v6771
  %7796 = vmatprep.subr.bf16.mxu0 %v6782
  %7797 = vmatpush1.bf16.msra.mxu0 %v6781
  %7798 = vmatprep.subr.bf16.mxu0 %v6792
  %7799 = vmatpush1.bf16.msra.mxu0 %v6791
  %7800 = vmatprep.subr.bf16.mxu0 %v6802
  %7801 = vmatpush1.bf16.msra.mxu0 %v6801
  %7802 = vmatprep.subr.bf16.mxu0 %v6812
  %7803 = vmatpush1.bf16.msra.mxu0 %v6811
  %7804 = vmatprep.subr.bf16.mxu0 %v6822
  %7805 = vmatpush1.bf16.msra.mxu0 %v6821
  %7806 = vmatprep.subr.bf16.mxu0 %v6832
  %7807 = vmatpush1.bf16.msra.mxu0 %v6831
  %7808 = vmatprep.subr.bf16.mxu0 %v6842
  %7809 = vmatpush1.bf16.msra.mxu0 %v6841
  %7810 = vmatprep.subr.bf16.mxu0 %v6852
  %7811 = vmatpush1.bf16.msra.mxu0 %v6851
  %7812 = vmatprep.subr.bf16.mxu0 %v6862
  %7813 = vmatpush1.bf16.msra.mxu0 %v6861
  %7814 = vmatprep.subr.bf16.mxu0 %v6872
  %7815 = vmatpush1.bf16.msra.mxu0 %v6871
  %7816 = vmatprep.subr.bf16.mxu0 %v6882
  %7817 = vmatpush1.bf16.msra.mxu0 %v6881
  %7818 = vmatprep.mubr.bf16.mxu0 %v145
  %7819 = vmatmul.mubr.bf16.gmra.mrb[0].mxu0 %v144
  %v7820 = vpop.f32.mrb[0].mxu0
  %v7821 = vadd.f32 0.0, %v7820
  %v7822 = vpop.f32.mrb[0].mxu0
  %v7823 = vadd.f32 0.0, %v7822
  %v7824 = vpop.f32.mrb[0].mxu0
  %v7825 = vadd.f32 0.0, %v7824
  %v7826 = vpop.f32.mrb[0].mxu0
  %v7827 = vadd.f32 0.0, %v7826
  %7828 = vmatprep.mubr.bf16.mxu0 %v148
  %7829 = vmatmul.mubr.bf16.gmra.mrb[0].mxu0 %v147
  %v7830 = vpop.f32.mrb[0].mxu0
  %v7831 = vadd.f32 0.0, %v7830
  %v7832 = vpop.f32.mrb[0].mxu0
  %v7833 = vadd.f32 0.0, %v7832
  %v7834 = vpop.f32.mrb[0].mxu0
  %v7835 = vadd.f32 0.0, %v7834
  %v7836 = vpop.f32.mrb[0].mxu0
  %v7837 = vadd.f32 0.0, %v7836
  %7838 = vmatprep.mubr.bf16.mxu0 %v151
  %7839 = vmatmul.mubr.bf16.gmra.mrb[0].mxu0 %v150
  %v7840 = vpop.f32.mrb[0].mxu0
  %v7841 = vadd.f32 0.0, %v7840
  %v7842 = vpop.f32.mrb[0].mxu0
  %v7843 = vadd.f32 0.0, %v7842
  %v7844 = vpop.f32.mrb[0].mxu0
  %v7845 = vadd.f32 0.0, %v7844
  %v7846 = vpop.f32.mrb[0].mxu0
  %v7847 = vadd.f32 0.0, %v7846
  %7848 = vmatprep.mubr.bf16.mxu0 %v154
  %7849 = vmatmul.mubr.bf16.gmra.mrb[0].mxu0 %v153
  %v7850 = vpop.f32.mrb[0].mxu0
  %v7851 = vadd.f32 0.0, %v7850
  %v7852 = vpop.f32.mrb[0].mxu0
  %v7853 = vadd.f32 0.0, %v7852
  %v7854 = vpop.f32.mrb[0].mxu0
  %v7855 = vadd.f32 0.0, %v7854
  %v7856 = vpop.f32.mrb[0].mxu0
  %v7857 = vadd.f32 0.0, %v7856
  %7858 = vmatprep.mubr.bf16.mxu0 %v157
  %7859 = vmatmul.mubr.bf16.gmra.mrb[0].mxu0 %v156
  %v7860 = vpop.f32.mrb[0].mxu0
  %v7861 = vadd.f32 0.0, %v7860
  %v7862 = vpop.f32.mrb[0].mxu0
  %v7863 = vadd.f32 0.0, %v7862
  %v7864 = vpop.f32.mrb[0].mxu0
  %v7865 = vpop.f32.mrb[0].mxu0
  %7866 = vdwg.mxu0
  %7867 = vmatprep.subr.bf16.mxu0 %v6892
  %7868 = vmatpush1.bf16.msra.mxu0 %v6891
  %7869 = vmatprep.subr.bf16.mxu0 %v6902
  %7870 = vmatpush1.bf16.msra.mxu0 %v6901
  %7871 = vmatprep.subr.bf16.mxu0 %v7136
  %7872 = vmatpush1.bf16.msra.mxu0 %v7133
  %7873 = vmatprep.subr.bf16.mxu0 0
  %7874 = vmatpush1.bf16.msra.mxu0 0
  %7875 = vmatprep.subr.bf16.mxu0 0
  %7876 = vmatpush1.bf16.msra.mxu0 0
  %7877 = vmatprep.subr.bf16.mxu0 0
  %7878 = vmatpush1.bf16.msra.mxu0 0
  %7879 = vmatprep.subr.bf16.mxu0 0
  %7880 = vmatpush1.bf16.msra.mxu0 0
  %7881 = vmatprep.subr.bf16.mxu0 0
  %7882 = vmatpush1.bf16.msra.mxu0 0
  %7883 = vmatprep.subr.bf16.mxu0 0
  %7884 = vmatpush1.bf16.msra.mxu0 0
  %7885 = vmatprep.subr.bf16.mxu0 0
  %7886 = vmatpush1.bf16.msra.mxu0 0
  %7887 = vmatprep.subr.bf16.mxu0 0
  %7888 = vmatpush1.bf16.msra.mxu0 0
  %7889 = vmatprep.subr.bf16.mxu0 0
  %7890 = vmatpush1.bf16.msra.mxu0 0
  %7891 = vmatprep.subr.bf16.mxu0 0
  %7892 = vmatpush1.bf16.msra.mxu0 0
  %7893 = vmatprep.subr.bf16.mxu0 0
  %7894 = vmatpush1.bf16.msra.mxu0 0
  %7895 = vmatprep.subr.bf16.mxu0 0
  %7896 = vmatpush1.bf16.msra.mxu0 0
  %7897 = vmatprep.subr.bf16.mxu0 0
  %7898 = vmatpush1.bf16.msra.mxu0 0
  %7899 = vmatprep.mubr.bf16.mxu0 0
  %7900 = vmatmul.mubr.bf16.gmra.mrb[0].mxu0 %v7094
  %v7901 = vpop.f32.mrb[0].mxu0
  %v7902 = vadd.f32 %v7821, %v7901
  %v7903 = vpop.f32.mrb[0].mxu0
  %v7904 = vadd.f32 %v7823, %v7903
  %v7905 = vpop.f32.mrb[0].mxu0
  %v7906 = vadd.f32 %v7825, %v7905
  %v7907 = vpop.f32.mrb[0].mxu0
  %v7908 = vadd.f32 %v7827, %v7907
  %7909 = vmatprep.mubr.bf16.mxu0 0
  %7910 = vmatmul.mubr.bf16.gmra.mrb[0].mxu0 %v7097
  %v7911 = vpop.f32.mrb[0].mxu0
  %v7912 = vadd.f32 %v7831, %v7911
  %v7913 = vpop.f32.mrb[0].mxu0
  %v7914 = vadd.f32 %v7833, %v7913
  %v7915 = vpop.f32.mrb[0].mxu0
  %v7916 = vadd.f32 %v7835, %v7915
  %v7917 = vpop.f32.mrb[0].mxu0
  %v7918 = vadd.f32 %v7837, %v7917
  %7919 = vmatprep.mubr.bf16.mxu0 0
  %7920 = vmatmul.mubr.bf16.gmra.mrb[0].mxu0 %v7100
  %v7921 = vpop.f32.mrb[0].mxu0
  %v7922 = vadd.f32 %v7841, %v7921
  %v7923 = vpop.f32.mrb[0].mxu0
  %v7924 = vadd.f32 %v7843, %v7923
  %v7925 = vpop.f32.mrb[0].mxu0
  %v7926 = vadd.f32 %v7845, %v7925
  %v7927 = vpop.f32.mrb[0].mxu0
  %v7928 = vadd.f32 %v7847, %v7927
  %7929 = vmatprep.mubr.bf16.mxu0 0
  %7930 = vmatmul.mubr.bf16.gmra.mrb[0].mxu0 %v7103
  %v7931 = vpop.f32.mrb[0].mxu0
  %v7932 = vadd.f32 %v7851, %v7931
  %v7933 = vpop.f32.mrb[0].mxu0
  %v7934 = vadd.f32 %v7853, %v7933
  %v7935 = vpop.f32.mrb[0].mxu0
  %v7936 = vadd.f32 %v7855, %v7935
  %v7937 = vpop.f32.mrb[0].mxu0
  %v7938 = vadd.f32 %v7857, %v7937
  %7939 = vmatprep.mubr.bf16.mxu0 0
  %7940 = vmatmul.mubr.bf16.gmra.mrb[0].mxu0 %v7106
  %v7941 = vpop.f32.mrb[0].mxu0
  %v7942 = vadd.f32 %v7861, %v7941
  %v7943 = vpop.f32.mrb[0].mxu0
  %v7944 = vadd.f32 %v7863, %v7943
  %v7945 = vpop.f32.mrb[0].mxu0
  %v7946 = vpop.f32.mrb[0].mxu0
  %7947 = vdwg.mxu0
  %v7948 = vmul.f32 %v7254, %v102
  %v7949 = vmul.f32 %v7256, %v103
  %v7950 = vmul.f32 %v7416, %v104
  %v7951 = vmul.f32 %v7258, %v105
  %v7952 = vmul.f32 %v7260, %v106
  %v7953 = vmul.f32 %v7420, %v107
  %v7954 = vmul.f32 %v7264, %v108
  %v7955 = vmul.f32 %v7266, %v109
  %v7956 = vmul.f32 %v7426, %v110
  %v7957 = vmul.f32 %v7268, %v111
  %v7958 = vmul.f32 %v7270, %v112
  %v7959 = vmul.f32 %v7430, %v113
  %v7960 = vmul.f32 %v7274, %v114
  %v7961 = vmul.f32 %v7276, %v115
  %v7962 = vmul.f32 %v7436, %v116
  %v7963 = vmul.f32 %v7278, %v117
  %v7964 = vmul.f32 %v7280, %v118
  %v7965 = vmul.f32 %v7440, %v119
  %v7966 = vmul.f32 %v7284, %v120
  %v7967 = vmul.f32 %v7286, %v121
  %v7968 = vmul.f32 %v7446, %v122
  %v7969 = vmul.f32 %v7288, %v123
  %v7970 = vmul.f32 %v7290, %v124
  %v7971 = vmul.f32 %v7450, %v125
  %v7972 = vmul.f32 %v7294, %v126
  %v7973 = vmul.f32 %v7296, %v127
  %v7974 = vmul.f32 %v7456, %v128
  %v7975 = vadd.f32 %v7948, %v7949
  %v7976 = vsel %vm1289, %v7950, 0.0
  %v7977 = vadd.f32 %v7975, %v7976
  %7978 = vadd.xlane.f32.xlu0 %v7977
  %v7979 = vpop.xlane.xlu0 %7978
  %v7980 = vadd.f32 %v7951, %v7952
  %v7981 = vsel %vm1289, %v7953, 0.0
  %v7982 = vadd.f32 %v7980, %v7981
  %7983 = vadd.xlane.f32.xlu0 %v7982
  %v7984 = vpop.xlane.xlu0 %7983
  %v7985 = vadd.f32 %v7954, %v7955
  %v7986 = vsel %vm1289, %v7956, 0.0
  %v7987 = vadd.f32 %v7985, %v7986
  %7988 = vadd.xlane.f32.xlu0 %v7987
  %v7989 = vpop.xlane.xlu0 %7988
  %v7990 = vadd.f32 %v7957, %v7958
  %v7991 = vsel %vm1289, %v7959, 0.0
  %v7992 = vadd.f32 %v7990, %v7991
  %7993 = vadd.xlane.f32.xlu0 %v7992
  %v7994 = vpop.xlane.xlu0 %7993
  %v7995 = vadd.f32 %v7960, %v7961
  %v7996 = vsel %vm1289, %v7962, 0.0
  %v7997 = vadd.f32 %v7995, %v7996
  %7998 = vadd.xlane.f32.xlu0 %v7997
  %v7999 = vpop.xlane.xlu0 %7998
  %v8000 = vadd.f32 %v7963, %v7964
  %v8001 = vsel %vm1289, %v7965, 0.0
  %v8002 = vadd.f32 %v8000, %v8001
  %8003 = vadd.xlane.f32.xlu0 %v8002
  %v8004 = vpop.xlane.xlu0 %8003
  %v8005 = vadd.f32 %v7966, %v7967
  %v8006 = vsel %vm1289, %v7968, 0.0
  %v8007 = vadd.f32 %v8005, %v8006
  %8008 = vadd.xlane.f32.xlu0 %v8007
  %v8009 = vpop.xlane.xlu0 %8008
  %v8010 = vadd.f32 %v7969, %v7970
  %v8011 = vsel %vm1289, %v7971, 0.0
  %v8012 = vadd.f32 %v8010, %v8011
  %8013 = vadd.xlane.f32.xlu0 %v8012
  %v8014 = vpop.xlane.xlu0 %8013
  %v8015 = vsel %vm1305, %v7972, 0.0
  %v8016 = vsel %vm1305, %v7973, 0.0
  %v8017 = vadd.f32 %v8015, %v8016
  %v8018 = vsel %vm2216, %v7974, 0.0
  %v8019 = vadd.f32 %v8017, %v8018
  %8020 = vadd.xlane.f32.xlu0 %v8019
  %v8021 = vpop.xlane.xlu0 %8020
  %8049 = vrot.lane.b32.xlu0 %v102, 44
  %v8050 = vpop.permute.xlu0 %8049
  %8051 = vrot.lane.b32.xlu0 %v103, 44
  %v8052 = vpop.permute.xlu0 %8051
  %8053 = vrot.lane.b32.xlu0 %v104, 44
  %v8054 = vpop.permute.xlu0 %8053
  %8055 = vrot.lane.b32.xlu0 %v105, 44
  %v8056 = vpop.permute.xlu0 %8055
  %8057 = vrot.lane.b32.xlu0 %v106, 44
  %v8058 = vpop.permute.xlu0 %8057
  %8059 = vrot.lane.b32.xlu0 %v107, 44
  %v8060 = vpop.permute.xlu0 %8059
  %8061 = vrot.lane.b32.xlu0 %v108, 44
  %v8062 = vpop.permute.xlu0 %8061
  %8063 = vrot.lane.b32.xlu0 %v109, 44
  %v8064 = vpop.permute.xlu0 %8063
  %8065 = vrot.lane.b32.xlu0 %v110, 44
  %v8066 = vpop.permute.xlu0 %8065
  %8067 = vrot.lane.b32.xlu0 %v111, 44
  %v8068 = vpop.permute.xlu0 %8067
  %8069 = vrot.lane.b32.xlu0 %v112, 44
  %v8070 = vpop.permute.xlu0 %8069
  %8071 = vrot.lane.b32.xlu0 %v113, 44
  %v8072 = vpop.permute.xlu0 %8071
  %8073 = vrot.lane.b32.xlu0 %v114, 44
  %v8074 = vpop.permute.xlu0 %8073
  %8075 = vrot.lane.b32.xlu0 %v115, 44
  %v8076 = vpop.permute.xlu0 %8075
  %8077 = vrot.lane.b32.xlu0 %v116, 44
  %v8078 = vpop.permute.xlu0 %8077
  %8079 = vrot.lane.b32.xlu0 %v117, 44
  %v8080 = vpop.permute.xlu0 %8079
  %8081 = vrot.lane.b32.xlu0 %v118, 44
  %v8082 = vpop.permute.xlu0 %8081
  %8083 = vrot.lane.b32.xlu0 %v119, 44
  %v8084 = vpop.permute.xlu0 %8083
  %8085 = vrot.lane.b32.xlu0 %v120, 44
  %v8086 = vpop.permute.xlu0 %8085
  %8087 = vrot.lane.b32.xlu0 %v121, 44
  %v8088 = vpop.permute.xlu0 %8087
  %8089 = vrot.lane.b32.xlu0 %v122, 44
  %v8090 = vpop.permute.xlu0 %8089
  %8091 = vrot.lane.b32.xlu0 %v123, 44
  %v8092 = vpop.permute.xlu0 %8091
  %8093 = vrot.lane.b32.xlu0 %v124, 44
  %v8094 = vpop.permute.xlu0 %8093
  %8095 = vrot.lane.b32.xlu0 %v125, 44
  %v8096 = vpop.permute.xlu0 %8095
  %8097 = vrot.lane.b32.xlu0 %v126, 44
  %v8098 = vpop.permute.xlu0 %8097
  %8099 = vrot.lane.b32.xlu0 %v127, 44
  %v8100 = vpop.permute.xlu0 %8099
  %8101 = vrot.lane.b32.xlu0 %v128, 44
  %v8102 = vpop.permute.xlu0 %8101
  %v8103 = vsel %vm1289, %v8050, %v8052
  %v8104 = vsel %vm1289, %v8052, %v8054
  %v8105 = vsel %vm1289, %v8056, %v8058
  %v8106 = vsel %vm1289, %v8058, %v8060
  %v8107 = vsel %vm1289, %v8062, %v8064
  %v8108 = vsel %vm1289, %v8064, %v8066
  %v8109 = vsel %vm1289, %v8068, %v8070
  %v8110 = vsel %vm1289, %v8070, %v8072
  %v8111 = vsel %vm1289, %v8074, %v8076
  %v8112 = vsel %vm1289, %v8076, %v8078
  %v8113 = vsel %vm1289, %v8080, %v8082
  %v8114 = vsel %vm1289, %v8082, %v8084
  %v8115 = vsel %vm1289, %v8086, %v8088
  %v8116 = vsel %vm1289, %v8088, %v8090
  %v8117 = vsel %vm1289, %v8092, %v8094
  %v8118 = vsel %vm1289, %v8094, %v8096
  %v8119 = vsel %vm1289, %v8098, %v8100
  %v8120 = vsel %vm1289, %v8100, %v8102
  %v8148 = vmul.f32 %v7416, %v8050
  %v8149 = vmul.f32 %v7418, %v8103
  %v8150 = vmul.f32 %v7578, %v8104
  %v8151 = vmul.f32 %v7420, %v8056
  %v8152 = vmul.f32 %v7422, %v8105
  %v8153 = vmul.f32 %v7582, %v8106
  %v8154 = vmul.f32 %v7426, %v8062
  %v8155 = vmul.f32 %v7428, %v8107
  %v8156 = vmul.f32 %v7588, %v8108
  %v8157 = vmul.f32 %v7430, %v8068
  %v8158 = vmul.f32 %v7432, %v8109
  %v8159 = vmul.f32 %v7592, %v8110
  %v8160 = vmul.f32 %v7436, %v8074
  %v8161 = vmul.f32 %v7438, %v8111
  %v8162 = vmul.f32 %v7598, %v8112
  %v8163 = vmul.f32 %v7440, %v8080
  %v8164 = vmul.f32 %v7442, %v8113
  %v8165 = vmul.f32 %v7602, %v8114
  %v8166 = vmul.f32 %v7446, %v8086
  %v8167 = vmul.f32 %v7448, %v8115
  %v8168 = vmul.f32 %v7608, %v8116
  %v8169 = vmul.f32 %v7450, %v8092
  %v8170 = vmul.f32 %v7452, %v8117
  %v8171 = vmul.f32 %v7612, %v8118
  %v8172 = vmul.f32 %v7456, %v8098
  %v8173 = vmul.f32 %v7458, %v8119
  %v8174 = vmul.f32 %v7618, %v8120
  %8202 = vrot.lane.b32.xlu0 %v8148, 84
  %v8203 = vpop.permute.xlu0 %8202
  %8204 = vrot.lane.b32.xlu0 %v8149, 84
  %v8205 = vpop.permute.xlu0 %8204
  %8206 = vrot.lane.b32.xlu0 %v8150, 84
  %v8207 = vpop.permute.xlu0 %8206
  %8208 = vrot.lane.b32.xlu0 %v8151, 84
  %v8209 = vpop.permute.xlu0 %8208
  %8210 = vrot.lane.b32.xlu0 %v8152, 84
  %v8211 = vpop.permute.xlu0 %8210
  %8212 = vrot.lane.b32.xlu0 %v8153, 84
  %v8213 = vpop.permute.xlu0 %8212
  %8214 = vrot.lane.b32.xlu0 %v8154, 84
  %v8215 = vpop.permute.xlu0 %8214
  %8216 = vrot.lane.b32.xlu0 %v8155, 84
  %v8217 = vpop.permute.xlu0 %8216
  %8218 = vrot.lane.b32.xlu0 %v8156, 84
  %v8219 = vpop.permute.xlu0 %8218
  %8220 = vrot.lane.b32.xlu0 %v8157, 84
  %v8221 = vpop.permute.xlu0 %8220
  %8222 = vrot.lane.b32.xlu0 %v8158, 84
  %v8223 = vpop.permute.xlu0 %8222
  %8224 = vrot.lane.b32.xlu0 %v8159, 84
  %v8225 = vpop.permute.xlu0 %8224
  %8226 = vrot.lane.b32.xlu0 %v8160, 84
  %v8227 = vpop.permute.xlu0 %8226
  %8228 = vrot.lane.b32.xlu0 %v8161, 84
  %v8229 = vpop.permute.xlu0 %8228
  %8230 = vrot.lane.b32.xlu0 %v8162, 84
  %v8231 = vpop.permute.xlu0 %8230
  %8232 = vrot.lane.b32.xlu0 %v8163, 84
  %v8233 = vpop.permute.xlu0 %8232
  %8234 = vrot.lane.b32.xlu0 %v8164, 84
  %v8235 = vpop.permute.xlu0 %8234
  %8236 = vrot.lane.b32.xlu0 %v8165, 84
  %v8237 = vpop.permute.xlu0 %8236
  %8238 = vrot.lane.b32.xlu0 %v8166, 84
  %v8239 = vpop.permute.xlu0 %8238
  %8240 = vrot.lane.b32.xlu0 %v8167, 84
  %v8241 = vpop.permute.xlu0 %8240
  %8242 = vrot.lane.b32.xlu0 %v8168, 84
  %v8243 = vpop.permute.xlu0 %8242
  %8244 = vrot.lane.b32.xlu0 %v8169, 84
  %v8245 = vpop.permute.xlu0 %8244
  %8246 = vrot.lane.b32.xlu0 %v8170, 84
  %v8247 = vpop.permute.xlu0 %8246
  %8248 = vrot.lane.b32.xlu0 %v8171, 84
  %v8249 = vpop.permute.xlu0 %8248
  %8250 = vrot.lane.b32.xlu0 %v8172, 84
  %v8251 = vpop.permute.xlu0 %8250
  %8252 = vrot.lane.b32.xlu0 %v8173, 84
  %v8253 = vpop.permute.xlu0 %8252
  %8254 = vrot.lane.b32.xlu0 %v8174, 84
  %v8255 = vpop.permute.xlu0 %8254
  %v8256 = vsel %vm2455, %v8203, %v8205
  %v8257 = vsel %vm2455, %v8205, %v8207
  %v8258 = vsel %vm2455, %v8209, %v8211
  %v8259 = vsel %vm2455, %v8211, %v8213
  %v8260 = vsel %vm2455, %v8215, %v8217
  %v8261 = vsel %vm2455, %v8217, %v8219
  %v8262 = vsel %vm2455, %v8221, %v8223
  %v8263 = vsel %vm2455, %v8223, %v8225
  %v8264 = vsel %vm2455, %v8227, %v8229
  %v8265 = vsel %vm2455, %v8229, %v8231
  %v8266 = vsel %vm2455, %v8233, %v8235
  %v8267 = vsel %vm2455, %v8235, %v8237
  %v8268 = vsel %vm2455, %v8239, %v8241
  %v8269 = vsel %vm2455, %v8241, %v8243
  %v8270 = vsel %vm2455, %v8245, %v8247
  %v8271 = vsel %vm2455, %v8247, %v8249
  %v8272 = vsel %vm2455, %v8251, %v8253
  %v8273 = vsel %vm2455, %v8253, %v8255
  %v8301 = vadd.f32 %v8256, %v8257
  %v8302 = vsel %vm1289, %v8207, 0.0
  %v8303 = vadd.f32 %v8301, %v8302
  %8304 = vadd.xlane.f32.xlu0 %v8303
  %v8305 = vpop.xlane.xlu0 %8304
  %v8306 = vadd.f32 %v8258, %v8259
  %v8307 = vsel %vm1289, %v8213, 0.0
  %v8308 = vadd.f32 %v8306, %v8307
  %8309 = vadd.xlane.f32.xlu0 %v8308
  %v8310 = vpop.xlane.xlu0 %8309
  %v8311 = vadd.f32 %v8260, %v8261
  %v8312 = vsel %vm1289, %v8219, 0.0
  %v8313 = vadd.f32 %v8311, %v8312
  %8314 = vadd.xlane.f32.xlu0 %v8313
  %v8315 = vpop.xlane.xlu0 %8314
  %v8316 = vadd.f32 %v8262, %v8263
  %v8317 = vsel %vm1289, %v8225, 0.0
  %v8318 = vadd.f32 %v8316, %v8317
  %8319 = vadd.xlane.f32.xlu0 %v8318
  %v8320 = vpop.xlane.xlu0 %8319
  %v8321 = vadd.f32 %v8264, %v8265
  %v8322 = vsel %vm1289, %v8231, 0.0
  %v8323 = vadd.f32 %v8321, %v8322
  %8324 = vadd.xlane.f32.xlu0 %v8323
  %v8325 = vpop.xlane.xlu0 %8324
  %v8326 = vadd.f32 %v8266, %v8267
  %v8327 = vsel %vm1289, %v8237, 0.0
  %v8328 = vadd.f32 %v8326, %v8327
  %8329 = vadd.xlane.f32.xlu0 %v8328
  %v8330 = vpop.xlane.xlu0 %8329
  %v8331 = vadd.f32 %v8268, %v8269
  %v8332 = vsel %vm1289, %v8243, 0.0
  %v8333 = vadd.f32 %v8331, %v8332
  %8334 = vadd.xlane.f32.xlu0 %v8333
  %v8335 = vpop.xlane.xlu0 %8334
  %v8336 = vadd.f32 %v8270, %v8271
  %v8337 = vsel %vm1289, %v8249, 0.0
  %v8338 = vadd.f32 %v8336, %v8337
  %8339 = vadd.xlane.f32.xlu0 %v8338
  %v8340 = vpop.xlane.xlu0 %8339
  %v8341 = vsel %vm1305, %v8272, 0.0
  %v8342 = vsel %vm1305, %v8273, 0.0
  %v8343 = vadd.f32 %v8341, %v8342
  %v8344 = vsel %vm2216, %v8255, 0.0
  %v8345 = vadd.f32 %v8343, %v8344
  %8346 = vadd.xlane.f32.xlu0 %v8345
  %v8347 = vpop.xlane.xlu0 %8346
  %8348 = vrot.lane.b32.xlu0 %v102, 88
  %v8349 = vpop.permute.xlu0 %8348
  %8350 = vrot.lane.b32.xlu0 %v103, 88
  %v8351 = vpop.permute.xlu0 %8350
  %8352 = vrot.lane.b32.xlu0 %v104, 88
  %v8353 = vpop.permute.xlu0 %8352
  %8354 = vrot.lane.b32.xlu0 %v105, 88
  %v8355 = vpop.permute.xlu0 %8354
  %8356 = vrot.lane.b32.xlu0 %v106, 88
  %v8357 = vpop.permute.xlu0 %8356
  %8358 = vrot.lane.b32.xlu0 %v107, 88
  %v8359 = vpop.permute.xlu0 %8358
  %8360 = vrot.lane.b32.xlu0 %v108, 88
  %v8361 = vpop.permute.xlu0 %8360
  %8362 = vrot.lane.b32.xlu0 %v109, 88
  %v8363 = vpop.permute.xlu0 %8362
  %8364 = vrot.lane.b32.xlu0 %v110, 88
  %v8365 = vpop.permute.xlu0 %8364
  %8366 = vrot.lane.b32.xlu0 %v111, 88
  %v8367 = vpop.permute.xlu0 %8366
  %8368 = vrot.lane.b32.xlu0 %v112, 88
  %v8369 = vpop.permute.xlu0 %8368
  %8370 = vrot.lane.b32.xlu0 %v113, 88
  %v8371 = vpop.permute.xlu0 %8370
  %8372 = vrot.lane.b32.xlu0 %v114, 88
  %v8373 = vpop.permute.xlu0 %8372
  %8374 = vrot.lane.b32.xlu0 %v115, 88
  %v8375 = vpop.permute.xlu0 %8374
  %8376 = vrot.lane.b32.xlu0 %v116, 88
  %v8377 = vpop.permute.xlu0 %8376
  %8378 = vrot.lane.b32.xlu0 %v117, 88
  %v8379 = vpop.permute.xlu0 %8378
  %8380 = vrot.lane.b32.xlu0 %v118, 88
  %v8381 = vpop.permute.xlu0 %8380
  %8382 = vrot.lane.b32.xlu0 %v119, 88
  %v8383 = vpop.permute.xlu0 %8382
  %8384 = vrot.lane.b32.xlu0 %v120, 88
  %v8385 = vpop.permute.xlu0 %8384
  %8386 = vrot.lane.b32.xlu0 %v121, 88
  %v8387 = vpop.permute.xlu0 %8386
  %8388 = vrot.lane.b32.xlu0 %v122, 88
  %v8389 = vpop.permute.xlu0 %8388
  %8390 = vrot.lane.b32.xlu0 %v123, 88
  %v8391 = vpop.permute.xlu0 %8390
  %8392 = vrot.lane.b32.xlu0 %v124, 88
  %v8393 = vpop.permute.xlu0 %8392
  %8394 = vrot.lane.b32.xlu0 %v125, 88
  %v8395 = vpop.permute.xlu0 %8394
  %8396 = vrot.lane.b32.xlu0 %v126, 88
  %v8397 = vpop.permute.xlu0 %8396
  %8398 = vrot.lane.b32.xlu0 %v127, 88
  %v8399 = vpop.permute.xlu0 %8398
  %8400 = vrot.lane.b32.xlu0 %v128, 88
  %v8401 = vpop.permute.xlu0 %8400
  %v8402 = vsel %vm2602, %v8349, %v8351
  %v8403 = vsel %vm2602, %v8351, %v8353
  %v8404 = vsel %vm2602, %v8355, %v8357
  %v8405 = vsel %vm2602, %v8357, %v8359
  %v8406 = vsel %vm2602, %v8361, %v8363
  %v8407 = vsel %vm2602, %v8363, %v8365
  %v8408 = vsel %vm2602, %v8367, %v8369
  %v8409 = vsel %vm2602, %v8369, %v8371
  %v8410 = vsel %vm2602, %v8373, %v8375
  %v8411 = vsel %vm2602, %v8375, %v8377
  %v8412 = vsel %vm2602, %v8379, %v8381
  %v8413 = vsel %vm2602, %v8381, %v8383
  %v8414 = vsel %vm2602, %v8385, %v8387
  %v8415 = vsel %vm2602, %v8387, %v8389
  %v8416 = vsel %vm2602, %v8391, %v8393
  %v8417 = vsel %vm2602, %v8393, %v8395
  %v8418 = vsel %vm2602, %v8397, %v8399
  %v8419 = vsel %vm2602, %v8399, %v8401
  %v8456 = vmul.f32 %v7578, %v8349
  %v8457 = vmul.f32 %v7580, %v8402
  %v8458 = vmul.f32 %v7740, %v8403
  %v8459 = vmul.f32 %v7742, %v8353
  %v8460 = vmul.f32 %v7582, %v8355
  %v8461 = vmul.f32 %v7584, %v8404
  %v8462 = vmul.f32 %v7744, %v8405
  %v8463 = vmul.f32 %v7746, %v8359
  %v8464 = vmul.f32 %v7588, %v8361
  %v8465 = vmul.f32 %v7590, %v8406
  %v8466 = vmul.f32 %v7750, %v8407
  %v8467 = vmul.f32 %v7752, %v8365
  %v8468 = vmul.f32 %v7592, %v8367
  %v8469 = vmul.f32 %v7594, %v8408
  %v8470 = vmul.f32 %v7754, %v8409
  %v8471 = vmul.f32 %v7756, %v8371
  %v8472 = vmul.f32 %v7598, %v8373
  %v8473 = vmul.f32 %v7600, %v8410
  %v8474 = vmul.f32 %v7760, %v8411
  %v8475 = vmul.f32 %v7762, %v8377
  %v8476 = vmul.f32 %v7602, %v8379
  %v8477 = vmul.f32 %v7604, %v8412
  %v8478 = vmul.f32 %v7764, %v8413
  %v8479 = vmul.f32 %v7766, %v8383
  %v8480 = vmul.f32 %v7608, %v8385
  %v8481 = vmul.f32 %v7610, %v8414
  %v8482 = vmul.f32 %v7770, %v8415
  %v8483 = vmul.f32 %v7772, %v8389
  %v8484 = vmul.f32 %v7612, %v8391
  %v8485 = vmul.f32 %v7614, %v8416
  %v8486 = vmul.f32 %v7774, %v8417
  %v8487 = vmul.f32 %v7776, %v8395
  %v8488 = vmul.f32 %v7618, %v8397
  %v8489 = vmul.f32 %v7620, %v8418
  %v8490 = vmul.f32 %v7780, %v8419
  %v8491 = vmul.f32 %v7782, %v8401
  %8528 = vrot.lane.b32.xlu0 %v8456, 40
  %v8529 = vpop.permute.xlu0 %8528
  %8530 = vrot.lane.b32.xlu0 %v8457, 40
  %v8531 = vpop.permute.xlu0 %8530
  %8532 = vrot.lane.b32.xlu0 %v8458, 40
  %v8533 = vpop.permute.xlu0 %8532
  %8534 = vrot.lane.b32.xlu0 %v8459, 40
  %v8535 = vpop.permute.xlu0 %8534
  %8536 = vrot.lane.b32.xlu0 %v8460, 40
  %v8537 = vpop.permute.xlu0 %8536
  %8538 = vrot.lane.b32.xlu0 %v8461, 40
  %v8539 = vpop.permute.xlu0 %8538
  %8540 = vrot.lane.b32.xlu0 %v8462, 40
  %v8541 = vpop.permute.xlu0 %8540
  %8542 = vrot.lane.b32.xlu0 %v8463, 40
  %v8543 = vpop.permute.xlu0 %8542
  %8544 = vrot.lane.b32.xlu0 %v8464, 40
  %v8545 = vpop.permute.xlu0 %8544
  %8546 = vrot.lane.b32.xlu0 %v8465, 40
  %v8547 = vpop.permute.xlu0 %8546
  %8548 = vrot.lane.b32.xlu0 %v8466, 40
  %v8549 = vpop.permute.xlu0 %8548
  %8550 = vrot.lane.b32.xlu0 %v8467, 40
  %v8551 = vpop.permute.xlu0 %8550
  %8552 = vrot.lane.b32.xlu0 %v8468, 40
  %v8553 = vpop.permute.xlu0 %8552
  %8554 = vrot.lane.b32.xlu0 %v8469, 40
  %v8555 = vpop.permute.xlu0 %8554
  %8556 = vrot.lane.b32.xlu0 %v8470, 40
  %v8557 = vpop.permute.xlu0 %8556
  %8558 = vrot.lane.b32.xlu0 %v8471, 40
  %v8559 = vpop.permute.xlu0 %8558
  %8560 = vrot.lane.b32.xlu0 %v8472, 40
  %v8561 = vpop.permute.xlu0 %8560
  %8562 = vrot.lane.b32.xlu0 %v8473, 40
  %v8563 = vpop.permute.xlu0 %8562
  %8564 = vrot.lane.b32.xlu0 %v8474, 40
  %v8565 = vpop.permute.xlu0 %8564
  %8566 = vrot.lane.b32.xlu0 %v8475, 40
  %v8567 = vpop.permute.xlu0 %8566
  %8568 = vrot.lane.b32.xlu0 %v8476, 40
  %v8569 = vpop.permute.xlu0 %8568
  %8570 = vrot.lane.b32.xlu0 %v8477, 40
  %v8571 = vpop.permute.xlu0 %8570
  %8572 = vrot.lane.b32.xlu0 %v8478, 40
  %v8573 = vpop.permute.xlu0 %8572
  %8574 = vrot.lane.b32.xlu0 %v8479, 40
  %v8575 = vpop.permute.xlu0 %8574
  %8576 = vrot.lane.b32.xlu0 %v8480, 40
  %v8577 = vpop.permute.xlu0 %8576
  %8578 = vrot.lane.b32.xlu0 %v8481, 40
  %v8579 = vpop.permute.xlu0 %8578
  %8580 = vrot.lane.b32.xlu0 %v8482, 40
  %v8581 = vpop.permute.xlu0 %8580
  %8582 = vrot.lane.b32.xlu0 %v8483, 40
  %v8583 = vpop.permute.xlu0 %8582
  %8584 = vrot.lane.b32.xlu0 %v8484, 40
  %v8585 = vpop.permute.xlu0 %8584
  %8586 = vrot.lane.b32.xlu0 %v8485, 40
  %v8587 = vpop.permute.xlu0 %8586
  %8588 = vrot.lane.b32.xlu0 %v8486, 40
  %v8589 = vpop.permute.xlu0 %8588
  %8590 = vrot.lane.b32.xlu0 %v8487, 40
  %v8591 = vpop.permute.xlu0 %8590
  %8592 = vrot.lane.b32.xlu0 %v8488, 40
  %v8593 = vpop.permute.xlu0 %8592
  %8594 = vrot.lane.b32.xlu0 %v8489, 40
  %v8595 = vpop.permute.xlu0 %8594
  %8596 = vrot.lane.b32.xlu0 %v8490, 40
  %v8597 = vpop.permute.xlu0 %8596
  %8598 = vrot.lane.b32.xlu0 %v8491, 40
  %v8599 = vpop.permute.xlu0 %8598
  %v8600 = vsel %vm2801, %v8529, %v8531
  %v8601 = vsel %vm2801, %v8531, %v8533
  %v8602 = vsel %vm2801, %v8533, %v8535
  %v8603 = vsel %vm2801, %v8537, %v8539
  %v8604 = vsel %vm2801, %v8539, %v8541
  %v8605 = vsel %vm2801, %v8541, %v8543
  %v8606 = vsel %vm2801, %v8545, %v8547
  %v8607 = vsel %vm2801, %v8547, %v8549
  %v8608 = vsel %vm2801, %v8549, %v8551
  %v8609 = vsel %vm2801, %v8553, %v8555
  %v8610 = vsel %vm2801, %v8555, %v8557
  %v8611 = vsel %vm2801, %v8557, %v8559
  %v8612 = vsel %vm2801, %v8561, %v8563
  %v8613 = vsel %vm2801, %v8563, %v8565
  %v8614 = vsel %vm2801, %v8565, %v8567
  %v8615 = vsel %vm2801, %v8569, %v8571
  %v8616 = vsel %vm2801, %v8571, %v8573
  %v8617 = vsel %vm2801, %v8573, %v8575
  %v8618 = vsel %vm2801, %v8577, %v8579
  %v8619 = vsel %vm2801, %v8579, %v8581
  %v8620 = vsel %vm2801, %v8581, %v8583
  %v8621 = vsel %vm2801, %v8585, %v8587
  %v8622 = vsel %vm2801, %v8587, %v8589
  %v8623 = vsel %vm2801, %v8589, %v8591
  %v8624 = vsel %vm2801, %v8593, %v8595
  %v8625 = vsel %vm2801, %v8595, %v8597
  %v8626 = vsel %vm2801, %v8597, %v8599
  %v8654 = vadd.f32 %v8600, %v8601
  %v8655 = vsel %vm1289, %v8602, 0.0
  %v8656 = vadd.f32 %v8654, %v8655
  %8657 = vadd.xlane.f32.xlu0 %v8656
  %v8658 = vpop.xlane.xlu0 %8657
  %v8659 = vadd.f32 %v8603, %v8604
  %v8660 = vsel %vm1289, %v8605, 0.0
  %v8661 = vadd.f32 %v8659, %v8660
  %8662 = vadd.xlane.f32.xlu0 %v8661
  %v8663 = vpop.xlane.xlu0 %8662
  %v8664 = vadd.f32 %v8606, %v8607
  %v8665 = vsel %vm1289, %v8608, 0.0
  %v8666 = vadd.f32 %v8664, %v8665
  %8667 = vadd.xlane.f32.xlu0 %v8666
  %v8668 = vpop.xlane.xlu0 %8667
  %v8669 = vadd.f32 %v8609, %v8610
  %v8670 = vsel %vm1289, %v8611, 0.0
  %v8671 = vadd.f32 %v8669, %v8670
  %8672 = vadd.xlane.f32.xlu0 %v8671
  %v8673 = vpop.xlane.xlu0 %8672
  %v8674 = vadd.f32 %v8612, %v8613
  %v8675 = vsel %vm1289, %v8614, 0.0
  %v8676 = vadd.f32 %v8674, %v8675
  %8677 = vadd.xlane.f32.xlu0 %v8676
  %v8678 = vpop.xlane.xlu0 %8677
  %v8679 = vadd.f32 %v8615, %v8616
  %v8680 = vsel %vm1289, %v8617, 0.0
  %v8681 = vadd.f32 %v8679, %v8680
  %8682 = vadd.xlane.f32.xlu0 %v8681
  %v8683 = vpop.xlane.xlu0 %8682
  %v8684 = vadd.f32 %v8618, %v8619
  %v8685 = vsel %vm1289, %v8620, 0.0
  %v8686 = vadd.f32 %v8684, %v8685
  %8687 = vadd.xlane.f32.xlu0 %v8686
  %v8688 = vpop.xlane.xlu0 %8687
  %v8689 = vadd.f32 %v8621, %v8622
  %v8690 = vsel %vm1289, %v8623, 0.0
  %v8691 = vadd.f32 %v8689, %v8690
  %8692 = vadd.xlane.f32.xlu0 %v8691
  %v8693 = vpop.xlane.xlu0 %8692
  %v8694 = vsel %vm1305, %v8624, 0.0
  %v8695 = vsel %vm1305, %v8625, 0.0
  %v8696 = vadd.f32 %v8694, %v8695
  %v8697 = vsel %vm2216, %v8626, 0.0
  %v8698 = vadd.f32 %v8696, %v8697
  %8699 = vadd.xlane.f32.xlu0 %v8698
  %v8700 = vpop.xlane.xlu0 %8699
  %8701 = vrot.lane.b32.xlu0 %v102, 4
  %v8702 = vpop.permute.xlu0 %8701
  %8703 = vrot.lane.b32.xlu0 %v103, 4
  %v8704 = vpop.permute.xlu0 %8703
  %8705 = vrot.lane.b32.xlu0 %v104, 4
  %v8706 = vpop.permute.xlu0 %8705
  %8707 = vrot.lane.b32.xlu0 %v105, 4
  %v8708 = vpop.permute.xlu0 %8707
  %8709 = vrot.lane.b32.xlu0 %v106, 4
  %v8710 = vpop.permute.xlu0 %8709
  %8711 = vrot.lane.b32.xlu0 %v107, 4
  %v8712 = vpop.permute.xlu0 %8711
  %8713 = vrot.lane.b32.xlu0 %v108, 4
  %v8714 = vpop.permute.xlu0 %8713
  %8715 = vrot.lane.b32.xlu0 %v109, 4
  %v8716 = vpop.permute.xlu0 %8715
  %8717 = vrot.lane.b32.xlu0 %v110, 4
  %v8718 = vpop.permute.xlu0 %8717
  %8719 = vrot.lane.b32.xlu0 %v111, 4
  %v8720 = vpop.permute.xlu0 %8719
  %8721 = vrot.lane.b32.xlu0 %v112, 4
  %v8722 = vpop.permute.xlu0 %8721
  %8723 = vrot.lane.b32.xlu0 %v113, 4
  %v8724 = vpop.permute.xlu0 %8723
  %8725 = vrot.lane.b32.xlu0 %v114, 4
  %v8726 = vpop.permute.xlu0 %8725
  %8727 = vrot.lane.b32.xlu0 %v115, 4
  %v8728 = vpop.permute.xlu0 %8727
  %8729 = vrot.lane.b32.xlu0 %v116, 4
  %v8730 = vpop.permute.xlu0 %8729
  %8731 = vrot.lane.b32.xlu0 %v117, 4
  %v8732 = vpop.permute.xlu0 %8731
  %8733 = vrot.lane.b32.xlu0 %v118, 4
  %v8734 = vpop.permute.xlu0 %8733
  %8735 = vrot.lane.b32.xlu0 %v119, 4
  %v8736 = vpop.permute.xlu0 %8735
  %8737 = vrot.lane.b32.xlu0 %v120, 4
  %v8738 = vpop.permute.xlu0 %8737
  %8739 = vrot.lane.b32.xlu0 %v121, 4
  %v8740 = vpop.permute.xlu0 %8739
  %8741 = vrot.lane.b32.xlu0 %v122, 4
  %v8742 = vpop.permute.xlu0 %8741
  %8743 = vrot.lane.b32.xlu0 %v123, 4
  %v8744 = vpop.permute.xlu0 %8743
  %8745 = vrot.lane.b32.xlu0 %v124, 4
  %v8746 = vpop.permute.xlu0 %8745
  %8747 = vrot.lane.b32.xlu0 %v125, 4
  %v8748 = vpop.permute.xlu0 %8747
  %8749 = vrot.lane.b32.xlu0 %v126, 4
  %v8750 = vpop.permute.xlu0 %8749
  %8751 = vrot.lane.b32.xlu0 %v127, 4
  %v8752 = vpop.permute.xlu0 %8751
  %8753 = vrot.lane.b32.xlu0 %v128, 4
  %v8754 = vpop.permute.xlu0 %8753
  %v8755 = vsel %vm2957, %v8702, %v8704
  %v8756 = vsel %vm2957, %v8704, %v8706
  %v8757 = vsel %vm2957, %v8708, %v8710
  %v8758 = vsel %vm2957, %v8710, %v8712
  %v8759 = vsel %vm2957, %v8714, %v8716
  %v8760 = vsel %vm2957, %v8716, %v8718
  %v8761 = vsel %vm2957, %v8720, %v8722
  %v8762 = vsel %vm2957, %v8722, %v8724
  %v8763 = vsel %vm2957, %v8726, %v8728
  %v8764 = vsel %vm2957, %v8728, %v8730
  %v8765 = vsel %vm2957, %v8732, %v8734
  %v8766 = vsel %vm2957, %v8734, %v8736
  %v8767 = vsel %vm2957, %v8738, %v8740
  %v8768 = vsel %vm2957, %v8740, %v8742
  %v8769 = vsel %vm2957, %v8744, %v8746
  %v8770 = vsel %vm2957, %v8746, %v8748
  %v8771 = vsel %vm2957, %v8750, %v8752
  %v8772 = vsel %vm2957, %v8752, %v8754
  %v8800 = vmul.f32 %v7742, %v8702
  %v8801 = vmul.f32 %v7902, %v8755
  %v8802 = vmul.f32 %v7904, %v8756
  %v8803 = vmul.f32 %v7746, %v8708
  %v8804 = vmul.f32 %v7906, %v8757
  %v8805 = vmul.f32 %v7908, %v8758
  %v8806 = vmul.f32 %v7752, %v8714
  %v8807 = vmul.f32 %v7912, %v8759
  %v8808 = vmul.f32 %v7914, %v8760
  %v8809 = vmul.f32 %v7756, %v8720
  %v8810 = vmul.f32 %v7916, %v8761
  %v8811 = vmul.f32 %v7918, %v8762
  %v8812 = vmul.f32 %v7762, %v8726
  %v8813 = vmul.f32 %v7922, %v8763
  %v8814 = vmul.f32 %v7924, %v8764
  %v8815 = vmul.f32 %v7766, %v8732
  %v8816 = vmul.f32 %v7926, %v8765
  %v8817 = vmul.f32 %v7928, %v8766
  %v8818 = vmul.f32 %v7772, %v8738
  %v8819 = vmul.f32 %v7932, %v8767
  %v8820 = vmul.f32 %v7934, %v8768
  %v8821 = vmul.f32 %v7776, %v8744
  %v8822 = vmul.f32 %v7936, %v8769
  %v8823 = vmul.f32 %v7938, %v8770
  %v8824 = vmul.f32 %v7782, %v8750
  %v8825 = vmul.f32 %v7942, %v8771
  %v8826 = vmul.f32 %v7944, %v8772
  %8854 = vrot.lane.b32.xlu0 %v8800, 124
  %v8855 = vpop.permute.xlu0 %8854
  %8856 = vrot.lane.b32.xlu0 %v8801, 124
  %v8857 = vpop.permute.xlu0 %8856
  %8858 = vrot.lane.b32.xlu0 %v8802, 124
  %v8859 = vpop.permute.xlu0 %8858
  %8860 = vrot.lane.b32.xlu0 %v8803, 124
  %v8861 = vpop.permute.xlu0 %8860
  %8862 = vrot.lane.b32.xlu0 %v8804, 124
  %v8863 = vpop.permute.xlu0 %8862
  %8864 = vrot.lane.b32.xlu0 %v8805, 124
  %v8865 = vpop.permute.xlu0 %8864
  %8866 = vrot.lane.b32.xlu0 %v8806, 124
  %v8867 = vpop.permute.xlu0 %8866
  %8868 = vrot.lane.b32.xlu0 %v8807, 124
  %v8869 = vpop.permute.xlu0 %8868
  %8870 = vrot.lane.b32.xlu0 %v8808, 124
  %v8871 = vpop.permute.xlu0 %8870
  %8872 = vrot.lane.b32.xlu0 %v8809, 124
  %v8873 = vpop.permute.xlu0 %8872
  %8874 = vrot.lane.b32.xlu0 %v8810, 124
  %v8875 = vpop.permute.xlu0 %8874
  %8876 = vrot.lane.b32.xlu0 %v8811, 124
  %v8877 = vpop.permute.xlu0 %8876
  %8878 = vrot.lane.b32.xlu0 %v8812, 124
  %v8879 = vpop.permute.xlu0 %8878
  %8880 = vrot.lane.b32.xlu0 %v8813, 124
  %v8881 = vpop.permute.xlu0 %8880
  %8882 = vrot.lane.b32.xlu0 %v8814, 124
  %v8883 = vpop.permute.xlu0 %8882
  %8884 = vrot.lane.b32.xlu0 %v8815, 124
  %v8885 = vpop.permute.xlu0 %8884
  %8886 = vrot.lane.b32.xlu0 %v8816, 124
  %v8887 = vpop.permute.xlu0 %8886
  %8888 = vrot.lane.b32.xlu0 %v8817, 124
  %v8889 = vpop.permute.xlu0 %8888
  %8890 = vrot.lane.b32.xlu0 %v8818, 124
  %v8891 = vpop.permute.xlu0 %8890
  %8892 = vrot.lane.b32.xlu0 %v8819, 124
  %v8893 = vpop.permute.xlu0 %8892
  %8894 = vrot.lane.b32.xlu0 %v8820, 124
  %v8895 = vpop.permute.xlu0 %8894
  %8896 = vrot.lane.b32.xlu0 %v8821, 124
  %v8897 = vpop.permute.xlu0 %8896
  %8898 = vrot.lane.b32.xlu0 %v8822, 124
  %v8899 = vpop.permute.xlu0 %8898
  %8900 = vrot.lane.b32.xlu0 %v8823, 124
  %v8901 = vpop.permute.xlu0 %8900
  %8902 = vrot.lane.b32.xlu0 %v8824, 124
  %v8903 = vpop.permute.xlu0 %8902
  %8904 = vrot.lane.b32.xlu0 %v8825, 124
  %v8905 = vpop.permute.xlu0 %8904
  %8906 = vrot.lane.b32.xlu0 %v8826, 124
  %v8907 = vpop.permute.xlu0 %8906
  %v8908 = vsel %vm3111, %v8855, %v8857
  %v8909 = vsel %vm3111, %v8857, %v8859
  %v8910 = vsel %vm3111, %v8861, %v8863
  %v8911 = vsel %vm3111, %v8863, %v8865
  %v8912 = vsel %vm3111, %v8867, %v8869
  %v8913 = vsel %vm3111, %v8869, %v8871
  %v8914 = vsel %vm3111, %v8873, %v8875
  %v8915 = vsel %vm3111, %v8875, %v8877
  %v8916 = vsel %vm3111, %v8879, %v8881
  %v8917 = vsel %vm3111, %v8881, %v8883
  %v8918 = vsel %vm3111, %v8885, %v8887
  %v8919 = vsel %vm3111, %v8887, %v8889
  %v8920 = vsel %vm3111, %v8891, %v8893
  %v8921 = vsel %vm3111, %v8893, %v8895
  %v8922 = vsel %vm3111, %v8897, %v8899
  %v8923 = vsel %vm3111, %v8899, %v8901
  %v8924 = vsel %vm3111, %v8903, %v8905
  %v8925 = vsel %vm3111, %v8905, %v8907
  %v8953 = vadd.f32 %v8908, %v8909
  %v8954 = vsel %vm1289, %v8859, 0.0
  %v8955 = vadd.f32 %v8953, %v8954
  %8956 = vadd.xlane.f32.xlu0 %v8955
  %v8957 = vpop.xlane.xlu0 %8956
  %v8958 = vadd.f32 %v8910, %v8911
  %v8959 = vsel %vm1289, %v8865, 0.0
  %v8960 = vadd.f32 %v8958, %v8959
  %8961 = vadd.xlane.f32.xlu0 %v8960
  %v8962 = vpop.xlane.xlu0 %8961
  %v8963 = vadd.f32 %v8912, %v8913
  %v8964 = vsel %vm1289, %v8871, 0.0
  %v8965 = vadd.f32 %v8963, %v8964
  %8966 = vadd.xlane.f32.xlu0 %v8965
  %v8967 = vpop.xlane.xlu0 %8966
  %v8968 = vadd.f32 %v8914, %v8915
  %v8969 = vsel %vm1289, %v8877, 0.0
  %v8970 = vadd.f32 %v8968, %v8969
  %8971 = vadd.xlane.f32.xlu0 %v8970
  %v8972 = vpop.xlane.xlu0 %8971
  %v8973 = vadd.f32 %v8916, %v8917
  %v8974 = vsel %vm1289, %v8883, 0.0
  %v8975 = vadd.f32 %v8973, %v8974
  %8976 = vadd.xlane.f32.xlu0 %v8975
  %v8977 = vpop.xlane.xlu0 %8976
  %v8978 = vadd.f32 %v8918, %v8919
  %v8979 = vsel %vm1289, %v8889, 0.0
  %v8980 = vadd.f32 %v8978, %v8979
  %8981 = vadd.xlane.f32.xlu0 %v8980
  %v8982 = vpop.xlane.xlu0 %8981
  %v8983 = vadd.f32 %v8920, %v8921
  %v8984 = vsel %vm1289, %v8895, 0.0
  %v8985 = vadd.f32 %v8983, %v8984
  %8986 = vadd.xlane.f32.xlu0 %v8985
  %v8987 = vpop.xlane.xlu0 %8986
  %v8988 = vadd.f32 %v8922, %v8923
  %v8989 = vsel %vm1289, %v8901, 0.0
  %v8990 = vadd.f32 %v8988, %v8989
  %8991 = vadd.xlane.f32.xlu0 %v8990
  %v8992 = vpop.xlane.xlu0 %8991
  %v8993 = vsel %vm1305, %v8924, 0.0
  %v8994 = vsel %vm1305, %v8925, 0.0
  %v8995 = vadd.f32 %v8993, %v8994
  %v8996 = vsel %vm2216, %v8907, 0.0
  %v8997 = vadd.f32 %v8995, %v8996
  %8998 = vadd.xlane.f32.xlu0 %v8997
  %v8999 = vpop.xlane.xlu0 %8998
  %s9000 = scalar_lea.vmem %s4, 1520
  %v9001 = vld [vmem:[%s9000] sm:$0xff]
  %v9002 = vld [vmem:[%s9000 + $0x8] sm:$0xff]
  %v9003 = vld [vmem:[%s9000 + $0x10] sm:$0xff]
  %v9004 = vld [vmem:[%s9000 + $0x18] sm:$0xff]
  %v9005 = vld [vmem:[%s9000 + $0x20] sm:$0xff]
  %v9006 = vld [vmem:[%s9000 + $0x28] sm:$0xff]
  %v9007 = vld [vmem:[%s9000 + $0x30] sm:$0xff]
  %v9008 = vld [vmem:[%s9000 + $0x38] sm:$0xff]
  %v9009 = vld [vmem:[%s9000 + $0x40] sm:$0xff]
  %v9010 = vld [vmem:[%s9000 + $0x48] sm:$0xff]
  %v9011 = vld [vmem:[%s9000 + $0x50] sm:$0xff]
  %v9012 = vld [vmem:[%s9000 + $0x58] sm:$0xff]
  %v9013 = vld [vmem:[%s9000 + $0x60] sm:$0xff]
  %v9014 = vld [vmem:[%s9000 + $0x68] sm:$0xff]
  %v9015 = vld [vmem:[%s9000 + $0x70] sm:$0xff]
  %v9016 = vld [vmem:[%s9000 + $0x78] sm:$0xff]
  %v9017 = vld [vmem:[%s9000 + $0x80] sm:$0xff]
  %v9018 = vld [vmem:[%s9000 + $0x88] sm:$0xff]
  %v9019 = vld [vmem:[%s9000 + $0x90] sm:$0xff]
  %v9020 = vld [vmem:[%s9000 + $0x98] sm:$0xff]
  %v9021 = vld [vmem:[%s9000 + $0xa0] sm:$0xff]
  %v9022 = vld [vmem:[%s9000 + $0xa8] sm:$0xff]
  %v9023 = vld [vmem:[%s9000 + $0xb0] sm:$0xff]
  %v9024 = vld [vmem:[%s9000 + $0xb8] sm:$0xff]
  %v9025 = vld [vmem:[%s9000 + $0xc0] sm:$0xff]
  %v9026 = vld [vmem:[%s9000 + $0xc8] sm:$0xff]
  %v9027 = vld [vmem:[%s9000 + $0xd0] sm:$0xff]
  %v9028 = vld [vmem:[%s9000 + $0xd8] sm:$0xff]
  %v9029 = vld [vmem:[%s9000 + $0xe0] sm:$0xff]
  %v9030 = vld [vmem:[%s9000 + $0xe8] sm:$0xff]
  %v9031 = vld [vmem:[%s9000 + $0xf0] sm:$0xff]
  %v9032 = vld [vmem:[%s9000 + $0xf8] sm:$0xff]
  %v9033 = vld [vmem:[%s9000 + $0x100] sm:$0xff]
  %v9034 = vld [vmem:[%s9000 + $0x108] sm:$0xff]
  %v9035 = vld [vmem:[%s9000 + $0x110] sm:$0xff]
  %v9036 = vld [vmem:[%s9000 + $0x118] sm:$0xff]
  %v9037 = vld [vmem:[%s9000 + $0x120] sm:$0xff]
  %v9038 = vld [vmem:[%s9000 + $0x128] sm:$0xff]
  %v9039 = vld [vmem:[%s9000 + $0x130] sm:$0xff]
  %v9040 = vld [vmem:[%s9000 + $0x138] sm:$0xff]
  %v9041 = vld [vmem:[%s9000 + $0x140] sm:$0xff]
  %v9042 = vld [vmem:[%s9000 + $0x148] sm:$0xff]
  %v9043 = vld [vmem:[%s9000 + $0x150] sm:$0xff]
  %v9044 = vld [vmem:[%s9000 + $0x158] sm:$0xff]
  %v9045 = vld [vmem:[%s9000 + $0x160] sm:$0xff]
  %v9046 = vld [vmem:[%s9000 + $0x168] sm:$0xff]
  %v9047 = vld [vmem:[%s9000 + $0x170] sm:$0xff]
  %v9048 = vld [vmem:[%s9000 + $0x178] sm:$0xff]
  %v9049 = vld [vmem:[%s9000 + $0x180] sm:$0xff]
  %v9050 = vld [vmem:[%s9000 + $0x188] sm:$0xff]
  %v9051 = vld [vmem:[%s9000 + $0x190] sm:$0xff]
  %v9052 = vld [vmem:[%s9000 + $0x198] sm:$0xff]
  %v9053 = vld [vmem:[%s9000 + $0x1a0] sm:$0xff]
  %v9054 = vld [vmem:[%s9000 + $0x1a8] sm:$0xff]
  %v9055 = vld [vmem:[%s9000 + $0x1b0] sm:$0xff]
  %v9056 = vld [vmem:[%s9000 + $0x1b8] sm:$0xff]
  %v9057 = vld [vmem:[%s9000 + $0x1c0] sm:$0xff]
  %v9058 = vld [vmem:[%s9000 + $0x1c8] sm:$0xff]
  %v9059 = vld [vmem:[%s9000 + $0x1d0] sm:$0xff]
  %v9060 = vld [vmem:[%s9000 + $0x1d8] sm:$0xff]
  %v9061 = vld [vmem:[%s9000 + $0x1e0] sm:$0xff]
  %v9062 = vld [vmem:[%s9000 + $0x1e8] sm:$0xff]
  %v9063 = vld [vmem:[%s9000 + $0x1f0] sm:$0xff]
  %v9064 = vld [vmem:[%s9000 + $0x1f8] sm:$0xff]
  %v9065 = vld [vmem:[%s9000 + $0x200] sm:$0xff]
  %v9066 = vld [vmem:[%s9000 + $0x208] sm:$0xff]
  %v9067 = vld [vmem:[%s9000 + $0x210] sm:$0xff]
  %v9068 = vld [vmem:[%s9000 + $0x218] sm:$0xff]
  %v9069 = vld [vmem:[%s9000 + $0x220] sm:$0xff]
  %v9070 = vld [vmem:[%s9000 + $0x228] sm:$0xff]
  %v9071 = vld [vmem:[%s9000 + $0x230] sm:$0xff]
  %v9072 = vld [vmem:[%s9000 + $0x238] sm:$0xff]
  %v9073 = vld [vmem:[%s9000 + $0x240] sm:$0xff]
  %v9074 = vld [vmem:[%s9000 + $0x248] sm:$0xff]
  %v9075 = vld [vmem:[%s9000 + $0x250] sm:$0xff]
  %v9076 = vld [vmem:[%s9000 + $0x258] sm:$0xff]
  %v9077 = vld [vmem:[%s9000 + $0x260] sm:$0xff]
  %v9078 = vld [vmem:[%s9000 + $0x268] sm:$0xff]
  %v9079 = vld [vmem:[%s9000 + $0x270] sm:$0xff]
  %v9080 = vld [vmem:[%s9000 + $0x278] sm:$0xff]
  %v9081 = vld [vmem:[%s9000 + $0x280] sm:$0xff]
  %v9082 = vld [vmem:[%s9000 + $0x288] sm:$0xff]
  %v9083 = vld [vmem:[%s9000 + $0x290] sm:$0xff]
  %v9084 = vld [vmem:[%s9000 + $0x298] sm:$0xff]
  %v9085 = vld [vmem:[%s9000 + $0x2a0] sm:$0xff]
  %v9086 = vld [vmem:[%s9000 + $0x2a8] sm:$0xff]
  %v9087 = vld [vmem:[%s9000 + $0x2b0] sm:$0xff]
  %v9088 = vld [vmem:[%s9000 + $0x2b8] sm:$0xff]
  %v9089 = vld [vmem:[%s9000 + $0x2c0] sm:$0xff]
  %v9090 = vld [vmem:[%s9000 + $0x2c8] sm:$0xff]
  %v9091 = vld [vmem:[%s9000 + $0x2d0] sm:$0xff]
  %v9092 = vld [vmem:[%s9000 + $0x2d8] sm:$0xff]
  %v9093 = vld [vmem:[%s9000 + $0x2e0] sm:$0xff]
  %v9094 = vld [vmem:[%s9000 + $0x2e8] sm:$0xff]
  %v9095 = vld [vmem:[%s9000 + $0x2f0] sm:$0xff]
  %v9096 = vld [vmem:[%s9000 + $0x2f8] sm:$0xff]
  %v9097 = vld [vmem:[%s9000 + $0x300] sm:$0xff]
  %v9098 = vld [vmem:[%s9000 + $0x308] sm:$0xff]
  %v9099 = vld [vmem:[%s9000 + $0x310] sm:$0xff]
  %v9100 = vld [vmem:[%s9000 + $0x318] sm:$0xff]
  %v9101 = vld [vmem:[%s9000 + $0x320] sm:$0xff]
  %v9102 = vld [vmem:[%s9000 + $0x328] sm:$0xff]
  %v9103 = vld [vmem:[%s9000 + $0x330] sm:$0xff]
  %v9104 = vld [vmem:[%s9000 + $0x338] sm:$0xff]
  %v9105 = vld [vmem:[%s9000 + $0x340] sm:$0xff]
  %v9106 = vld [vmem:[%s9000 + $0x348] sm:$0xff]
  %v9107 = vld [vmem:[%s9000 + $0x350] sm:$0xff]
  %v9108 = vld [vmem:[%s9000 + $0x358] sm:$0xff]
  %v9109 = vld [vmem:[%s9000 + $0x360] sm:$0xff]
  %v9110 = vld [vmem:[%s9000 + $0x368] sm:$0xff]
  %v9111 = vld [vmem:[%s9000 + $0x370] sm:$0xff]
  %v9112 = vld [vmem:[%s9000 + $0x378] sm:$0xff]
  %v9113 = vld [vmem:[%s9000 + $0x380] sm:$0xff]
  %v9114 = vld [vmem:[%s9000 + $0x388] sm:$0xff]
  %v9115 = vld [vmem:[%s9000 + $0x390] sm:$0xff]
  %v9116 = vld [vmem:[%s9000 + $0x398] sm:$0xff]
  %v9117 = vld [vmem:[%s9000 + $0x3a0] sm:$0xff]
  %v9118 = vld [vmem:[%s9000 + $0x3a8] sm:$0xff]
  %v9119 = vld [vmem:[%s9000 + $0x3b0] sm:$0xff]
  %v9120 = vld [vmem:[%s9000 + $0x3b8] sm:$0xff]
  %v9121 = vld [vmem:[%s9000 + $0x3c0] sm:$0xff]
  %v9122 = vld [vmem:[%s9000 + $0x3c8] sm:$0xff]
  %v9123 = vld [vmem:[%s9000 + $0x3d0] sm:$0xff]
  %v9124 = vld [vmem:[%s9000 + $0x3d8] sm:$0xff]
  %v9125 = vld [vmem:[%s9000 + $0x3e0] sm:$0xff]
  %v9126 = vld [vmem:[%s9000 + $0x3e8] sm:$0xff]
  %v9127 = vld [vmem:[%s9000 + $0x3f0] sm:$0xff]
  %v9128 = vld [vmem:[%s9000 + $0x3f8] sm:$0xff]
  %v9129 = vld [vmem:[%s9000 + $0x400] sm:$0xff]
  %v9130 = vld [vmem:[%s9000 + $0x408] sm:$0xff]
  %v9131 = vld [vmem:[%s9000 + $0x410] sm:$0xff]
  %v9132 = vld [vmem:[%s9000 + $0x418] sm:$0xff]
  %v9133 = vld [vmem:[%s9000 + $0x420] sm:$0xff]
  %v9134 = vld [vmem:[%s9000 + $0x428] sm:$0xff]
  %v9135 = vld [vmem:[%s9000 + $0x430] sm:$0xff]
  %v9136 = vld [vmem:[%s9000 + $0x438] sm:$0xff]
  %v9137 = vld [vmem:[%s9000 + $0x440] sm:$0xff]
  %v9138 = vld [vmem:[%s9000 + $0x448] sm:$0xff]
  %v9139 = vld [vmem:[%s9000 + $0x450] sm:$0xff]
  %v9140 = vld [vmem:[%s9000 + $0x458] sm:$0xff]
  %v9141 = vld [vmem:[%s9000 + $0x460] sm:$0xff]
  %v9142 = vld [vmem:[%s9000 + $0x468] sm:$0xff]
  %v9143 = vld [vmem:[%s9000 + $0x470] sm:$0xff]
  %v9144 = vld [vmem:[%s9000 + $0x478] sm:$0xff]
  %v9145 = vld [vmem:[%s9000 + $0x480] sm:$0xff]
  %v9146 = vld [vmem:[%s9000 + $0x488] sm:$0xff]
  %v9147 = vld [vmem:[%s9000 + $0x490] sm:$0xff]
  %v9148 = vld [vmem:[%s9000 + $0x498] sm:$0xff]
  %v9149 = vld [vmem:[%s9000 + $0x4a0] sm:$0xff]
  %v9150 = vld [vmem:[%s9000 + $0x4a8] sm:$0xff]
  %v9151 = vld [vmem:[%s9000 + $0x4b0] sm:$0xff]
  %v9152 = vld [vmem:[%s9000 + $0x4b8] sm:$0xff]
  %v9153 = vld [vmem:[%s9000 + $0x4c0] sm:$0xff]
  %v9154 = vld [vmem:[%s9000 + $0x4c8] sm:$0xff]
  %v9155 = vld [vmem:[%s9000 + $0x4d0] sm:$0xff]
  %v9156 = vld [vmem:[%s9000 + $0x4d8] sm:$0xff]
  %v9157 = vld [vmem:[%s9000 + $0x4e0] sm:$0xff]
  %v9158 = vld [vmem:[%s9000 + $0x4e8] sm:$0xff]
  %v9159 = vld [vmem:[%s9000 + $0x4f0] sm:$0xff]
  %v9160 = vld [vmem:[%s9000 + $0x4f8] sm:$0xff]
  %v9161 = vld [vmem:[%s9000 + $0x500] sm:$0xff]
  %v9162 = vld [vmem:[%s9000 + $0x508] sm:$0xff]
  %v9163 = vld [vmem:[%s9000 + $0x510] sm:$0xff]
  %v9164 = vld [vmem:[%s9000 + $0x518] sm:$0xff]
  %v9165 = vld [vmem:[%s9000 + $0x520] sm:$0xff]
  %v9166 = vld [vmem:[%s9000 + $0x528] sm:$0xff]
  %v9167 = vld [vmem:[%s9000 + $0x530] sm:$0xff]
  %v9168 = vld [vmem:[%s9000 + $0x538] sm:$0xff]
  %v9169 = vld [vmem:[%s9000 + $0x540] sm:$0xff]
  %v9170 = vld [vmem:[%s9000 + $0x548] sm:$0xff]
  %v9171 = vld [vmem:[%s9000 + $0x550] sm:$0xff]
  %v9172 = vld [vmem:[%s9000 + $0x558] sm:$0xff]
  %v9173 = vld [vmem:[%s9000 + $0x560] sm:$0xff]
  %v9174 = vld [vmem:[%s9000 + $0x568] sm:$0xff]
  %v9175 = vld [vmem:[%s9000 + $0x570] sm:$0xff]
  %v9176 = vld [vmem:[%s9000 + $0x578] sm:$0xff]
  %v9177 = vld [vmem:[%s9000 + $0x580] sm:$0xff]
  %v9178 = vld [vmem:[%s9000 + $0x588] sm:$0xff]
  %v9179 = vld [vmem:[%s9000 + $0x590] sm:$0xff]
  %v9180 = vld [vmem:[%s9000 + $0x598] sm:$0xff]
  %v9181 = vld [vmem:[%s9000 + $0x5a0] sm:$0xff]
  %v9182 = vld [vmem:[%s9000 + $0x5a8] sm:$0xff]
  %v9183 = vld [vmem:[%s9000 + $0x5b0] sm:$0xff]
  %v9184 = vld [vmem:[%s9000 + $0x5b8] sm:$0xff]
  %v9185 = vld [vmem:[%s9000 + $0x5c0] sm:$0xff]
  %v9186 = vld [vmem:[%s9000 + $0x5c8] sm:$0x33]
  %v9187 = vld [vmem:[%s9000 + $0x5d0] sm:$0x33]
  %v9188 = vld [vmem:[%s9000 + $0x5d8] sm:$0x33]
  %v9189 = vld [vmem:[%s9000 + $0x5e0] sm:$0x33]
  %v9190 = vld [vmem:[%s9000 + $0x5e8] sm:$0x33]
  %v9381 = vunpack.c.l.b16 %v9001
  %v9382 = vunpack.c.h.b16 %v9001
  %v9383 = vunpack.c.l.b16 %v9002
  %v9384 = vunpack.c.h.b16 %v9002
  %v9385 = vunpack.c.l.b16 %v9003
  %v9386 = vunpack.c.h.b16 %v9003
  %v9387 = vunpack.c.l.b16 %v9004
  %v9388 = vunpack.c.h.b16 %v9004
  %v9389 = vunpack.c.l.b16 %v9005
  %v9390 = vunpack.c.h.b16 %v9005
  %v9391 = vunpack.c.l.b16 %v9006
  %v9392 = vunpack.c.h.b16 %v9006
  %v9393 = vunpack.c.l.b16 %v9007
  %v9394 = vunpack.c.h.b16 %v9007
  %v9395 = vunpack.c.l.b16 %v9008
  %v9396 = vunpack.c.h.b16 %v9008
  %v9397 = vunpack.c.l.b16 %v9009
  %v9398 = vunpack.c.h.b16 %v9009
  %v9399 = vunpack.c.l.b16 %v9010
  %v9400 = vunpack.c.h.b16 %v9010
  %v9401 = vunpack.c.l.b16 %v9011
  %v9402 = vunpack.c.h.b16 %v9011
  %v9403 = vunpack.c.l.b16 %v9012
  %v9404 = vunpack.c.h.b16 %v9012
  %v9405 = vunpack.c.l.b16 %v9013
  %v9406 = vunpack.c.h.b16 %v9013
  %v9407 = vunpack.c.l.b16 %v9014
  %v9408 = vunpack.c.h.b16 %v9014
  %v9409 = vunpack.c.l.b16 %v9015
  %v9410 = vunpack.c.h.b16 %v9015
  %v9411 = vunpack.c.l.b16 %v9016
  %v9412 = vunpack.c.h.b16 %v9016
  %v9413 = vunpack.c.l.b16 %v9017
  %v9414 = vunpack.c.h.b16 %v9017
  %v9415 = vunpack.c.l.b16 %v9018
  %v9416 = vunpack.c.h.b16 %v9018
  %v9417 = vunpack.c.l.b16 %v9019
  %v9418 = vunpack.c.h.b16 %v9019
  %v9419 = vunpack.c.l.b16 %v9020
  %v9420 = vunpack.c.h.b16 %v9020
  %v9421 = vunpack.c.l.b16 %v9021
  %v9422 = vunpack.c.h.b16 %v9021
  %v9423 = vunpack.c.l.b16 %v9022
  %v9424 = vunpack.c.h.b16 %v9022
  %v9425 = vunpack.c.l.b16 %v9023
  %v9426 = vunpack.c.h.b16 %v9023
  %v9427 = vunpack.c.l.b16 %v9024
  %v9428 = vunpack.c.h.b16 %v9024
  %v9429 = vunpack.c.l.b16 %v9025
  %v9430 = vunpack.c.h.b16 %v9025
  %v9431 = vunpack.c.l.b16 %v9026
  %v9432 = vunpack.c.h.b16 %v9026
  %v9433 = vunpack.c.l.b16 %v9027
  %v9434 = vunpack.c.h.b16 %v9027
  %v9435 = vunpack.c.l.b16 %v9028
  %v9436 = vunpack.c.h.b16 %v9028
  %v9437 = vunpack.c.l.b16 %v9029
  %v9438 = vunpack.c.h.b16 %v9029
  %v9439 = vunpack.c.l.b16 %v9030
  %v9440 = vunpack.c.h.b16 %v9030
  %v9441 = vunpack.c.l.b16 %v9031
  %v9442 = vunpack.c.h.b16 %v9031
  %v9443 = vunpack.c.l.b16 %v9032
  %v9444 = vunpack.c.h.b16 %v9032
  %v9445 = vunpack.c.l.b16 %v9033
  %v9446 = vunpack.c.h.b16 %v9033
  %v9447 = vunpack.c.l.b16 %v9034
  %v9448 = vunpack.c.h.b16 %v9034
  %v9449 = vunpack.c.l.b16 %v9035
  %v9450 = vunpack.c.h.b16 %v9035
  %v9451 = vunpack.c.l.b16 %v9036
  %v9452 = vunpack.c.h.b16 %v9036
  %v9453 = vunpack.c.l.b16 %v9037
  %v9454 = vunpack.c.h.b16 %v9037
  %v9455 = vunpack.c.l.b16 %v9038
  %v9456 = vunpack.c.h.b16 %v9038
  %v9457 = vunpack.c.l.b16 %v9039
  %v9458 = vunpack.c.h.b16 %v9039
  %v9459 = vunpack.c.l.b16 %v9040
  %v9460 = vunpack.c.h.b16 %v9040
  %v9461 = vunpack.c.l.b16 %v9041
  %v9462 = vunpack.c.h.b16 %v9041
  %v9463 = vunpack.c.l.b16 %v9042
  %v9464 = vunpack.c.h.b16 %v9042
  %v9465 = vunpack.c.l.b16 %v9043
  %v9466 = vunpack.c.h.b16 %v9043
  %v9467 = vunpack.c.l.b16 %v9044
  %v9468 = vunpack.c.h.b16 %v9044
  %v9469 = vunpack.c.l.b16 %v9045
  %v9470 = vunpack.c.h.b16 %v9045
  %v9471 = vunpack.c.l.b16 %v9046
  %v9472 = vunpack.c.h.b16 %v9046
  %v9473 = vunpack.c.l.b16 %v9047
  %v9474 = vunpack.c.h.b16 %v9047
  %v9475 = vunpack.c.l.b16 %v9048
  %v9476 = vunpack.c.h.b16 %v9048
  %v9477 = vunpack.c.l.b16 %v9049
  %v9478 = vunpack.c.h.b16 %v9049
  %v9479 = vunpack.c.l.b16 %v9050
  %v9480 = vunpack.c.h.b16 %v9050
  %v9481 = vunpack.c.l.b16 %v9051
  %v9482 = vunpack.c.h.b16 %v9051
  %v9483 = vunpack.c.l.b16 %v9052
  %v9484 = vunpack.c.h.b16 %v9052
  %v9485 = vunpack.c.l.b16 %v9053
  %v9486 = vunpack.c.h.b16 %v9053
  %v9487 = vunpack.c.l.b16 %v9054
  %v9488 = vunpack.c.h.b16 %v9054
  %v9489 = vunpack.c.l.b16 %v9055
  %v9490 = vunpack.c.h.b16 %v9055
  %v9491 = vunpack.c.l.b16 %v9056
  %v9492 = vunpack.c.h.b16 %v9056
  %v9493 = vunpack.c.l.b16 %v9057
  %v9494 = vunpack.c.h.b16 %v9057
  %v9495 = vunpack.c.l.b16 %v9058
  %v9496 = vunpack.c.h.b16 %v9058
  %v9497 = vunpack.c.l.b16 %v9059
  %v9498 = vunpack.c.h.b16 %v9059
  %v9499 = vunpack.c.l.b16 %v9060
  %v9500 = vunpack.c.h.b16 %v9060
  %v9501 = vunpack.c.l.b16 %v9061
  %v9502 = vunpack.c.h.b16 %v9061
  %v9503 = vunpack.c.l.b16 %v9062
  %v9504 = vunpack.c.h.b16 %v9062
  %v9505 = vunpack.c.l.b16 %v9063
  %v9506 = vunpack.c.h.b16 %v9063
  %v9507 = vunpack.c.l.b16 %v9064
  %v9508 = vunpack.c.h.b16 %v9064
  %v9509 = vunpack.c.l.b16 %v9065
  %v9510 = vunpack.c.h.b16 %v9065
  %v9511 = vunpack.c.l.b16 %v9066
  %v9512 = vunpack.c.h.b16 %v9066
  %v9513 = vunpack.c.l.b16 %v9067
  %v9514 = vunpack.c.h.b16 %v9067
  %v9515 = vunpack.c.l.b16 %v9068
  %v9516 = vunpack.c.h.b16 %v9068
  %v9517 = vunpack.c.l.b16 %v9069
  %v9518 = vunpack.c.h.b16 %v9069
  %v9519 = vunpack.c.l.b16 %v9070
  %v9520 = vunpack.c.h.b16 %v9070
  %v9521 = vunpack.c.l.b16 %v9071
  %v9522 = vunpack.c.h.b16 %v9071
  %v9523 = vunpack.c.l.b16 %v9072
  %v9524 = vunpack.c.h.b16 %v9072
  %v9525 = vunpack.c.l.b16 %v9073
  %v9526 = vunpack.c.h.b16 %v9073
  %v9527 = vunpack.c.l.b16 %v9074
  %v9528 = vunpack.c.h.b16 %v9074
  %v9529 = vunpack.c.l.b16 %v9075
  %v9530 = vunpack.c.h.b16 %v9075
  %v9531 = vunpack.c.l.b16 %v9076
  %v9532 = vunpack.c.h.b16 %v9076
  %v9533 = vunpack.c.l.b16 %v9077
  %v9534 = vunpack.c.h.b16 %v9077
  %v9535 = vunpack.c.l.b16 %v9078
  %v9536 = vunpack.c.h.b16 %v9078
  %v9537 = vunpack.c.l.b16 %v9079
  %v9538 = vunpack.c.h.b16 %v9079
  %v9539 = vunpack.c.l.b16 %v9080
  %v9540 = vunpack.c.h.b16 %v9080
  %v9541 = vunpack.c.l.b16 %v9081
  %v9542 = vunpack.c.h.b16 %v9081
  %v9543 = vunpack.c.l.b16 %v9082
  %v9544 = vunpack.c.h.b16 %v9082
  %v9545 = vunpack.c.l.b16 %v9083
  %v9546 = vunpack.c.h.b16 %v9083
  %v9547 = vunpack.c.l.b16 %v9084
  %v9548 = vunpack.c.h.b16 %v9084
  %v9549 = vunpack.c.l.b16 %v9085
  %v9550 = vunpack.c.h.b16 %v9085
  %v9551 = vunpack.c.l.b16 %v9086
  %v9552 = vunpack.c.h.b16 %v9086
  %v9553 = vunpack.c.l.b16 %v9087
  %v9554 = vunpack.c.h.b16 %v9087
  %v9555 = vunpack.c.l.b16 %v9088
  %v9556 = vunpack.c.h.b16 %v9088
  %v9557 = vunpack.c.l.b16 %v9089
  %v9558 = vunpack.c.h.b16 %v9089
  %v9559 = vunpack.c.l.b16 %v9090
  %v9560 = vunpack.c.h.b16 %v9090
  %v9561 = vunpack.c.l.b16 %v9091
  %v9562 = vunpack.c.h.b16 %v9091
  %v9563 = vunpack.c.l.b16 %v9092
  %v9564 = vunpack.c.h.b16 %v9092
  %v9565 = vunpack.c.l.b16 %v9093
  %v9566 = vunpack.c.h.b16 %v9093
  %v9567 = vunpack.c.l.b16 %v9094
  %v9568 = vunpack.c.h.b16 %v9094
  %v9569 = vunpack.c.l.b16 %v9095
  %v9570 = vunpack.c.h.b16 %v9095
  %v9571 = vunpack.c.l.b16 %v9096
  %v9572 = vunpack.c.h.b16 %v9096
  %v9573 = vunpack.c.l.b16 %v9097
  %v9574 = vunpack.c.h.b16 %v9097
  %v9575 = vunpack.c.l.b16 %v9098
  %v9576 = vunpack.c.h.b16 %v9098
  %v9577 = vunpack.c.l.b16 %v9099
  %v9578 = vunpack.c.h.b16 %v9099
  %v9579 = vunpack.c.l.b16 %v9100
  %v9580 = vunpack.c.h.b16 %v9100
  %v9581 = vunpack.c.l.b16 %v9101
  %v9582 = vunpack.c.h.b16 %v9101
  %v9583 = vunpack.c.l.b16 %v9102
  %v9584 = vunpack.c.h.b16 %v9102
  %v9585 = vunpack.c.l.b16 %v9103
  %v9586 = vunpack.c.h.b16 %v9103
  %v9587 = vunpack.c.l.b16 %v9104
  %v9588 = vunpack.c.h.b16 %v9104
  %v9589 = vunpack.c.l.b16 %v9105
  %v9590 = vunpack.c.h.b16 %v9105
  %v9591 = vunpack.c.l.b16 %v9106
  %v9592 = vunpack.c.h.b16 %v9106
  %v9593 = vunpack.c.l.b16 %v9107
  %v9594 = vunpack.c.h.b16 %v9107
  %v9595 = vunpack.c.l.b16 %v9108
  %v9596 = vunpack.c.h.b16 %v9108
  %v9597 = vunpack.c.l.b16 %v9109
  %v9598 = vunpack.c.h.b16 %v9109
  %v9599 = vunpack.c.l.b16 %v9110
  %v9600 = vunpack.c.h.b16 %v9110
  %v9601 = vunpack.c.l.b16 %v9111
  %v9602 = vunpack.c.h.b16 %v9111
  %v9603 = vunpack.c.l.b16 %v9112
  %v9604 = vunpack.c.h.b16 %v9112
  %v9605 = vunpack.c.l.b16 %v9113
  %v9606 = vunpack.c.h.b16 %v9113
  %v9607 = vunpack.c.l.b16 %v9114
  %v9608 = vunpack.c.h.b16 %v9114
  %v9609 = vunpack.c.l.b16 %v9115
  %v9610 = vunpack.c.h.b16 %v9115
  %v9611 = vunpack.c.l.b16 %v9116
  %v9612 = vunpack.c.h.b16 %v9116
  %v9613 = vunpack.c.l.b16 %v9117
  %v9614 = vunpack.c.h.b16 %v9117
  %v9615 = vunpack.c.l.b16 %v9118
  %v9616 = vunpack.c.h.b16 %v9118
  %v9617 = vunpack.c.l.b16 %v9119
  %v9618 = vunpack.c.h.b16 %v9119
  %v9619 = vunpack.c.l.b16 %v9120
  %v9620 = vunpack.c.h.b16 %v9120
  %v9621 = vunpack.c.l.b16 %v9121
  %v9622 = vunpack.c.h.b16 %v9121
  %v9623 = vunpack.c.l.b16 %v9122
  %v9624 = vunpack.c.h.b16 %v9122
  %v9625 = vunpack.c.l.b16 %v9123
  %v9626 = vunpack.c.h.b16 %v9123
  %v9627 = vunpack.c.l.b16 %v9124
  %v9628 = vunpack.c.h.b16 %v9124
  %v9629 = vunpack.c.l.b16 %v9125
  %v9630 = vunpack.c.h.b16 %v9125
  %v9631 = vunpack.c.l.b16 %v9126
  %v9632 = vunpack.c.h.b16 %v9126
  %v9633 = vunpack.c.l.b16 %v9127
  %v9634 = vunpack.c.h.b16 %v9127
  %v9635 = vunpack.c.l.b16 %v9128
  %v9636 = vunpack.c.h.b16 %v9128
  %v9637 = vunpack.c.l.b16 %v9129
  %v9638 = vunpack.c.h.b16 %v9129
  %v9639 = vunpack.c.l.b16 %v9130
  %v9640 = vunpack.c.h.b16 %v9130
  %v9641 = vunpack.c.l.b16 %v9131
  %v9642 = vunpack.c.h.b16 %v9131
  %v9643 = vunpack.c.l.b16 %v9132
  %v9644 = vunpack.c.h.b16 %v9132
  %v9645 = vunpack.c.l.b16 %v9133
  %v9646 = vunpack.c.h.b16 %v9133
  %v9647 = vunpack.c.l.b16 %v9134
  %v9648 = vunpack.c.h.b16 %v9134
  %v9649 = vunpack.c.l.b16 %v9135
  %v9650 = vunpack.c.h.b16 %v9135
  %v9651 = vunpack.c.l.b16 %v9136
  %v9652 = vunpack.c.h.b16 %v9136
  %v9653 = vunpack.c.l.b16 %v9137
  %v9654 = vunpack.c.h.b16 %v9137
  %v9655 = vunpack.c.l.b16 %v9138
  %v9656 = vunpack.c.h.b16 %v9138
  %v9657 = vunpack.c.l.b16 %v9139
  %v9658 = vunpack.c.h.b16 %v9139
  %v9659 = vunpack.c.l.b16 %v9140
  %v9660 = vunpack.c.h.b16 %v9140
  %v9661 = vunpack.c.l.b16 %v9141
  %v9662 = vunpack.c.h.b16 %v9141
  %v9663 = vunpack.c.l.b16 %v9142
  %v9664 = vunpack.c.h.b16 %v9142
  %v9665 = vunpack.c.l.b16 %v9143
  %v9666 = vunpack.c.h.b16 %v9143
  %v9667 = vunpack.c.l.b16 %v9144
  %v9668 = vunpack.c.h.b16 %v9144
  %v9669 = vunpack.c.l.b16 %v9145
  %v9670 = vunpack.c.h.b16 %v9145
  %v9671 = vunpack.c.l.b16 %v9146
  %v9672 = vunpack.c.h.b16 %v9146
  %v9673 = vunpack.c.l.b16 %v9147
  %v9674 = vunpack.c.h.b16 %v9147
  %v9675 = vunpack.c.l.b16 %v9148
  %v9676 = vunpack.c.h.b16 %v9148
  %v9677 = vunpack.c.l.b16 %v9149
  %v9678 = vunpack.c.h.b16 %v9149
  %v9679 = vunpack.c.l.b16 %v9150
  %v9680 = vunpack.c.h.b16 %v9150
  %v9681 = vunpack.c.l.b16 %v9151
  %v9682 = vunpack.c.h.b16 %v9151
  %v9683 = vunpack.c.l.b16 %v9152
  %v9684 = vunpack.c.h.b16 %v9152
  %v9685 = vunpack.c.l.b16 %v9153
  %v9686 = vunpack.c.h.b16 %v9153
  %v9687 = vunpack.c.l.b16 %v9154
  %v9688 = vunpack.c.h.b16 %v9154
  %v9689 = vunpack.c.l.b16 %v9155
  %v9690 = vunpack.c.h.b16 %v9155
  %v9691 = vunpack.c.l.b16 %v9156
  %v9692 = vunpack.c.h.b16 %v9156
  %v9693 = vunpack.c.l.b16 %v9157
  %v9694 = vunpack.c.h.b16 %v9157
  %v9695 = vunpack.c.l.b16 %v9158
  %v9696 = vunpack.c.h.b16 %v9158
  %v9697 = vunpack.c.l.b16 %v9159
  %v9698 = vunpack.c.h.b16 %v9159
  %v9699 = vunpack.c.l.b16 %v9160
  %v9700 = vunpack.c.h.b16 %v9160
  %v9701 = vunpack.c.l.b16 %v9161
  %v9702 = vunpack.c.h.b16 %v9161
  %v9703 = vunpack.c.l.b16 %v9162
  %v9704 = vunpack.c.h.b16 %v9162
  %v9705 = vunpack.c.l.b16 %v9163
  %v9706 = vunpack.c.h.b16 %v9163
  %v9707 = vunpack.c.l.b16 %v9164
  %v9708 = vunpack.c.h.b16 %v9164
  %v9709 = vunpack.c.l.b16 %v9165
  %v9710 = vunpack.c.h.b16 %v9165
  %v9711 = vunpack.c.l.b16 %v9166
  %v9712 = vunpack.c.h.b16 %v9166
  %v9713 = vunpack.c.l.b16 %v9167
  %v9714 = vunpack.c.h.b16 %v9167
  %v9715 = vunpack.c.l.b16 %v9168
  %v9716 = vunpack.c.h.b16 %v9168
  %v9717 = vunpack.c.l.b16 %v9169
  %v9718 = vunpack.c.h.b16 %v9169
  %v9719 = vunpack.c.l.b16 %v9170
  %v9720 = vunpack.c.h.b16 %v9170
  %v9721 = vunpack.c.l.b16 %v9171
  %v9722 = vunpack.c.h.b16 %v9171
  %v9723 = vunpack.c.l.b16 %v9172
  %v9724 = vunpack.c.h.b16 %v9172
  %v9725 = vunpack.c.l.b16 %v9173
  %v9726 = vunpack.c.h.b16 %v9173
  %v9727 = vunpack.c.l.b16 %v9174
  %v9728 = vunpack.c.h.b16 %v9174
  %v9729 = vunpack.c.l.b16 %v9175
  %v9730 = vunpack.c.h.b16 %v9175
  %v9731 = vunpack.c.l.b16 %v9176
  %v9732 = vunpack.c.h.b16 %v9176
  %v9733 = vunpack.c.l.b16 %v9177
  %v9734 = vunpack.c.h.b16 %v9177
  %v9735 = vunpack.c.l.b16 %v9178
  %v9736 = vunpack.c.h.b16 %v9178
  %v9737 = vunpack.c.l.b16 %v9179
  %v9738 = vunpack.c.h.b16 %v9179
  %v9739 = vunpack.c.l.b16 %v9180
  %v9740 = vunpack.c.h.b16 %v9180
  %v9741 = vunpack.c.l.b16 %v9181
  %v9742 = vunpack.c.h.b16 %v9181
  %v9743 = vunpack.c.l.b16 %v9182
  %v9744 = vunpack.c.h.b16 %v9182
  %v9745 = vunpack.c.l.b16 %v9183
  %v9746 = vunpack.c.h.b16 %v9183
  %v9747 = vunpack.c.l.b16 %v9184
  %v9748 = vunpack.c.h.b16 %v9184
  %v9749 = vunpack.c.l.b16 %v9185
  %v9750 = vunpack.c.h.b16 %v9185
  %v9751 = vunpack.c.l.b16 %v9186
  %v9752 = vunpack.c.h.b16 %v9186
  %v9753 = vunpack.c.l.b16 %v9187
  %v9754 = vunpack.c.h.b16 %v9187
  %v9755 = vunpack.c.l.b16 %v9188
  %v9756 = vunpack.c.h.b16 %v9188
  %v9757 = vunpack.c.l.b16 %v9189
  %v9758 = vunpack.c.h.b16 %v9189
  %v9759 = vunpack.c.l.b16 %v9190
  %v9760 = vunpack.c.h.b16 %v9190
  %v9761 = vpack.c.b16 %v9391, %v9381
  %v9762 = vpack.c.b16 %v9392, %v9382
  %v9763 = vpack.c.b16 %v9393, %v9383
  %v9764 = vpack.c.b16 %v9394, %v9384
  %v9765 = vpack.c.b16 %v9395, %v9385
  %v9766 = vpack.c.b16 %v9396, %v9386
  %v9767 = vpack.c.b16 %v9397, %v9387
  %v9768 = vpack.c.b16 %v9398, %v9388
  %v9769 = vpack.c.b16 %v9399, %v9389
  %v9770 = vpack.c.b16 %v9400, %v9390
  %v9771 = vpack.c.b16 %v9411, %v9401
  %v9772 = vpack.c.b16 %v9412, %v9402
  %v9773 = vpack.c.b16 %v9413, %v9403
  %v9774 = vpack.c.b16 %v9414, %v9404
  %v9775 = vpack.c.b16 %v9415, %v9405
  %v9776 = vpack.c.b16 %v9416, %v9406
  %v9777 = vpack.c.b16 %v9417, %v9407
  %v9778 = vpack.c.b16 %v9418, %v9408
  %v9779 = vpack.c.b16 %v9419, %v9409
  %v9780 = vpack.c.b16 %v9420, %v9410
  %v9781 = vpack.c.b16 %v9431, %v9421
  %v9782 = vpack.c.b16 %v9432, %v9422
  %v9783 = vpack.c.b16 %v9433, %v9423
  %v9784 = vpack.c.b16 %v9434, %v9424
  %v9785 = vpack.c.b16 %v9435, %v9425
  %v9786 = vpack.c.b16 %v9436, %v9426
  %v9787 = vpack.c.b16 %v9437, %v9427
  %v9788 = vpack.c.b16 %v9438, %v9428
  %v9789 = vpack.c.b16 %v9439, %v9429
  %v9790 = vpack.c.b16 %v9440, %v9430
  %v9791 = vpack.c.b16 %v9451, %v9441
  %v9792 = vpack.c.b16 %v9452, %v9442
  %v9793 = vpack.c.b16 %v9453, %v9443
  %v9794 = vpack.c.b16 %v9454, %v9444
  %v9795 = vpack.c.b16 %v9455, %v9445
  %v9796 = vpack.c.b16 %v9456, %v9446
  %v9797 = vpack.c.b16 %v9457, %v9447
  %v9798 = vpack.c.b16 %v9458, %v9448
  %v9799 = vpack.c.b16 %v9459, %v9449
  %v9800 = vpack.c.b16 %v9460, %v9450
  %v9801 = vpack.c.b16 %v9471, %v9461
  %v9802 = vpack.c.b16 %v9472, %v9462
  %v9803 = vpack.c.b16 %v9473, %v9463
  %v9804 = vpack.c.b16 %v9474, %v9464
  %v9805 = vpack.c.b16 %v9475, %v9465
  %v9806 = vpack.c.b16 %v9476, %v9466
  %v9807 = vpack.c.b16 %v9477, %v9467
  %v9808 = vpack.c.b16 %v9478, %v9468
  %v9809 = vpack.c.b16 %v9479, %v9469
  %v9810 = vpack.c.b16 %v9480, %v9470
  %v9811 = vpack.c.b16 %v9491, %v9481
  %v9812 = vpack.c.b16 %v9492, %v9482
  %v9813 = vpack.c.b16 %v9493, %v9483
  %v9814 = vpack.c.b16 %v9494, %v9484
  %v9815 = vpack.c.b16 %v9495, %v9485
  %v9816 = vpack.c.b16 %v9496, %v9486
  %v9817 = vpack.c.b16 %v9497, %v9487
  %v9818 = vpack.c.b16 %v9498, %v9488
  %v9819 = vpack.c.b16 %v9499, %v9489
  %v9820 = vpack.c.b16 %v9500, %v9490
  %v9821 = vpack.c.b16 %v9511, %v9501
  %v9822 = vpack.c.b16 %v9512, %v9502
  %v9823 = vpack.c.b16 %v9513, %v9503
  %v9824 = vpack.c.b16 %v9514, %v9504
  %v9825 = vpack.c.b16 %v9515, %v9505
  %v9826 = vpack.c.b16 %v9516, %v9506
  %v9827 = vpack.c.b16 %v9517, %v9507
  %v9828 = vpack.c.b16 %v9518, %v9508
  %v9829 = vpack.c.b16 %v9519, %v9509
  %v9830 = vpack.c.b16 %v9520, %v9510
  %v9831 = vpack.c.b16 %v9531, %v9521
  %v9832 = vpack.c.b16 %v9532, %v9522
  %v9833 = vpack.c.b16 %v9533, %v9523
  %v9834 = vpack.c.b16 %v9534, %v9524
  %v9835 = vpack.c.b16 %v9535, %v9525
  %v9836 = vpack.c.b16 %v9536, %v9526
  %v9837 = vpack.c.b16 %v9537, %v9527
  %v9838 = vpack.c.b16 %v9538, %v9528
  %v9839 = vpack.c.b16 %v9539, %v9529
  %v9840 = vpack.c.b16 %v9540, %v9530
  %v9841 = vpack.c.b16 %v9551, %v9541
  %v9842 = vpack.c.b16 %v9552, %v9542
  %v9843 = vpack.c.b16 %v9553, %v9543
  %v9844 = vpack.c.b16 %v9554, %v9544
  %v9845 = vpack.c.b16 %v9555, %v9545
  %v9846 = vpack.c.b16 %v9556, %v9546
  %v9847 = vpack.c.b16 %v9557, %v9547
  %v9848 = vpack.c.b16 %v9558, %v9548
  %v9849 = vpack.c.b16 %v9559, %v9549
  %v9850 = vpack.c.b16 %v9560, %v9550
  %v9851 = vpack.c.b16 %v9571, %v9561
  %v9852 = vpack.c.b16 %v9572, %v9562
  %v9853 = vpack.c.b16 %v9573, %v9563
  %v9854 = vpack.c.b16 %v9574, %v9564
  %v9855 = vpack.c.b16 %v9575, %v9565
  %v9856 = vpack.c.b16 %v9576, %v9566
  %v9857 = vpack.c.b16 %v9577, %v9567
  %v9858 = vpack.c.b16 %v9578, %v9568
  %v9859 = vpack.c.b16 %v9579, %v9569
  %v9860 = vpack.c.b16 %v9580, %v9570
  %v9861 = vpack.c.b16 %v9591, %v9581
  %v9862 = vpack.c.b16 %v9592, %v9582
  %v9863 = vpack.c.b16 %v9593, %v9583
  %v9864 = vpack.c.b16 %v9594, %v9584
  %v9865 = vpack.c.b16 %v9595, %v9585
  %v9866 = vpack.c.b16 %v9596, %v9586
  %v9867 = vpack.c.b16 %v9597, %v9587
  %v9868 = vpack.c.b16 %v9598, %v9588
  %v9869 = vpack.c.b16 %v9599, %v9589
  %v9870 = vpack.c.b16 %v9600, %v9590
  %v9871 = vpack.c.b16 %v9611, %v9601
  %v9872 = vpack.c.b16 %v9612, %v9602
  %v9873 = vpack.c.b16 %v9613, %v9603
  %v9874 = vpack.c.b16 %v9614, %v9604
  %v9875 = vpack.c.b16 %v9615, %v9605
  %v9876 = vpack.c.b16 %v9616, %v9606
  %v9877 = vpack.c.b16 %v9617, %v9607
  %v9878 = vpack.c.b16 %v9618, %v9608
  %v9879 = vpack.c.b16 %v9619, %v9609
  %v9880 = vpack.c.b16 %v9620, %v9610
  %v9881 = vpack.c.b16 %v9631, %v9621
  %v9882 = vpack.c.b16 %v9632, %v9622
  %v9883 = vpack.c.b16 %v9633, %v9623
  %v9884 = vpack.c.b16 %v9634, %v9624
  %v9885 = vpack.c.b16 %v9635, %v9625
  %v9886 = vpack.c.b16 %v9636, %v9626
  %v9887 = vpack.c.b16 %v9637, %v9627
  %v9888 = vpack.c.b16 %v9638, %v9628
  %v9889 = vpack.c.b16 %v9639, %v9629
  %v9890 = vpack.c.b16 %v9640, %v9630
  %v9891 = vpack.c.b16 %v9651, %v9641
  %v9892 = vpack.c.b16 %v9652, %v9642
  %v9893 = vpack.c.b16 %v9653, %v9643
  %v9894 = vpack.c.b16 %v9654, %v9644
  %v9895 = vpack.c.b16 %v9655, %v9645
  %v9896 = vpack.c.b16 %v9656, %v9646
  %v9897 = vpack.c.b16 %v9657, %v9647
  %v9898 = vpack.c.b16 %v9658, %v9648
  %v9899 = vpack.c.b16 %v9659, %v9649
  %v9900 = vpack.c.b16 %v9660, %v9650
  %v9901 = vpack.c.b16 %v9671, %v9661
  %v9902 = vpack.c.b16 %v9672, %v9662
  %v9903 = vpack.c.b16 %v9673, %v9663
  %v9904 = vpack.c.b16 %v9674, %v9664
  %v9905 = vpack.c.b16 %v9675, %v9665
  %v9906 = vpack.c.b16 %v9676, %v9666
  %v9907 = vpack.c.b16 %v9677, %v9667
  %v9908 = vpack.c.b16 %v9678, %v9668
  %v9909 = vpack.c.b16 %v9679, %v9669
  %v9910 = vpack.c.b16 %v9680, %v9670
  %v9911 = vpack.c.b16 %v9691, %v9681
  %v9912 = vpack.c.b16 %v9692, %v9682
  %v9913 = vpack.c.b16 %v9693, %v9683
  %v9914 = vpack.c.b16 %v9694, %v9684
  %v9915 = vpack.c.b16 %v9695, %v9685
  %v9916 = vpack.c.b16 %v9696, %v9686
  %v9917 = vpack.c.b16 %v9697, %v9687
  %v9918 = vpack.c.b16 %v9698, %v9688
  %v9919 = vpack.c.b16 %v9699, %v9689
  %v9920 = vpack.c.b16 %v9700, %v9690
  %v9921 = vpack.c.b16 %v9711, %v9701
  %v9922 = vpack.c.b16 %v9712, %v9702
  %v9923 = vpack.c.b16 %v9713, %v9703
  %v9924 = vpack.c.b16 %v9714, %v9704
  %v9925 = vpack.c.b16 %v9715, %v9705
  %v9926 = vpack.c.b16 %v9716, %v9706
  %v9927 = vpack.c.b16 %v9717, %v9707
  %v9928 = vpack.c.b16 %v9718, %v9708
  %v9929 = vpack.c.b16 %v9719, %v9709
  %v9930 = vpack.c.b16 %v9720, %v9710
  %v9931 = vpack.c.b16 %v9731, %v9721
  %v9932 = vpack.c.b16 %v9732, %v9722
  %v9933 = vpack.c.b16 %v9733, %v9723
  %v9934 = vpack.c.b16 %v9734, %v9724
  %v9935 = vpack.c.b16 %v9735, %v9725
  %v9936 = vpack.c.b16 %v9736, %v9726
  %v9937 = vpack.c.b16 %v9737, %v9727
  %v9938 = vpack.c.b16 %v9738, %v9728
  %v9939 = vpack.c.b16 %v9739, %v9729
  %v9940 = vpack.c.b16 %v9740, %v9730
  %v9941 = vpack.c.b16 %v9751, %v9741
  %v9942 = vpack.c.b16 %v9752, %v9742
  %v9943 = vpack.c.b16 %v9753, %v9743
  %v9944 = vpack.c.b16 %v9754, %v9744
  %v9945 = vpack.c.b16 %v9755, %v9745
  %v9946 = vpack.c.b16 %v9756, %v9746
  %v9947 = vpack.c.b16 %v9757, %v9747
  %v9948 = vpack.c.b16 %v9758, %v9748
  %v9949 = vpack.c.b16 %v9759, %v9749
  %v9950 = vpack.c.b16 %v9760, %v9750
  %v10132 = vsel %vm1305, %v9941, 0
  %v10135 = vsel %vm1305, %v9942, 0
  %v10138 = vsel %vm1305, %v9943, 0
  %v10141 = vsel %vm1305, %v9944, 0
  %v10144 = vsel %vm1305, %v9945, 0
  %v10147 = vsel %vm1305, %v9946, 0
  %v10150 = vsel %vm1305, %v9947, 0
  %v10153 = vsel %vm1305, %v9948, 0
  %v10156 = vsel %vm1305, %v9949, 0
  %v10159 = vsel %vm1305, %v9950, 0
  %10161 = vmatprep.subr.bf16.mxu0 %v9762
  %10162 = vmatpush1.bf16.msra.mxu0 %v9761
  %10163 = vmatprep.subr.bf16.mxu0 %v9772
  %10164 = vmatpush1.bf16.msra.mxu0 %v9771
  %10165 = vmatprep.subr.bf16.mxu0 %v9782
  %10166 = vmatpush1.bf16.msra.mxu0 %v9781
  %10167 = vmatprep.subr.bf16.mxu0 %v9792
  %10168 = vmatpush1.bf16.msra.mxu0 %v9791
  %10169 = vmatprep.subr.bf16.mxu0 %v9802
  %10170 = vmatpush1.bf16.msra.mxu0 %v9801
  %10171 = vmatprep.subr.bf16.mxu0 %v9812
  %10172 = vmatpush1.bf16.msra.mxu0 %v9811
  %10173 = vmatprep.subr.bf16.mxu0 %v9822
  %10174 = vmatpush1.bf16.msra.mxu0 %v9821
  %10175 = vmatprep.subr.bf16.mxu0 %v9832
  %10176 = vmatpush1.bf16.msra.mxu0 %v9831
  %10177 = vmatprep.subr.bf16.mxu0 %v9842
  %10178 = vmatpush1.bf16.msra.mxu0 %v9841
  %10179 = vmatprep.subr.bf16.mxu0 %v9852
  %10180 = vmatpush1.bf16.msra.mxu0 %v9851
  %10181 = vmatprep.subr.bf16.mxu0 %v9862
  %10182 = vmatpush1.bf16.msra.mxu0 %v9861
  %10183 = vmatprep.subr.bf16.mxu0 %v9872
  %10184 = vmatpush1.bf16.msra.mxu0 %v9871
  %10185 = vmatprep.subr.bf16.mxu0 %v9882
  %10186 = vmatpush1.bf16.msra.mxu0 %v9881
  %10187 = vmatprep.subr.bf16.mxu0 %v9892
  %10188 = vmatpush1.bf16.msra.mxu0 %v9891
  %10189 = vmatprep.subr.bf16.mxu0 %v9902
  %10190 = vmatpush1.bf16.msra.mxu0 %v9901
  %10191 = vmatprep.subr.bf16.mxu0 %v9912
  %10192 = vmatpush1.bf16.msra.mxu0 %v9911
  %10193 = vmatprep.mubr.bf16.mxu0 %v145
  %10194 = vmatmul.mubr.bf16.gmra.mrb[0].mxu0 %v144
  %v10195 = vpop.f32.mrb[0].mxu0
  %v10196 = vadd.f32 0.0, %v10195
  %v10197 = vpop.f32.mrb[0].mxu0
  %v10198 = vadd.f32 0.0, %v10197
  %v10199 = vpop.f32.mrb[0].mxu0
  %v10200 = vadd.f32 0.0, %v10199
  %v10201 = vpop.f32.mrb[0].mxu0
  %v10202 = vadd.f32 0.0, %v10201
  %10203 = vmatprep.mubr.bf16.mxu0 %v148
  %10204 = vmatmul.mubr.bf16.gmra.mrb[0].mxu0 %v147
  %v10205 = vpop.f32.mrb[0].mxu0
  %v10206 = vadd.f32 0.0, %v10205
  %v10207 = vpop.f32.mrb[0].mxu0
  %v10208 = vadd.f32 0.0, %v10207
  %v10209 = vpop.f32.mrb[0].mxu0
  %v10210 = vadd.f32 0.0, %v10209
  %v10211 = vpop.f32.mrb[0].mxu0
  %v10212 = vadd.f32 0.0, %v10211
  %10213 = vmatprep.mubr.bf16.mxu0 %v151
  %10214 = vmatmul.mubr.bf16.gmra.mrb[0].mxu0 %v150
  %v10215 = vpop.f32.mrb[0].mxu0
  %v10216 = vadd.f32 0.0, %v10215
  %v10217 = vpop.f32.mrb[0].mxu0
  %v10218 = vadd.f32 0.0, %v10217
  %v10219 = vpop.f32.mrb[0].mxu0
  %v10220 = vadd.f32 0.0, %v10219
  %v10221 = vpop.f32.mrb[0].mxu0
  %v10222 = vadd.f32 0.0, %v10221
  %10223 = vmatprep.mubr.bf16.mxu0 %v154
  %10224 = vmatmul.mubr.bf16.gmra.mrb[0].mxu0 %v153
  %v10225 = vpop.f32.mrb[0].mxu0
  %v10226 = vadd.f32 0.0, %v10225
  %v10227 = vpop.f32.mrb[0].mxu0
  %v10228 = vadd.f32 0.0, %v10227
  %v10229 = vpop.f32.mrb[0].mxu0
  %v10230 = vadd.f32 0.0, %v10229
  %v10231 = vpop.f32.mrb[0].mxu0
  %v10232 = vadd.f32 0.0, %v10231
  %10233 = vmatprep.mubr.bf16.mxu0 %v157
  %10234 = vmatmul.mubr.bf16.gmra.mrb[0].mxu0 %v156
  %v10235 = vpop.f32.mrb[0].mxu0
  %v10236 = vadd.f32 0.0, %v10235
  %v10237 = vpop.f32.mrb[0].mxu0
  %v10238 = vadd.f32 0.0, %v10237
  %v10239 = vpop.f32.mrb[0].mxu0
  %v10240 = vpop.f32.mrb[0].mxu0
  %10241 = vdwg.mxu0
  %10242 = vmatprep.subr.bf16.mxu0 %v9922
  %10243 = vmatpush1.bf16.msra.mxu0 %v9921
  %10244 = vmatprep.subr.bf16.mxu0 %v9932
  %10245 = vmatpush1.bf16.msra.mxu0 %v9931
  %10246 = vmatprep.subr.bf16.mxu0 %v10135
  %10247 = vmatpush1.bf16.msra.mxu0 %v10132
  %10248 = vmatprep.subr.bf16.mxu0 0
  %10249 = vmatpush1.bf16.msra.mxu0 0
  %10250 = vmatprep.subr.bf16.mxu0 0
  %10251 = vmatpush1.bf16.msra.mxu0 0
  %10252 = vmatprep.subr.bf16.mxu0 0
  %10253 = vmatpush1.bf16.msra.mxu0 0
  %10254 = vmatprep.subr.bf16.mxu0 0
  %10255 = vmatpush1.bf16.msra.mxu0 0
  %10256 = vmatprep.subr.bf16.mxu0 0
  %10257 = vmatpush1.bf16.msra.mxu0 0
  %10258 = vmatprep.subr.bf16.mxu0 0
  %10259 = vmatpush1.bf16.msra.mxu0 0
  %10260 = vmatprep.subr.bf16.mxu0 0
  %10261 = vmatpush1.bf16.msra.mxu0 0
  %10262 = vmatprep.subr.bf16.mxu0 0
  %10263 = vmatpush1.bf16.msra.mxu0 0
  %10264 = vmatprep.subr.bf16.mxu0 0
  %10265 = vmatpush1.bf16.msra.mxu0 0
  %10266 = vmatprep.subr.bf16.mxu0 0
  %10267 = vmatpush1.bf16.msra.mxu0 0
  %10268 = vmatprep.subr.bf16.mxu0 0
  %10269 = vmatpush1.bf16.msra.mxu0 0
  %10270 = vmatprep.subr.bf16.mxu0 0
  %10271 = vmatpush1.bf16.msra.mxu0 0
  %10272 = vmatprep.subr.bf16.mxu0 0
  %10273 = vmatpush1.bf16.msra.mxu0 0
  %10274 = vmatprep.mubr.bf16.mxu0 0
  %10275 = vmatmul.mubr.bf16.gmra.mrb[0].mxu0 %v7094
  %v10276 = vpop.f32.mrb[0].mxu0
  %v10277 = vadd.f32 %v10196, %v10276
  %v10278 = vpop.f32.mrb[0].mxu0
  %v10279 = vadd.f32 %v10198, %v10278
  %v10280 = vpop.f32.mrb[0].mxu0
  %v10281 = vadd.f32 %v10200, %v10280
  %v10282 = vpop.f32.mrb[0].mxu0
  %v10283 = vadd.f32 %v10202, %v10282
  %10284 = vmatprep.mubr.bf16.mxu0 0
  %10285 = vmatmul.mubr.bf16.gmra.mrb[0].mxu0 %v7097
  %v10286 = vpop.f32.mrb[0].mxu0
  %v10287 = vadd.f32 %v10206, %v10286
  %v10288 = vpop.f32.mrb[0].mxu0
  %v10289 = vadd.f32 %v10208, %v10288
  %v10290 = vpop.f32.mrb[0].mxu0
  %v10291 = vadd.f32 %v10210, %v10290
  %v10292 = vpop.f32.mrb[0].mxu0
  %v10293 = vadd.f32 %v10212, %v10292
  %10294 = vmatprep.mubr.bf16.mxu0 0
  %10295 = vmatmul.mubr.bf16.gmra.mrb[0].mxu0 %v7100
  %v10296 = vpop.f32.mrb[0].mxu0
  %v10297 = vadd.f32 %v10216, %v10296
  %v10298 = vpop.f32.mrb[0].mxu0
  %v10299 = vadd.f32 %v10218, %v10298
  %v10300 = vpop.f32.mrb[0].mxu0
  %v10301 = vadd.f32 %v10220, %v10300
  %v10302 = vpop.f32.mrb[0].mxu0
  %v10303 = vadd.f32 %v10222, %v10302
  %10304 = vmatprep.mubr.bf16.mxu0 0
  %10305 = vmatmul.mubr.bf16.gmra.mrb[0].mxu0 %v7103
  %v10306 = vpop.f32.mrb[0].mxu0
  %v10307 = vadd.f32 %v10226, %v10306
  %v10308 = vpop.f32.mrb[0].mxu0
  %v10309 = vadd.f32 %v10228, %v10308
  %v10310 = vpop.f32.mrb[0].mxu0
  %v10311 = vadd.f32 %v10230, %v10310
  %v10312 = vpop.f32.mrb[0].mxu0
  %v10313 = vadd.f32 %v10232, %v10312
  %10314 = vmatprep.mubr.bf16.mxu0 0
  %10315 = vmatmul.mubr.bf16.gmra.mrb[0].mxu0 %v7106
  %v10316 = vpop.f32.mrb[0].mxu0
  %v10317 = vadd.f32 %v10236, %v10316
  %v10318 = vpop.f32.mrb[0].mxu0
  %v10319 = vadd.f32 %v10238, %v10318
  %v10320 = vpop.f32.mrb[0].mxu0
  %v10321 = vpop.f32.mrb[0].mxu0
  %10322 = vdwg.mxu0
  %10323 = vmatprep.subr.bf16.mxu0 %v9764
  %10324 = vmatpush1.bf16.msra.mxu0 %v9763
  %10325 = vmatprep.subr.bf16.mxu0 %v9774
  %10326 = vmatpush1.bf16.msra.mxu0 %v9773
  %10327 = vmatprep.subr.bf16.mxu0 %v9784
  %10328 = vmatpush1.bf16.msra.mxu0 %v9783
  %10329 = vmatprep.subr.bf16.mxu0 %v9794
  %10330 = vmatpush1.bf16.msra.mxu0 %v9793
  %10331 = vmatprep.subr.bf16.mxu0 %v9804
  %10332 = vmatpush1.bf16.msra.mxu0 %v9803
  %10333 = vmatprep.subr.bf16.mxu0 %v9814
  %10334 = vmatpush1.bf16.msra.mxu0 %v9813
  %10335 = vmatprep.subr.bf16.mxu0 %v9824
  %10336 = vmatpush1.bf16.msra.mxu0 %v9823
  %10337 = vmatprep.subr.bf16.mxu0 %v9834
  %10338 = vmatpush1.bf16.msra.mxu0 %v9833
  %10339 = vmatprep.subr.bf16.mxu0 %v9844
  %10340 = vmatpush1.bf16.msra.mxu0 %v9843
  %10341 = vmatprep.subr.bf16.mxu0 %v9854
  %10342 = vmatpush1.bf16.msra.mxu0 %v9853
  %10343 = vmatprep.subr.bf16.mxu0 %v9864
  %10344 = vmatpush1.bf16.msra.mxu0 %v9863
  %10345 = vmatprep.subr.bf16.mxu0 %v9874
  %10346 = vmatpush1.bf16.msra.mxu0 %v9873
  %10347 = vmatprep.subr.bf16.mxu0 %v9884
  %10348 = vmatpush1.bf16.msra.mxu0 %v9883
  %10349 = vmatprep.subr.bf16.mxu0 %v9894
  %10350 = vmatpush1.bf16.msra.mxu0 %v9893
  %10351 = vmatprep.subr.bf16.mxu0 %v9904
  %10352 = vmatpush1.bf16.msra.mxu0 %v9903
  %10353 = vmatprep.subr.bf16.mxu0 %v9914
  %10354 = vmatpush1.bf16.msra.mxu0 %v9913
  %10355 = vmatprep.mubr.bf16.mxu0 %v145
  %10356 = vmatmul.mubr.bf16.gmra.mrb[0].mxu0 %v144
  %v10357 = vpop.f32.mrb[0].mxu0
  %v10358 = vadd.f32 0.0, %v10357
  %v10359 = vpop.f32.mrb[0].mxu0
  %v10360 = vadd.f32 0.0, %v10359
  %v10361 = vpop.f32.mrb[0].mxu0
  %v10362 = vadd.f32 0.0, %v10361
  %v10363 = vpop.f32.mrb[0].mxu0
  %v10364 = vadd.f32 0.0, %v10363
  %10365 = vmatprep.mubr.bf16.mxu0 %v148
  %10366 = vmatmul.mubr.bf16.gmra.mrb[0].mxu0 %v147
  %v10367 = vpop.f32.mrb[0].mxu0
  %v10368 = vadd.f32 0.0, %v10367
  %v10369 = vpop.f32.mrb[0].mxu0
  %v10370 = vadd.f32 0.0, %v10369
  %v10371 = vpop.f32.mrb[0].mxu0
  %v10372 = vadd.f32 0.0, %v10371
  %v10373 = vpop.f32.mrb[0].mxu0
  %v10374 = vadd.f32 0.0, %v10373
  %10375 = vmatprep.mubr.bf16.mxu0 %v151
  %10376 = vmatmul.mubr.bf16.gmra.mrb[0].mxu0 %v150
  %v10377 = vpop.f32.mrb[0].mxu0
  %v10378 = vadd.f32 0.0, %v10377
  %v10379 = vpop.f32.mrb[0].mxu0
  %v10380 = vadd.f32 0.0, %v10379
  %v10381 = vpop.f32.mrb[0].mxu0
  %v10382 = vadd.f32 0.0, %v10381
  %v10383 = vpop.f32.mrb[0].mxu0
  %v10384 = vadd.f32 0.0, %v10383
  %10385 = vmatprep.mubr.bf16.mxu0 %v154
  %10386 = vmatmul.mubr.bf16.gmra.mrb[0].mxu0 %v153
  %v10387 = vpop.f32.mrb[0].mxu0
  %v10388 = vadd.f32 0.0, %v10387
  %v10389 = vpop.f32.mrb[0].mxu0
  %v10390 = vadd.f32 0.0, %v10389
  %v10391 = vpop.f32.mrb[0].mxu0
  %v10392 = vadd.f32 0.0, %v10391
  %v10393 = vpop.f32.mrb[0].mxu0
  %v10394 = vadd.f32 0.0, %v10393
  %10395 = vmatprep.mubr.bf16.mxu0 %v157
  %10396 = vmatmul.mubr.bf16.gmra.mrb[0].mxu0 %v156
  %v10397 = vpop.f32.mrb[0].mxu0
  %v10398 = vadd.f32 0.0, %v10397
  %v10399 = vpop.f32.mrb[0].mxu0
  %v10400 = vadd.f32 0.0, %v10399
  %v10401 = vpop.f32.mrb[0].mxu0
  %v10402 = vpop.f32.mrb[0].mxu0
  %10403 = vdwg.mxu0
  %10404 = vmatprep.subr.bf16.mxu0 %v9924
  %10405 = vmatpush1.bf16.msra.mxu0 %v9923
  %10406 = vmatprep.subr.bf16.mxu0 %v9934
  %10407 = vmatpush1.bf16.msra.mxu0 %v9933
  %10408 = vmatprep.subr.bf16.mxu0 %v10141
  %10409 = vmatpush1.bf16.msra.mxu0 %v10138
  %10410 = vmatprep.subr.bf16.mxu0 0
  %10411 = vmatpush1.bf16.msra.mxu0 0
  %10412 = vmatprep.subr.bf16.mxu0 0
  %10413 = vmatpush1.bf16.msra.mxu0 0
  %10414 = vmatprep.subr.bf16.mxu0 0
  %10415 = vmatpush1.bf16.msra.mxu0 0
  %10416 = vmatprep.subr.bf16.mxu0 0
  %10417 = vmatpush1.bf16.msra.mxu0 0
  %10418 = vmatprep.subr.bf16.mxu0 0
  %10419 = vmatpush1.bf16.msra.mxu0 0
  %10420 = vmatprep.subr.bf16.mxu0 0
  %10421 = vmatpush1.bf16.msra.mxu0 0
  %10422 = vmatprep.subr.bf16.mxu0 0
  %10423 = vmatpush1.bf16.msra.mxu0 0
  %10424 = vmatprep.subr.bf16.mxu0 0
  %10425 = vmatpush1.bf16.msra.mxu0 0
  %10426 = vmatprep.subr.bf16.mxu0 0
  %10427 = vmatpush1.bf16.msra.mxu0 0
  %10428 = vmatprep.subr.bf16.mxu0 0
  %10429 = vmatpush1.bf16.msra.mxu0 0
  %10430 = vmatprep.subr.bf16.mxu0 0
  %10431 = vmatpush1.bf16.msra.mxu0 0
  %10432 = vmatprep.subr.bf16.mxu0 0
  %10433 = vmatpush1.bf16.msra.mxu0 0
  %10434 = vmatprep.subr.bf16.mxu0 0
  %10435 = vmatpush1.bf16.msra.mxu0 0
  %10436 = vmatprep.mubr.bf16.mxu0 0
  %10437 = vmatmul.mubr.bf16.gmra.mrb[0].mxu0 %v7094
  %v10438 = vpop.f32.mrb[0].mxu0
  %v10439 = vadd.f32 %v10358, %v10438
  %v10440 = vpop.f32.mrb[0].mxu0
  %v10441 = vadd.f32 %v10360, %v10440
  %v10442 = vpop.f32.mrb[0].mxu0
  %v10443 = vadd.f32 %v10362, %v10442
  %v10444 = vpop.f32.mrb[0].mxu0
  %v10445 = vadd.f32 %v10364, %v10444
  %10446 = vmatprep.mubr.bf16.mxu0 0
  %10447 = vmatmul.mubr.bf16.gmra.mrb[0].mxu0 %v7097
  %v10448 = vpop.f32.mrb[0].mxu0
  %v10449 = vadd.f32 %v10368, %v10448
  %v10450 = vpop.f32.mrb[0].mxu0
  %v10451 = vadd.f32 %v10370, %v10450
  %v10452 = vpop.f32.mrb[0].mxu0
  %v10453 = vadd.f32 %v10372, %v10452
  %v10454 = vpop.f32.mrb[0].mxu0
  %v10455 = vadd.f32 %v10374, %v10454
  %10456 = vmatprep.mubr.bf16.mxu0 0
  %10457 = vmatmul.mubr.bf16.gmra.mrb[0].mxu0 %v7100
  %v10458 = vpop.f32.mrb[0].mxu0
  %v10459 = vadd.f32 %v10378, %v10458
  %v10460 = vpop.f32.mrb[0].mxu0
  %v10461 = vadd.f32 %v10380, %v10460
  %v10462 = vpop.f32.mrb[0].mxu0
  %v10463 = vadd.f32 %v10382, %v10462
  %v10464 = vpop.f32.mrb[0].mxu0
  %v10465 = vadd.f32 %v10384, %v10464
  %10466 = vmatprep.mubr.bf16.mxu0 0
  %10467 = vmatmul.mubr.bf16.gmra.mrb[0].mxu0 %v7103
  %v10468 = vpop.f32.mrb[0].mxu0
  %v10469 = vadd.f32 %v10388, %v10468
  %v10470 = vpop.f32.mrb[0].mxu0
  %v10471 = vadd.f32 %v10390, %v10470
  %v10472 = vpop.f32.mrb[0].mxu0
  %v10473 = vadd.f32 %v10392, %v10472
  %v10474 = vpop.f32.mrb[0].mxu0
  %v10475 = vadd.f32 %v10394, %v10474
  %10476 = vmatprep.mubr.bf16.mxu0 0
  %10477 = vmatmul.mubr.bf16.gmra.mrb[0].mxu0 %v7106
  %v10478 = vpop.f32.mrb[0].mxu0
  %v10479 = vadd.f32 %v10398, %v10478
  %v10480 = vpop.f32.mrb[0].mxu0
  %v10481 = vadd.f32 %v10400, %v10480
  %v10482 = vpop.f32.mrb[0].mxu0
  %v10483 = vpop.f32.mrb[0].mxu0
  %10484 = vdwg.mxu0
  %10485 = vmatprep.subr.bf16.mxu0 %v9766
  %10486 = vmatpush1.bf16.msra.mxu0 %v9765
  %10487 = vmatprep.subr.bf16.mxu0 %v9776
  %10488 = vmatpush1.bf16.msra.mxu0 %v9775
  %10489 = vmatprep.subr.bf16.mxu0 %v9786
  %10490 = vmatpush1.bf16.msra.mxu0 %v9785
  %10491 = vmatprep.subr.bf16.mxu0 %v9796
  %10492 = vmatpush1.bf16.msra.mxu0 %v9795
  %10493 = vmatprep.subr.bf16.mxu0 %v9806
  %10494 = vmatpush1.bf16.msra.mxu0 %v9805
  %10495 = vmatprep.subr.bf16.mxu0 %v9816
  %10496 = vmatpush1.bf16.msra.mxu0 %v9815
  %10497 = vmatprep.subr.bf16.mxu0 %v9826
  %10498 = vmatpush1.bf16.msra.mxu0 %v9825
  %10499 = vmatprep.subr.bf16.mxu0 %v9836
  %10500 = vmatpush1.bf16.msra.mxu0 %v9835
  %10501 = vmatprep.subr.bf16.mxu0 %v9846
  %10502 = vmatpush1.bf16.msra.mxu0 %v9845
  %10503 = vmatprep.subr.bf16.mxu0 %v9856
  %10504 = vmatpush1.bf16.msra.mxu0 %v9855
  %10505 = vmatprep.subr.bf16.mxu0 %v9866
  %10506 = vmatpush1.bf16.msra.mxu0 %v9865
  %10507 = vmatprep.subr.bf16.mxu0 %v9876
  %10508 = vmatpush1.bf16.msra.mxu0 %v9875
  %10509 = vmatprep.subr.bf16.mxu0 %v9886
  %10510 = vmatpush1.bf16.msra.mxu0 %v9885
  %10511 = vmatprep.subr.bf16.mxu0 %v9896
  %10512 = vmatpush1.bf16.msra.mxu0 %v9895
  %10513 = vmatprep.subr.bf16.mxu0 %v9906
  %10514 = vmatpush1.bf16.msra.mxu0 %v9905
  %10515 = vmatprep.subr.bf16.mxu0 %v9916
  %10516 = vmatpush1.bf16.msra.mxu0 %v9915
  %10517 = vmatprep.mubr.bf16.mxu0 %v145
  %10518 = vmatmul.mubr.bf16.gmra.mrb[0].mxu0 %v144
  %v10519 = vpop.f32.mrb[0].mxu0
  %v10520 = vadd.f32 0.0, %v10519
  %v10521 = vpop.f32.mrb[0].mxu0
  %v10522 = vadd.f32 0.0, %v10521
  %v10523 = vpop.f32.mrb[0].mxu0
  %v10524 = vadd.f32 0.0, %v10523
  %v10525 = vpop.f32.mrb[0].mxu0
  %v10526 = vadd.f32 0.0, %v10525
  %10527 = vmatprep.mubr.bf16.mxu0 %v148
  %10528 = vmatmul.mubr.bf16.gmra.mrb[0].mxu0 %v147
  %v10529 = vpop.f32.mrb[0].mxu0
  %v10530 = vadd.f32 0.0, %v10529
  %v10531 = vpop.f32.mrb[0].mxu0
  %v10532 = vadd.f32 0.0, %v10531
  %v10533 = vpop.f32.mrb[0].mxu0
  %v10534 = vadd.f32 0.0, %v10533
  %v10535 = vpop.f32.mrb[0].mxu0
  %v10536 = vadd.f32 0.0, %v10535
  %10537 = vmatprep.mubr.bf16.mxu0 %v151
  %10538 = vmatmul.mubr.bf16.gmra.mrb[0].mxu0 %v150
  %v10539 = vpop.f32.mrb[0].mxu0
  %v10540 = vadd.f32 0.0, %v10539
  %v10541 = vpop.f32.mrb[0].mxu0
  %v10542 = vadd.f32 0.0, %v10541
  %v10543 = vpop.f32.mrb[0].mxu0
  %v10544 = vadd.f32 0.0, %v10543
  %v10545 = vpop.f32.mrb[0].mxu0
  %v10546 = vadd.f32 0.0, %v10545
  %10547 = vmatprep.mubr.bf16.mxu0 %v154
  %10548 = vmatmul.mubr.bf16.gmra.mrb[0].mxu0 %v153
  %v10549 = vpop.f32.mrb[0].mxu0
  %v10550 = vadd.f32 0.0, %v10549
  %v10551 = vpop.f32.mrb[0].mxu0
  %v10552 = vadd.f32 0.0, %v10551
  %v10553 = vpop.f32.mrb[0].mxu0
  %v10554 = vadd.f32 0.0, %v10553
  %v10555 = vpop.f32.mrb[0].mxu0
  %v10556 = vadd.f32 0.0, %v10555
  %10557 = vmatprep.mubr.bf16.mxu0 %v157
  %10558 = vmatmul.mubr.bf16.gmra.mrb[0].mxu0 %v156
  %v10559 = vpop.f32.mrb[0].mxu0
  %v10560 = vadd.f32 0.0, %v10559
  %v10561 = vpop.f32.mrb[0].mxu0
  %v10562 = vadd.f32 0.0, %v10561
  %v10563 = vpop.f32.mrb[0].mxu0
  %v10564 = vpop.f32.mrb[0].mxu0
  %10565 = vdwg.mxu0
  %10566 = vmatprep.subr.bf16.mxu0 %v9926
  %10567 = vmatpush1.bf16.msra.mxu0 %v9925
  %10568 = vmatprep.subr.bf16.mxu0 %v9936
  %10569 = vmatpush1.bf16.msra.mxu0 %v9935
  %10570 = vmatprep.subr.bf16.mxu0 %v10147
  %10571 = vmatpush1.bf16.msra.mxu0 %v10144
  %10572 = vmatprep.subr.bf16.mxu0 0
  %10573 = vmatpush1.bf16.msra.mxu0 0
  %10574 = vmatprep.subr.bf16.mxu0 0
  %10575 = vmatpush1.bf16.msra.mxu0 0
  %10576 = vmatprep.subr.bf16.mxu0 0
  %10577 = vmatpush1.bf16.msra.mxu0 0
  %10578 = vmatprep.subr.bf16.mxu0 0
  %10579 = vmatpush1.bf16.msra.mxu0 0
  %10580 = vmatprep.subr.bf16.mxu0 0
  %10581 = vmatpush1.bf16.msra.mxu0 0
  %10582 = vmatprep.subr.bf16.mxu0 0
  %10583 = vmatpush1.bf16.msra.mxu0 0
  %10584 = vmatprep.subr.bf16.mxu0 0
  %10585 = vmatpush1.bf16.msra.mxu0 0
  %10586 = vmatprep.subr.bf16.mxu0 0
  %10587 = vmatpush1.bf16.msra.mxu0 0
  %10588 = vmatprep.subr.bf16.mxu0 0
  %10589 = vmatpush1.bf16.msra.mxu0 0
  %10590 = vmatprep.subr.bf16.mxu0 0
  %10591 = vmatpush1.bf16.msra.mxu0 0
  %10592 = vmatprep.subr.bf16.mxu0 0
  %10593 = vmatpush1.bf16.msra.mxu0 0
  %10594 = vmatprep.subr.bf16.mxu0 0
  %10595 = vmatpush1.bf16.msra.mxu0 0
  %10596 = vmatprep.subr.bf16.mxu0 0
  %10597 = vmatpush1.bf16.msra.mxu0 0
  %10598 = vmatprep.mubr.bf16.mxu0 0
  %10599 = vmatmul.mubr.bf16.gmra.mrb[0].mxu0 %v7094
  %v10600 = vpop.f32.mrb[0].mxu0
  %v10601 = vadd.f32 %v10520, %v10600
  %v10602 = vpop.f32.mrb[0].mxu0
  %v10603 = vadd.f32 %v10522, %v10602
  %v10604 = vpop.f32.mrb[0].mxu0
  %v10605 = vadd.f32 %v10524, %v10604
  %v10606 = vpop.f32.mrb[0].mxu0
  %v10607 = vadd.f32 %v10526, %v10606
  %10608 = vmatprep.mubr.bf16.mxu0 0
  %10609 = vmatmul.mubr.bf16.gmra.mrb[0].mxu0 %v7097
  %v10610 = vpop.f32.mrb[0].mxu0
  %v10611 = vadd.f32 %v10530, %v10610
  %v10612 = vpop.f32.mrb[0].mxu0
  %v10613 = vadd.f32 %v10532, %v10612
  %v10614 = vpop.f32.mrb[0].mxu0
  %v10615 = vadd.f32 %v10534, %v10614
  %v10616 = vpop.f32.mrb[0].mxu0
  %v10617 = vadd.f32 %v10536, %v10616
  %10618 = vmatprep.mubr.bf16.mxu0 0
  %10619 = vmatmul.mubr.bf16.gmra.mrb[0].mxu0 %v7100
  %v10620 = vpop.f32.mrb[0].mxu0
  %v10621 = vadd.f32 %v10540, %v10620
  %v10622 = vpop.f32.mrb[0].mxu0
  %v10623 = vadd.f32 %v10542, %v10622
  %v10624 = vpop.f32.mrb[0].mxu0
  %v10625 = vadd.f32 %v10544, %v10624
  %v10626 = vpop.f32.mrb[0].mxu0
  %v10627 = vadd.f32 %v10546, %v10626
  %10628 = vmatprep.mubr.bf16.mxu0 0
  %10629 = vmatmul.mubr.bf16.gmra.mrb[0].mxu0 %v7103
  %v10630 = vpop.f32.mrb[0].mxu0
  %v10631 = vadd.f32 %v10550, %v10630
  %v10632 = vpop.f32.mrb[0].mxu0
  %v10633 = vadd.f32 %v10552, %v10632
  %v10634 = vpop.f32.mrb[0].mxu0
  %v10635 = vadd.f32 %v10554, %v10634
  %v10636 = vpop.f32.mrb[0].mxu0
  %v10637 = vadd.f32 %v10556, %v10636
  %10638 = vmatprep.mubr.bf16.mxu0 0
  %10639 = vmatmul.mubr.bf16.gmra.mrb[0].mxu0 %v7106
  %v10640 = vpop.f32.mrb[0].mxu0
  %v10641 = vadd.f32 %v10560, %v10640
  %v10642 = vpop.f32.mrb[0].mxu0
  %v10643 = vadd.f32 %v10562, %v10642
  %v10644 = vpop.f32.mrb[0].mxu0
  %v10645 = vpop.f32.mrb[0].mxu0
  %10646 = vdwg.mxu0
  %10647 = vmatprep.subr.bf16.mxu0 %v9768
  %10648 = vmatpush1.bf16.msra.mxu0 %v9767
  %10649 = vmatprep.subr.bf16.mxu0 %v9778
  %10650 = vmatpush1.bf16.msra.mxu0 %v9777
  %10651 = vmatprep.subr.bf16.mxu0 %v9788
  %10652 = vmatpush1.bf16.msra.mxu0 %v9787
  %10653 = vmatprep.subr.bf16.mxu0 %v9798
  %10654 = vmatpush1.bf16.msra.mxu0 %v9797
  %10655 = vmatprep.subr.bf16.mxu0 %v9808
  %10656 = vmatpush1.bf16.msra.mxu0 %v9807
  %10657 = vmatprep.subr.bf16.mxu0 %v9818
  %10658 = vmatpush1.bf16.msra.mxu0 %v9817
  %10659 = vmatprep.subr.bf16.mxu0 %v9828
  %10660 = vmatpush1.bf16.msra.mxu0 %v9827
  %10661 = vmatprep.subr.bf16.mxu0 %v9838
  %10662 = vmatpush1.bf16.msra.mxu0 %v9837
  %10663 = vmatprep.subr.bf16.mxu0 %v9848
  %10664 = vmatpush1.bf16.msra.mxu0 %v9847
  %10665 = vmatprep.subr.bf16.mxu0 %v9858
  %10666 = vmatpush1.bf16.msra.mxu0 %v9857
  %10667 = vmatprep.subr.bf16.mxu0 %v9868
  %10668 = vmatpush1.bf16.msra.mxu0 %v9867
  %10669 = vmatprep.subr.bf16.mxu0 %v9878
  %10670 = vmatpush1.bf16.msra.mxu0 %v9877
  %10671 = vmatprep.subr.bf16.mxu0 %v9888
  %10672 = vmatpush1.bf16.msra.mxu0 %v9887
  %10673 = vmatprep.subr.bf16.mxu0 %v9898
  %10674 = vmatpush1.bf16.msra.mxu0 %v9897
  %10675 = vmatprep.subr.bf16.mxu0 %v9908
  %10676 = vmatpush1.bf16.msra.mxu0 %v9907
  %10677 = vmatprep.subr.bf16.mxu0 %v9918
  %10678 = vmatpush1.bf16.msra.mxu0 %v9917
  %10679 = vmatprep.mubr.bf16.mxu0 %v145
  %10680 = vmatmul.mubr.bf16.gmra.mrb[0].mxu0 %v144
  %v10681 = vpop.f32.mrb[0].mxu0
  %v10682 = vadd.f32 0.0, %v10681
  %v10683 = vpop.f32.mrb[0].mxu0
  %v10684 = vadd.f32 0.0, %v10683
  %v10685 = vpop.f32.mrb[0].mxu0
  %v10686 = vadd.f32 0.0, %v10685
  %v10687 = vpop.f32.mrb[0].mxu0
  %v10688 = vadd.f32 0.0, %v10687
  %10689 = vmatprep.mubr.bf16.mxu0 %v148
  %10690 = vmatmul.mubr.bf16.gmra.mrb[0].mxu0 %v147
  %v10691 = vpop.f32.mrb[0].mxu0
  %v10692 = vadd.f32 0.0, %v10691
  %v10693 = vpop.f32.mrb[0].mxu0
  %v10694 = vadd.f32 0.0, %v10693
  %v10695 = vpop.f32.mrb[0].mxu0
  %v10696 = vadd.f32 0.0, %v10695
  %v10697 = vpop.f32.mrb[0].mxu0
  %v10698 = vadd.f32 0.0, %v10697
  %10699 = vmatprep.mubr.bf16.mxu0 %v151
  %10700 = vmatmul.mubr.bf16.gmra.mrb[0].mxu0 %v150
  %v10701 = vpop.f32.mrb[0].mxu0
  %v10702 = vadd.f32 0.0, %v10701
  %v10703 = vpop.f32.mrb[0].mxu0
  %v10704 = vadd.f32 0.0, %v10703
  %v10705 = vpop.f32.mrb[0].mxu0
  %v10706 = vadd.f32 0.0, %v10705
  %v10707 = vpop.f32.mrb[0].mxu0
  %v10708 = vadd.f32 0.0, %v10707
  %10709 = vmatprep.mubr.bf16.mxu0 %v154
  %10710 = vmatmul.mubr.bf16.gmra.mrb[0].mxu0 %v153
  %v10711 = vpop.f32.mrb[0].mxu0
  %v10712 = vadd.f32 0.0, %v10711
  %v10713 = vpop.f32.mrb[0].mxu0
  %v10714 = vadd.f32 0.0, %v10713
  %v10715 = vpop.f32.mrb[0].mxu0
  %v10716 = vadd.f32 0.0, %v10715
  %v10717 = vpop.f32.mrb[0].mxu0
  %v10718 = vadd.f32 0.0, %v10717
  %10719 = vmatprep.mubr.bf16.mxu0 %v157
  %10720 = vmatmul.mubr.bf16.gmra.mrb[0].mxu0 %v156
  %v10721 = vpop.f32.mrb[0].mxu0
  %v10722 = vadd.f32 0.0, %v10721
  %v10723 = vpop.f32.mrb[0].mxu0
  %v10724 = vadd.f32 0.0, %v10723
  %v10725 = vpop.f32.mrb[0].mxu0
  %v10726 = vpop.f32.mrb[0].mxu0
  %10727 = vdwg.mxu0
  %10728 = vmatprep.subr.bf16.mxu0 %v9928
  %10729 = vmatpush1.bf16.msra.mxu0 %v9927
  %10730 = vmatprep.subr.bf16.mxu0 %v9938
  %10731 = vmatpush1.bf16.msra.mxu0 %v9937
  %10732 = vmatprep.subr.bf16.mxu0 %v10153
  %10733 = vmatpush1.bf16.msra.mxu0 %v10150
  %10734 = vmatprep.subr.bf16.mxu0 0
  %10735 = vmatpush1.bf16.msra.mxu0 0
  %10736 = vmatprep.subr.bf16.mxu0 0
  %10737 = vmatpush1.bf16.msra.mxu0 0
  %10738 = vmatprep.subr.bf16.mxu0 0
  %10739 = vmatpush1.bf16.msra.mxu0 0
  %10740 = vmatprep.subr.bf16.mxu0 0
  %10741 = vmatpush1.bf16.msra.mxu0 0
  %10742 = vmatprep.subr.bf16.mxu0 0
  %10743 = vmatpush1.bf16.msra.mxu0 0
  %10744 = vmatprep.subr.bf16.mxu0 0
  %10745 = vmatpush1.bf16.msra.mxu0 0
  %10746 = vmatprep.subr.bf16.mxu0 0
  %10747 = vmatpush1.bf16.msra.mxu0 0
  %10748 = vmatprep.subr.bf16.mxu0 0
  %10749 = vmatpush1.bf16.msra.mxu0 0
  %10750 = vmatprep.subr.bf16.mxu0 0
  %10751 = vmatpush1.bf16.msra.mxu0 0
  %10752 = vmatprep.subr.bf16.mxu0 0
  %10753 = vmatpush1.bf16.msra.mxu0 0
  %10754 = vmatprep.subr.bf16.mxu0 0
  %10755 = vmatpush1.bf16.msra.mxu0 0
  %10756 = vmatprep.subr.bf16.mxu0 0
  %10757 = vmatpush1.bf16.msra.mxu0 0
  %10758 = vmatprep.subr.bf16.mxu0 0
  %10759 = vmatpush1.bf16.msra.mxu0 0
  %10760 = vmatprep.mubr.bf16.mxu0 0
  %10761 = vmatmul.mubr.bf16.gmra.mrb[0].mxu0 %v7094
  %v10762 = vpop.f32.mrb[0].mxu0
  %v10763 = vadd.f32 %v10682, %v10762
  %v10764 = vpop.f32.mrb[0].mxu0
  %v10765 = vadd.f32 %v10684, %v10764
  %v10766 = vpop.f32.mrb[0].mxu0
  %v10767 = vadd.f32 %v10686, %v10766
  %v10768 = vpop.f32.mrb[0].mxu0
  %v10769 = vadd.f32 %v10688, %v10768
  %10770 = vmatprep.mubr.bf16.mxu0 0
  %10771 = vmatmul.mubr.bf16.gmra.mrb[0].mxu0 %v7097
  %v10772 = vpop.f32.mrb[0].mxu0
  %v10773 = vadd.f32 %v10692, %v10772
  %v10774 = vpop.f32.mrb[0].mxu0
  %v10775 = vadd.f32 %v10694, %v10774
  %v10776 = vpop.f32.mrb[0].mxu0
  %v10777 = vadd.f32 %v10696, %v10776
  %v10778 = vpop.f32.mrb[0].mxu0
  %v10779 = vadd.f32 %v10698, %v10778
  %10780 = vmatprep.mubr.bf16.mxu0 0
  %10781 = vmatmul.mubr.bf16.gmra.mrb[0].mxu0 %v7100
  %v10782 = vpop.f32.mrb[0].mxu0
  %v10783 = vadd.f32 %v10702, %v10782
  %v10784 = vpop.f32.mrb[0].mxu0
  %v10785 = vadd.f32 %v10704, %v10784
  %v10786 = vpop.f32.mrb[0].mxu0
  %v10787 = vadd.f32 %v10706, %v10786
  %v10788 = vpop.f32.mrb[0].mxu0
  %v10789 = vadd.f32 %v10708, %v10788
  %10790 = vmatprep.mubr.bf16.mxu0 0
  %10791 = vmatmul.mubr.bf16.gmra.mrb[0].mxu0 %v7103
  %v10792 = vpop.f32.mrb[0].mxu0
  %v10793 = vadd.f32 %v10712, %v10792
  %v10794 = vpop.f32.mrb[0].mxu0
  %v10795 = vadd.f32 %v10714, %v10794
  %v10796 = vpop.f32.mrb[0].mxu0
  %v10797 = vadd.f32 %v10716, %v10796
  %v10798 = vpop.f32.mrb[0].mxu0
  %v10799 = vadd.f32 %v10718, %v10798
  %10800 = vmatprep.mubr.bf16.mxu0 0
  %10801 = vmatmul.mubr.bf16.gmra.mrb[0].mxu0 %v7106
  %v10802 = vpop.f32.mrb[0].mxu0
  %v10803 = vadd.f32 %v10722, %v10802
  %v10804 = vpop.f32.mrb[0].mxu0
  %v10805 = vadd.f32 %v10724, %v10804
  %v10806 = vpop.f32.mrb[0].mxu0
  %v10807 = vpop.f32.mrb[0].mxu0
  %10808 = vdwg.mxu0
  %10809 = vmatprep.subr.bf16.mxu0 %v9770
  %10810 = vmatpush1.bf16.msra.mxu0 %v9769
  %10811 = vmatprep.subr.bf16.mxu0 %v9780
  %10812 = vmatpush1.bf16.msra.mxu0 %v9779
  %10813 = vmatprep.subr.bf16.mxu0 %v9790
  %10814 = vmatpush1.bf16.msra.mxu0 %v9789
  %10815 = vmatprep.subr.bf16.mxu0 %v9800
  %10816 = vmatpush1.bf16.msra.mxu0 %v9799
  %10817 = vmatprep.subr.bf16.mxu0 %v9810
  %10818 = vmatpush1.bf16.msra.mxu0 %v9809
  %10819 = vmatprep.subr.bf16.mxu0 %v9820
  %10820 = vmatpush1.bf16.msra.mxu0 %v9819
  %10821 = vmatprep.subr.bf16.mxu0 %v9830
  %10822 = vmatpush1.bf16.msra.mxu0 %v9829
  %10823 = vmatprep.subr.bf16.mxu0 %v9840
  %10824 = vmatpush1.bf16.msra.mxu0 %v9839
  %10825 = vmatprep.subr.bf16.mxu0 %v9850
  %10826 = vmatpush1.bf16.msra.mxu0 %v9849
  %10827 = vmatprep.subr.bf16.mxu0 %v9860
  %10828 = vmatpush1.bf16.msra.mxu0 %v9859
  %10829 = vmatprep.subr.bf16.mxu0 %v9870
  %10830 = vmatpush1.bf16.msra.mxu0 %v9869
  %10831 = vmatprep.subr.bf16.mxu0 %v9880
  %10832 = vmatpush1.bf16.msra.mxu0 %v9879
  %10833 = vmatprep.subr.bf16.mxu0 %v9890
  %10834 = vmatpush1.bf16.msra.mxu0 %v9889
  %10835 = vmatprep.subr.bf16.mxu0 %v9900
  %10836 = vmatpush1.bf16.msra.mxu0 %v9899
  %10837 = vmatprep.subr.bf16.mxu0 %v9910
  %10838 = vmatpush1.bf16.msra.mxu0 %v9909
  %10839 = vmatprep.subr.bf16.mxu0 %v9920
  %10840 = vmatpush1.bf16.msra.mxu0 %v9919
  %10841 = vmatprep.mubr.bf16.mxu0 %v145
  %10842 = vmatmul.mubr.bf16.gmra.mrb[0].mxu0 %v144
  %v10843 = vpop.f32.mrb[0].mxu0
  %v10844 = vadd.f32 0.0, %v10843
  %v10845 = vpop.f32.mrb[0].mxu0
  %v10846 = vadd.f32 0.0, %v10845
  %v10847 = vpop.f32.mrb[0].mxu0
  %v10848 = vadd.f32 0.0, %v10847
  %v10849 = vpop.f32.mrb[0].mxu0
  %v10850 = vadd.f32 0.0, %v10849
  %10851 = vmatprep.mubr.bf16.mxu0 %v148
  %10852 = vmatmul.mubr.bf16.gmra.mrb[0].mxu0 %v147
  %v10853 = vpop.f32.mrb[0].mxu0
  %v10854 = vadd.f32 0.0, %v10853
  %v10855 = vpop.f32.mrb[0].mxu0
  %v10856 = vadd.f32 0.0, %v10855
  %v10857 = vpop.f32.mrb[0].mxu0
  %v10858 = vadd.f32 0.0, %v10857
  %v10859 = vpop.f32.mrb[0].mxu0
  %v10860 = vadd.f32 0.0, %v10859
  %10861 = vmatprep.mubr.bf16.mxu0 %v151
  %10862 = vmatmul.mubr.bf16.gmra.mrb[0].mxu0 %v150
  %v10863 = vpop.f32.mrb[0].mxu0
  %v10864 = vadd.f32 0.0, %v10863
  %v10865 = vpop.f32.mrb[0].mxu0
  %v10866 = vadd.f32 0.0, %v10865
  %v10867 = vpop.f32.mrb[0].mxu0
  %v10868 = vadd.f32 0.0, %v10867
  %v10869 = vpop.f32.mrb[0].mxu0
  %v10870 = vadd.f32 0.0, %v10869
  %10871 = vmatprep.mubr.bf16.mxu0 %v154
  %10872 = vmatmul.mubr.bf16.gmra.mrb[0].mxu0 %v153
  %v10873 = vpop.f32.mrb[0].mxu0
  %v10874 = vadd.f32 0.0, %v10873
  %v10875 = vpop.f32.mrb[0].mxu0
  %v10876 = vadd.f32 0.0, %v10875
  %v10877 = vpop.f32.mrb[0].mxu0
  %v10878 = vadd.f32 0.0, %v10877
  %v10879 = vpop.f32.mrb[0].mxu0
  %v10880 = vadd.f32 0.0, %v10879
  %10881 = vmatprep.mubr.bf16.mxu0 %v157
  %10882 = vmatmul.mubr.bf16.gmra.mrb[0].mxu0 %v156
  %v10883 = vpop.f32.mrb[0].mxu0
  %v10884 = vadd.f32 0.0, %v10883
  %v10885 = vpop.f32.mrb[0].mxu0
  %v10886 = vadd.f32 0.0, %v10885
  %v10887 = vpop.f32.mrb[0].mxu0
  %v10888 = vpop.f32.mrb[0].mxu0
  %10889 = vdwg.mxu0
  %10890 = vmatprep.subr.bf16.mxu0 %v9930
  %10891 = vmatpush1.bf16.msra.mxu0 %v9929
  %10892 = vmatprep.subr.bf16.mxu0 %v9940
  %10893 = vmatpush1.bf16.msra.mxu0 %v9939
  %10894 = vmatprep.subr.bf16.mxu0 %v10159
  %10895 = vmatpush1.bf16.msra.mxu0 %v10156
  %10896 = vmatprep.subr.bf16.mxu0 0
  %10897 = vmatpush1.bf16.msra.mxu0 0
  %10898 = vmatprep.subr.bf16.mxu0 0
  %10899 = vmatpush1.bf16.msra.mxu0 0
  %10900 = vmatprep.subr.bf16.mxu0 0
  %10901 = vmatpush1.bf16.msra.mxu0 0
  %10902 = vmatprep.subr.bf16.mxu0 0
  %10903 = vmatpush1.bf16.msra.mxu0 0
  %10904 = vmatprep.subr.bf16.mxu0 0
  %10905 = vmatpush1.bf16.msra.mxu0 0
  %10906 = vmatprep.subr.bf16.mxu0 0
  %10907 = vmatpush1.bf16.msra.mxu0 0
  %10908 = vmatprep.subr.bf16.mxu0 0
  %10909 = vmatpush1.bf16.msra.mxu0 0
  %10910 = vmatprep.subr.bf16.mxu0 0
  %10911 = vmatpush1.bf16.msra.mxu0 0
  %10912 = vmatprep.subr.bf16.mxu0 0
  %10913 = vmatpush1.bf16.msra.mxu0 0
  %10914 = vmatprep.subr.bf16.mxu0 0
  %10915 = vmatpush1.bf16.msra.mxu0 0
  %10916 = vmatprep.subr.bf16.mxu0 0
  %10917 = vmatpush1.bf16.msra.mxu0 0
  %10918 = vmatprep.subr.bf16.mxu0 0
  %10919 = vmatpush1.bf16.msra.mxu0 0
  %10920 = vmatprep.subr.bf16.mxu0 0
  %10921 = vmatpush1.bf16.msra.mxu0 0
  %10922 = vmatprep.mubr.bf16.mxu0 0
  %10923 = vmatmul.mubr.bf16.gmra.mrb[0].mxu0 %v7094
  %v10924 = vpop.f32.mrb[0].mxu0
  %v10925 = vadd.f32 %v10844, %v10924
  %v10926 = vpop.f32.mrb[0].mxu0
  %v10927 = vadd.f32 %v10846, %v10926
  %v10928 = vpop.f32.mrb[0].mxu0
  %v10929 = vadd.f32 %v10848, %v10928
  %v10930 = vpop.f32.mrb[0].mxu0
  %v10931 = vadd.f32 %v10850, %v10930
  %10932 = vmatprep.mubr.bf16.mxu0 0
  %10933 = vmatmul.mubr.bf16.gmra.mrb[0].mxu0 %v7097
  %v10934 = vpop.f32.mrb[0].mxu0
  %v10935 = vadd.f32 %v10854, %v10934
  %v10936 = vpop.f32.mrb[0].mxu0
  %v10937 = vadd.f32 %v10856, %v10936
  %v10938 = vpop.f32.mrb[0].mxu0
  %v10939 = vadd.f32 %v10858, %v10938
  %v10940 = vpop.f32.mrb[0].mxu0
  %v10941 = vadd.f32 %v10860, %v10940
  %10942 = vmatprep.mubr.bf16.mxu0 0
  %10943 = vmatmul.mubr.bf16.gmra.mrb[0].mxu0 %v7100
  %v10944 = vpop.f32.mrb[0].mxu0
  %v10945 = vadd.f32 %v10864, %v10944
  %v10946 = vpop.f32.mrb[0].mxu0
  %v10947 = vadd.f32 %v10866, %v10946
  %v10948 = vpop.f32.mrb[0].mxu0
  %v10949 = vadd.f32 %v10868, %v10948
  %v10950 = vpop.f32.mrb[0].mxu0
  %v10951 = vadd.f32 %v10870, %v10950
  %10952 = vmatprep.mubr.bf16.mxu0 0
  %10953 = vmatmul.mubr.bf16.gmra.mrb[0].mxu0 %v7103
  %v10954 = vpop.f32.mrb[0].mxu0
  %v10955 = vadd.f32 %v10874, %v10954
  %v10956 = vpop.f32.mrb[0].mxu0
  %v10957 = vadd.f32 %v10876, %v10956
  %v10958 = vpop.f32.mrb[0].mxu0
  %v10959 = vadd.f32 %v10878, %v10958
  %v10960 = vpop.f32.mrb[0].mxu0
  %v10961 = vadd.f32 %v10880, %v10960
  %10962 = vmatprep.mubr.bf16.mxu0 0
  %10963 = vmatmul.mubr.bf16.gmra.mrb[0].mxu0 %v7106
  %v10964 = vpop.f32.mrb[0].mxu0
  %v10965 = vadd.f32 %v10884, %v10964
  %v10966 = vpop.f32.mrb[0].mxu0
  %v10967 = vadd.f32 %v10886, %v10966
  %v10968 = vpop.f32.mrb[0].mxu0
  %v10969 = vpop.f32.mrb[0].mxu0
  %10970 = vdwg.mxu0
  %v10971 = vmul.f32 %v10277, %v102
  %v10972 = vmul.f32 %v10279, %v103
  %v10973 = vmul.f32 %v10439, %v104
  %v10974 = vmul.f32 %v10281, %v105
  %v10975 = vmul.f32 %v10283, %v106
  %v10976 = vmul.f32 %v10443, %v107
  %v10977 = vmul.f32 %v10287, %v108
  %v10978 = vmul.f32 %v10289, %v109
  %v10979 = vmul.f32 %v10449, %v110
  %v10980 = vmul.f32 %v10291, %v111
  %v10981 = vmul.f32 %v10293, %v112
  %v10982 = vmul.f32 %v10453, %v113
  %v10983 = vmul.f32 %v10297, %v114
  %v10984 = vmul.f32 %v10299, %v115
  %v10985 = vmul.f32 %v10459, %v116
  %v10986 = vmul.f32 %v10301, %v117
  %v10987 = vmul.f32 %v10303, %v118
  %v10988 = vmul.f32 %v10463, %v119
  %v10989 = vmul.f32 %v10307, %v120
  %v10990 = vmul.f32 %v10309, %v121
  %v10991 = vmul.f32 %v10469, %v122
  %v10992 = vmul.f32 %v10311, %v123
  %v10993 = vmul.f32 %v10313, %v124
  %v10994 = vmul.f32 %v10473, %v125
  %v10995 = vmul.f32 %v10317, %v126
  %v10996 = vmul.f32 %v10319, %v127
  %v10997 = vmul.f32 %v10479, %v128
  %v10998 = vadd.f32 %v10971, %v10972
  %v10999 = vsel %vm1289, %v10973, 0.0
  %v11000 = vadd.f32 %v10998, %v10999
  %11001 = vadd.xlane.f32.xlu0 %v11000
  %v11002 = vpop.xlane.xlu0 %11001
  %v11003 = vadd.f32 %v10974, %v10975
  %v11004 = vsel %vm1289, %v10976, 0.0
  %v11005 = vadd.f32 %v11003, %v11004
  %11006 = vadd.xlane.f32.xlu0 %v11005
  %v11007 = vpop.xlane.xlu0 %11006
  %v11008 = vadd.f32 %v10977, %v10978
  %v11009 = vsel %vm1289, %v10979, 0.0
  %v11010 = vadd.f32 %v11008, %v11009
  %11011 = vadd.xlane.f32.xlu0 %v11010
  %v11012 = vpop.xlane.xlu0 %11011
  %v11013 = vadd.f32 %v10980, %v10981
  %v11014 = vsel %vm1289, %v10982, 0.0
  %v11015 = vadd.f32 %v11013, %v11014
  %11016 = vadd.xlane.f32.xlu0 %v11015
  %v11017 = vpop.xlane.xlu0 %11016
  %v11018 = vadd.f32 %v10983, %v10984
  %v11019 = vsel %vm1289, %v10985, 0.0
  %v11020 = vadd.f32 %v11018, %v11019
  %11021 = vadd.xlane.f32.xlu0 %v11020
  %v11022 = vpop.xlane.xlu0 %11021
  %v11023 = vadd.f32 %v10986, %v10987
  %v11024 = vsel %vm1289, %v10988, 0.0
  %v11025 = vadd.f32 %v11023, %v11024
  %11026 = vadd.xlane.f32.xlu0 %v11025
  %v11027 = vpop.xlane.xlu0 %11026
  %v11028 = vadd.f32 %v10989, %v10990
  %v11029 = vsel %vm1289, %v10991, 0.0
  %v11030 = vadd.f32 %v11028, %v11029
  %11031 = vadd.xlane.f32.xlu0 %v11030
  %v11032 = vpop.xlane.xlu0 %11031
  %v11033 = vadd.f32 %v10992, %v10993
  %v11034 = vsel %vm1289, %v10994, 0.0
  %v11035 = vadd.f32 %v11033, %v11034
  %11036 = vadd.xlane.f32.xlu0 %v11035
  %v11037 = vpop.xlane.xlu0 %11036
  %v11038 = vsel %vm1305, %v10995, 0.0
  %v11039 = vsel %vm1305, %v10996, 0.0
  %v11040 = vadd.f32 %v11038, %v11039
  %v11041 = vsel %vm2216, %v10997, 0.0
  %v11042 = vadd.f32 %v11040, %v11041
  %11043 = vadd.xlane.f32.xlu0 %v11042
  %v11044 = vpop.xlane.xlu0 %11043
  %v11045 = vmul.f32 %v10439, %v8050
  %v11046 = vmul.f32 %v10441, %v8103
  %v11047 = vmul.f32 %v10601, %v8104
  %v11048 = vmul.f32 %v10443, %v8056
  %v11049 = vmul.f32 %v10445, %v8105
  %v11050 = vmul.f32 %v10605, %v8106
  %v11051 = vmul.f32 %v10449, %v8062
  %v11052 = vmul.f32 %v10451, %v8107
  %v11053 = vmul.f32 %v10611, %v8108
  %v11054 = vmul.f32 %v10453, %v8068
  %v11055 = vmul.f32 %v10455, %v8109
  %v11056 = vmul.f32 %v10615, %v8110
  %v11057 = vmul.f32 %v10459, %v8074
  %v11058 = vmul.f32 %v10461, %v8111
  %v11059 = vmul.f32 %v10621, %v8112
  %v11060 = vmul.f32 %v10463, %v8080
  %v11061 = vmul.f32 %v10465, %v8113
  %v11062 = vmul.f32 %v10625, %v8114
  %v11063 = vmul.f32 %v10469, %v8086
  %v11064 = vmul.f32 %v10471, %v8115
  %v11065 = vmul.f32 %v10631, %v8116
  %v11066 = vmul.f32 %v10473, %v8092
  %v11067 = vmul.f32 %v10475, %v8117
  %v11068 = vmul.f32 %v10635, %v8118
  %v11069 = vmul.f32 %v10479, %v8098
  %v11070 = vmul.f32 %v10481, %v8119
  %v11071 = vmul.f32 %v10641, %v8120
  %11099 = vrot.lane.b32.xlu0 %v11045, 84
  %v11100 = vpop.permute.xlu0 %11099
  %11101 = vrot.lane.b32.xlu0 %v11046, 84
  %v11102 = vpop.permute.xlu0 %11101
  %11103 = vrot.lane.b32.xlu0 %v11047, 84
  %v11104 = vpop.permute.xlu0 %11103
  %11105 = vrot.lane.b32.xlu0 %v11048, 84
  %v11106 = vpop.permute.xlu0 %11105
  %11107 = vrot.lane.b32.xlu0 %v11049, 84
  %v11108 = vpop.permute.xlu0 %11107
  %11109 = vrot.lane.b32.xlu0 %v11050, 84
  %v11110 = vpop.permute.xlu0 %11109
  %11111 = vrot.lane.b32.xlu0 %v11051, 84
  %v11112 = vpop.permute.xlu0 %11111
  %11113 = vrot.lane.b32.xlu0 %v11052, 84
  %v11114 = vpop.permute.xlu0 %11113
  %11115 = vrot.lane.b32.xlu0 %v11053, 84
  %v11116 = vpop.permute.xlu0 %11115
  %11117 = vrot.lane.b32.xlu0 %v11054, 84
  %v11118 = vpop.permute.xlu0 %11117
  %11119 = vrot.lane.b32.xlu0 %v11055, 84
  %v11120 = vpop.permute.xlu0 %11119
  %11121 = vrot.lane.b32.xlu0 %v11056, 84
  %v11122 = vpop.permute.xlu0 %11121
  %11123 = vrot.lane.b32.xlu0 %v11057, 84
  %v11124 = vpop.permute.xlu0 %11123
  %11125 = vrot.lane.b32.xlu0 %v11058, 84
  %v11126 = vpop.permute.xlu0 %11125
  %11127 = vrot.lane.b32.xlu0 %v11059, 84
  %v11128 = vpop.permute.xlu0 %11127
  %11129 = vrot.lane.b32.xlu0 %v11060, 84
  %v11130 = vpop.permute.xlu0 %11129
  %11131 = vrot.lane.b32.xlu0 %v11061, 84
  %v11132 = vpop.permute.xlu0 %11131
  %11133 = vrot.lane.b32.xlu0 %v11062, 84
  %v11134 = vpop.permute.xlu0 %11133
  %11135 = vrot.lane.b32.xlu0 %v11063, 84
  %v11136 = vpop.permute.xlu0 %11135
  %11137 = vrot.lane.b32.xlu0 %v11064, 84
  %v11138 = vpop.permute.xlu0 %11137
  %11139 = vrot.lane.b32.xlu0 %v11065, 84
  %v11140 = vpop.permute.xlu0 %11139
  %11141 = vrot.lane.b32.xlu0 %v11066, 84
  %v11142 = vpop.permute.xlu0 %11141
  %11143 = vrot.lane.b32.xlu0 %v11067, 84
  %v11144 = vpop.permute.xlu0 %11143
  %11145 = vrot.lane.b32.xlu0 %v11068, 84
  %v11146 = vpop.permute.xlu0 %11145
  %11147 = vrot.lane.b32.xlu0 %v11069, 84
  %v11148 = vpop.permute.xlu0 %11147
  %11149 = vrot.lane.b32.xlu0 %v11070, 84
  %v11150 = vpop.permute.xlu0 %11149
  %11151 = vrot.lane.b32.xlu0 %v11071, 84
  %v11152 = vpop.permute.xlu0 %11151
  %v11153 = vsel %vm2455, %v11100, %v11102
  %v11154 = vsel %vm2455, %v11102, %v11104
  %v11155 = vsel %vm2455, %v11106, %v11108
  %v11156 = vsel %vm2455, %v11108, %v11110
  %v11157 = vsel %vm2455, %v11112, %v11114
  %v11158 = vsel %vm2455, %v11114, %v11116
  %v11159 = vsel %vm2455, %v11118, %v11120
  %v11160 = vsel %vm2455, %v11120, %v11122
  %v11161 = vsel %vm2455, %v11124, %v11126
  %v11162 = vsel %vm2455, %v11126, %v11128
  %v11163 = vsel %vm2455, %v11130, %v11132
  %v11164 = vsel %vm2455, %v11132, %v11134
  %v11165 = vsel %vm2455, %v11136, %v11138
  %v11166 = vsel %vm2455, %v11138, %v11140
  %v11167 = vsel %vm2455, %v11142, %v11144
  %v11168 = vsel %vm2455, %v11144, %v11146
  %v11169 = vsel %vm2455, %v11148, %v11150
  %v11170 = vsel %vm2455, %v11150, %v11152
  %v11198 = vadd.f32 %v11153, %v11154
  %v11199 = vsel %vm1289, %v11104, 0.0
  %v11200 = vadd.f32 %v11198, %v11199
  %11201 = vadd.xlane.f32.xlu0 %v11200
  %v11202 = vpop.xlane.xlu0 %11201
  %v11203 = vadd.f32 %v11155, %v11156
  %v11204 = vsel %vm1289, %v11110, 0.0
  %v11205 = vadd.f32 %v11203, %v11204
  %11206 = vadd.xlane.f32.xlu0 %v11205
  %v11207 = vpop.xlane.xlu0 %11206
  %v11208 = vadd.f32 %v11157, %v11158
  %v11209 = vsel %vm1289, %v11116, 0.0
  %v11210 = vadd.f32 %v11208, %v11209
  %11211 = vadd.xlane.f32.xlu0 %v11210
  %v11212 = vpop.xlane.xlu0 %11211
  %v11213 = vadd.f32 %v11159, %v11160
  %v11214 = vsel %vm1289, %v11122, 0.0
  %v11215 = vadd.f32 %v11213, %v11214
  %11216 = vadd.xlane.f32.xlu0 %v11215
  %v11217 = vpop.xlane.xlu0 %11216
  %v11218 = vadd.f32 %v11161, %v11162
  %v11219 = vsel %vm1289, %v11128, 0.0
  %v11220 = vadd.f32 %v11218, %v11219
  %11221 = vadd.xlane.f32.xlu0 %v11220
  %v11222 = vpop.xlane.xlu0 %11221
  %v11223 = vadd.f32 %v11163, %v11164
  %v11224 = vsel %vm1289, %v11134, 0.0
  %v11225 = vadd.f32 %v11223, %v11224
  %11226 = vadd.xlane.f32.xlu0 %v11225
  %v11227 = vpop.xlane.xlu0 %11226
  %v11228 = vadd.f32 %v11165, %v11166
  %v11229 = vsel %vm1289, %v11140, 0.0
  %v11230 = vadd.f32 %v11228, %v11229
  %11231 = vadd.xlane.f32.xlu0 %v11230
  %v11232 = vpop.xlane.xlu0 %11231
  %v11233 = vadd.f32 %v11167, %v11168
  %v11234 = vsel %vm1289, %v11146, 0.0
  %v11235 = vadd.f32 %v11233, %v11234
  %11236 = vadd.xlane.f32.xlu0 %v11235
  %v11237 = vpop.xlane.xlu0 %11236
  %v11238 = vsel %vm1305, %v11169, 0.0
  %v11239 = vsel %vm1305, %v11170, 0.0
  %v11240 = vadd.f32 %v11238, %v11239
  %v11241 = vsel %vm2216, %v11152, 0.0
  %v11242 = vadd.f32 %v11240, %v11241
  %11243 = vadd.xlane.f32.xlu0 %v11242
  %v11244 = vpop.xlane.xlu0 %11243
  %v11245 = vmul.f32 %v10601, %v8349
  %v11246 = vmul.f32 %v10603, %v8402
  %v11247 = vmul.f32 %v10763, %v8403
  %v11248 = vmul.f32 %v10765, %v8353
  %v11249 = vmul.f32 %v10605, %v8355
  %v11250 = vmul.f32 %v10607, %v8404
  %v11251 = vmul.f32 %v10767, %v8405
  %v11252 = vmul.f32 %v10769, %v8359
  %v11253 = vmul.f32 %v10611, %v8361
  %v11254 = vmul.f32 %v10613, %v8406
  %v11255 = vmul.f32 %v10773, %v8407
  %v11256 = vmul.f32 %v10775, %v8365
  %v11257 = vmul.f32 %v10615, %v8367
  %v11258 = vmul.f32 %v10617, %v8408
  %v11259 = vmul.f32 %v10777, %v8409
  %v11260 = vmul.f32 %v10779, %v8371
  %v11261 = vmul.f32 %v10621, %v8373
  %v11262 = vmul.f32 %v10623, %v8410
  %v11263 = vmul.f32 %v10783, %v8411
  %v11264 = vmul.f32 %v10785, %v8377
  %v11265 = vmul.f32 %v10625, %v8379
  %v11266 = vmul.f32 %v10627, %v8412
  %v11267 = vmul.f32 %v10787, %v8413
  %v11268 = vmul.f32 %v10789, %v8383
  %v11269 = vmul.f32 %v10631, %v8385
  %v11270 = vmul.f32 %v10633, %v8414
  %v11271 = vmul.f32 %v10793, %v8415
  %v11272 = vmul.f32 %v10795, %v8389
  %v11273 = vmul.f32 %v10635, %v8391
  %v11274 = vmul.f32 %v10637, %v8416
  %v11275 = vmul.f32 %v10797, %v8417
  %v11276 = vmul.f32 %v10799, %v8395
  %v11277 = vmul.f32 %v10641, %v8397
  %v11278 = vmul.f32 %v10643, %v8418
  %v11279 = vmul.f32 %v10803, %v8419
  %v11280 = vmul.f32 %v10805, %v8401
  %11317 = vrot.lane.b32.xlu0 %v11245, 40
  %v11318 = vpop.permute.xlu0 %11317
  %11319 = vrot.lane.b32.xlu0 %v11246, 40
  %v11320 = vpop.permute.xlu0 %11319
  %11321 = vrot.lane.b32.xlu0 %v11247, 40
  %v11322 = vpop.permute.xlu0 %11321
  %11323 = vrot.lane.b32.xlu0 %v11248, 40
  %v11324 = vpop.permute.xlu0 %11323
  %11325 = vrot.lane.b32.xlu0 %v11249, 40
  %v11326 = vpop.permute.xlu0 %11325
  %11327 = vrot.lane.b32.xlu0 %v11250, 40
  %v11328 = vpop.permute.xlu0 %11327
  %11329 = vrot.lane.b32.xlu0 %v11251, 40
  %v11330 = vpop.permute.xlu0 %11329
  %11331 = vrot.lane.b32.xlu0 %v11252, 40
  %v11332 = vpop.permute.xlu0 %11331
  %11333 = vrot.lane.b32.xlu0 %v11253, 40
  %v11334 = vpop.permute.xlu0 %11333
  %11335 = vrot.lane.b32.xlu0 %v11254, 40
  %v11336 = vpop.permute.xlu0 %11335
  %11337 = vrot.lane.b32.xlu0 %v11255, 40
  %v11338 = vpop.permute.xlu0 %11337
  %11339 = vrot.lane.b32.xlu0 %v11256, 40
  %v11340 = vpop.permute.xlu0 %11339
  %11341 = vrot.lane.b32.xlu0 %v11257, 40
  %v11342 = vpop.permute.xlu0 %11341
  %11343 = vrot.lane.b32.xlu0 %v11258, 40
  %v11344 = vpop.permute.xlu0 %11343
  %11345 = vrot.lane.b32.xlu0 %v11259, 40
  %v11346 = vpop.permute.xlu0 %11345
  %11347 = vrot.lane.b32.xlu0 %v11260, 40
  %v11348 = vpop.permute.xlu0 %11347
  %11349 = vrot.lane.b32.xlu0 %v11261, 40
  %v11350 = vpop.permute.xlu0 %11349
  %11351 = vrot.lane.b32.xlu0 %v11262, 40
  %v11352 = vpop.permute.xlu0 %11351
  %11353 = vrot.lane.b32.xlu0 %v11263, 40
  %v11354 = vpop.permute.xlu0 %11353
  %11355 = vrot.lane.b32.xlu0 %v11264, 40
  %v11356 = vpop.permute.xlu0 %11355
  %11357 = vrot.lane.b32.xlu0 %v11265, 40
  %v11358 = vpop.permute.xlu0 %11357
  %11359 = vrot.lane.b32.xlu0 %v11266, 40
  %v11360 = vpop.permute.xlu0 %11359
  %11361 = vrot.lane.b32.xlu0 %v11267, 40
  %v11362 = vpop.permute.xlu0 %11361
  %11363 = vrot.lane.b32.xlu0 %v11268, 40
  %v11364 = vpop.permute.xlu0 %11363
  %11365 = vrot.lane.b32.xlu0 %v11269, 40
  %v11366 = vpop.permute.xlu0 %11365
  %11367 = vrot.lane.b32.xlu0 %v11270, 40
  %v11368 = vpop.permute.xlu0 %11367
  %11369 = vrot.lane.b32.xlu0 %v11271, 40
  %v11370 = vpop.permute.xlu0 %11369
  %11371 = vrot.lane.b32.xlu0 %v11272, 40
  %v11372 = vpop.permute.xlu0 %11371
  %11373 = vrot.lane.b32.xlu0 %v11273, 40
  %v11374 = vpop.permute.xlu0 %11373
  %11375 = vrot.lane.b32.xlu0 %v11274, 40
  %v11376 = vpop.permute.xlu0 %11375
  %11377 = vrot.lane.b32.xlu0 %v11275, 40
  %v11378 = vpop.permute.xlu0 %11377
  %11379 = vrot.lane.b32.xlu0 %v11276, 40
  %v11380 = vpop.permute.xlu0 %11379
  %11381 = vrot.lane.b32.xlu0 %v11277, 40
  %v11382 = vpop.permute.xlu0 %11381
  %11383 = vrot.lane.b32.xlu0 %v11278, 40
  %v11384 = vpop.permute.xlu0 %11383
  %11385 = vrot.lane.b32.xlu0 %v11279, 40
  %v11386 = vpop.permute.xlu0 %11385
  %11387 = vrot.lane.b32.xlu0 %v11280, 40
  %v11388 = vpop.permute.xlu0 %11387
  %v11389 = vsel %vm2801, %v11318, %v11320
  %v11390 = vsel %vm2801, %v11320, %v11322
  %v11391 = vsel %vm2801, %v11322, %v11324
  %v11392 = vsel %vm2801, %v11326, %v11328
  %v11393 = vsel %vm2801, %v11328, %v11330
  %v11394 = vsel %vm2801, %v11330, %v11332
  %v11395 = vsel %vm2801, %v11334, %v11336
  %v11396 = vsel %vm2801, %v11336, %v11338
  %v11397 = vsel %vm2801, %v11338, %v11340
  %v11398 = vsel %vm2801, %v11342, %v11344
  %v11399 = vsel %vm2801, %v11344, %v11346
  %v11400 = vsel %vm2801, %v11346, %v11348
  %v11401 = vsel %vm2801, %v11350, %v11352
  %v11402 = vsel %vm2801, %v11352, %v11354
  %v11403 = vsel %vm2801, %v11354, %v11356
  %v11404 = vsel %vm2801, %v11358, %v11360
  %v11405 = vsel %vm2801, %v11360, %v11362
  %v11406 = vsel %vm2801, %v11362, %v11364
  %v11407 = vsel %vm2801, %v11366, %v11368
  %v11408 = vsel %vm2801, %v11368, %v11370
  %v11409 = vsel %vm2801, %v11370, %v11372
  %v11410 = vsel %vm2801, %v11374, %v11376
  %v11411 = vsel %vm2801, %v11376, %v11378
  %v11412 = vsel %vm2801, %v11378, %v11380
  %v11413 = vsel %vm2801, %v11382, %v11384
  %v11414 = vsel %vm2801, %v11384, %v11386
  %v11415 = vsel %vm2801, %v11386, %v11388
  %v11443 = vadd.f32 %v11389, %v11390
  %v11444 = vsel %vm1289, %v11391, 0.0
  %v11445 = vadd.f32 %v11443, %v11444
  %11446 = vadd.xlane.f32.xlu0 %v11445
  %v11447 = vpop.xlane.xlu0 %11446
  %v11448 = vadd.f32 %v11392, %v11393
  %v11449 = vsel %vm1289, %v11394, 0.0
  %v11450 = vadd.f32 %v11448, %v11449
  %11451 = vadd.xlane.f32.xlu0 %v11450
  %v11452 = vpop.xlane.xlu0 %11451
  %v11453 = vadd.f32 %v11395, %v11396
  %v11454 = vsel %vm1289, %v11397, 0.0
  %v11455 = vadd.f32 %v11453, %v11454
  %11456 = vadd.xlane.f32.xlu0 %v11455
  %v11457 = vpop.xlane.xlu0 %11456
  %v11458 = vadd.f32 %v11398, %v11399
  %v11459 = vsel %vm1289, %v11400, 0.0
  %v11460 = vadd.f32 %v11458, %v11459
  %11461 = vadd.xlane.f32.xlu0 %v11460
  %v11462 = vpop.xlane.xlu0 %11461
  %v11463 = vadd.f32 %v11401, %v11402
  %v11464 = vsel %vm1289, %v11403, 0.0
  %v11465 = vadd.f32 %v11463, %v11464
  %11466 = vadd.xlane.f32.xlu0 %v11465
  %v11467 = vpop.xlane.xlu0 %11466
  %v11468 = vadd.f32 %v11404, %v11405
  %v11469 = vsel %vm1289, %v11406, 0.0
  %v11470 = vadd.f32 %v11468, %v11469
  %11471 = vadd.xlane.f32.xlu0 %v11470
  %v11472 = vpop.xlane.xlu0 %11471
  %v11473 = vadd.f32 %v11407, %v11408
  %v11474 = vsel %vm1289, %v11409, 0.0
  %v11475 = vadd.f32 %v11473, %v11474
  %11476 = vadd.xlane.f32.xlu0 %v11475
  %v11477 = vpop.xlane.xlu0 %11476
  %v11478 = vadd.f32 %v11410, %v11411
  %v11479 = vsel %vm1289, %v11412, 0.0
  %v11480 = vadd.f32 %v11478, %v11479
  %11481 = vadd.xlane.f32.xlu0 %v11480
  %v11482 = vpop.xlane.xlu0 %11481
  %v11483 = vsel %vm1305, %v11413, 0.0
  %v11484 = vsel %vm1305, %v11414, 0.0
  %v11485 = vadd.f32 %v11483, %v11484
  %v11486 = vsel %vm2216, %v11415, 0.0
  %v11487 = vadd.f32 %v11485, %v11486
  %11488 = vadd.xlane.f32.xlu0 %v11487
  %v11489 = vpop.xlane.xlu0 %11488
  %v11490 = vmul.f32 %v10765, %v8702
  %v11491 = vmul.f32 %v10925, %v8755
  %v11492 = vmul.f32 %v10927, %v8756
  %v11493 = vmul.f32 %v10769, %v8708
  %v11494 = vmul.f32 %v10929, %v8757
  %v11495 = vmul.f32 %v10931, %v8758
  %v11496 = vmul.f32 %v10775, %v8714
  %v11497 = vmul.f32 %v10935, %v8759
  %v11498 = vmul.f32 %v10937, %v8760
  %v11499 = vmul.f32 %v10779, %v8720
  %v11500 = vmul.f32 %v10939, %v8761
  %v11501 = vmul.f32 %v10941, %v8762
  %v11502 = vmul.f32 %v10785, %v8726
  %v11503 = vmul.f32 %v10945, %v8763
  %v11504 = vmul.f32 %v10947, %v8764
  %v11505 = vmul.f32 %v10789, %v8732
  %v11506 = vmul.f32 %v10949, %v8765
  %v11507 = vmul.f32 %v10951, %v8766
  %v11508 = vmul.f32 %v10795, %v8738
  %v11509 = vmul.f32 %v10955, %v8767
  %v11510 = vmul.f32 %v10957, %v8768
  %v11511 = vmul.f32 %v10799, %v8744
  %v11512 = vmul.f32 %v10959, %v8769
  %v11513 = vmul.f32 %v10961, %v8770
  %v11514 = vmul.f32 %v10805, %v8750
  %v11515 = vmul.f32 %v10965, %v8771
  %v11516 = vmul.f32 %v10967, %v8772
  %11544 = vrot.lane.b32.xlu0 %v11490, 124
  %v11545 = vpop.permute.xlu0 %11544
  %11546 = vrot.lane.b32.xlu0 %v11491, 124
  %v11547 = vpop.permute.xlu0 %11546
  %11548 = vrot.lane.b32.xlu0 %v11492, 124
  %v11549 = vpop.permute.xlu0 %11548
  %11550 = vrot.lane.b32.xlu0 %v11493, 124
  %v11551 = vpop.permute.xlu0 %11550
  %11552 = vrot.lane.b32.xlu0 %v11494, 124
  %v11553 = vpop.permute.xlu0 %11552
  %11554 = vrot.lane.b32.xlu0 %v11495, 124
  %v11555 = vpop.permute.xlu0 %11554
  %11556 = vrot.lane.b32.xlu0 %v11496, 124
  %v11557 = vpop.permute.xlu0 %11556
  %11558 = vrot.lane.b32.xlu0 %v11497, 124
  %v11559 = vpop.permute.xlu0 %11558
  %11560 = vrot.lane.b32.xlu0 %v11498, 124
  %v11561 = vpop.permute.xlu0 %11560
  %11562 = vrot.lane.b32.xlu0 %v11499, 124
  %v11563 = vpop.permute.xlu0 %11562
  %11564 = vrot.lane.b32.xlu0 %v11500, 124
  %v11565 = vpop.permute.xlu0 %11564
  %11566 = vrot.lane.b32.xlu0 %v11501, 124
  %v11567 = vpop.permute.xlu0 %11566
  %11568 = vrot.lane.b32.xlu0 %v11502, 124
  %v11569 = vpop.permute.xlu0 %11568
  %11570 = vrot.lane.b32.xlu0 %v11503, 124
  %v11571 = vpop.permute.xlu0 %11570
  %11572 = vrot.lane.b32.xlu0 %v11504, 124
  %v11573 = vpop.permute.xlu0 %11572
  %11574 = vrot.lane.b32.xlu0 %v11505, 124
  %v11575 = vpop.permute.xlu0 %11574
  %11576 = vrot.lane.b32.xlu0 %v11506, 124
  %v11577 = vpop.permute.xlu0 %11576
  %11578 = vrot.lane.b32.xlu0 %v11507, 124
  %v11579 = vpop.permute.xlu0 %11578
  %11580 = vrot.lane.b32.xlu0 %v11508, 124
  %v11581 = vpop.permute.xlu0 %11580
  %11582 = vrot.lane.b32.xlu0 %v11509, 124
  %v11583 = vpop.permute.xlu0 %11582
  %11584 = vrot.lane.b32.xlu0 %v11510, 124
  %v11585 = vpop.permute.xlu0 %11584
  %11586 = vrot.lane.b32.xlu0 %v11511, 124
  %v11587 = vpop.permute.xlu0 %11586
  %11588 = vrot.lane.b32.xlu0 %v11512, 124
  %v11589 = vpop.permute.xlu0 %11588
  %11590 = vrot.lane.b32.xlu0 %v11513, 124
  %v11591 = vpop.permute.xlu0 %11590
  %11592 = vrot.lane.b32.xlu0 %v11514, 124
  %v11593 = vpop.permute.xlu0 %11592
  %11594 = vrot.lane.b32.xlu0 %v11515, 124
  %v11595 = vpop.permute.xlu0 %11594
  %11596 = vrot.lane.b32.xlu0 %v11516, 124
  %v11597 = vpop.permute.xlu0 %11596
  %v11598 = vsel %vm3111, %v11545, %v11547
  %v11599 = vsel %vm3111, %v11547, %v11549
  %v11600 = vsel %vm3111, %v11551, %v11553
  %v11601 = vsel %vm3111, %v11553, %v11555
  %v11602 = vsel %vm3111, %v11557, %v11559
  %v11603 = vsel %vm3111, %v11559, %v11561
  %v11604 = vsel %vm3111, %v11563, %v11565
  %v11605 = vsel %vm3111, %v11565, %v11567
  %v11606 = vsel %vm3111, %v11569, %v11571
  %v11607 = vsel %vm3111, %v11571, %v11573
  %v11608 = vsel %vm3111, %v11575, %v11577
  %v11609 = vsel %vm3111, %v11577, %v11579
  %v11610 = vsel %vm3111, %v11581, %v11583
  %v11611 = vsel %vm3111, %v11583, %v11585
  %v11612 = vsel %vm3111, %v11587, %v11589
  %v11613 = vsel %vm3111, %v11589, %v11591
  %v11614 = vsel %vm3111, %v11593, %v11595
  %v11615 = vsel %vm3111, %v11595, %v11597
  %v11643 = vadd.f32 %v11598, %v11599
  %v11644 = vsel %vm1289, %v11549, 0.0
  %v11645 = vadd.f32 %v11643, %v11644
  %11646 = vadd.xlane.f32.xlu0 %v11645
  %v11647 = vpop.xlane.xlu0 %11646
  %v11648 = vadd.f32 %v11600, %v11601
  %v11649 = vsel %vm1289, %v11555, 0.0
  %v11650 = vadd.f32 %v11648, %v11649
  %11651 = vadd.xlane.f32.xlu0 %v11650
  %v11652 = vpop.xlane.xlu0 %11651
  %v11653 = vadd.f32 %v11602, %v11603
  %v11654 = vsel %vm1289, %v11561, 0.0
  %v11655 = vadd.f32 %v11653, %v11654
  %11656 = vadd.xlane.f32.xlu0 %v11655
  %v11657 = vpop.xlane.xlu0 %11656
  %v11658 = vadd.f32 %v11604, %v11605
  %v11659 = vsel %vm1289, %v11567, 0.0
  %v11660 = vadd.f32 %v11658, %v11659
  %11661 = vadd.xlane.f32.xlu0 %v11660
  %v11662 = vpop.xlane.xlu0 %11661
  %v11663 = vadd.f32 %v11606, %v11607
  %v11664 = vsel %vm1289, %v11573, 0.0
  %v11665 = vadd.f32 %v11663, %v11664
  %11666 = vadd.xlane.f32.xlu0 %v11665
  %v11667 = vpop.xlane.xlu0 %11666
  %v11668 = vadd.f32 %v11608, %v11609
  %v11669 = vsel %vm1289, %v11579, 0.0
  %v11670 = vadd.f32 %v11668, %v11669
  %11671 = vadd.xlane.f32.xlu0 %v11670
  %v11672 = vpop.xlane.xlu0 %11671
  %v11673 = vadd.f32 %v11610, %v11611
  %v11674 = vsel %vm1289, %v11585, 0.0
  %v11675 = vadd.f32 %v11673, %v11674
  %11676 = vadd.xlane.f32.xlu0 %v11675
  %v11677 = vpop.xlane.xlu0 %11676
  %v11678 = vadd.f32 %v11612, %v11613
  %v11679 = vsel %vm1289, %v11591, 0.0
  %v11680 = vadd.f32 %v11678, %v11679
  %11681 = vadd.xlane.f32.xlu0 %v11680
  %v11682 = vpop.xlane.xlu0 %11681
  %v11683 = vsel %vm1305, %v11614, 0.0
  %v11684 = vsel %vm1305, %v11615, 0.0
  %v11685 = vadd.f32 %v11683, %v11684
  %v11686 = vsel %vm2216, %v11597, 0.0
  %v11687 = vadd.f32 %v11685, %v11686
  %11688 = vadd.xlane.f32.xlu0 %v11687
  %v11689 = vpop.xlane.xlu0 %11688
  %v11690 = vsel %vm5894, %v7979, %v8305
  %v11691 = vsel %vm5894, %v7984, %v8310
  %v11692 = vsel %vm5894, %v7989, %v8315
  %v11693 = vsel %vm5894, %v7994, %v8320
  %v11694 = vsel %vm5894, %v7999, %v8325
  %v11695 = vsel %vm5894, %v8004, %v8330
  %v11696 = vsel %vm5894, %v8009, %v8335
  %v11697 = vsel %vm5894, %v8014, %v8340
  %v11698 = vsel %vm5894, %v8021, %v8347
  %v11699 = vsel %vm5904, %v11690, %v8658
  %v11700 = vsel %vm5904, %v11691, %v8663
  %v11701 = vsel %vm5904, %v11692, %v8668
  %v11702 = vsel %vm5904, %v11693, %v8673
  %v11703 = vsel %vm5904, %v11694, %v8678
  %v11704 = vsel %vm5904, %v11695, %v8683
  %v11705 = vsel %vm5904, %v11696, %v8688
  %v11706 = vsel %vm5904, %v11697, %v8693
  %v11707 = vsel %vm5904, %v11698, %v8700
  %v11708 = vsel %vm5914, %v11699, %v8957
  %v11709 = vsel %vm5914, %v11700, %v8962
  %v11710 = vsel %vm5914, %v11701, %v8967
  %v11711 = vsel %vm5914, %v11702, %v8972
  %v11712 = vsel %vm5914, %v11703, %v8977
  %v11713 = vsel %vm5914, %v11704, %v8982
  %v11714 = vsel %vm5914, %v11705, %v8987
  %v11715 = vsel %vm5914, %v11706, %v8992
  %v11716 = vsel %vm5914, %v11707, %v8999
  %v11717 = vsel %vm2957, %v11708, %v11002
  %v11718 = vsel %vm2957, %v11709, %v11007
  %v11719 = vsel %vm2957, %v11710, %v11012
  %v11720 = vsel %vm2957, %v11711, %v11017
  %v11721 = vsel %vm2957, %v11712, %v11022
  %v11722 = vsel %vm2957, %v11713, %v11027
  %v11723 = vsel %vm2957, %v11714, %v11032
  %v11724 = vsel %vm2957, %v11715, %v11037
  %v11725 = vsel %vm2957, %v11716, %v11044
  %v11726 = vsel %vm5933, %v11717, %v11202
  %v11727 = vsel %vm5933, %v11718, %v11207
  %v11728 = vsel %vm5933, %v11719, %v11212
  %v11729 = vsel %vm5933, %v11720, %v11217
  %v11730 = vsel %vm5933, %v11721, %v11222
  %v11731 = vsel %vm5933, %v11722, %v11227
  %v11732 = vsel %vm5933, %v11723, %v11232
  %v11733 = vsel %vm5933, %v11724, %v11237
  %v11734 = vsel %vm5933, %v11725, %v11244
  %v11735 = vsel %vm5943, %v11726, %v11447
  %v11736 = vsel %vm5943, %v11727, %v11452
  %v11737 = vsel %vm5943, %v11728, %v11457
  %v11738 = vsel %vm5943, %v11729, %v11462
  %v11739 = vsel %vm5943, %v11730, %v11467
  %v11740 = vsel %vm5943, %v11731, %v11472
  %v11741 = vsel %vm5943, %v11732, %v11477
  %v11742 = vsel %vm5943, %v11733, %v11482
  %v11743 = vsel %vm5943, %v11734, %v11489
  %v11744 = vsel %vm5953, %v11735, %v11647
  %v11745 = vsel %vm5953, %v11736, %v11652
  %v11746 = vsel %vm5953, %v11737, %v11657
  %v11747 = vsel %vm5953, %v11738, %v11662
  %v11748 = vsel %vm5953, %v11739, %v11667
  %v11749 = vsel %vm5953, %v11740, %v11672
  %v11750 = vsel %vm5953, %v11741, %v11677
  %v11751 = vsel %vm5953, %v11742, %v11682
  %v11752 = vsel %vm5953, %v11743, %v11689
  %v11753 = vld [vmem:[%s6] sm:$0xff]
  %v11754 = vld [vmem:[%s6 + $0x8] sm:$0xff]
  %v11755 = vld [vmem:[%s6 + $0x10] sm:$0xff]
  %v11756 = vld [vmem:[%s6 + $0x18] sm:$0xff]
  %v11757 = vld [vmem:[%s6 + $0x20] sm:$0xff]
  %v11758 = vld [vmem:[%s6 + $0x28] sm:$0xff]
  %v11759 = vld [vmem:[%s6 + $0x30] sm:$0xff]
  %v11760 = vld [vmem:[%s6 + $0x38] sm:$0xff]
  %v11761 = vld [vmem:[%s6 + $0x40] sm:$0xff]
  %v11762 = vld [vmem:[%s6 + $0x48] sm:$0xff]
  %v11763 = vld [vmem:[%s6 + $0x50] sm:$0xff]
  %v11764 = vld [vmem:[%s6 + $0x58] sm:$0xff]
  %v11765 = vld [vmem:[%s6 + $0x60] sm:$0xff]
  %v11766 = vld [vmem:[%s6 + $0x68] sm:$0xff]
  %v11767 = vld [vmem:[%s6 + $0x70] sm:$0xff]
  %v11768 = vld [vmem:[%s6 + $0x78] sm:$0xff]
  %v11769 = vld [vmem:[%s6 + $0x80] sm:$0xff]
  %v11770 = vld [vmem:[%s6 + $0x88] sm:$0xff]
  %v11771 = vld [vmem:[%s6 + $0x90] sm:$0xff]
  %v11772 = vld [vmem:[%s6 + $0x98] sm:$0xff]
  %v11773 = vld [vmem:[%s6 + $0xa0] sm:$0xff]
  %v11774 = vld [vmem:[%s6 + $0xa8] sm:$0xff]
  %v11775 = vld [vmem:[%s6 + $0xb0] sm:$0xff]
  %v11776 = vld [vmem:[%s6 + $0xb8] sm:$0xff]
  %v11777 = vld [vmem:[%s6 + $0xc0] sm:$0xff]
  %v11778 = vld [vmem:[%s6 + $0xc8] sm:$0xff]
  %v11779 = vld [vmem:[%s6 + $0xd0] sm:$0xff]
  %v11780 = vld [vmem:[%s6 + $0xd8] sm:$0xff]
  %v11781 = vld [vmem:[%s6 + $0xe0] sm:$0xff]
  %v11782 = vld [vmem:[%s6 + $0xe8] sm:$0xff]
  %v11783 = vld [vmem:[%s6 + $0xf0] sm:$0xff]
  %v11784 = vld [vmem:[%s6 + $0xf8] sm:$0xff]
  %v11785 = vld [vmem:[%s6 + $0x100] sm:$0xff]
  %v11786 = vld [vmem:[%s6 + $0x108] sm:$0xff]
  %v11787 = vld [vmem:[%s6 + $0x110] sm:$0xff]
  %v11788 = vld [vmem:[%s6 + $0x118] sm:$0xff]
  %v11789 = vld [vmem:[%s6 + $0x120] sm:$0xff]
  %v11790 = vld [vmem:[%s6 + $0x128] sm:$0xf]
  %v11791 = vsel %vm1289, %v77, 0
  %v11793 = vsel %vm1289, %v80, 0
  %v11795 = vsel %vm1289, %v83, 0
  %v11797 = vsel %vm1289, %v86, 0
  %v11799 = vsel %vm1289, %v89, 0
  %v11801 = vsel %vm1289, %v92, 0
  %v11803 = vsel %vm1289, %v95, 0
  %v11805 = vsel %vm1289, %v98, 0
  %v11807 = vsel %vm1289, %v101, 0
  %vm11809 = vcmask 1043456
  %v11811 = vsel %vm11809, %v11790, 0
  %11813 = vmatprep.subr.mxu0 0.0
  %11814 = vmatpush1.msra.mxu0 %v11753
  %11815 = vmatprep.subr.mxu0 0.0
  %11816 = vmatpush1.msra.mxu0 %v11754
  %11817 = vmatprep.subr.mxu0 0.0
  %11818 = vmatpush1.msra.mxu0 %v11755
  %11819 = vmatprep.subr.mxu0 0.0
  %11820 = vmatpush1.msra.mxu0 %v11756
  %11821 = vmatprep.subr.mxu0 0.0
  %11822 = vmatpush1.msra.mxu0 %v11757
  %11823 = vmatprep.subr.mxu0 0.0
  %11824 = vmatpush1.msra.mxu0 %v11758
  %11825 = vmatprep.subr.mxu0 0.0
  %11826 = vmatpush1.msra.mxu0 %v11759
  %11827 = vmatprep.subr.mxu0 0.0
  %11828 = vmatpush1.msra.mxu0 %v11760
  %11829 = vmatprep.subr.mxu0 0.0
  %11830 = vmatpush1.msra.mxu0 %v11761
  %11831 = vmatprep.subr.mxu0 0.0
  %11832 = vmatpush1.msra.mxu0 %v11762
  %11833 = vmatprep.subr.mxu0 0.0
  %11834 = vmatpush1.msra.mxu0 %v11763
  %11835 = vmatprep.subr.mxu0 0.0
  %11836 = vmatpush1.msra.mxu0 %v11764
  %11837 = vmatprep.subr.mxu0 0.0
  %11838 = vmatpush1.msra.mxu0 %v11765
  %11839 = vmatprep.subr.mxu0 0.0
  %11840 = vmatpush1.msra.mxu0 %v11766
  %11841 = vmatprep.subr.mxu0 0.0
  %11842 = vmatpush1.msra.mxu0 %v11767
  %11843 = vmatprep.subr.mxu0 0.0
  %11844 = vmatpush1.msra.mxu0 %v11768
  %11845 = vmatprep.subr.mxu0 0.0
  %11846 = vmatpush1.msra.mxu0 %v11769
  %11847 = vmatprep.subr.mxu0 0.0
  %11848 = vmatpush1.msra.mxu0 %v11770
  %11849 = vmatprep.subr.mxu0 0.0
  %11850 = vmatpush1.msra.mxu0 %v11771
  %11851 = vmatprep.subr.mxu0 0.0
  %11852 = vmatpush1.msra.mxu0 %v11772
  %11853 = vmatprep.subr.mxu0 0.0
  %11854 = vmatpush1.msra.mxu0 %v11773
  %11855 = vmatprep.subr.mxu0 0.0
  %11856 = vmatpush1.msra.mxu0 %v11774
  %11857 = vmatprep.subr.mxu0 0.0
  %11858 = vmatpush1.msra.mxu0 %v11775
  %11859 = vmatprep.subr.mxu0 0.0
  %11860 = vmatpush1.msra.mxu0 %v11776
  %11861 = vmatprep.subr.mxu0 0.0
  %11862 = vmatpush1.msra.mxu0 %v11777
  %11863 = vmatprep.subr.mxu0 0.0
  %11864 = vmatpush1.msra.mxu0 %v11778
  %11865 = vmatprep.subr.mxu0 0.0
  %11866 = vmatpush1.msra.mxu0 %v11779
  %11867 = vmatprep.subr.mxu0 0.0
  %11868 = vmatpush1.msra.mxu0 %v11780
  %11869 = vmatprep.subr.mxu0 0.0
  %11870 = vmatpush1.msra.mxu0 %v11781
  %11871 = vmatprep.subr.mxu0 0.0
  %11872 = vmatpush1.msra.mxu0 %v11782
  %11873 = vmatprep.subr.mxu0 0.0
  %11874 = vmatpush1.msra.mxu0 %v11783
  %11875 = vmatprep.subr.mxu0 0.0
  %11876 = vmatpush1.msra.mxu0 %v11784
  %11877 = vmatprep.mubr.f32.mxu0 %v76
  %11878 = vmatmul.mubr.f32.gmra.mrb[0].mxu0 %v75
  %v11879 = vpop.f32.mrb[0].mxu0
  %v11880 = vadd.f32 0.0, %v11879
  %v11881 = vpop.f32.mrb[0].mxu0
  %11882 = vmatprep.mubr.f32.mxu0 %v79
  %11883 = vmatmul.mubr.f32.gmra.mrb[0].mxu0 %v78
  %v11884 = vpop.f32.mrb[0].mxu0
  %v11885 = vadd.f32 0.0, %v11884
  %v11886 = vpop.f32.mrb[0].mxu0
  %11887 = vmatprep.mubr.f32.mxu0 %v82
  %11888 = vmatmul.mubr.f32.gmra.mrb[0].mxu0 %v81
  %v11889 = vpop.f32.mrb[0].mxu0
  %v11890 = vadd.f32 0.0, %v11889
  %v11891 = vpop.f32.mrb[0].mxu0
  %11892 = vmatprep.mubr.f32.mxu0 %v85
  %11893 = vmatmul.mubr.f32.gmra.mrb[0].mxu0 %v84
  %v11894 = vpop.f32.mrb[0].mxu0
  %v11895 = vadd.f32 0.0, %v11894
  %v11896 = vpop.f32.mrb[0].mxu0
  %11897 = vmatprep.mubr.f32.mxu0 %v88
  %11898 = vmatmul.mubr.f32.gmra.mrb[0].mxu0 %v87
  %v11899 = vpop.f32.mrb[0].mxu0
  %v11900 = vadd.f32 0.0, %v11899
  %v11901 = vpop.f32.mrb[0].mxu0
  %11902 = vmatprep.mubr.f32.mxu0 %v91
  %11903 = vmatmul.mubr.f32.gmra.mrb[0].mxu0 %v90
  %v11904 = vpop.f32.mrb[0].mxu0
  %v11905 = vadd.f32 0.0, %v11904
  %v11906 = vpop.f32.mrb[0].mxu0
  %11907 = vmatprep.mubr.f32.mxu0 %v94
  %11908 = vmatmul.mubr.f32.gmra.mrb[0].mxu0 %v93
  %v11909 = vpop.f32.mrb[0].mxu0
  %v11910 = vadd.f32 0.0, %v11909
  %v11911 = vpop.f32.mrb[0].mxu0
  %11912 = vmatprep.mubr.f32.mxu0 %v97
  %11913 = vmatmul.mubr.f32.gmra.mrb[0].mxu0 %v96
  %v11914 = vpop.f32.mrb[0].mxu0
  %v11915 = vadd.f32 0.0, %v11914
  %v11916 = vpop.f32.mrb[0].mxu0
  %11917 = vmatprep.mubr.f32.mxu0 %v100
  %11918 = vmatmul.mubr.f32.gmra.mrb[0].mxu0 %v99
  %v11919 = vpop.f32.mrb[0].mxu0
  %v11920 = vadd.f32 0.0, %v11919
  %v11921 = vpop.f32.mrb[0].mxu0
  %11922 = vdwg.mxu0
  %11923 = vmatprep.subr.mxu0 0.0
  %11924 = vmatpush1.msra.mxu0 %v11785
  %11925 = vmatprep.subr.mxu0 0.0
  %11926 = vmatpush1.msra.mxu0 %v11786
  %11927 = vmatprep.subr.mxu0 0.0
  %11928 = vmatpush1.msra.mxu0 %v11787
  %11929 = vmatprep.subr.mxu0 0.0
  %11930 = vmatpush1.msra.mxu0 %v11788
  %11931 = vmatprep.subr.mxu0 0.0
  %11932 = vmatpush1.msra.mxu0 %v11789
  %11933 = vmatprep.subr.mxu0 0.0
  %11934 = vmatpush1.msra.mxu0 %v11811
  %11935 = vmatprep.subr.mxu0 0.0
  %11936 = vmatpush1.msra.mxu0 0.0
  %11937 = vmatprep.subr.mxu0 0.0
  %11938 = vmatpush1.msra.mxu0 0.0
  %11939 = vmatprep.subr.mxu0 0.0
  %11940 = vmatpush1.msra.mxu0 0.0
  %11941 = vmatprep.subr.mxu0 0.0
  %11942 = vmatpush1.msra.mxu0 0.0
  %11943 = vmatprep.subr.mxu0 0.0
  %11944 = vmatpush1.msra.mxu0 0.0
  %11945 = vmatprep.subr.mxu0 0.0
  %11946 = vmatpush1.msra.mxu0 0.0
  %11947 = vmatprep.subr.mxu0 0.0
  %11948 = vmatpush1.msra.mxu0 0.0
  %11949 = vmatprep.subr.mxu0 0.0
  %11950 = vmatpush1.msra.mxu0 0.0
  %11951 = vmatprep.subr.mxu0 0.0
  %11952 = vmatpush1.msra.mxu0 0.0
  %11953 = vmatprep.subr.mxu0 0.0
  %11954 = vmatpush1.msra.mxu0 0.0
  %11955 = vmatprep.subr.mxu0 0.0
  %11956 = vmatpush1.msra.mxu0 0.0
  %11957 = vmatprep.subr.mxu0 0.0
  %11958 = vmatpush1.msra.mxu0 0.0
  %11959 = vmatprep.subr.mxu0 0.0
  %11960 = vmatpush1.msra.mxu0 0.0
  %11961 = vmatprep.subr.mxu0 0.0
  %11962 = vmatpush1.msra.mxu0 0.0
  %11963 = vmatprep.subr.mxu0 0.0
  %11964 = vmatpush1.msra.mxu0 0.0
  %11965 = vmatprep.subr.mxu0 0.0
  %11966 = vmatpush1.msra.mxu0 0.0
  %11967 = vmatprep.subr.mxu0 0.0
  %11968 = vmatpush1.msra.mxu0 0.0
  %11969 = vmatprep.subr.mxu0 0.0
  %11970 = vmatpush1.msra.mxu0 0.0
  %11971 = vmatprep.subr.mxu0 0.0
  %11972 = vmatpush1.msra.mxu0 0.0
  %11973 = vmatprep.subr.mxu0 0.0
  %11974 = vmatpush1.msra.mxu0 0.0
  %11975 = vmatprep.subr.mxu0 0.0
  %11976 = vmatpush1.msra.mxu0 0.0
  %11977 = vmatprep.subr.mxu0 0.0
  %11978 = vmatpush1.msra.mxu0 0.0
  %11979 = vmatprep.subr.mxu0 0.0
  %11980 = vmatpush1.msra.mxu0 0.0
  %11981 = vmatprep.subr.mxu0 0.0
  %11982 = vmatpush1.msra.mxu0 0.0
  %11983 = vmatprep.subr.mxu0 0.0
  %11984 = vmatpush1.msra.mxu0 0.0
  %11985 = vmatprep.subr.mxu0 0.0
  %11986 = vmatpush1.msra.mxu0 0.0
  %11987 = vmatprep.mubr.f32.mxu0 0.0
  %11988 = vmatmul.mubr.f32.gmra.mrb[0].mxu0 %v11791
  %v11989 = vpop.f32.mrb[0].mxu0
  %v11990 = vadd.f32 %v11880, %v11989
  %v11991 = vpop.f32.mrb[0].mxu0
  %11992 = vmatprep.mubr.f32.mxu0 0.0
  %11993 = vmatmul.mubr.f32.gmra.mrb[0].mxu0 %v11793
  %v11994 = vpop.f32.mrb[0].mxu0
  %v11995 = vadd.f32 %v11885, %v11994
  %v11996 = vpop.f32.mrb[0].mxu0
  %11997 = vmatprep.mubr.f32.mxu0 0.0
  %11998 = vmatmul.mubr.f32.gmra.mrb[0].mxu0 %v11795
  %v11999 = vpop.f32.mrb[0].mxu0
  %v12000 = vadd.f32 %v11890, %v11999
  %v12001 = vpop.f32.mrb[0].mxu0
  %12002 = vmatprep.mubr.f32.mxu0 0.0
  %12003 = vmatmul.mubr.f32.gmra.mrb[0].mxu0 %v11797
  %v12004 = vpop.f32.mrb[0].mxu0
  %v12005 = vadd.f32 %v11895, %v12004
  %v12006 = vpop.f32.mrb[0].mxu0
  %12007 = vmatprep.mubr.f32.mxu0 0.0
  %12008 = vmatmul.mubr.f32.gmra.mrb[0].mxu0 %v11799
  %v12009 = vpop.f32.mrb[0].mxu0
  %v12010 = vadd.f32 %v11900, %v12009
  %v12011 = vpop.f32.mrb[0].mxu0
  %12012 = vmatprep.mubr.f32.mxu0 0.0
  %12013 = vmatmul.mubr.f32.gmra.mrb[0].mxu0 %v11801
  %v12014 = vpop.f32.mrb[0].mxu0
  %v12015 = vadd.f32 %v11905, %v12014
  %v12016 = vpop.f32.mrb[0].mxu0
  %12017 = vmatprep.mubr.f32.mxu0 0.0
  %12018 = vmatmul.mubr.f32.gmra.mrb[0].mxu0 %v11803
  %v12019 = vpop.f32.mrb[0].mxu0
  %v12020 = vadd.f32 %v11910, %v12019
  %v12021 = vpop.f32.mrb[0].mxu0
  %12022 = vmatprep.mubr.f32.mxu0 0.0
  %12023 = vmatmul.mubr.f32.gmra.mrb[0].mxu0 %v11805
  %v12024 = vpop.f32.mrb[0].mxu0
  %v12025 = vadd.f32 %v11915, %v12024
  %v12026 = vpop.f32.mrb[0].mxu0
  %12027 = vmatprep.mubr.f32.mxu0 0.0
  %12028 = vmatmul.mubr.f32.gmra.mrb[0].mxu0 %v11807
  %v12029 = vpop.f32.mrb[0].mxu0
  %v12030 = vadd.f32 %v11920, %v12029
  %v12031 = vpop.f32.mrb[0].mxu0
  %12032 = vdwg.mxu0
  %v12033 = vld [vmem:[%s5] sm:$0xff]
  %v12034 = vld [vmem:[%s5 + $0x8] sm:$0xff]
  %v12035 = vld [vmem:[%s5 + $0x10] sm:$0xff]
  %v12036 = vld [vmem:[%s5 + $0x18] sm:$0xff]
  %v12037 = vld [vmem:[%s5 + $0x20] sm:$0xff]
  %v12038 = vld [vmem:[%s5 + $0x28] sm:$0xff]
  %v12039 = vld [vmem:[%s5 + $0x30] sm:$0xff]
  %v12040 = vld [vmem:[%s5 + $0x38] sm:$0xff]
  %v12041 = vld [vmem:[%s5 + $0x40] sm:$0xff]
  %v12042 = vld [vmem:[%s5 + $0x48] sm:$0xff]
  %v12043 = vld [vmem:[%s5 + $0x50] sm:$0xff]
  %v12044 = vld [vmem:[%s5 + $0x58] sm:$0xff]
  %v12045 = vld [vmem:[%s5 + $0x60] sm:$0xff]
  %v12046 = vld [vmem:[%s5 + $0x68] sm:$0xff]
  %v12047 = vld [vmem:[%s5 + $0x70] sm:$0xff]
  %v12048 = vld [vmem:[%s5 + $0x78] sm:$0xff]
  %v12049 = vld [vmem:[%s5 + $0x80] sm:$0xff]
  %v12050 = vld [vmem:[%s5 + $0x88] sm:$0xff]
  %v12051 = vld [vmem:[%s5 + $0x90] sm:$0xff]
  %v12052 = vld [vmem:[%s5 + $0x98] sm:$0xff]
  %v12053 = vld [vmem:[%s5 + $0xa0] sm:$0xff]
  %v12054 = vld [vmem:[%s5 + $0xa8] sm:$0xff]
  %v12055 = vld [vmem:[%s5 + $0xb0] sm:$0xff]
  %v12056 = vld [vmem:[%s5 + $0xb8] sm:$0xff]
  %v12057 = vld [vmem:[%s5 + $0xc0] sm:$0xff]
  %v12058 = vld [vmem:[%s5 + $0xc8] sm:$0xff]
  %v12059 = vld [vmem:[%s5 + $0xd0] sm:$0xff]
  %v12060 = vld [vmem:[%s5 + $0xd8] sm:$0xff]
  %v12061 = vld [vmem:[%s5 + $0xe0] sm:$0xff]
  %v12062 = vld [vmem:[%s5 + $0xe8] sm:$0xff]
  %v12063 = vld [vmem:[%s5 + $0xf0] sm:$0xff]
  %v12064 = vld [vmem:[%s5 + $0xf8] sm:$0xff]
  %v12065 = vld [vmem:[%s5 + $0x100] sm:$0xff]
  %v12066 = vld [vmem:[%s5 + $0x108] sm:$0xff]
  %v12067 = vld [vmem:[%s5 + $0x110] sm:$0xff]
  %v12068 = vld [vmem:[%s5 + $0x118] sm:$0xff]
  %v12069 = vld [vmem:[%s5 + $0x120] sm:$0xff]
  %v12070 = vld [vmem:[%s5 + $0x128] sm:$0xf]
  %v12072 = vsel %vm1289, %v50, 0
  %v12075 = vsel %vm1289, %v53, 0
  %v12078 = vsel %vm1289, %v56, 0
  %v12081 = vsel %vm1289, %v59, 0
  %v12084 = vsel %vm1289, %v62, 0
  %v12087 = vsel %vm1289, %v65, 0
  %v12090 = vsel %vm1289, %v68, 0
  %v12093 = vsel %vm1289, %v71, 0
  %v12096 = vsel %vm1289, %v74, 0
  %v12099 = vsel %vm11809, %v12070, 0
  %12101 = vmatprep.subr.mxu0 0.0
  %12102 = vmatpush1.msra.mxu0 %v12033
  %12103 = vmatprep.subr.mxu0 0.0
  %12104 = vmatpush1.msra.mxu0 %v12034
  %12105 = vmatprep.subr.mxu0 0.0
  %12106 = vmatpush1.msra.mxu0 %v12035
  %12107 = vmatprep.subr.mxu0 0.0
  %12108 = vmatpush1.msra.mxu0 %v12036
  %12109 = vmatprep.subr.mxu0 0.0
  %12110 = vmatpush1.msra.mxu0 %v12037
  %12111 = vmatprep.subr.mxu0 0.0
  %12112 = vmatpush1.msra.mxu0 %v12038
  %12113 = vmatprep.subr.mxu0 0.0
  %12114 = vmatpush1.msra.mxu0 %v12039
  %12115 = vmatprep.subr.mxu0 0.0
  %12116 = vmatpush1.msra.mxu0 %v12040
  %12117 = vmatprep.subr.mxu0 0.0
  %12118 = vmatpush1.msra.mxu0 %v12041
  %12119 = vmatprep.subr.mxu0 0.0
  %12120 = vmatpush1.msra.mxu0 %v12042
  %12121 = vmatprep.subr.mxu0 0.0
  %12122 = vmatpush1.msra.mxu0 %v12043
  %12123 = vmatprep.subr.mxu0 0.0
  %12124 = vmatpush1.msra.mxu0 %v12044
  %12125 = vmatprep.subr.mxu0 0.0
  %12126 = vmatpush1.msra.mxu0 %v12045
  %12127 = vmatprep.subr.mxu0 0.0
  %12128 = vmatpush1.msra.mxu0 %v12046
  %12129 = vmatprep.subr.mxu0 0.0
  %12130 = vmatpush1.msra.mxu0 %v12047
  %12131 = vmatprep.subr.mxu0 0.0
  %12132 = vmatpush1.msra.mxu0 %v12048
  %12133 = vmatprep.subr.mxu0 0.0
  %12134 = vmatpush1.msra.mxu0 %v12049
  %12135 = vmatprep.subr.mxu0 0.0
  %12136 = vmatpush1.msra.mxu0 %v12050
  %12137 = vmatprep.subr.mxu0 0.0
  %12138 = vmatpush1.msra.mxu0 %v12051
  %12139 = vmatprep.subr.mxu0 0.0
  %12140 = vmatpush1.msra.mxu0 %v12052
  %12141 = vmatprep.subr.mxu0 0.0
  %12142 = vmatpush1.msra.mxu0 %v12053
  %12143 = vmatprep.subr.mxu0 0.0
  %12144 = vmatpush1.msra.mxu0 %v12054
  %12145 = vmatprep.subr.mxu0 0.0
  %12146 = vmatpush1.msra.mxu0 %v12055
  %12147 = vmatprep.subr.mxu0 0.0
  %12148 = vmatpush1.msra.mxu0 %v12056
  %12149 = vmatprep.subr.mxu0 0.0
  %12150 = vmatpush1.msra.mxu0 %v12057
  %12151 = vmatprep.subr.mxu0 0.0
  %12152 = vmatpush1.msra.mxu0 %v12058
  %12153 = vmatprep.subr.mxu0 0.0
  %12154 = vmatpush1.msra.mxu0 %v12059
  %12155 = vmatprep.subr.mxu0 0.0
  %12156 = vmatpush1.msra.mxu0 %v12060
  %12157 = vmatprep.subr.mxu0 0.0
  %12158 = vmatpush1.msra.mxu0 %v12061
  %12159 = vmatprep.subr.mxu0 0.0
  %12160 = vmatpush1.msra.mxu0 %v12062
  %12161 = vmatprep.subr.mxu0 0.0
  %12162 = vmatpush1.msra.mxu0 %v12063
  %12163 = vmatprep.subr.mxu0 0.0
  %12164 = vmatpush1.msra.mxu0 %v12064
  %12165 = vmatprep.mubr.f32.mxu0 %v49
  %12166 = vmatmul.mubr.f32.gmra.mrb[0].mxu0 %v48
  %v12167 = vpop.f32.mrb[0].mxu0
  %v12168 = vadd.f32 %v11990, %v12167
  %v12169 = vpop.f32.mrb[0].mxu0
  %12170 = vmatprep.mubr.f32.mxu0 %v52
  %12171 = vmatmul.mubr.f32.gmra.mrb[0].mxu0 %v51
  %v12172 = vpop.f32.mrb[0].mxu0
  %v12173 = vadd.f32 %v11995, %v12172
  %v12174 = vpop.f32.mrb[0].mxu0
  %12175 = vmatprep.mubr.f32.mxu0 %v55
  %12176 = vmatmul.mubr.f32.gmra.mrb[0].mxu0 %v54
  %v12177 = vpop.f32.mrb[0].mxu0
  %v12178 = vadd.f32 %v12000, %v12177
  %v12179 = vpop.f32.mrb[0].mxu0
  %12180 = vmatprep.mubr.f32.mxu0 %v58
  %12181 = vmatmul.mubr.f32.gmra.mrb[0].mxu0 %v57
  %v12182 = vpop.f32.mrb[0].mxu0
  %v12183 = vadd.f32 %v12005, %v12182
  %v12184 = vpop.f32.mrb[0].mxu0
  %12185 = vmatprep.mubr.f32.mxu0 %v61
  %12186 = vmatmul.mubr.f32.gmra.mrb[0].mxu0 %v60
  %v12187 = vpop.f32.mrb[0].mxu0
  %v12188 = vadd.f32 %v12010, %v12187
  %v12189 = vpop.f32.mrb[0].mxu0
  %12190 = vmatprep.mubr.f32.mxu0 %v64
  %12191 = vmatmul.mubr.f32.gmra.mrb[0].mxu0 %v63
  %v12192 = vpop.f32.mrb[0].mxu0
  %v12193 = vadd.f32 %v12015, %v12192
  %v12194 = vpop.f32.mrb[0].mxu0
  %12195 = vmatprep.mubr.f32.mxu0 %v67
  %12196 = vmatmul.mubr.f32.gmra.mrb[0].mxu0 %v66
  %v12197 = vpop.f32.mrb[0].mxu0
  %v12198 = vadd.f32 %v12020, %v12197
  %v12199 = vpop.f32.mrb[0].mxu0
  %12200 = vmatprep.mubr.f32.mxu0 %v70
  %12201 = vmatmul.mubr.f32.gmra.mrb[0].mxu0 %v69
  %v12202 = vpop.f32.mrb[0].mxu0
  %v12203 = vadd.f32 %v12025, %v12202
  %v12204 = vpop.f32.mrb[0].mxu0
  %12205 = vmatprep.mubr.f32.mxu0 %v73
  %12206 = vmatmul.mubr.f32.gmra.mrb[0].mxu0 %v72
  %v12207 = vpop.f32.mrb[0].mxu0
  %v12208 = vadd.f32 %v12030, %v12207
  %v12209 = vpop.f32.mrb[0].mxu0
  %12210 = vdwg.mxu0
  %12211 = vmatprep.subr.mxu0 0.0
  %12212 = vmatpush1.msra.mxu0 %v12065
  %12213 = vmatprep.subr.mxu0 0.0
  %12214 = vmatpush1.msra.mxu0 %v12066
  %12215 = vmatprep.subr.mxu0 0.0
  %12216 = vmatpush1.msra.mxu0 %v12067
  %12217 = vmatprep.subr.mxu0 0.0
  %12218 = vmatpush1.msra.mxu0 %v12068
  %12219 = vmatprep.subr.mxu0 0.0
  %12220 = vmatpush1.msra.mxu0 %v12069
  %12221 = vmatprep.subr.mxu0 0.0
  %12222 = vmatpush1.msra.mxu0 %v12099
  %12223 = vmatprep.subr.mxu0 0.0
  %12224 = vmatpush1.msra.mxu0 0.0
  %12225 = vmatprep.subr.mxu0 0.0
  %12226 = vmatpush1.msra.mxu0 0.0
  %12227 = vmatprep.subr.mxu0 0.0
  %12228 = vmatpush1.msra.mxu0 0.0
  %12229 = vmatprep.subr.mxu0 0.0
  %12230 = vmatpush1.msra.mxu0 0.0
  %12231 = vmatprep.subr.mxu0 0.0
  %12232 = vmatpush1.msra.mxu0 0.0
  %12233 = vmatprep.subr.mxu0 0.0
  %12234 = vmatpush1.msra.mxu0 0.0
  %12235 = vmatprep.subr.mxu0 0.0
  %12236 = vmatpush1.msra.mxu0 0.0
  %12237 = vmatprep.subr.mxu0 0.0
  %12238 = vmatpush1.msra.mxu0 0.0
  %12239 = vmatprep.subr.mxu0 0.0
  %12240 = vmatpush1.msra.mxu0 0.0
  %12241 = vmatprep.subr.mxu0 0.0
  %12242 = vmatpush1.msra.mxu0 0.0
  %12243 = vmatprep.subr.mxu0 0.0
  %12244 = vmatpush1.msra.mxu0 0.0
  %12245 = vmatprep.subr.mxu0 0.0
  %12246 = vmatpush1.msra.mxu0 0.0
  %12247 = vmatprep.subr.mxu0 0.0
  %12248 = vmatpush1.msra.mxu0 0.0
  %12249 = vmatprep.subr.mxu0 0.0
  %12250 = vmatpush1.msra.mxu0 0.0
  %12251 = vmatprep.subr.mxu0 0.0
  %12252 = vmatpush1.msra.mxu0 0.0
  %12253 = vmatprep.subr.mxu0 0.0
  %12254 = vmatpush1.msra.mxu0 0.0
  %12255 = vmatprep.subr.mxu0 0.0
  %12256 = vmatpush1.msra.mxu0 0.0
  %12257 = vmatprep.subr.mxu0 0.0
  %12258 = vmatpush1.msra.mxu0 0.0
  %12259 = vmatprep.subr.mxu0 0.0
  %12260 = vmatpush1.msra.mxu0 0.0
  %12261 = vmatprep.subr.mxu0 0.0
  %12262 = vmatpush1.msra.mxu0 0.0
  %12263 = vmatprep.subr.mxu0 0.0
  %12264 = vmatpush1.msra.mxu0 0.0
  %12265 = vmatprep.subr.mxu0 0.0
  %12266 = vmatpush1.msra.mxu0 0.0
  %12267 = vmatprep.subr.mxu0 0.0
  %12268 = vmatpush1.msra.mxu0 0.0
  %12269 = vmatprep.subr.mxu0 0.0
  %12270 = vmatpush1.msra.mxu0 0.0
  %12271 = vmatprep.subr.mxu0 0.0
  %12272 = vmatpush1.msra.mxu0 0.0
  %12273 = vmatprep.subr.mxu0 0.0
  %12274 = vmatpush1.msra.mxu0 0.0
  %12275 = vmatprep.mubr.f32.mxu0 0.0
  %12276 = vmatmul.mubr.f32.gmra.mrb[0].mxu0 %v12072
  %v12277 = vpop.f32.mrb[0].mxu0
  %v12278 = vadd.f32 %v12168, %v12277
  %v12279 = vpop.f32.mrb[0].mxu0
  %12280 = vmatprep.mubr.f32.mxu0 0.0
  %12281 = vmatmul.mubr.f32.gmra.mrb[0].mxu0 %v12075
  %v12282 = vpop.f32.mrb[0].mxu0
  %v12283 = vadd.f32 %v12173, %v12282
  %v12284 = vpop.f32.mrb[0].mxu0
  %12285 = vmatprep.mubr.f32.mxu0 0.0
  %12286 = vmatmul.mubr.f32.gmra.mrb[0].mxu0 %v12078
  %v12287 = vpop.f32.mrb[0].mxu0
  %v12288 = vadd.f32 %v12178, %v12287
  %v12289 = vpop.f32.mrb[0].mxu0
  %12290 = vmatprep.mubr.f32.mxu0 0.0
  %12291 = vmatmul.mubr.f32.gmra.mrb[0].mxu0 %v12081
  %v12292 = vpop.f32.mrb[0].mxu0
  %v12293 = vadd.f32 %v12183, %v12292
  %v12294 = vpop.f32.mrb[0].mxu0
  %12295 = vmatprep.mubr.f32.mxu0 0.0
  %12296 = vmatmul.mubr.f32.gmra.mrb[0].mxu0 %v12084
  %v12297 = vpop.f32.mrb[0].mxu0
  %v12298 = vadd.f32 %v12188, %v12297
  %v12299 = vpop.f32.mrb[0].mxu0
  %12300 = vmatprep.mubr.f32.mxu0 0.0
  %12301 = vmatmul.mubr.f32.gmra.mrb[0].mxu0 %v12087
  %v12302 = vpop.f32.mrb[0].mxu0
  %v12303 = vadd.f32 %v12193, %v12302
  %v12304 = vpop.f32.mrb[0].mxu0
  %12305 = vmatprep.mubr.f32.mxu0 0.0
  %12306 = vmatmul.mubr.f32.gmra.mrb[0].mxu0 %v12090
  %v12307 = vpop.f32.mrb[0].mxu0
  %v12308 = vadd.f32 %v12198, %v12307
  %v12309 = vpop.f32.mrb[0].mxu0
  %12310 = vmatprep.mubr.f32.mxu0 0.0
  %12311 = vmatmul.mubr.f32.gmra.mrb[0].mxu0 %v12093
  %v12312 = vpop.f32.mrb[0].mxu0
  %v12313 = vadd.f32 %v12203, %v12312
  %v12314 = vpop.f32.mrb[0].mxu0
  %12315 = vmatprep.mubr.f32.mxu0 0.0
  %12316 = vmatmul.mubr.f32.gmra.mrb[0].mxu0 %v12096
  %v12317 = vpop.f32.mrb[0].mxu0
  %v12318 = vadd.f32 %v12208, %v12317
  %v12319 = vpop.f32.mrb[0].mxu0
  %12320 = vdwg.mxu0
  %v12321 = vld [vmem:[%s8] sm:$0x1]
  %v12323 = vlaneseq
  %v12324 = vshrl.u32 %v12323, 7
  %v12325 = vsub.s32 0, %v12324
  %v12326 = vrot.slane %v12321, %v12325
  %v12328 = vadd.f32 %v12278, %v12326
  %v12329 = vadd.f32 %v12283, %v12326
  %v12330 = vadd.f32 %v12288, %v12326
  %v12331 = vadd.f32 %v12293, %v12326
  %v12332 = vadd.f32 %v12298, %v12326
  %v12333 = vadd.f32 %v12303, %v12326
  %v12334 = vadd.f32 %v12308, %v12326
  %v12335 = vadd.f32 %v12313, %v12326
  %v12336 = vadd.f32 %v12318, %v12326
  %v12337 = vld [vmem:[%s7] sm:$0xff]
  %v12338 = vld [vmem:[%s7 + $0x8] sm:$0xff]
  %v12339 = vld [vmem:[%s7 + $0x10] sm:$0xff]
  %v12340 = vld [vmem:[%s7 + $0x18] sm:$0xff]
  %v12341 = vld [vmem:[%s7 + $0x20] sm:$0xff]
  %v12342 = vld [vmem:[%s7 + $0x28] sm:$0xff]
  %v12343 = vld [vmem:[%s7 + $0x30] sm:$0xff]
  %v12344 = vld [vmem:[%s7 + $0x38] sm:$0xff]
  %v12345 = vld [vmem:[%s7 + $0x40] sm:$0xff]
  %v12346 = vld [vmem:[%s7 + $0x48] sm:$0xff]
  %v12347 = vld [vmem:[%s7 + $0x50] sm:$0xff]
  %v12348 = vld [vmem:[%s7 + $0x58] sm:$0xff]
  %v12349 = vld [vmem:[%s7 + $0x60] sm:$0xff]
  %v12350 = vld [vmem:[%s7 + $0x68] sm:$0xff]
  %v12351 = vld [vmem:[%s7 + $0x70] sm:$0xff]
  %v12352 = vld [vmem:[%s7 + $0x78] sm:$0xff]
  %v12353 = vld [vmem:[%s7 + $0x80] sm:$0xff]
  %v12354 = vld [vmem:[%s7 + $0x88] sm:$0xff]
  %v12355 = vld [vmem:[%s7 + $0x90] sm:$0xff]
  %v12356 = vld [vmem:[%s7 + $0x98] sm:$0xff]
  %v12357 = vld [vmem:[%s7 + $0xa0] sm:$0xff]
  %v12358 = vld [vmem:[%s7 + $0xa8] sm:$0xff]
  %v12359 = vld [vmem:[%s7 + $0xb0] sm:$0xff]
  %v12360 = vld [vmem:[%s7 + $0xb8] sm:$0xff]
  %v12361 = vld [vmem:[%s7 + $0xc0] sm:$0xff]
  %v12362 = vld [vmem:[%s7 + $0xc8] sm:$0xff]
  %v12363 = vld [vmem:[%s7 + $0xd0] sm:$0xff]
  %v12364 = vld [vmem:[%s7 + $0xd8] sm:$0xff]
  %v12365 = vld [vmem:[%s7 + $0xe0] sm:$0xff]
  %v12366 = vld [vmem:[%s7 + $0xe8] sm:$0xff]
  %v12367 = vld [vmem:[%s7 + $0xf0] sm:$0xff]
  %v12368 = vld [vmem:[%s7 + $0xf8] sm:$0xff]
  %v12369 = vld [vmem:[%s7 + $0x100] sm:$0xff]
  %v12370 = vld [vmem:[%s7 + $0x108] sm:$0xff]
  %v12371 = vld [vmem:[%s7 + $0x110] sm:$0xff]
  %v12372 = vld [vmem:[%s7 + $0x118] sm:$0xff]
  %v12373 = vld [vmem:[%s7 + $0x120] sm:$0xff]
  %v12374 = vld [vmem:[%s7 + $0x128] sm:$0xf]
  %v12375 = vsel %vm1289, %v104, 0
  %v12377 = vsel %vm1289, %v107, 0
  %v12379 = vsel %vm1289, %v110, 0
  %v12381 = vsel %vm1289, %v113, 0
  %v12383 = vsel %vm1289, %v116, 0
  %v12385 = vsel %vm1289, %v119, 0
  %v12387 = vsel %vm1289, %v122, 0
  %v12389 = vsel %vm1289, %v125, 0
  %v12391 = vsel %vm1289, %v128, 0
  %v12394 = vsel %vm11809, %v12374, 0
  %12396 = vmatprep.subr.mxu0 0.0
  %12397 = vmatpush1.msra.mxu0 %v12337
  %12398 = vmatprep.subr.mxu0 0.0
  %12399 = vmatpush1.msra.mxu0 %v12338
  %12400 = vmatprep.subr.mxu0 0.0
  %12401 = vmatpush1.msra.mxu0 %v12339
  %12402 = vmatprep.subr.mxu0 0.0
  %12403 = vmatpush1.msra.mxu0 %v12340
  %12404 = vmatprep.subr.mxu0 0.0
  %12405 = vmatpush1.msra.mxu0 %v12341
  %12406 = vmatprep.subr.mxu0 0.0
  %12407 = vmatpush1.msra.mxu0 %v12342
  %12408 = vmatprep.subr.mxu0 0.0
  %12409 = vmatpush1.msra.mxu0 %v12343
  %12410 = vmatprep.subr.mxu0 0.0
  %12411 = vmatpush1.msra.mxu0 %v12344
  %12412 = vmatprep.subr.mxu0 0.0
  %12413 = vmatpush1.msra.mxu0 %v12345
  %12414 = vmatprep.subr.mxu0 0.0
  %12415 = vmatpush1.msra.mxu0 %v12346
  %12416 = vmatprep.subr.mxu0 0.0
  %12417 = vmatpush1.msra.mxu0 %v12347
  %12418 = vmatprep.subr.mxu0 0.0
  %12419 = vmatpush1.msra.mxu0 %v12348
  %12420 = vmatprep.subr.mxu0 0.0
  %12421 = vmatpush1.msra.mxu0 %v12349
  %12422 = vmatprep.subr.mxu0 0.0
  %12423 = vmatpush1.msra.mxu0 %v12350
  %12424 = vmatprep.subr.mxu0 0.0
  %12425 = vmatpush1.msra.mxu0 %v12351
  %12426 = vmatprep.subr.mxu0 0.0
  %12427 = vmatpush1.msra.mxu0 %v12352
  %12428 = vmatprep.subr.mxu0 0.0
  %12429 = vmatpush1.msra.mxu0 %v12353
  %12430 = vmatprep.subr.mxu0 0.0
  %12431 = vmatpush1.msra.mxu0 %v12354
  %12432 = vmatprep.subr.mxu0 0.0
  %12433 = vmatpush1.msra.mxu0 %v12355
  %12434 = vmatprep.subr.mxu0 0.0
  %12435 = vmatpush1.msra.mxu0 %v12356
  %12436 = vmatprep.subr.mxu0 0.0
  %12437 = vmatpush1.msra.mxu0 %v12357
  %12438 = vmatprep.subr.mxu0 0.0
  %12439 = vmatpush1.msra.mxu0 %v12358
  %12440 = vmatprep.subr.mxu0 0.0
  %12441 = vmatpush1.msra.mxu0 %v12359
  %12442 = vmatprep.subr.mxu0 0.0
  %12443 = vmatpush1.msra.mxu0 %v12360
  %12444 = vmatprep.subr.mxu0 0.0
  %12445 = vmatpush1.msra.mxu0 %v12361
  %12446 = vmatprep.subr.mxu0 0.0
  %12447 = vmatpush1.msra.mxu0 %v12362
  %12448 = vmatprep.subr.mxu0 0.0
  %12449 = vmatpush1.msra.mxu0 %v12363
  %12450 = vmatprep.subr.mxu0 0.0
  %12451 = vmatpush1.msra.mxu0 %v12364
  %12452 = vmatprep.subr.mxu0 0.0
  %12453 = vmatpush1.msra.mxu0 %v12365
  %12454 = vmatprep.subr.mxu0 0.0
  %12455 = vmatpush1.msra.mxu0 %v12366
  %12456 = vmatprep.subr.mxu0 0.0
  %12457 = vmatpush1.msra.mxu0 %v12367
  %12458 = vmatprep.subr.mxu0 0.0
  %12459 = vmatpush1.msra.mxu0 %v12368
  %12460 = vmatprep.mubr.f32.mxu0 %v103
  %12461 = vmatmul.mubr.f32.gmra.mrb[0].mxu0 %v102
  %v12462 = vpop.f32.mrb[0].mxu0
  %v12463 = vadd.f32 0.0, %v12462
  %v12464 = vpop.f32.mrb[0].mxu0
  %12465 = vmatprep.mubr.f32.mxu0 %v106
  %12466 = vmatmul.mubr.f32.gmra.mrb[0].mxu0 %v105
  %v12467 = vpop.f32.mrb[0].mxu0
  %v12468 = vadd.f32 0.0, %v12467
  %v12469 = vpop.f32.mrb[0].mxu0
  %12470 = vmatprep.mubr.f32.mxu0 %v109
  %12471 = vmatmul.mubr.f32.gmra.mrb[0].mxu0 %v108
  %v12472 = vpop.f32.mrb[0].mxu0
  %v12473 = vadd.f32 0.0, %v12472
  %v12474 = vpop.f32.mrb[0].mxu0
  %12475 = vmatprep.mubr.f32.mxu0 %v112
  %12476 = vmatmul.mubr.f32.gmra.mrb[0].mxu0 %v111
  %v12477 = vpop.f32.mrb[0].mxu0
  %v12478 = vadd.f32 0.0, %v12477
  %v12479 = vpop.f32.mrb[0].mxu0
  %12480 = vmatprep.mubr.f32.mxu0 %v115
  %12481 = vmatmul.mubr.f32.gmra.mrb[0].mxu0 %v114
  %v12482 = vpop.f32.mrb[0].mxu0
  %v12483 = vadd.f32 0.0, %v12482
  %v12484 = vpop.f32.mrb[0].mxu0
  %12485 = vmatprep.mubr.f32.mxu0 %v118
  %12486 = vmatmul.mubr.f32.gmra.mrb[0].mxu0 %v117
  %v12487 = vpop.f32.mrb[0].mxu0
  %v12488 = vadd.f32 0.0, %v12487
  %v12489 = vpop.f32.mrb[0].mxu0
  %12490 = vmatprep.mubr.f32.mxu0 %v121
  %12491 = vmatmul.mubr.f32.gmra.mrb[0].mxu0 %v120
  %v12492 = vpop.f32.mrb[0].mxu0
  %v12493 = vadd.f32 0.0, %v12492
  %v12494 = vpop.f32.mrb[0].mxu0
  %12495 = vmatprep.mubr.f32.mxu0 %v124
  %12496 = vmatmul.mubr.f32.gmra.mrb[0].mxu0 %v123
  %v12497 = vpop.f32.mrb[0].mxu0
  %v12498 = vadd.f32 0.0, %v12497
  %v12499 = vpop.f32.mrb[0].mxu0
  %12500 = vmatprep.mubr.f32.mxu0 %v127
  %12501 = vmatmul.mubr.f32.gmra.mrb[0].mxu0 %v126
  %v12502 = vpop.f32.mrb[0].mxu0
  %v12503 = vadd.f32 0.0, %v12502
  %v12504 = vpop.f32.mrb[0].mxu0
  %12505 = vdwg.mxu0
  %12506 = vmatprep.subr.mxu0 0.0
  %12507 = vmatpush1.msra.mxu0 %v12369
  %12508 = vmatprep.subr.mxu0 0.0
  %12509 = vmatpush1.msra.mxu0 %v12370
  %12510 = vmatprep.subr.mxu0 0.0
  %12511 = vmatpush1.msra.mxu0 %v12371
  %12512 = vmatprep.subr.mxu0 0.0
  %12513 = vmatpush1.msra.mxu0 %v12372
  %12514 = vmatprep.subr.mxu0 0.0
  %12515 = vmatpush1.msra.mxu0 %v12373
  %12516 = vmatprep.subr.mxu0 0.0
  %12517 = vmatpush1.msra.mxu0 %v12394
  %12518 = vmatprep.subr.mxu0 0.0
  %12519 = vmatpush1.msra.mxu0 0.0
  %12520 = vmatprep.subr.mxu0 0.0
  %12521 = vmatpush1.msra.mxu0 0.0
  %12522 = vmatprep.subr.mxu0 0.0
  %12523 = vmatpush1.msra.mxu0 0.0
  %12524 = vmatprep.subr.mxu0 0.0
  %12525 = vmatpush1.msra.mxu0 0.0
  %12526 = vmatprep.subr.mxu0 0.0
  %12527 = vmatpush1.msra.mxu0 0.0
  %12528 = vmatprep.subr.mxu0 0.0
  %12529 = vmatpush1.msra.mxu0 0.0
  %12530 = vmatprep.subr.mxu0 0.0
  %12531 = vmatpush1.msra.mxu0 0.0
  %12532 = vmatprep.subr.mxu0 0.0
  %12533 = vmatpush1.msra.mxu0 0.0
  %12534 = vmatprep.subr.mxu0 0.0
  %12535 = vmatpush1.msra.mxu0 0.0
  %12536 = vmatprep.subr.mxu0 0.0
  %12537 = vmatpush1.msra.mxu0 0.0
  %12538 = vmatprep.subr.mxu0 0.0
  %12539 = vmatpush1.msra.mxu0 0.0
  %12540 = vmatprep.subr.mxu0 0.0
  %12541 = vmatpush1.msra.mxu0 0.0
  %12542 = vmatprep.subr.mxu0 0.0
  %12543 = vmatpush1.msra.mxu0 0.0
  %12544 = vmatprep.subr.mxu0 0.0
  %12545 = vmatpush1.msra.mxu0 0.0
  %12546 = vmatprep.subr.mxu0 0.0
  %12547 = vmatpush1.msra.mxu0 0.0
  %12548 = vmatprep.subr.mxu0 0.0
  %12549 = vmatpush1.msra.mxu0 0.0
  %12550 = vmatprep.subr.mxu0 0.0
  %12551 = vmatpush1.msra.mxu0 0.0
  %12552 = vmatprep.subr.mxu0 0.0
  %12553 = vmatpush1.msra.mxu0 0.0
  %12554 = vmatprep.subr.mxu0 0.0
  %12555 = vmatpush1.msra.mxu0 0.0
  %12556 = vmatprep.subr.mxu0 0.0
  %12557 = vmatpush1.msra.mxu0 0.0
  %12558 = vmatprep.subr.mxu0 0.0
  %12559 = vmatpush1.msra.mxu0 0.0
  %12560 = vmatprep.subr.mxu0 0.0
  %12561 = vmatpush1.msra.mxu0 0.0
  %12562 = vmatprep.subr.mxu0 0.0
  %12563 = vmatpush1.msra.mxu0 0.0
  %12564 = vmatprep.subr.mxu0 0.0
  %12565 = vmatpush1.msra.mxu0 0.0
  %12566 = vmatprep.subr.mxu0 0.0
  %12567 = vmatpush1.msra.mxu0 0.0
  %12568 = vmatprep.subr.mxu0 0.0
  %12569 = vmatpush1.msra.mxu0 0.0
  %12570 = vmatprep.mubr.f32.mxu0 0.0
  %12571 = vmatmul.mubr.f32.gmra.mrb[0].mxu0 %v12375
  %v12572 = vpop.f32.mrb[0].mxu0
  %v12573 = vadd.f32 %v12463, %v12572
  %v12574 = vpop.f32.mrb[0].mxu0
  %12575 = vmatprep.mubr.f32.mxu0 0.0
  %12576 = vmatmul.mubr.f32.gmra.mrb[0].mxu0 %v12377
  %v12577 = vpop.f32.mrb[0].mxu0
  %v12578 = vadd.f32 %v12468, %v12577
  %v12579 = vpop.f32.mrb[0].mxu0
  %12580 = vmatprep.mubr.f32.mxu0 0.0
  %12581 = vmatmul.mubr.f32.gmra.mrb[0].mxu0 %v12379
  %v12582 = vpop.f32.mrb[0].mxu0
  %v12583 = vadd.f32 %v12473, %v12582
  %v12584 = vpop.f32.mrb[0].mxu0
  %12585 = vmatprep.mubr.f32.mxu0 0.0
  %12586 = vmatmul.mubr.f32.gmra.mrb[0].mxu0 %v12381
  %v12587 = vpop.f32.mrb[0].mxu0
  %v12588 = vadd.f32 %v12478, %v12587
  %v12589 = vpop.f32.mrb[0].mxu0
  %12590 = vmatprep.mubr.f32.mxu0 0.0
  %12591 = vmatmul.mubr.f32.gmra.mrb[0].mxu0 %v12383
  %v12592 = vpop.f32.mrb[0].mxu0
  %v12593 = vadd.f32 %v12483, %v12592
  %v12594 = vpop.f32.mrb[0].mxu0
  %12595 = vmatprep.mubr.f32.mxu0 0.0
  %12596 = vmatmul.mubr.f32.gmra.mrb[0].mxu0 %v12385
  %v12597 = vpop.f32.mrb[0].mxu0
  %v12598 = vadd.f32 %v12488, %v12597
  %v12599 = vpop.f32.mrb[0].mxu0
  %12600 = vmatprep.mubr.f32.mxu0 0.0
  %12601 = vmatmul.mubr.f32.gmra.mrb[0].mxu0 %v12387
  %v12602 = vpop.f32.mrb[0].mxu0
  %v12603 = vadd.f32 %v12493, %v12602
  %v12604 = vpop.f32.mrb[0].mxu0
  %12605 = vmatprep.mubr.f32.mxu0 0.0
  %12606 = vmatmul.mubr.f32.gmra.mrb[0].mxu0 %v12389
  %v12607 = vpop.f32.mrb[0].mxu0
  %v12608 = vadd.f32 %v12498, %v12607
  %v12609 = vpop.f32.mrb[0].mxu0
  %12610 = vmatprep.mubr.f32.mxu0 0.0
  %12611 = vmatmul.mubr.f32.gmra.mrb[0].mxu0 %v12391
  %v12612 = vpop.f32.mrb[0].mxu0
  %v12613 = vadd.f32 %v12503, %v12612
  %v12614 = vpop.f32.mrb[0].mxu0
  %12615 = vdwg.mxu0
  %12625 = vrot.lane.b32.xlu0 %v12573, 8
  %v12626 = vpop.permute.xlu0 %12625
  %12627 = vrot.lane.b32.xlu0 %v12578, 8
  %v12628 = vpop.permute.xlu0 %12627
  %12629 = vrot.lane.b32.xlu0 %v12583, 8
  %v12630 = vpop.permute.xlu0 %12629
  %12631 = vrot.lane.b32.xlu0 %v12588, 8
  %v12632 = vpop.permute.xlu0 %12631
  %12633 = vrot.lane.b32.xlu0 %v12593, 8
  %v12634 = vpop.permute.xlu0 %12633
  %12635 = vrot.lane.b32.xlu0 %v12598, 8
  %v12636 = vpop.permute.xlu0 %12635
  %12637 = vrot.lane.b32.xlu0 %v12603, 8
  %v12638 = vpop.permute.xlu0 %12637
  %12639 = vrot.lane.b32.xlu0 %v12608, 8
  %v12640 = vpop.permute.xlu0 %12639
  %12641 = vrot.lane.b32.xlu0 %v12613, 8
  %v12642 = vpop.permute.xlu0 %12641
  %v12652 = vadd.f32 %v11990, %v12626
  %v12653 = vadd.f32 %v11995, %v12628
  %v12654 = vadd.f32 %v12000, %v12630
  %v12655 = vadd.f32 %v12005, %v12632
  %v12656 = vadd.f32 %v12010, %v12634
  %v12657 = vadd.f32 %v12015, %v12636
  %v12658 = vadd.f32 %v12020, %v12638
  %v12659 = vadd.f32 %v12025, %v12640
  %v12660 = vadd.f32 %v12030, %v12642
  %v12661 = vld [vmem:[%s9] sm:$0x1]
  %v12663 = vlaneseq
  %v12664 = vshrl.u32 %v12663, 7
  %v12665 = vsub.s32 0, %v12664
  %v12666 = vrot.slane %v12661, %v12665
  %12667 = vrot.lane.b32.xlu0 %v12666, 8
  %v12668 = vpop.permute.xlu0 %12667
  %v12670 = vadd.f32 %v12652, %v12668
  %v12671 = vadd.f32 %v12653, %v12668
  %v12672 = vadd.f32 %v12654, %v12668
  %v12673 = vadd.f32 %v12655, %v12668
  %v12674 = vadd.f32 %v12656, %v12668
  %v12675 = vadd.f32 %v12657, %v12668
  %v12676 = vadd.f32 %v12658, %v12668
  %v12677 = vadd.f32 %v12659, %v12668
  %v12678 = vadd.f32 %v12660, %v12668
  %v12679 = vadd.f32 %v5954, %v12328
  %v12680 = vadd.f32 %v5955, %v12329
  %v12681 = vadd.f32 %v5956, %v12330
  %v12682 = vadd.f32 %v5957, %v12331
  %v12683 = vadd.f32 %v5958, %v12332
  %v12684 = vadd.f32 %v5959, %v12333
  %v12685 = vadd.f32 %v5960, %v12334
  %v12686 = vadd.f32 %v5961, %v12335
  %v12687 = vadd.f32 %v5962, %v12336
  %v12688 = vtanh.pop %v12679
  %v12689 = vtanh.pop %v12680
  %v12690 = vtanh.pop %v12681
  %v12691 = vtanh.pop %v12682
  %v12692 = vtanh.pop %v12683
  %v12693 = vtanh.pop %v12684
  %v12694 = vtanh.pop %v12685
  %v12695 = vtanh.pop %v12686
  %v12696 = vtanh.pop %v12687
  %12706 = vrot.lane.b32.xlu0 %v12670, 120
  %v12707 = vpop.permute.xlu0 %12706
  %12708 = vrot.lane.b32.xlu0 %v12671, 120
  %v12709 = vpop.permute.xlu0 %12708
  %12710 = vrot.lane.b32.xlu0 %v12672, 120
  %v12711 = vpop.permute.xlu0 %12710
  %12712 = vrot.lane.b32.xlu0 %v12673, 120
  %v12713 = vpop.permute.xlu0 %12712
  %12714 = vrot.lane.b32.xlu0 %v12674, 120
  %v12715 = vpop.permute.xlu0 %12714
  %12716 = vrot.lane.b32.xlu0 %v12675, 120
  %v12717 = vpop.permute.xlu0 %12716
  %12718 = vrot.lane.b32.xlu0 %v12676, 120
  %v12719 = vpop.permute.xlu0 %12718
  %12720 = vrot.lane.b32.xlu0 %v12677, 120
  %v12721 = vpop.permute.xlu0 %12720
  %12722 = vrot.lane.b32.xlu0 %v12678, 120
  %v12723 = vpop.permute.xlu0 %12722
  %v12733 = vadd.f32 %v11744, %v12707
  %v12734 = vadd.f32 %v11745, %v12709
  %v12735 = vadd.f32 %v11746, %v12711
  %v12736 = vadd.f32 %v11747, %v12713
  %v12737 = vadd.f32 %v11748, %v12715
  %v12738 = vadd.f32 %v11749, %v12717
  %v12739 = vadd.f32 %v11750, %v12719
  %v12740 = vadd.f32 %v11751, %v12721
  %v12741 = vadd.f32 %v11752, %v12723
  %v12742 = vtanh.pop %v12733
  %v12743 = vtanh.pop %v12734
  %v12744 = vtanh.pop %v12735
  %v12745 = vtanh.pop %v12736
  %v12746 = vtanh.pop %v12737
  %v12747 = vtanh.pop %v12738
  %v12748 = vtanh.pop %v12739
  %v12749 = vtanh.pop %v12740
  %v12750 = vtanh.pop %v12741
  %v12751 = vld [vmem:[%s10] sm:$0xff]
  %vm12752 = vcmask 64512
  %v12754 = vsel %vm12752, %v12688, 0
  %v12757 = vsel %vm12752, %v12689, 0
  %v12760 = vsel %vm12752, %v12690, 0
  %v12763 = vsel %vm12752, %v12691, 0
  %v12766 = vsel %vm12752, %v12692, 0
  %v12769 = vsel %vm12752, %v12693, 0
  %v12772 = vsel %vm12752, %v12694, 0
  %v12775 = vsel %vm12752, %v12695, 0
  %v12778 = vsel %vm12752, %v12696, 0
  %12780 = vmatprep.subr.mxu0 0.0
  %12781 = vmatpush1.msra.mxu0 %v12751
  %12782 = vmatprep.subr.mxu0 0.0
  %12783 = vmatpush1.msra.mxu0 0.0
  %12784 = vmatprep.subr.mxu0 0.0
  %12785 = vmatpush1.msra.mxu0 0.0
  %12786 = vmatprep.subr.mxu0 0.0
  %12787 = vmatpush1.msra.mxu0 0.0
  %12788 = vmatprep.subr.mxu0 0.0
  %12789 = vmatpush1.msra.mxu0 0.0
  %12790 = vmatprep.subr.mxu0 0.0
  %12791 = vmatpush1.msra.mxu0 0.0
  %12792 = vmatprep.subr.mxu0 0.0
  %12793 = vmatpush1.msra.mxu0 0.0
  %12794 = vmatprep.subr.mxu0 0.0
  %12795 = vmatpush1.msra.mxu0 0.0
  %12796 = vmatprep.subr.mxu0 0.0
  %12797 = vmatpush1.msra.mxu0 0.0
  %12798 = vmatprep.subr.mxu0 0.0
  %12799 = vmatpush1.msra.mxu0 0.0
  %12800 = vmatprep.subr.mxu0 0.0
  %12801 = vmatpush1.msra.mxu0 0.0
  %12802 = vmatprep.subr.mxu0 0.0
  %12803 = vmatpush1.msra.mxu0 0.0
  %12804 = vmatprep.subr.mxu0 0.0
  %12805 = vmatpush1.msra.mxu0 0.0
  %12806 = vmatprep.subr.mxu0 0.0
  %12807 = vmatpush1.msra.mxu0 0.0
  %12808 = vmatprep.subr.mxu0 0.0
  %12809 = vmatpush1.msra.mxu0 0.0
  %12810 = vmatprep.subr.mxu0 0.0
  %12811 = vmatpush1.msra.mxu0 0.0
  %12812 = vmatprep.subr.mxu0 0.0
  %12813 = vmatpush1.msra.mxu0 0.0
  %12814 = vmatprep.subr.mxu0 0.0
  %12815 = vmatpush1.msra.mxu0 0.0
  %12816 = vmatprep.subr.mxu0 0.0
  %12817 = vmatpush1.msra.mxu0 0.0
  %12818 = vmatprep.subr.mxu0 0.0
  %12819 = vmatpush1.msra.mxu0 0.0
  %12820 = vmatprep.subr.mxu0 0.0
  %12821 = vmatpush1.msra.mxu0 0.0
  %12822 = vmatprep.subr.mxu0 0.0
  %12823 = vmatpush1.msra.mxu0 0.0
  %12824 = vmatprep.subr.mxu0 0.0
  %12825 = vmatpush1.msra.mxu0 0.0
  %12826 = vmatprep.subr.mxu0 0.0
  %12827 = vmatpush1.msra.mxu0 0.0
  %12828 = vmatprep.subr.mxu0 0.0
  %12829 = vmatpush1.msra.mxu0 0.0
  %12830 = vmatprep.subr.mxu0 0.0
  %12831 = vmatpush1.msra.mxu0 0.0
  %12832 = vmatprep.subr.mxu0 0.0
  %12833 = vmatpush1.msra.mxu0 0.0
  %12834 = vmatprep.subr.mxu0 0.0
  %12835 = vmatpush1.msra.mxu0 0.0
  %12836 = vmatprep.subr.mxu0 0.0
  %12837 = vmatpush1.msra.mxu0 0.0
  %12838 = vmatprep.subr.mxu0 0.0
  %12839 = vmatpush1.msra.mxu0 0.0
  %12840 = vmatprep.subr.mxu0 0.0
  %12841 = vmatpush1.msra.mxu0 0.0
  %12842 = vmatprep.subr.mxu0 0.0
  %12843 = vmatpush1.msra.mxu0 0.0
  %12844 = vmatprep.mubr.f32.mxu0 0.0
  %12845 = vmatmul.mubr.f32.gmra.mrb[0].mxu0 %v12754
  %v12846 = vpop.f32.mrb[0].mxu0
  %v12847 = vadd.f32 0.0, %v12846
  %v12848 = vpop.f32.mrb[0].mxu0
  %12849 = vmatprep.mubr.f32.mxu0 0.0
  %12850 = vmatmul.mubr.f32.gmra.mrb[0].mxu0 %v12757
  %v12851 = vpop.f32.mrb[0].mxu0
  %v12852 = vadd.f32 0.0, %v12851
  %v12853 = vpop.f32.mrb[0].mxu0
  %12854 = vmatprep.mubr.f32.mxu0 0.0
  %12855 = vmatmul.mubr.f32.gmra.mrb[0].mxu0 %v12760
  %v12856 = vpop.f32.mrb[0].mxu0
  %v12857 = vadd.f32 0.0, %v12856
  %v12858 = vpop.f32.mrb[0].mxu0
  %12859 = vmatprep.mubr.f32.mxu0 0.0
  %12860 = vmatmul.mubr.f32.gmra.mrb[0].mxu0 %v12763
  %v12861 = vpop.f32.mrb[0].mxu0
  %v12862 = vadd.f32 0.0, %v12861
  %v12863 = vpop.f32.mrb[0].mxu0
  %12864 = vmatprep.mubr.f32.mxu0 0.0
  %12865 = vmatmul.mubr.f32.gmra.mrb[0].mxu0 %v12766
  %v12866 = vpop.f32.mrb[0].mxu0
  %v12867 = vadd.f32 0.0, %v12866
  %v12868 = vpop.f32.mrb[0].mxu0
  %12869 = vmatprep.mubr.f32.mxu0 0.0
  %12870 = vmatmul.mubr.f32.gmra.mrb[0].mxu0 %v12769
  %v12871 = vpop.f32.mrb[0].mxu0
  %v12872 = vadd.f32 0.0, %v12871
  %v12873 = vpop.f32.mrb[0].mxu0
  %12874 = vmatprep.mubr.f32.mxu0 0.0
  %12875 = vmatmul.mubr.f32.gmra.mrb[0].mxu0 %v12772
  %v12876 = vpop.f32.mrb[0].mxu0
  %v12877 = vadd.f32 0.0, %v12876
  %v12878 = vpop.f32.mrb[0].mxu0
  %12879 = vmatprep.mubr.f32.mxu0 0.0
  %12880 = vmatmul.mubr.f32.gmra.mrb[0].mxu0 %v12775
  %v12881 = vpop.f32.mrb[0].mxu0
  %v12882 = vadd.f32 0.0, %v12881
  %v12883 = vpop.f32.mrb[0].mxu0
  %12884 = vmatprep.mubr.f32.mxu0 0.0
  %12885 = vmatmul.mubr.f32.gmra.mrb[0].mxu0 %v12778
  %v12886 = vpop.f32.mrb[0].mxu0
  %v12887 = vadd.f32 0.0, %v12886
  %v12888 = vpop.f32.mrb[0].mxu0
  %12889 = vdwg.mxu0
  %v12890 = vmul.f32 %v12847, %v12742
  %v12891 = vmul.f32 %v12852, %v12743
  %v12892 = vmul.f32 %v12857, %v12744
  %v12893 = vmul.f32 %v12862, %v12745
  %v12894 = vmul.f32 %v12867, %v12746
  %v12895 = vmul.f32 %v12872, %v12747
  %v12896 = vmul.f32 %v12877, %v12748
  %v12897 = vmul.f32 %v12882, %v12749
  %v12898 = vmul.f32 %v12887, %v12750
  %v12899 = vsel %vm12752, %v12890, 0.0
  %12900 = vadd.xlane.f32.xlu0 %v12899
  %v12901 = vpop.xlane.xlu0 %12900
  %v12902 = vsel %vm12752, %v12891, 0.0
  %12903 = vadd.xlane.f32.xlu0 %v12902
  %v12904 = vpop.xlane.xlu0 %12903
  %v12905 = vsel %vm12752, %v12892, 0.0
  %12906 = vadd.xlane.f32.xlu0 %v12905
  %v12907 = vpop.xlane.xlu0 %12906
  %v12908 = vsel %vm12752, %v12893, 0.0
  %12909 = vadd.xlane.f32.xlu0 %v12908
  %v12910 = vpop.xlane.xlu0 %12909
  %v12911 = vsel %vm12752, %v12894, 0.0
  %12912 = vadd.xlane.f32.xlu0 %v12911
  %v12913 = vpop.xlane.xlu0 %12912
  %v12914 = vsel %vm12752, %v12895, 0.0
  %12915 = vadd.xlane.f32.xlu0 %v12914
  %v12916 = vpop.xlane.xlu0 %12915
  %v12917 = vsel %vm12752, %v12896, 0.0
  %12918 = vadd.xlane.f32.xlu0 %v12917
  %v12919 = vpop.xlane.xlu0 %12918
  %v12920 = vsel %vm12752, %v12897, 0.0
  %12921 = vadd.xlane.f32.xlu0 %v12920
  %v12922 = vpop.xlane.xlu0 %12921
  %vm12923 = vcmask 62464
  %v12924 = vsel %vm12923, %v12898, 0.0
  %12925 = vadd.xlane.f32.xlu0 %v12924
  %v12926 = vpop.xlane.xlu0 %12925
  %12936 = vrot.lane.b32.xlu0 %v12742, 8
  %v12937 = vpop.permute.xlu0 %12936
  %12938 = vrot.lane.b32.xlu0 %v12743, 8
  %v12939 = vpop.permute.xlu0 %12938
  %12940 = vrot.lane.b32.xlu0 %v12744, 8
  %v12941 = vpop.permute.xlu0 %12940
  %12942 = vrot.lane.b32.xlu0 %v12745, 8
  %v12943 = vpop.permute.xlu0 %12942
  %12944 = vrot.lane.b32.xlu0 %v12746, 8
  %v12945 = vpop.permute.xlu0 %12944
  %12946 = vrot.lane.b32.xlu0 %v12747, 8
  %v12947 = vpop.permute.xlu0 %12946
  %12948 = vrot.lane.b32.xlu0 %v12748, 8
  %v12949 = vpop.permute.xlu0 %12948
  %12950 = vrot.lane.b32.xlu0 %v12749, 8
  %v12951 = vpop.permute.xlu0 %12950
  %12952 = vrot.lane.b32.xlu0 %v12750, 8
  %v12953 = vpop.permute.xlu0 %12952
  %v12963 = vmul.f32 %v12847, %v12937
  %v12964 = vmul.f32 %v12852, %v12939
  %v12965 = vmul.f32 %v12857, %v12941
  %v12966 = vmul.f32 %v12862, %v12943
  %v12967 = vmul.f32 %v12867, %v12945
  %v12968 = vmul.f32 %v12872, %v12947
  %v12969 = vmul.f32 %v12877, %v12949
  %v12970 = vmul.f32 %v12882, %v12951
  %v12971 = vmul.f32 %v12887, %v12953
  %12981 = vrot.lane.b32.xlu0 %v12963, 120
  %v12982 = vpop.permute.xlu0 %12981
  %12983 = vrot.lane.b32.xlu0 %v12964, 120
  %v12984 = vpop.permute.xlu0 %12983
  %12985 = vrot.lane.b32.xlu0 %v12965, 120
  %v12986 = vpop.permute.xlu0 %12985
  %12987 = vrot.lane.b32.xlu0 %v12966, 120
  %v12988 = vpop.permute.xlu0 %12987
  %12989 = vrot.lane.b32.xlu0 %v12967, 120
  %v12990 = vpop.permute.xlu0 %12989
  %12991 = vrot.lane.b32.xlu0 %v12968, 120
  %v12992 = vpop.permute.xlu0 %12991
  %12993 = vrot.lane.b32.xlu0 %v12969, 120
  %v12994 = vpop.permute.xlu0 %12993
  %12995 = vrot.lane.b32.xlu0 %v12970, 120
  %v12996 = vpop.permute.xlu0 %12995
  %12997 = vrot.lane.b32.xlu0 %v12971, 120
  %v12998 = vpop.permute.xlu0 %12997
  %v13008 = vsel %vm12752, %v12982, 0.0
  %13009 = vadd.xlane.f32.xlu0 %v13008
  %v13010 = vpop.xlane.xlu0 %13009
  %v13011 = vsel %vm12752, %v12984, 0.0
  %13012 = vadd.xlane.f32.xlu0 %v13011
  %v13013 = vpop.xlane.xlu0 %13012
  %v13014 = vsel %vm12752, %v12986, 0.0
  %13015 = vadd.xlane.f32.xlu0 %v13014
  %v13016 = vpop.xlane.xlu0 %13015
  %v13017 = vsel %vm12752, %v12988, 0.0
  %13018 = vadd.xlane.f32.xlu0 %v13017
  %v13019 = vpop.xlane.xlu0 %13018
  %v13020 = vsel %vm12752, %v12990, 0.0
  %13021 = vadd.xlane.f32.xlu0 %v13020
  %v13022 = vpop.xlane.xlu0 %13021
  %v13023 = vsel %vm12752, %v12992, 0.0
  %13024 = vadd.xlane.f32.xlu0 %v13023
  %v13025 = vpop.xlane.xlu0 %13024
  %v13026 = vsel %vm12752, %v12994, 0.0
  %13027 = vadd.xlane.f32.xlu0 %v13026
  %v13028 = vpop.xlane.xlu0 %13027
  %v13029 = vsel %vm12752, %v12996, 0.0
  %13030 = vadd.xlane.f32.xlu0 %v13029
  %v13031 = vpop.xlane.xlu0 %13030
  %v13032 = vsel %vm12923, %v12998, 0.0
  %13033 = vadd.xlane.f32.xlu0 %v13032
  %v13034 = vpop.xlane.xlu0 %13033
  %13035 = vrot.lane.b32.xlu0 %v12742, 16
  %v13036 = vpop.permute.xlu0 %13035
  %13037 = vrot.lane.b32.xlu0 %v12743, 16
  %v13038 = vpop.permute.xlu0 %13037
  %13039 = vrot.lane.b32.xlu0 %v12744, 16
  %v13040 = vpop.permute.xlu0 %13039
  %13041 = vrot.lane.b32.xlu0 %v12745, 16
  %v13042 = vpop.permute.xlu0 %13041
  %13043 = vrot.lane.b32.xlu0 %v12746, 16
  %v13044 = vpop.permute.xlu0 %13043
  %13045 = vrot.lane.b32.xlu0 %v12747, 16
  %v13046 = vpop.permute.xlu0 %13045
  %13047 = vrot.lane.b32.xlu0 %v12748, 16
  %v13048 = vpop.permute.xlu0 %13047
  %13049 = vrot.lane.b32.xlu0 %v12749, 16
  %v13050 = vpop.permute.xlu0 %13049
  %13051 = vrot.lane.b32.xlu0 %v12750, 16
  %v13052 = vpop.permute.xlu0 %13051
  %v13062 = vmul.f32 %v12847, %v13036
  %v13063 = vmul.f32 %v12852, %v13038
  %v13064 = vmul.f32 %v12857, %v13040
  %v13065 = vmul.f32 %v12862, %v13042
  %v13066 = vmul.f32 %v12867, %v13044
  %v13067 = vmul.f32 %v12872, %v13046
  %v13068 = vmul.f32 %v12877, %v13048
  %v13069 = vmul.f32 %v12882, %v13050
  %v13070 = vmul.f32 %v12887, %v13052
  %13080 = vrot.lane.b32.xlu0 %v13062, 112
  %v13081 = vpop.permute.xlu0 %13080
  %13082 = vrot.lane.b32.xlu0 %v13063, 112
  %v13083 = vpop.permute.xlu0 %13082
  %13084 = vrot.lane.b32.xlu0 %v13064, 112
  %v13085 = vpop.permute.xlu0 %13084
  %13086 = vrot.lane.b32.xlu0 %v13065, 112
  %v13087 = vpop.permute.xlu0 %13086
  %13088 = vrot.lane.b32.xlu0 %v13066, 112
  %v13089 = vpop.permute.xlu0 %13088
  %13090 = vrot.lane.b32.xlu0 %v13067, 112
  %v13091 = vpop.permute.xlu0 %13090
  %13092 = vrot.lane.b32.xlu0 %v13068, 112
  %v13093 = vpop.permute.xlu0 %13092
  %13094 = vrot.lane.b32.xlu0 %v13069, 112
  %v13095 = vpop.permute.xlu0 %13094
  %13096 = vrot.lane.b32.xlu0 %v13070, 112
  %v13097 = vpop.permute.xlu0 %13096
  %v13107 = vsel %vm12752, %v13081, 0.0
  %13108 = vadd.xlane.f32.xlu0 %v13107
  %v13109 = vpop.xlane.xlu0 %13108
  %v13110 = vsel %vm12752, %v13083, 0.0
  %13111 = vadd.xlane.f32.xlu0 %v13110
  %v13112 = vpop.xlane.xlu0 %13111
  %v13113 = vsel %vm12752, %v13085, 0.0
  %13114 = vadd.xlane.f32.xlu0 %v13113
  %v13115 = vpop.xlane.xlu0 %13114
  %v13116 = vsel %vm12752, %v13087, 0.0
  %13117 = vadd.xlane.f32.xlu0 %v13116
  %v13118 = vpop.xlane.xlu0 %13117
  %v13119 = vsel %vm12752, %v13089, 0.0
  %13120 = vadd.xlane.f32.xlu0 %v13119
  %v13121 = vpop.xlane.xlu0 %13120
  %v13122 = vsel %vm12752, %v13091, 0.0
  %13123 = vadd.xlane.f32.xlu0 %v13122
  %v13124 = vpop.xlane.xlu0 %13123
  %v13125 = vsel %vm12752, %v13093, 0.0
  %13126 = vadd.xlane.f32.xlu0 %v13125
  %v13127 = vpop.xlane.xlu0 %13126
  %v13128 = vsel %vm12752, %v13095, 0.0
  %13129 = vadd.xlane.f32.xlu0 %v13128
  %v13130 = vpop.xlane.xlu0 %13129
  %v13131 = vsel %vm12923, %v13097, 0.0
  %13132 = vadd.xlane.f32.xlu0 %v13131
  %v13133 = vpop.xlane.xlu0 %13132
  %13134 = vrot.lane.b32.xlu0 %v12742, 24
  %v13135 = vpop.permute.xlu0 %13134
  %13136 = vrot.lane.b32.xlu0 %v12743, 24
  %v13137 = vpop.permute.xlu0 %13136
  %13138 = vrot.lane.b32.xlu0 %v12744, 24
  %v13139 = vpop.permute.xlu0 %13138
  %13140 = vrot.lane.b32.xlu0 %v12745, 24
  %v13141 = vpop.permute.xlu0 %13140
  %13142 = vrot.lane.b32.xlu0 %v12746, 24
  %v13143 = vpop.permute.xlu0 %13142
  %13144 = vrot.lane.b32.xlu0 %v12747, 24
  %v13145 = vpop.permute.xlu0 %13144
  %13146 = vrot.lane.b32.xlu0 %v12748, 24
  %v13147 = vpop.permute.xlu0 %13146
  %13148 = vrot.lane.b32.xlu0 %v12749, 24
  %v13149 = vpop.permute.xlu0 %13148
  %13150 = vrot.lane.b32.xlu0 %v12750, 24
  %v13151 = vpop.permute.xlu0 %13150
  %v13161 = vmul.f32 %v12847, %v13135
  %v13162 = vmul.f32 %v12852, %v13137
  %v13163 = vmul.f32 %v12857, %v13139
  %v13164 = vmul.f32 %v12862, %v13141
  %v13165 = vmul.f32 %v12867, %v13143
  %v13166 = vmul.f32 %v12872, %v13145
  %v13167 = vmul.f32 %v12877, %v13147
  %v13168 = vmul.f32 %v12882, %v13149
  %v13169 = vmul.f32 %v12887, %v13151
  %13179 = vrot.lane.b32.xlu0 %v13161, 104
  %v13180 = vpop.permute.xlu0 %13179
  %13181 = vrot.lane.b32.xlu0 %v13162, 104
  %v13182 = vpop.permute.xlu0 %13181
  %13183 = vrot.lane.b32.xlu0 %v13163, 104
  %v13184 = vpop.permute.xlu0 %13183
  %13185 = vrot.lane.b32.xlu0 %v13164, 104
  %v13186 = vpop.permute.xlu0 %13185
  %13187 = vrot.lane.b32.xlu0 %v13165, 104
  %v13188 = vpop.permute.xlu0 %13187
  %13189 = vrot.lane.b32.xlu0 %v13166, 104
  %v13190 = vpop.permute.xlu0 %13189
  %13191 = vrot.lane.b32.xlu0 %v13167, 104
  %v13192 = vpop.permute.xlu0 %13191
  %13193 = vrot.lane.b32.xlu0 %v13168, 104
  %v13194 = vpop.permute.xlu0 %13193
  %13195 = vrot.lane.b32.xlu0 %v13169, 104
  %v13196 = vpop.permute.xlu0 %13195
  %v13206 = vsel %vm12752, %v13180, 0.0
  %13207 = vadd.xlane.f32.xlu0 %v13206
  %v13208 = vpop.xlane.xlu0 %13207
  %v13209 = vsel %vm12752, %v13182, 0.0
  %13210 = vadd.xlane.f32.xlu0 %v13209
  %v13211 = vpop.xlane.xlu0 %13210
  %v13212 = vsel %vm12752, %v13184, 0.0
  %13213 = vadd.xlane.f32.xlu0 %v13212
  %v13214 = vpop.xlane.xlu0 %13213
  %v13215 = vsel %vm12752, %v13186, 0.0
  %13216 = vadd.xlane.f32.xlu0 %v13215
  %v13217 = vpop.xlane.xlu0 %13216
  %v13218 = vsel %vm12752, %v13188, 0.0
  %13219 = vadd.xlane.f32.xlu0 %v13218
  %v13220 = vpop.xlane.xlu0 %13219
  %v13221 = vsel %vm12752, %v13190, 0.0
  %13222 = vadd.xlane.f32.xlu0 %v13221
  %v13223 = vpop.xlane.xlu0 %13222
  %v13224 = vsel %vm12752, %v13192, 0.0
  %13225 = vadd.xlane.f32.xlu0 %v13224
  %v13226 = vpop.xlane.xlu0 %13225
  %v13227 = vsel %vm12752, %v13194, 0.0
  %13228 = vadd.xlane.f32.xlu0 %v13227
  %v13229 = vpop.xlane.xlu0 %13228
  %v13230 = vsel %vm12923, %v13196, 0.0
  %13231 = vadd.xlane.f32.xlu0 %v13230
  %v13232 = vpop.xlane.xlu0 %13231
  %13233 = vrot.lane.b32.xlu0 %v12742, 32
  %v13234 = vpop.permute.xlu0 %13233
  %13235 = vrot.lane.b32.xlu0 %v12743, 32
  %v13236 = vpop.permute.xlu0 %13235
  %13237 = vrot.lane.b32.xlu0 %v12744, 32
  %v13238 = vpop.permute.xlu0 %13237
  %13239 = vrot.lane.b32.xlu0 %v12745, 32
  %v13240 = vpop.permute.xlu0 %13239
  %13241 = vrot.lane.b32.xlu0 %v12746, 32
  %v13242 = vpop.permute.xlu0 %13241
  %13243 = vrot.lane.b32.xlu0 %v12747, 32
  %v13244 = vpop.permute.xlu0 %13243
  %13245 = vrot.lane.b32.xlu0 %v12748, 32
  %v13246 = vpop.permute.xlu0 %13245
  %13247 = vrot.lane.b32.xlu0 %v12749, 32
  %v13248 = vpop.permute.xlu0 %13247
  %13249 = vrot.lane.b32.xlu0 %v12750, 32
  %v13250 = vpop.permute.xlu0 %13249
  %v13260 = vmul.f32 %v12847, %v13234
  %v13261 = vmul.f32 %v12852, %v13236
  %v13262 = vmul.f32 %v12857, %v13238
  %v13263 = vmul.f32 %v12862, %v13240
  %v13264 = vmul.f32 %v12867, %v13242
  %v13265 = vmul.f32 %v12872, %v13244
  %v13266 = vmul.f32 %v12877, %v13246
  %v13267 = vmul.f32 %v12882, %v13248
  %v13268 = vmul.f32 %v12887, %v13250
  %13278 = vrot.lane.b32.xlu0 %v13260, 96
  %v13279 = vpop.permute.xlu0 %13278
  %13280 = vrot.lane.b32.xlu0 %v13261, 96
  %v13281 = vpop.permute.xlu0 %13280
  %13282 = vrot.lane.b32.xlu0 %v13262, 96
  %v13283 = vpop.permute.xlu0 %13282
  %13284 = vrot.lane.b32.xlu0 %v13263, 96
  %v13285 = vpop.permute.xlu0 %13284
  %13286 = vrot.lane.b32.xlu0 %v13264, 96
  %v13287 = vpop.permute.xlu0 %13286
  %13288 = vrot.lane.b32.xlu0 %v13265, 96
  %v13289 = vpop.permute.xlu0 %13288
  %13290 = vrot.lane.b32.xlu0 %v13266, 96
  %v13291 = vpop.permute.xlu0 %13290
  %13292 = vrot.lane.b32.xlu0 %v13267, 96
  %v13293 = vpop.permute.xlu0 %13292
  %13294 = vrot.lane.b32.xlu0 %v13268, 96
  %v13295 = vpop.permute.xlu0 %13294
  %v13305 = vsel %vm12752, %v13279, 0.0
  %13306 = vadd.xlane.f32.xlu0 %v13305
  %v13307 = vpop.xlane.xlu0 %13306
  %v13308 = vsel %vm12752, %v13281, 0.0
  %13309 = vadd.xlane.f32.xlu0 %v13308
  %v13310 = vpop.xlane.xlu0 %13309
  %v13311 = vsel %vm12752, %v13283, 0.0
  %13312 = vadd.xlane.f32.xlu0 %v13311
  %v13313 = vpop.xlane.xlu0 %13312
  %v13314 = vsel %vm12752, %v13285, 0.0
  %13315 = vadd.xlane.f32.xlu0 %v13314
  %v13316 = vpop.xlane.xlu0 %13315
  %v13317 = vsel %vm12752, %v13287, 0.0
  %13318 = vadd.xlane.f32.xlu0 %v13317
  %v13319 = vpop.xlane.xlu0 %13318
  %v13320 = vsel %vm12752, %v13289, 0.0
  %13321 = vadd.xlane.f32.xlu0 %v13320
  %v13322 = vpop.xlane.xlu0 %13321
  %v13323 = vsel %vm12752, %v13291, 0.0
  %13324 = vadd.xlane.f32.xlu0 %v13323
  %v13325 = vpop.xlane.xlu0 %13324
  %v13326 = vsel %vm12752, %v13293, 0.0
  %13327 = vadd.xlane.f32.xlu0 %v13326
  %v13328 = vpop.xlane.xlu0 %13327
  %v13329 = vsel %vm12923, %v13295, 0.0
  %13330 = vadd.xlane.f32.xlu0 %v13329
  %v13331 = vpop.xlane.xlu0 %13330
  %13332 = vrot.lane.b32.xlu0 %v12742, 40
  %v13333 = vpop.permute.xlu0 %13332
  %13334 = vrot.lane.b32.xlu0 %v12743, 40
  %v13335 = vpop.permute.xlu0 %13334
  %13336 = vrot.lane.b32.xlu0 %v12744, 40
  %v13337 = vpop.permute.xlu0 %13336
  %13338 = vrot.lane.b32.xlu0 %v12745, 40
  %v13339 = vpop.permute.xlu0 %13338
  %13340 = vrot.lane.b32.xlu0 %v12746, 40
  %v13341 = vpop.permute.xlu0 %13340
  %13342 = vrot.lane.b32.xlu0 %v12747, 40
  %v13343 = vpop.permute.xlu0 %13342
  %13344 = vrot.lane.b32.xlu0 %v12748, 40
  %v13345 = vpop.permute.xlu0 %13344
  %13346 = vrot.lane.b32.xlu0 %v12749, 40
  %v13347 = vpop.permute.xlu0 %13346
  %13348 = vrot.lane.b32.xlu0 %v12750, 40
  %v13349 = vpop.permute.xlu0 %13348
  %v13359 = vmul.f32 %v12847, %v13333
  %v13360 = vmul.f32 %v12852, %v13335
  %v13361 = vmul.f32 %v12857, %v13337
  %v13362 = vmul.f32 %v12862, %v13339
  %v13363 = vmul.f32 %v12867, %v13341
  %v13364 = vmul.f32 %v12872, %v13343
  %v13365 = vmul.f32 %v12877, %v13345
  %v13366 = vmul.f32 %v12882, %v13347
  %v13367 = vmul.f32 %v12887, %v13349
  %13377 = vrot.lane.b32.xlu0 %v13359, 88
  %v13378 = vpop.permute.xlu0 %13377
  %13379 = vrot.lane.b32.xlu0 %v13360, 88
  %v13380 = vpop.permute.xlu0 %13379
  %13381 = vrot.lane.b32.xlu0 %v13361, 88
  %v13382 = vpop.permute.xlu0 %13381
  %13383 = vrot.lane.b32.xlu0 %v13362, 88
  %v13384 = vpop.permute.xlu0 %13383
  %13385 = vrot.lane.b32.xlu0 %v13363, 88
  %v13386 = vpop.permute.xlu0 %13385
  %13387 = vrot.lane.b32.xlu0 %v13364, 88
  %v13388 = vpop.permute.xlu0 %13387
  %13389 = vrot.lane.b32.xlu0 %v13365, 88
  %v13390 = vpop.permute.xlu0 %13389
  %13391 = vrot.lane.b32.xlu0 %v13366, 88
  %v13392 = vpop.permute.xlu0 %13391
  %13393 = vrot.lane.b32.xlu0 %v13367, 88
  %v13394 = vpop.permute.xlu0 %13393
  %v13404 = vsel %vm12752, %v13378, 0.0
  %13405 = vadd.xlane.f32.xlu0 %v13404
  %v13406 = vpop.xlane.xlu0 %13405
  %v13407 = vsel %vm12752, %v13380, 0.0
  %13408 = vadd.xlane.f32.xlu0 %v13407
  %v13409 = vpop.xlane.xlu0 %13408
  %v13410 = vsel %vm12752, %v13382, 0.0
  %13411 = vadd.xlane.f32.xlu0 %v13410
  %v13412 = vpop.xlane.xlu0 %13411
  %v13413 = vsel %vm12752, %v13384, 0.0
  %13414 = vadd.xlane.f32.xlu0 %v13413
  %v13415 = vpop.xlane.xlu0 %13414
  %v13416 = vsel %vm12752, %v13386, 0.0
  %13417 = vadd.xlane.f32.xlu0 %v13416
  %v13418 = vpop.xlane.xlu0 %13417
  %v13419 = vsel %vm12752, %v13388, 0.0
  %13420 = vadd.xlane.f32.xlu0 %v13419
  %v13421 = vpop.xlane.xlu0 %13420
  %v13422 = vsel %vm12752, %v13390, 0.0
  %13423 = vadd.xlane.f32.xlu0 %v13422
  %v13424 = vpop.xlane.xlu0 %13423
  %v13425 = vsel %vm12752, %v13392, 0.0
  %13426 = vadd.xlane.f32.xlu0 %v13425
  %v13427 = vpop.xlane.xlu0 %13426
  %v13428 = vsel %vm12923, %v13394, 0.0
  %13429 = vadd.xlane.f32.xlu0 %v13428
  %v13430 = vpop.xlane.xlu0 %13429
  %13431 = vrot.lane.b32.xlu0 %v12742, 48
  %v13432 = vpop.permute.xlu0 %13431
  %13433 = vrot.lane.b32.xlu0 %v12743, 48
  %v13434 = vpop.permute.xlu0 %13433
  %13435 = vrot.lane.b32.xlu0 %v12744, 48
  %v13436 = vpop.permute.xlu0 %13435
  %13437 = vrot.lane.b32.xlu0 %v12745, 48
  %v13438 = vpop.permute.xlu0 %13437
  %13439 = vrot.lane.b32.xlu0 %v12746, 48
  %v13440 = vpop.permute.xlu0 %13439
  %13441 = vrot.lane.b32.xlu0 %v12747, 48
  %v13442 = vpop.permute.xlu0 %13441
  %13443 = vrot.lane.b32.xlu0 %v12748, 48
  %v13444 = vpop.permute.xlu0 %13443
  %13445 = vrot.lane.b32.xlu0 %v12749, 48
  %v13446 = vpop.permute.xlu0 %13445
  %13447 = vrot.lane.b32.xlu0 %v12750, 48
  %v13448 = vpop.permute.xlu0 %13447
  %v13458 = vmul.f32 %v12847, %v13432
  %v13459 = vmul.f32 %v12852, %v13434
  %v13460 = vmul.f32 %v12857, %v13436
  %v13461 = vmul.f32 %v12862, %v13438
  %v13462 = vmul.f32 %v12867, %v13440
  %v13463 = vmul.f32 %v12872, %v13442
  %v13464 = vmul.f32 %v12877, %v13444
  %v13465 = vmul.f32 %v12882, %v13446
  %v13466 = vmul.f32 %v12887, %v13448
  %13476 = vrot.lane.b32.xlu0 %v13458, 80
  %v13477 = vpop.permute.xlu0 %13476
  %13478 = vrot.lane.b32.xlu0 %v13459, 80
  %v13479 = vpop.permute.xlu0 %13478
  %13480 = vrot.lane.b32.xlu0 %v13460, 80
  %v13481 = vpop.permute.xlu0 %13480
  %13482 = vrot.lane.b32.xlu0 %v13461, 80
  %v13483 = vpop.permute.xlu0 %13482
  %13484 = vrot.lane.b32.xlu0 %v13462, 80
  %v13485 = vpop.permute.xlu0 %13484
  %13486 = vrot.lane.b32.xlu0 %v13463, 80
  %v13487 = vpop.permute.xlu0 %13486
  %13488 = vrot.lane.b32.xlu0 %v13464, 80
  %v13489 = vpop.permute.xlu0 %13488
  %13490 = vrot.lane.b32.xlu0 %v13465, 80
  %v13491 = vpop.permute.xlu0 %13490
  %13492 = vrot.lane.b32.xlu0 %v13466, 80
  %v13493 = vpop.permute.xlu0 %13492
  %v13503 = vsel %vm12752, %v13477, 0.0
  %13504 = vadd.xlane.f32.xlu0 %v13503
  %v13505 = vpop.xlane.xlu0 %13504
  %v13506 = vsel %vm12752, %v13479, 0.0
  %13507 = vadd.xlane.f32.xlu0 %v13506
  %v13508 = vpop.xlane.xlu0 %13507
  %v13509 = vsel %vm12752, %v13481, 0.0
  %13510 = vadd.xlane.f32.xlu0 %v13509
  %v13511 = vpop.xlane.xlu0 %13510
  %v13512 = vsel %vm12752, %v13483, 0.0
  %13513 = vadd.xlane.f32.xlu0 %v13512
  %v13514 = vpop.xlane.xlu0 %13513
  %v13515 = vsel %vm12752, %v13485, 0.0
  %13516 = vadd.xlane.f32.xlu0 %v13515
  %v13517 = vpop.xlane.xlu0 %13516
  %v13518 = vsel %vm12752, %v13487, 0.0
  %13519 = vadd.xlane.f32.xlu0 %v13518
  %v13520 = vpop.xlane.xlu0 %13519
  %v13521 = vsel %vm12752, %v13489, 0.0
  %13522 = vadd.xlane.f32.xlu0 %v13521
  %v13523 = vpop.xlane.xlu0 %13522
  %v13524 = vsel %vm12752, %v13491, 0.0
  %13525 = vadd.xlane.f32.xlu0 %v13524
  %v13526 = vpop.xlane.xlu0 %13525
  %v13527 = vsel %vm12923, %v13493, 0.0
  %13528 = vadd.xlane.f32.xlu0 %v13527
  %v13529 = vpop.xlane.xlu0 %13528
  %13530 = vrot.lane.b32.xlu0 %v12742, 56
  %v13531 = vpop.permute.xlu0 %13530
  %13532 = vrot.lane.b32.xlu0 %v12743, 56
  %v13533 = vpop.permute.xlu0 %13532
  %13534 = vrot.lane.b32.xlu0 %v12744, 56
  %v13535 = vpop.permute.xlu0 %13534
  %13536 = vrot.lane.b32.xlu0 %v12745, 56
  %v13537 = vpop.permute.xlu0 %13536
  %13538 = vrot.lane.b32.xlu0 %v12746, 56
  %v13539 = vpop.permute.xlu0 %13538
  %13540 = vrot.lane.b32.xlu0 %v12747, 56
  %v13541 = vpop.permute.xlu0 %13540
  %13542 = vrot.lane.b32.xlu0 %v12748, 56
  %v13543 = vpop.permute.xlu0 %13542
  %13544 = vrot.lane.b32.xlu0 %v12749, 56
  %v13545 = vpop.permute.xlu0 %13544
  %13546 = vrot.lane.b32.xlu0 %v12750, 56
  %v13547 = vpop.permute.xlu0 %13546
  %v13557 = vmul.f32 %v12847, %v13531
  %v13558 = vmul.f32 %v12852, %v13533
  %v13559 = vmul.f32 %v12857, %v13535
  %v13560 = vmul.f32 %v12862, %v13537
  %v13561 = vmul.f32 %v12867, %v13539
  %v13562 = vmul.f32 %v12872, %v13541
  %v13563 = vmul.f32 %v12877, %v13543
  %v13564 = vmul.f32 %v12882, %v13545
  %v13565 = vmul.f32 %v12887, %v13547
  %13575 = vrot.lane.b32.xlu0 %v13557, 72
  %v13576 = vpop.permute.xlu0 %13575
  %13577 = vrot.lane.b32.xlu0 %v13558, 72
  %v13578 = vpop.permute.xlu0 %13577
  %13579 = vrot.lane.b32.xlu0 %v13559, 72
  %v13580 = vpop.permute.xlu0 %13579
  %13581 = vrot.lane.b32.xlu0 %v13560, 72
  %v13582 = vpop.permute.xlu0 %13581
  %13583 = vrot.lane.b32.xlu0 %v13561, 72
  %v13584 = vpop.permute.xlu0 %13583
  %13585 = vrot.lane.b32.xlu0 %v13562, 72
  %v13586 = vpop.permute.xlu0 %13585
  %13587 = vrot.lane.b32.xlu0 %v13563, 72
  %v13588 = vpop.permute.xlu0 %13587
  %13589 = vrot.lane.b32.xlu0 %v13564, 72
  %v13590 = vpop.permute.xlu0 %13589
  %13591 = vrot.lane.b32.xlu0 %v13565, 72
  %v13592 = vpop.permute.xlu0 %13591
  %v13602 = vsel %vm12752, %v13576, 0.0
  %13603 = vadd.xlane.f32.xlu0 %v13602
  %v13604 = vpop.xlane.xlu0 %13603
  %v13605 = vsel %vm12752, %v13578, 0.0
  %13606 = vadd.xlane.f32.xlu0 %v13605
  %v13607 = vpop.xlane.xlu0 %13606
  %v13608 = vsel %vm12752, %v13580, 0.0
  %13609 = vadd.xlane.f32.xlu0 %v13608
  %v13610 = vpop.xlane.xlu0 %13609
  %v13611 = vsel %vm12752, %v13582, 0.0
  %13612 = vadd.xlane.f32.xlu0 %v13611
  %v13613 = vpop.xlane.xlu0 %13612
  %v13614 = vsel %vm12752, %v13584, 0.0
  %13615 = vadd.xlane.f32.xlu0 %v13614
  %v13616 = vpop.xlane.xlu0 %13615
  %v13617 = vsel %vm12752, %v13586, 0.0
  %13618 = vadd.xlane.f32.xlu0 %v13617
  %v13619 = vpop.xlane.xlu0 %13618
  %v13620 = vsel %vm12752, %v13588, 0.0
  %13621 = vadd.xlane.f32.xlu0 %v13620
  %v13622 = vpop.xlane.xlu0 %13621
  %v13623 = vsel %vm12752, %v13590, 0.0
  %13624 = vadd.xlane.f32.xlu0 %v13623
  %v13625 = vpop.xlane.xlu0 %13624
  %v13626 = vsel %vm12923, %v13592, 0.0
  %13627 = vadd.xlane.f32.xlu0 %v13626
  %v13628 = vpop.xlane.xlu0 %13627
  %v13629 = vsel %vm5894, %v12901, %v13010
  %v13630 = vsel %vm5894, %v12904, %v13013
  %v13631 = vsel %vm5894, %v12907, %v13016
  %v13632 = vsel %vm5894, %v12910, %v13019
  %v13633 = vsel %vm5894, %v12913, %v13022
  %v13634 = vsel %vm5894, %v12916, %v13025
  %v13635 = vsel %vm5894, %v12919, %v13028
  %v13636 = vsel %vm5894, %v12922, %v13031
  %v13637 = vsel %vm5894, %v12926, %v13034
  %v13638 = vsel %vm5904, %v13629, %v13109
  %v13639 = vsel %vm5904, %v13630, %v13112
  %v13640 = vsel %vm5904, %v13631, %v13115
  %v13641 = vsel %vm5904, %v13632, %v13118
  %v13642 = vsel %vm5904, %v13633, %v13121
  %v13643 = vsel %vm5904, %v13634, %v13124
  %v13644 = vsel %vm5904, %v13635, %v13127
  %v13645 = vsel %vm5904, %v13636, %v13130
  %v13646 = vsel %vm5904, %v13637, %v13133
  %v13647 = vsel %vm5914, %v13638, %v13208
  %v13648 = vsel %vm5914, %v13639, %v13211
  %v13649 = vsel %vm5914, %v13640, %v13214
  %v13650 = vsel %vm5914, %v13641, %v13217
  %v13651 = vsel %vm5914, %v13642, %v13220
  %v13652 = vsel %vm5914, %v13643, %v13223
  %v13653 = vsel %vm5914, %v13644, %v13226
  %v13654 = vsel %vm5914, %v13645, %v13229
  %v13655 = vsel %vm5914, %v13646, %v13232
  %v13656 = vsel %vm2957, %v13647, %v13307
  %v13657 = vsel %vm2957, %v13648, %v13310
  %v13658 = vsel %vm2957, %v13649, %v13313
  %v13659 = vsel %vm2957, %v13650, %v13316
  %v13660 = vsel %vm2957, %v13651, %v13319
  %v13661 = vsel %vm2957, %v13652, %v13322
  %v13662 = vsel %vm2957, %v13653, %v13325
  %v13663 = vsel %vm2957, %v13654, %v13328
  %v13664 = vsel %vm2957, %v13655, %v13331
  %v13665 = vsel %vm5933, %v13656, %v13406
  %v13666 = vsel %vm5933, %v13657, %v13409
  %v13667 = vsel %vm5933, %v13658, %v13412
  %v13668 = vsel %vm5933, %v13659, %v13415
  %v13669 = vsel %vm5933, %v13660, %v13418
  %v13670 = vsel %vm5933, %v13661, %v13421
  %v13671 = vsel %vm5933, %v13662, %v13424
  %v13672 = vsel %vm5933, %v13663, %v13427
  %v13673 = vsel %vm5933, %v13664, %v13430
  %v13674 = vsel %vm5943, %v13665, %v13505
  %v13675 = vsel %vm5943, %v13666, %v13508
  %v13676 = vsel %vm5943, %v13667, %v13511
  %v13677 = vsel %vm5943, %v13668, %v13514
  %v13678 = vsel %vm5943, %v13669, %v13517
  %v13679 = vsel %vm5943, %v13670, %v13520
  %v13680 = vsel %vm5943, %v13671, %v13523
  %v13681 = vsel %vm5943, %v13672, %v13526
  %v13682 = vsel %vm5943, %v13673, %v13529
  %v13683 = vsel %vm5953, %v13674, %v13604
  %v13684 = vsel %vm5953, %v13675, %v13607
  %v13685 = vsel %vm5953, %v13676, %v13610
  %v13686 = vsel %vm5953, %v13677, %v13613
  %v13687 = vsel %vm5953, %v13678, %v13616
  %v13688 = vsel %vm5953, %v13679, %v13619
  %v13689 = vsel %vm5953, %v13680, %v13622
  %v13690 = vsel %vm5953, %v13681, %v13625
  %v13691 = vsel %vm5953, %v13682, %v13628
  %v13692 = vld [vmem:[%s11] sm:$0xff]
  %v13693 = vld [vmem:[%s12] sm:$0xff]
  %v13694 = vsel %vm12752, %v12742, 0
  %v13696 = vsel %vm12752, %v12743, 0
  %v13698 = vsel %vm12752, %v12744, 0
  %v13700 = vsel %vm12752, %v12745, 0
  %v13702 = vsel %vm12752, %v12746, 0
  %v13704 = vsel %vm12752, %v12747, 0
  %v13706 = vsel %vm12752, %v12748, 0
  %v13708 = vsel %vm12752, %v12749, 0
  %v13710 = vsel %vm12752, %v12750, 0
  %13712 = vmatprep.subr.mxu0 0.0
  %13713 = vmatpush1.msra.mxu0 %v13693
  %13714 = vmatprep.subr.mxu0 0.0
  %13715 = vmatpush1.msra.mxu0 0.0
  %13716 = vmatprep.subr.mxu0 0.0
  %13717 = vmatpush1.msra.mxu0 0.0
  %13718 = vmatprep.subr.mxu0 0.0
  %13719 = vmatpush1.msra.mxu0 0.0
  %13720 = vmatprep.subr.mxu0 0.0
  %13721 = vmatpush1.msra.mxu0 0.0
  %13722 = vmatprep.subr.mxu0 0.0
  %13723 = vmatpush1.msra.mxu0 0.0
  %13724 = vmatprep.subr.mxu0 0.0
  %13725 = vmatpush1.msra.mxu0 0.0
  %13726 = vmatprep.subr.mxu0 0.0
  %13727 = vmatpush1.msra.mxu0 0.0
  %13728 = vmatprep.subr.mxu0 0.0
  %13729 = vmatpush1.msra.mxu0 0.0
  %13730 = vmatprep.subr.mxu0 0.0
  %13731 = vmatpush1.msra.mxu0 0.0
  %13732 = vmatprep.subr.mxu0 0.0
  %13733 = vmatpush1.msra.mxu0 0.0
  %13734 = vmatprep.subr.mxu0 0.0
  %13735 = vmatpush1.msra.mxu0 0.0
  %13736 = vmatprep.subr.mxu0 0.0
  %13737 = vmatpush1.msra.mxu0 0.0
  %13738 = vmatprep.subr.mxu0 0.0
  %13739 = vmatpush1.msra.mxu0 0.0
  %13740 = vmatprep.subr.mxu0 0.0
  %13741 = vmatpush1.msra.mxu0 0.0
  %13742 = vmatprep.subr.mxu0 0.0
  %13743 = vmatpush1.msra.mxu0 0.0
  %13744 = vmatprep.subr.mxu0 0.0
  %13745 = vmatpush1.msra.mxu0 0.0
  %13746 = vmatprep.subr.mxu0 0.0
  %13747 = vmatpush1.msra.mxu0 0.0
  %13748 = vmatprep.subr.mxu0 0.0
  %13749 = vmatpush1.msra.mxu0 0.0
  %13750 = vmatprep.subr.mxu0 0.0
  %13751 = vmatpush1.msra.mxu0 0.0
  %13752 = vmatprep.subr.mxu0 0.0
  %13753 = vmatpush1.msra.mxu0 0.0
  %13754 = vmatprep.subr.mxu0 0.0
  %13755 = vmatpush1.msra.mxu0 0.0
  %13756 = vmatprep.subr.mxu0 0.0
  %13757 = vmatpush1.msra.mxu0 0.0
  %13758 = vmatprep.subr.mxu0 0.0
  %13759 = vmatpush1.msra.mxu0 0.0
  %13760 = vmatprep.subr.mxu0 0.0
  %13761 = vmatpush1.msra.mxu0 0.0
  %13762 = vmatprep.subr.mxu0 0.0
  %13763 = vmatpush1.msra.mxu0 0.0
  %13764 = vmatprep.subr.mxu0 0.0
  %13765 = vmatpush1.msra.mxu0 0.0
  %13766 = vmatprep.subr.mxu0 0.0
  %13767 = vmatpush1.msra.mxu0 0.0
  %13768 = vmatprep.subr.mxu0 0.0
  %13769 = vmatpush1.msra.mxu0 0.0
  %13770 = vmatprep.subr.mxu0 0.0
  %13771 = vmatpush1.msra.mxu0 0.0
  %13772 = vmatprep.subr.mxu0 0.0
  %13773 = vmatpush1.msra.mxu0 0.0
  %13774 = vmatprep.subr.mxu0 0.0
  %13775 = vmatpush1.msra.mxu0 0.0
  %13776 = vmatprep.mubr.f32.mxu0 0.0
  %13777 = vmatmul.mubr.f32.gmra.mrb[0].mxu0 %v13694
  %v13778 = vpop.f32.mrb[0].mxu0
  %v13779 = vadd.f32 0.0, %v13778
  %v13780 = vpop.f32.mrb[0].mxu0
  %13781 = vmatprep.mubr.f32.mxu0 0.0
  %13782 = vmatmul.mubr.f32.gmra.mrb[0].mxu0 %v13696
  %v13783 = vpop.f32.mrb[0].mxu0
  %v13784 = vadd.f32 0.0, %v13783
  %v13785 = vpop.f32.mrb[0].mxu0
  %13786 = vmatprep.mubr.f32.mxu0 0.0
  %13787 = vmatmul.mubr.f32.gmra.mrb[0].mxu0 %v13698
  %v13788 = vpop.f32.mrb[0].mxu0
  %v13789 = vadd.f32 0.0, %v13788
  %v13790 = vpop.f32.mrb[0].mxu0
  %13791 = vmatprep.mubr.f32.mxu0 0.0
  %13792 = vmatmul.mubr.f32.gmra.mrb[0].mxu0 %v13700
  %v13793 = vpop.f32.mrb[0].mxu0
  %v13794 = vadd.f32 0.0, %v13793
  %v13795 = vpop.f32.mrb[0].mxu0
  %13796 = vmatprep.mubr.f32.mxu0 0.0
  %13797 = vmatmul.mubr.f32.gmra.mrb[0].mxu0 %v13702
  %v13798 = vpop.f32.mrb[0].mxu0
  %v13799 = vadd.f32 0.0, %v13798
  %v13800 = vpop.f32.mrb[0].mxu0
  %13801 = vmatprep.mubr.f32.mxu0 0.0
  %13802 = vmatmul.mubr.f32.gmra.mrb[0].mxu0 %v13704
  %v13803 = vpop.f32.mrb[0].mxu0
  %v13804 = vadd.f32 0.0, %v13803
  %v13805 = vpop.f32.mrb[0].mxu0
  %13806 = vmatprep.mubr.f32.mxu0 0.0
  %13807 = vmatmul.mubr.f32.gmra.mrb[0].mxu0 %v13706
  %v13808 = vpop.f32.mrb[0].mxu0
  %v13809 = vadd.f32 0.0, %v13808
  %v13810 = vpop.f32.mrb[0].mxu0
  %13811 = vmatprep.mubr.f32.mxu0 0.0
  %13812 = vmatmul.mubr.f32.gmra.mrb[0].mxu0 %v13708
  %v13813 = vpop.f32.mrb[0].mxu0
  %v13814 = vadd.f32 0.0, %v13813
  %v13815 = vpop.f32.mrb[0].mxu0
  %13816 = vmatprep.mubr.f32.mxu0 0.0
  %13817 = vmatmul.mubr.f32.gmra.mrb[0].mxu0 %v13710
  %v13818 = vpop.f32.mrb[0].mxu0
  %v13819 = vadd.f32 0.0, %v13818
  %v13820 = vpop.f32.mrb[0].mxu0
  %13821 = vdwg.mxu0
  %13822 = vmatprep.subr.mxu0 0.0
  %13823 = vmatpush1.msra.mxu0 %v13692
  %13824 = vmatprep.subr.mxu0 0.0
  %13825 = vmatpush1.msra.mxu0 0.0
  %13826 = vmatprep.subr.mxu0 0.0
  %13827 = vmatpush1.msra.mxu0 0.0
  %13828 = vmatprep.subr.mxu0 0.0
  %13829 = vmatpush1.msra.mxu0 0.0
  %13830 = vmatprep.subr.mxu0 0.0
  %13831 = vmatpush1.msra.mxu0 0.0
  %13832 = vmatprep.subr.mxu0 0.0
  %13833 = vmatpush1.msra.mxu0 0.0
  %13834 = vmatprep.subr.mxu0 0.0
  %13835 = vmatpush1.msra.mxu0 0.0
  %13836 = vmatprep.subr.mxu0 0.0
  %13837 = vmatpush1.msra.mxu0 0.0
  %13838 = vmatprep.subr.mxu0 0.0
  %13839 = vmatpush1.msra.mxu0 0.0
  %13840 = vmatprep.subr.mxu0 0.0
  %13841 = vmatpush1.msra.mxu0 0.0
  %13842 = vmatprep.subr.mxu0 0.0
  %13843 = vmatpush1.msra.mxu0 0.0
  %13844 = vmatprep.subr.mxu0 0.0
  %13845 = vmatpush1.msra.mxu0 0.0
  %13846 = vmatprep.subr.mxu0 0.0
  %13847 = vmatpush1.msra.mxu0 0.0
  %13848 = vmatprep.subr.mxu0 0.0
  %13849 = vmatpush1.msra.mxu0 0.0
  %13850 = vmatprep.subr.mxu0 0.0
  %13851 = vmatpush1.msra.mxu0 0.0
  %13852 = vmatprep.subr.mxu0 0.0
  %13853 = vmatpush1.msra.mxu0 0.0
  %13854 = vmatprep.subr.mxu0 0.0
  %13855 = vmatpush1.msra.mxu0 0.0
  %13856 = vmatprep.subr.mxu0 0.0
  %13857 = vmatpush1.msra.mxu0 0.0
  %13858 = vmatprep.subr.mxu0 0.0
  %13859 = vmatpush1.msra.mxu0 0.0
  %13860 = vmatprep.subr.mxu0 0.0
  %13861 = vmatpush1.msra.mxu0 0.0
  %13862 = vmatprep.subr.mxu0 0.0
  %13863 = vmatpush1.msra.mxu0 0.0
  %13864 = vmatprep.subr.mxu0 0.0
  %13865 = vmatpush1.msra.mxu0 0.0
  %13866 = vmatprep.subr.mxu0 0.0
  %13867 = vmatpush1.msra.mxu0 0.0
  %13868 = vmatprep.subr.mxu0 0.0
  %13869 = vmatpush1.msra.mxu0 0.0
  %13870 = vmatprep.subr.mxu0 0.0
  %13871 = vmatpush1.msra.mxu0 0.0
  %13872 = vmatprep.subr.mxu0 0.0
  %13873 = vmatpush1.msra.mxu0 0.0
  %13874 = vmatprep.subr.mxu0 0.0
  %13875 = vmatpush1.msra.mxu0 0.0
  %13876 = vmatprep.subr.mxu0 0.0
  %13877 = vmatpush1.msra.mxu0 0.0
  %13878 = vmatprep.subr.mxu0 0.0
  %13879 = vmatpush1.msra.mxu0 0.0
  %13880 = vmatprep.subr.mxu0 0.0
  %13881 = vmatpush1.msra.mxu0 0.0
  %13882 = vmatprep.subr.mxu0 0.0
  %13883 = vmatpush1.msra.mxu0 0.0
  %13884 = vmatprep.subr.mxu0 0.0
  %13885 = vmatpush1.msra.mxu0 0.0
  %13886 = vmatprep.mubr.f32.mxu0 0.0
  %13887 = vmatmul.mubr.f32.gmra.mrb[0].mxu0 %v12754
  %v13888 = vpop.f32.mrb[0].mxu0
  %v13889 = vadd.f32 %v13779, %v13888
  %v13890 = vpop.f32.mrb[0].mxu0
  %13891 = vmatprep.mubr.f32.mxu0 0.0
  %13892 = vmatmul.mubr.f32.gmra.mrb[0].mxu0 %v12757
  %v13893 = vpop.f32.mrb[0].mxu0
  %v13894 = vadd.f32 %v13784, %v13893
  %v13895 = vpop.f32.mrb[0].mxu0
  %13896 = vmatprep.mubr.f32.mxu0 0.0
  %13897 = vmatmul.mubr.f32.gmra.mrb[0].mxu0 %v12760
  %v13898 = vpop.f32.mrb[0].mxu0
  %v13899 = vadd.f32 %v13789, %v13898
  %v13900 = vpop.f32.mrb[0].mxu0
  %13901 = vmatprep.mubr.f32.mxu0 0.0
  %13902 = vmatmul.mubr.f32.gmra.mrb[0].mxu0 %v12763
  %v13903 = vpop.f32.mrb[0].mxu0
  %v13904 = vadd.f32 %v13794, %v13903
  %v13905 = vpop.f32.mrb[0].mxu0
  %13906 = vmatprep.mubr.f32.mxu0 0.0
  %13907 = vmatmul.mubr.f32.gmra.mrb[0].mxu0 %v12766
  %v13908 = vpop.f32.mrb[0].mxu0
  %v13909 = vadd.f32 %v13799, %v13908
  %v13910 = vpop.f32.mrb[0].mxu0
  %13911 = vmatprep.mubr.f32.mxu0 0.0
  %13912 = vmatmul.mubr.f32.gmra.mrb[0].mxu0 %v12769
  %v13913 = vpop.f32.mrb[0].mxu0
  %v13914 = vadd.f32 %v13804, %v13913
  %v13915 = vpop.f32.mrb[0].mxu0
  %13916 = vmatprep.mubr.f32.mxu0 0.0
  %13917 = vmatmul.mubr.f32.gmra.mrb[0].mxu0 %v12772
  %v13918 = vpop.f32.mrb[0].mxu0
  %v13919 = vadd.f32 %v13809, %v13918
  %v13920 = vpop.f32.mrb[0].mxu0
  %13921 = vmatprep.mubr.f32.mxu0 0.0
  %13922 = vmatmul.mubr.f32.gmra.mrb[0].mxu0 %v12775
  %v13923 = vpop.f32.mrb[0].mxu0
  %v13924 = vadd.f32 %v13814, %v13923
  %v13925 = vpop.f32.mrb[0].mxu0
  %13926 = vmatprep.mubr.f32.mxu0 0.0
  %13927 = vmatmul.mubr.f32.gmra.mrb[0].mxu0 %v12778
  %v13928 = vpop.f32.mrb[0].mxu0
  %v13929 = vadd.f32 %v13819, %v13928
  %v13930 = vpop.f32.mrb[0].mxu0
  %13931 = vdwg.mxu0
  %v13932 = vld [vmem:[%s13] sm:$0x1]
  %v13934 = vlaneseq
  %v13935 = vshrl.u32 %v13934, 7
  %v13936 = vsub.s32 0, %v13935
  %v13937 = vrot.slane %v13932, %v13936
  %v13939 = vadd.f32 %v13889, %v13937
  %v13940 = vadd.f32 %v13894, %v13937
  %v13941 = vadd.f32 %v13899, %v13937
  %v13942 = vadd.f32 %v13904, %v13937
  %v13943 = vadd.f32 %v13909, %v13937
  %v13944 = vadd.f32 %v13914, %v13937
  %v13945 = vadd.f32 %v13919, %v13937
  %v13946 = vadd.f32 %v13924, %v13937
  %v13947 = vadd.f32 %v13929, %v13937
  %v13948 = vadd.f32 %v13683, %v13939
  %v13949 = vadd.f32 %v13684, %v13940
  %v13950 = vadd.f32 %v13685, %v13941
  %v13951 = vadd.f32 %v13686, %v13942
  %v13952 = vadd.f32 %v13687, %v13943
  %v13953 = vadd.f32 %v13688, %v13944
  %v13954 = vadd.f32 %v13689, %v13945
  %v13955 = vadd.f32 %v13690, %v13946
  %v13956 = vadd.f32 %v13691, %v13947
  %v13957 = vtanh.pop %v13948
  %v13958 = vtanh.pop %v13949
  %v13959 = vtanh.pop %v13950
  %v13960 = vtanh.pop %v13951
  %v13961 = vtanh.pop %v13952
  %v13962 = vtanh.pop %v13953
  %v13963 = vtanh.pop %v13954
  %v13964 = vtanh.pop %v13955
  %v13965 = vtanh.pop %v13956
  %13966 = vst.msk [vmem:[%s14] sm:$0xff] %vm12752, %v13957
  %13967 = vst.msk [vmem:[%s14 + $0x8] sm:$0xff] %vm12752, %v13958
  %13968 = vst.msk [vmem:[%s14 + $0x10] sm:$0xff] %vm12752, %v13959
  %13969 = vst.msk [vmem:[%s14 + $0x18] sm:$0xff] %vm12752, %v13960
  %13970 = vst.msk [vmem:[%s14 + $0x20] sm:$0xff] %vm12752, %v13961
  %13971 = vst.msk [vmem:[%s14 + $0x28] sm:$0xff] %vm12752, %v13962
  %13972 = vst.msk [vmem:[%s14 + $0x30] sm:$0xff] %vm12752, %v13963
  %13973 = vst.msk [vmem:[%s14 + $0x38] sm:$0xff] %vm12752, %v13964
  %13974 = vst.msk [vmem:[%s14 + $0x40] sm:$0x3f] %vm12923, %v13965
  // Predicated region
  $region58: #{ntn_forward.1} parent=0 // pred_check
    _
  $region59: #{ntn_forward.1} parent=0 // pred_check_branch
    %13976 = sbr.rel (0) target = $region61
  $region60: #{ntn_forward.1} parent=0 // pred_region
    _
  $region61: #{ntn_forward.1} parent=0 // pred_fallthru
    _
  // Predicated region
  $region62: #{ntn_forward.1} parent=0 // pred_check
    _
  $region63: #{ntn_forward.1} parent=0 // pred_check_branch
    %13978 = sbr.rel (0) target = $region65
  $region64: #{ntn_forward.1} parent=0 // pred_region
    _
  $region65: #{ntn_forward.1} parent=0 // pred_fallthru
    _

</llo_original>
